<compile_context>
chip_gen: v5e
topology: v5e:2x2
jax: 0.10.0
libtpu: 0.0.40
codegen_flags: <defaults>
</compile_context>

<pallas_src>
import functools
import numpy as np
import jax
import jax.numpy as jnp
from jax import lax
from jax.experimental import pallas as pl
from jax.experimental.pallas import tpu as pltpu


_VMEM_LIMIT = 32 * 1024 * 1024  # explicit scoped-VMEM limit (>= all defaults)


def _cparams(sems):
    return pltpu.CompilerParams(dimension_semantics=sems,
                                vmem_limit_bytes=_VMEM_LIMIT)


def _row_tile(M, cap=1024):
    """Row tile: multiple of 8, >=2 grid steps when possible (v7x has 2 TCs)."""
    if M <= 16:
        return M
    steps = max(2, pl.cdiv(M, cap))
    tm = (pl.cdiv(M, steps) + 7) // 8 * 8
    return min(tm, M)


def _lane_tile(L, n_in, n_out, in_bytes=2, out_bytes=2, budget=4 * 1024 * 1024):
    """Largest multiple of 128 dividing L whose block set fits the byte budget."""
    per_lane = n_in * in_bytes + n_out * out_bytes
    cap = max(128, budget // max(per_lane, 1))
    if L <= cap:
        return L
    t = (cap // 128) * 128
    while t >= 128:
        if L % t == 0:
            return t
        t -= 128
    return L  # fallback: full lane dim (vmem_limit covers the rare large case)


# ----------------------------- Pallas kernels ------------------------------

def _linear_kernel(x_ref, w_ref, b_ref, o_ref, *, relu):
    y = jnp.dot(x_ref[...], w_ref[...], preferred_element_type=jnp.float32)
    y = y + b_ref[...]
    if relu:
        y = jnp.maximum(y, 0.0)
    o_ref[...] = y.astype(o_ref.dtype)


def linear_pallas(x, w, b, *, relu, out_dtype=jnp.bfloat16):
    """relu(x @ w + b) (ReLU optional). bf16 MXU operands, f32 accumulation."""
    M, K = x.shape
    N = w.shape[1]
    tm = _row_tile(M)
    grid = (pl.cdiv(M, tm),)
    kern = functools.partial(_linear_kernel, relu=relu)
    return pl.pallas_call(
        kern,
        out_shape=jax.ShapeDtypeStruct((M, N), out_dtype),
        grid_spec=pltpu.PrefetchScalarGridSpec(
            num_scalar_prefetch=0,
            grid=grid,
            in_specs=[pl.BlockSpec((tm, K), lambda i: (i, 0)),
                      pl.BlockSpec((K, N), lambda i: (0, 0)),
                      pl.BlockSpec((1, N), lambda i: (0, 0))],
            out_specs=pl.BlockSpec((tm, N), lambda i: (i, 0))),
        compiler_params=_cparams(("parallel",)),
    )(x.astype(jnp.bfloat16), w.astype(jnp.bfloat16),
      b.reshape(1, N).astype(jnp.float32))


def _resize_kernel(a_ref, x_ref, o_ref):
    # per-image 1-D bilinear resize along the leading axis: (N_out,N_in)@(N_in,tl)
    o_ref[0] = jnp.dot(a_ref[...], x_ref[0],
                       preferred_element_type=jnp.float32).astype(o_ref.dtype)


def resize_pallas(x, a, out_dtype=jnp.bfloat16):
    """Separable axis resize: x (B, N_in, L) -> (B, N_out, L), out[b] = a @ x[b]."""
    B, N_in, L = x.shape
    N_out = a.shape[0]
    tl = _lane_tile(L, N_in, N_out)
    grid = (B, L // tl)
    return pl.pallas_call(
        _resize_kernel,
        out_shape=jax.ShapeDtypeStruct((B, N_out, L), out_dtype),
        grid_spec=pltpu.PrefetchScalarGridSpec(
            num_scalar_prefetch=0,
            grid=grid,
            in_specs=[pl.BlockSpec((N_out, N_in), lambda b, l: (0, 0)),
                      pl.BlockSpec((1, N_in, tl), lambda b, l: (b, 0, l))],
            out_specs=pl.BlockSpec((1, N_out, tl), lambda b, l: (b, 0, l))),
        compiler_params=_cparams(("parallel", "parallel")),
    )(jnp.asarray(a, jnp.bfloat16), x.astype(jnp.bfloat16))


def _cat_head_kernel(f1_ref, f2_ref, f3_ref, f4_ref,
                     wc_ref, bc_ref, wo_ref, bo_ref, o_ref):
    # in-register 512-channel concat (never materialized in HBM) + ONE K=512
    # MXU dot, then ReLU and the classifier, all in-register.
    x = jnp.concatenate([f1_ref[...], f2_ref[...], f3_ref[...], f4_ref[...]],
                        axis=1)                                   # (tm, 512) bf16
    y = jnp.dot(x, wc_ref[...], preferred_element_type=jnp.float32) + bc_ref[...]
    y = jnp.maximum(y, 0.0)
    z = jnp.dot(y.astype(jnp.bfloat16), wo_ref[...],
                preferred_element_type=jnp.float32) + bo_ref[...]
    o_ref[...] = z.astype(o_ref.dtype)


def cat_head_pallas(feats, cat_w, cat_b, out_w, out_b, out_dtype=jnp.bfloat16):
    """feats: 4x (M, 128); cat_w: (512,128); out_w: (128, Np). -> (M, Np)."""
    # NOTE: feats order is [c1,c2,c3,c4], matching torch.cat in the reference
    # forward (HF pretrained weights would need their 128-row blocks reordered).
    M, C = feats[0].shape
    Np = out_w.shape[1]
    tm = _row_tile(M)
    grid = (pl.cdiv(M, tm),)
    f_bf = [f.astype(jnp.bfloat16) for f in feats]
    in_specs = ([pl.BlockSpec((tm, C), lambda i: (i, 0))] * 4 +
                [pl.BlockSpec((4 * C, C), lambda i: (0, 0)),
                 pl.BlockSpec((1, C), lambda i: (0, 0)),
                 pl.BlockSpec((C, Np), lambda i: (0, 0)),
                 pl.BlockSpec((1, Np), lambda i: (0, 0))])
    return pl.pallas_call(
        _cat_head_kernel,
        out_shape=jax.ShapeDtypeStruct((M, Np), out_dtype),
        grid_spec=pltpu.PrefetchScalarGridSpec(
            num_scalar_prefetch=0,
            grid=grid,
            in_specs=in_specs,
            out_specs=pl.BlockSpec((tm, Np), lambda i: (i, 0))),
        compiler_params=_cparams(("parallel",)),
    )(*f_bf,
      cat_w.astype(jnp.bfloat16),
      cat_b.reshape(1, C).astype(jnp.float32),
      out_w.astype(jnp.bfloat16),
      out_b.reshape(1, Np).astype(jnp.float32))


def _upsample2d_kernel(ah_ref, awt_ref, x_ref, o_ref):
    # fused separable bilinear upsample of one (batch, class) plane:
    #   out = A_h @ X @ A_wT  -- both passes stay in VMEM/registers.
    t = jnp.dot(ah_ref[...], x_ref[0, 0], preferred_element_type=jnp.float32)
    y = jnp.dot(t.astype(jnp.bfloat16), awt_ref[...],
                preferred_element_type=jnp.float32)
    o_ref[0, 0, :, :] = y.astype(o_ref.dtype)


def upsample_nchw_pallas(x, a_h, a_wt, out_dtype=jnp.float32):
    """x: (B, C, H_in, W_in) -> (B, C, H_out, W_out); out[b,c] = a_h @ x[b,c] @ a_wt."""
    B, C, H_in, W_in = x.shape
    H_out = a_h.shape[0]
    W_out = a_wt.shape[1]
    # byte-aware output-row tile (f32 out + f32 intermediate + bf16 A rows)
    budget = 2 * 1024 * 1024
    per_row = 4 * W_out + 4 * W_in + 2 * H_in
    th = max(8, (budget // max(per_row, 1)) // 8 * 8)
    if th >= H_out:
        th = H_out
    grid = (B, C, pl.cdiv(H_out, th))
    return pl.pallas_call(
        _upsample2d_kernel,
        out_shape=jax.ShapeDtypeStruct((B, C, H_out, W_out), out_dtype),
        grid_spec=pltpu.PrefetchScalarGridSpec(
            num_scalar_prefetch=0,
            grid=grid,
            in_specs=[pl.BlockSpec((th, H_in), lambda b, c, h: (h, 0)),
                      pl.BlockSpec((W_in, W_out), lambda b, c, h: (0, 0)),
                      pl.BlockSpec((1, 1, H_in, W_in), lambda b, c, h: (b, c, 0, 0))],
            out_specs=pl.BlockSpec((1, 1, th, W_out), lambda b, c, h: (b, c, h, 0))),
        compiler_params=_cparams(("parallel", "parallel", "parallel")),
    )(jnp.asarray(a_h, jnp.bfloat16), jnp.asarray(a_wt, jnp.bfloat16),
      x.astype(jnp.bfloat16))


# ---------------- bilinear interpolation matrices (PyTorch semantics) -------

@functools.lru_cache(maxsize=None)
def _axis_matrix(n_in, n_out):
    """One axis of nn.Upsample(mode='bilinear', align_corners=False) as (n_out, n_in)."""
    scale = n_in / n_out
    dst = np.arange(n_out, dtype=np.float64)
    src = np.maximum((dst + 0.5) * scale - 0.5, 0.0)
    i0 = np.minimum(np.floor(src).astype(np.int64), n_in - 1)
    i1 = np.minimum(i0 + 1, n_in - 1)
    lam = src - i0
    mat = np.zeros((n_out, n_in), dtype=np.float32)
    mat[np.arange(n_out), i0] += (1.0 - lam)
    mat[np.arange(n_out), i1] += lam
    return mat


# ------------------------ synthetic backbone (glue) -------------------------

def _conv_stage(x_nhwc, w, b, kernel, stride, pad):
    """Strided conv + ReLU via im2col (XLA glue) + the Pallas matmul kernel. NHWC, bf16."""
    patches = lax.conv_general_dilated_patches(
        x_nhwc, (kernel, kernel), (stride, stride),
        ((pad, pad), (pad, pad)),
        dimension_numbers=('NHWC', 'HWIO', 'NHWC'))
    B, Ho, Wo, CK = patches.shape
    y = linear_pallas(patches.reshape(B * Ho * Wo, CK), w, b, relu=True)
    return y.reshape(B, Ho, Wo, w.shape[1])  # NHWC bf16


def synthetic_backbone(x_nhwc, p):
    c1 = _conv_stage(x_nhwc, p['bb1_w'], p['bb1_b'], 7, 4, 3)   # (B, H/4,  W/4,   32)
    c2 = _conv_stage(c1,     p['bb2_w'], p['bb2_b'], 3, 2, 1)   # (B, H/8,  W/8,   64)
    c3 = _conv_stage(c2,     p['bb3_w'], p['bb3_b'], 3, 2, 1)   # (B, H/16, W/16, 160)
    c4 = _conv_stage(c3,     p['bb4_w'], p['bb4_b'], 3, 2, 1)   # (B, H/32, W/32, 256)
    return c1, c2, c3, c4


# ------------------------------- forward ------------------------------------

def segformer_segmentation_forward(x, params, *, num_classes):
    B, _, H, W = x.shape
    H4, W4 = H // 4, W // 4

    # NCHW -> NHWC once, in bf16 (patches never materialized in f32).
    x_nhwc = jnp.transpose(x, (0, 2, 3, 1)).astype(jnp.bfloat16)
    c1, c2, c3, c4 = synthetic_backbone(x_nhwc, params)

    # c1: upsample(scale_factor=1) is the identity -> project only.  W-major
    # row order: c1 (32 ch) is the cheapest tensor to flip so it matches the
    # W-major output of the resize passes below; the fused final upsample
    # consumes CHW logits so nothing downstream depends on this choice.
    c1w = jnp.transpose(c1, (0, 2, 1, 3)).reshape(B * W4 * H4, c1.shape[-1])
    f1 = linear_pallas(c1w, params['lin_c1_w'], params['lin_c1_b'], relu=True)

    feats = [f1]
    for ci, name in ((c2, 'c2'), (c3, 'c3'), (c4, 'c4')):
        _, Hi, Wi, Ci = ci.shape
        y = linear_pallas(ci.reshape(B * Hi * Wi, Ci),
                          params[f'lin_{name}_w'], params[f'lin_{name}_b'],
                          relu=True)                               # (B*Hi*Wi, 128) bf16
        # separable bilinear upsample to (H4, W4): H pass, then W pass (bf16
        # intermediates; the XLA transpose between them stays -- see TODO(3)).
        y = resize_pallas(y.reshape(B, Hi, Wi * 128), _axis_matrix(Hi, H4))
        y = y.reshape(B, H4, Wi, 128).transpose(0, 2, 1, 3)        # (B, Wi, H4, 128)
        y = resize_pallas(y.reshape(B, Wi, H4 * 128), _axis_matrix(Wi, W4))
        feats.append(y.reshape(B * W4 * H4, 128))                  # W-major rows, bf16

    # fused: concat + concat_linear + ReLU + output_linear.  The classifier is
    # applied BEFORE the final 4x upsample (exact: bilinear rows sum to 1) and
    # emits exactly num_classes lanes (no 128-lane padding through the upsample).
    z = cat_head_pallas(feats, params['cat_w'], params['cat_b'],
                        params['out_w'], params['out_b'])          # (B*W4*H4, nc) bf16

    # logits to CHW planes (tiny tensor), then ONE fused kernel performs the
    # separable 4x upsample per (batch, class) plane and writes NCHW directly.
    z = z.reshape(B, W4, H4, num_classes).transpose(0, 3, 2, 1)    # (B, nc, H4, W4)
    out = upsample_nchw_pallas(z, _axis_matrix(H4, H), _axis_matrix(W4, W).T)
    return out                                                     # (B, nc, H, W) f32


# ------------------------------- params --------------------------------------

def init_params(key, num_classes):
    def dense(k, fan_in, fan_out):
        kw, kb = jax.random.split(k)
        w = jax.random.normal(kw, (fan_in, fan_out), jnp.float32) / np.sqrt(fan_in)
        b = jax.random.normal(kb, (fan_out,), jnp.float32) * 0.01
        return w, b

    keys = jax.random.split(key, 10)
    p = {}
    p['bb1_w'], p['bb1_b'] = dense(keys[0], 3 * 7 * 7, 32)
    p['bb2_w'], p['bb2_b'] = dense(keys[1], 32 * 3 * 3, 64)
    p['bb3_w'], p['bb3_b'] = dense(keys[2], 64 * 3 * 3, 160)
    p['bb4_w'], p['bb4_b'] = dense(keys[3], 160 * 3 * 3, 256)
    p['lin_c1_w'], p['lin_c1_b'] = dense(keys[4], 32, 128)
    p['lin_c2_w'], p['lin_c2_b'] = dense(keys[5], 64, 128)
    p['lin_c3_w'], p['lin_c3_b'] = dense(keys[6], 160, 128)
    p['lin_c4_w'], p['lin_c4_b'] = dense(keys[7], 256, 128)
    p['cat_w'], p['cat_b'] = dense(keys[8], 4 * 128, 128)
    p['out_w'], p['out_b'] = dense(keys[9], 128, num_classes)
    return p


# --------------------------------- main ---------------------------------------

if __name__ == "__main__":
    num_classes = 8
    key = jax.random.PRNGKey(0)
    k_x, k_p = jax.random.split(key)

    # small NCHW input (B=2, 3 channels, 64x64) -> output (2, num_classes, 64, 64)
    x = jax.random.normal(k_x, (2, 3, 64, 64), jnp.float32)
    params = init_params(k_p, num_classes)

    fwd = jax.jit(functools.partial(segformer_segmentation_forward,
                                    num_classes=num_classes))
    out = fwd(x, params)
    out = jax.block_until_ready(out)

    assert out.shape == (2, num_classes, 64, 64), out.shape
    assert out.dtype == jnp.float32
    assert bool(jnp.all(jnp.isfinite(out)))
    print("KERNEL_OK")
</pallas_src>

<mosaic_0001>
module attributes {stable_mosaic.version = 11 : i64} {
  func.func @_linear_kernel(%arg0: i32, %arg1: memref<256x147xbf16, #tpu.memory_space<vmem>>, %arg2: memref<147x32xbf16, #tpu.memory_space<vmem>>, %arg3: memref<1x32xf32, #tpu.memory_space<vmem>>, %arg4: memref<256x32xbf16, #tpu.memory_space<vmem>>) attributes {dimension_semantics = [#tpu.dimension_semantics<parallel>], iteration_bounds = array<i64: 2>, scalar_prefetch = 0 : i64, scratch_operands = 0 : i64, tpu.core_type = #tpu.core_type<tc>, window_params = [{transform_indices = @transform_0, window_bounds = array<i64: 256, 147>}, {pipeline_mode = #tpu.pipeline_mode<synchronous>, transform_indices = @transform_1, window_bounds = array<i64: 147, 32>}, {pipeline_mode = #tpu.pipeline_mode<synchronous>, transform_indices = @transform_2, window_bounds = array<i64: 1, 32>}, {transform_indices = @transform_3, window_bounds = array<i64: 256, 32>}]} {
    %c0 = arith.constant 0 : index
    %c0_0 = arith.constant 0 : index
    %0 = vector.load %arg1[%c0, %c0_0] : memref<256x147xbf16, #tpu.memory_space<vmem>>, vector<256x147xbf16>
    %c0_1 = arith.constant 0 : index
    %c0_2 = arith.constant 0 : index
    %1 = vector.load %arg2[%c0_1, %c0_2] : memref<147x32xbf16, #tpu.memory_space<vmem>>, vector<147x32xbf16>
    %cst = arith.constant dense<0.000000e+00> : vector<256x32xf32>
    %2 = tpu.matmul %0, %1, %cst {dimension_numbers = #tpu.dot_dimension_numbers<[1], [0], [0], [1], [0, 0, 1, 1], [], []>} : vector<256x147xbf16>, vector<147x32xbf16>, vector<256x32xf32> -> vector<256x32xf32>
    %c0_3 = arith.constant 0 : index
    %c0_4 = arith.constant 0 : index
    %3 = vector.load %arg3[%c0_3, %c0_4] : memref<1x32xf32, #tpu.memory_space<vmem>>, vector<1x32xf32>
    %4 = vector.broadcast %3 : vector<1x32xf32> to vector<256x32xf32>
    %5 = arith.addf %2, %4 : vector<256x32xf32>
    %cst_5 = arith.constant 0.000000e+00 : f32
    %6 = vector.broadcast %cst_5 : f32 to vector<256x32xf32>
    %7 = arith.maximumf %5, %6 : vector<256x32xf32>
    %8 = arith.truncf %7 : vector<256x32xf32> to vector<256x32xbf16>
    %c0_6 = arith.constant 0 : index
    %c0_7 = arith.constant 0 : index
    %9 = vector.load %arg4[%c0_6, %c0_7] : memref<256x32xbf16, #tpu.memory_space<vmem>>, vector<256x32xbf16>
    tpu.vector_store %arg4[%c0_6, %c0_7], %8 {strides = array<i32>} : memref<256x32xbf16, #tpu.memory_space<vmem>>, vector<256x32xbf16>,
    return
  }
  func.func @transform_0(%arg0: i32) -> (i32, i32) {
    %c0_i32 = arith.constant 0 : i32
    %c0_i32_0 = arith.constant 0 : i32
    return %arg0, %c0_i32 : i32, i32
  }
  func.func @transform_1(%arg0: i32) -> (i32, i32) {
    %c0_i32 = arith.constant 0 : i32
    %c0_i32_0 = arith.constant 0 : i32
    %c0_i32_1 = arith.constant 0 : i32
    return %c0_i32, %c0_i32_0 : i32, i32
  }
  func.func @transform_2(%arg0: i32) -> (i32, i32) {
    %c0_i32 = arith.constant 0 : i32
    %c0_i32_0 = arith.constant 0 : i32
    %c0_i32_1 = arith.constant 0 : i32
    return %c0_i32, %c0_i32_0 : i32, i32
  }
  func.func @transform_3(%arg0: i32) -> (i32, i32) {
    %c0_i32 = arith.constant 0 : i32
    %c0_i32_0 = arith.constant 0 : i32
    return %arg0, %c0_i32 : i32, i32
  }
}

module attributes {stable_mosaic.version = 11 : i64} {
  func.func @_linear_kernel(%arg0: i32, %arg1: memref<256x32xbf16, #tpu.memory_space<vmem>>, %arg2: memref<32x128xbf16, #tpu.memory_space<vmem>>, %arg3: memref<1x128xf32, #tpu.memory_space<vmem>>, %arg4: memref<256x128xbf16, #tpu.memory_space<vmem>>) attributes {dimension_semantics = [#tpu.dimension_semantics<parallel>], iteration_bounds = array<i64: 2>, scalar_prefetch = 0 : i64, scratch_operands = 0 : i64, tpu.core_type = #tpu.core_type<tc>, window_params = [{transform_indices = @transform_0, window_bounds = array<i64: 256, 32>}, {pipeline_mode = #tpu.pipeline_mode<synchronous>, transform_indices = @transform_1, window_bounds = array<i64: 32, 128>}, {pipeline_mode = #tpu.pipeline_mode<synchronous>, transform_indices = @transform_2, window_bounds = array<i64: 1, 128>}, {transform_indices = @transform_3, window_bounds = array<i64: 256, 128>}]} {
    %c0 = arith.constant 0 : index
    %c0_0 = arith.constant 0 : index
    %0 = vector.load %arg1[%c0, %c0_0] : memref<256x32xbf16, #tpu.memory_space<vmem>>, vector<256x32xbf16>
    %c0_1 = arith.constant 0 : index
    %c0_2 = arith.constant 0 : index
    %1 = vector.load %arg2[%c0_1, %c0_2] : memref<32x128xbf16, #tpu.memory_space<vmem>>, vector<32x128xbf16>
    %cst = arith.constant dense<0.000000e+00> : vector<256x128xf32>
    %2 = tpu.matmul %0, %1, %cst {dimension_numbers = #tpu.dot_dimension_numbers<[1], [0], [0], [1], [0, 0, 1, 1], [], []>} : vector<256x32xbf16>, vector<32x128xbf16>, vector<256x128xf32> -> vector<256x128xf32>
    %c0_3 = arith.constant 0 : index
    %c0_4 = arith.constant 0 : index
    %3 = vector.load %arg3[%c0_3, %c0_4] : memref<1x128xf32, #tpu.memory_space<vmem>>, vector<1x128xf32>
    %4 = vector.broadcast %3 : vector<1x128xf32> to vector<256x128xf32>
    %5 = arith.addf %2, %4 : vector<256x128xf32>
    %cst_5 = arith.constant 0.000000e+00 : f32
    %6 = vector.broadcast %cst_5 : f32 to vector<256x128xf32>
    %7 = arith.maximumf %5, %6 : vector<256x128xf32>
    %8 = arith.truncf %7 : vector<256x128xf32> to vector<256x128xbf16>
    %c0_6 = arith.constant 0 : index
    %c0_7 = arith.constant 0 : index
    %9 = vector.load %arg4[%c0_6, %c0_7] : memref<256x128xbf16, #tpu.memory_space<vmem>>, vector<256x128xbf16>
    tpu.vector_store %arg4[%c0_6, %c0_7], %8 {strides = array<i32>} : memref<256x128xbf16, #tpu.memory_space<vmem>>, vector<256x128xbf16>,
    return
  }
  func.func @transform_0(%arg0: i32) -> (i32, i32) {
    %c0_i32 = arith.constant 0 : i32
    %c0_i32_0 = arith.constant 0 : i32
    return %arg0, %c0_i32 : i32, i32
  }
  func.func @transform_1(%arg0: i32) -> (i32, i32) {
    %c0_i32 = arith.constant 0 : i32
    %c0_i32_0 = arith.constant 0 : i32
    %c0_i32_1 = arith.constant 0 : i32
    return %c0_i32, %c0_i32_0 : i32, i32
  }
  func.func @transform_2(%arg0: i32) -> (i32, i32) {
    %c0_i32 = arith.constant 0 : i32
    %c0_i32_0 = arith.constant 0 : i32
    %c0_i32_1 = arith.constant 0 : i32
    return %c0_i32, %c0_i32_0 : i32, i32
  }
  func.func @transform_3(%arg0: i32) -> (i32, i32) {
    %c0_i32 = arith.constant 0 : i32
    %c0_i32_0 = arith.constant 0 : i32
    return %arg0, %c0_i32 : i32, i32
  }
}

module attributes {stable_mosaic.version = 11 : i64} {
  func.func @_linear_kernel(%arg0: i32, %arg1: memref<64x288xbf16, #tpu.memory_space<vmem>>, %arg2: memref<288x64xbf16, #tpu.memory_space<vmem>>, %arg3: memref<1x64xf32, #tpu.memory_space<vmem>>, %arg4: memref<64x64xbf16, #tpu.memory_space<vmem>>) attributes {dimension_semantics = [#tpu.dimension_semantics<parallel>], iteration_bounds = array<i64: 2>, scalar_prefetch = 0 : i64, scratch_operands = 0 : i64, tpu.core_type = #tpu.core_type<tc>, window_params = [{transform_indices = @transform_0, window_bounds = array<i64: 64, 288>}, {pipeline_mode = #tpu.pipeline_mode<synchronous>, transform_indices = @transform_1, window_bounds = array<i64: 288, 64>}, {pipeline_mode = #tpu.pipeline_mode<synchronous>, transform_indices = @transform_2, window_bounds = array<i64: 1, 64>}, {transform_indices = @transform_3, window_bounds = array<i64: 64, 64>}]} {
    %c0 = arith.constant 0 : index
    %c0_0 = arith.constant 0 : index
    %0 = vector.load %arg1[%c0, %c0_0] : memref<64x288xbf16, #tpu.memory_space<vmem>>, vector<64x288xbf16>
    %c0_1 = arith.constant 0 : index
    %c0_2 = arith.constant 0 : index
    %1 = vector.load %arg2[%c0_1, %c0_2] : memref<288x64xbf16, #tpu.memory_space<vmem>>, vector<288x64xbf16>
    %cst = arith.constant dense<0.000000e+00> : vector<64x64xf32>
    %2 = tpu.matmul %0, %1, %cst {dimension_numbers = #tpu.dot_dimension_numbers<[1], [0], [0], [1], [0, 0, 1, 1], [], []>} : vector<64x288xbf16>, vector<288x64xbf16>, vector<64x64xf32> -> vector<64x64xf32>
    %c0_3 = arith.constant 0 : index
    %c0_4 = arith.constant 0 : index
    %3 = vector.load %arg3[%c0_3, %c0_4] : memref<1x64xf32, #tpu.memory_space<vmem>>, vector<1x64xf32>
    %4 = vector.broadcast %3 : vector<1x64xf32> to vector<64x64xf32>
    %5 = arith.addf %2, %4 : vector<64x64xf32>
    %cst_5 = arith.constant 0.000000e+00 : f32
    %6 = vector.broadcast %cst_5 : f32 to vector<64x64xf32>
    %7 = arith.maximumf %5, %6 : vector<64x64xf32>
    %8 = arith.truncf %7 : vector<64x64xf32> to vector<64x64xbf16>
    %c0_6 = arith.constant 0 : index
    %c0_7 = arith.constant 0 : index
    %9 = vector.load %arg4[%c0_6, %c0_7] : memref<64x64xbf16, #tpu.memory_space<vmem>>, vector<64x64xbf16>
    tpu.vector_store %arg4[%c0_6, %c0_7], %8 {strides = array<i32>} : memref<64x64xbf16, #tpu.memory_space<vmem>>, vector<64x64xbf16>,
    return
  }
  func.func @transform_0(%arg0: i32) -> (i32, i32) {
    %c0_i32 = arith.constant 0 : i32
    %c0_i32_0 = arith.constant 0 : i32
    return %arg0, %c0_i32 : i32, i32
  }
  func.func @transform_1(%arg0: i32) -> (i32, i32) {
    %c0_i32 = arith.constant 0 : i32
    %c0_i32_0 = arith.constant 0 : i32
    %c0_i32_1 = arith.constant 0 : i32
    return %c0_i32, %c0_i32_0 : i32, i32
  }
  func.func @transform_2(%arg0: i32) -> (i32, i32) {
    %c0_i32 = arith.constant 0 : i32
    %c0_i32_0 = arith.constant 0 : i32
    %c0_i32_1 = arith.constant 0 : i32
    return %c0_i32, %c0_i32_0 : i32, i32
  }
  func.func @transform_3(%arg0: i32) -> (i32, i32) {
    %c0_i32 = arith.constant 0 : i32
    %c0_i32_0 = arith.constant 0 : i32
    return %arg0, %c0_i32 : i32, i32
  }
}

module attributes {stable_mosaic.version = 11 : i64} {
  func.func @_linear_kernel(%arg0: i32, %arg1: memref<64x64xbf16, #tpu.memory_space<vmem>>, %arg2: memref<64x128xbf16, #tpu.memory_space<vmem>>, %arg3: memref<1x128xf32, #tpu.memory_space<vmem>>, %arg4: memref<64x128xbf16, #tpu.memory_space<vmem>>) attributes {dimension_semantics = [#tpu.dimension_semantics<parallel>], iteration_bounds = array<i64: 2>, scalar_prefetch = 0 : i64, scratch_operands = 0 : i64, tpu.core_type = #tpu.core_type<tc>, window_params = [{transform_indices = @transform_0, window_bounds = array<i64: 64, 64>}, {pipeline_mode = #tpu.pipeline_mode<synchronous>, transform_indices = @transform_1, window_bounds = array<i64: 64, 128>}, {pipeline_mode = #tpu.pipeline_mode<synchronous>, transform_indices = @transform_2, window_bounds = array<i64: 1, 128>}, {transform_indices = @transform_3, window_bounds = array<i64: 64, 128>}]} {
    %c0 = arith.constant 0 : index
    %c0_0 = arith.constant 0 : index
    %0 = vector.load %arg1[%c0, %c0_0] : memref<64x64xbf16, #tpu.memory_space<vmem>>, vector<64x64xbf16>
    %c0_1 = arith.constant 0 : index
    %c0_2 = arith.constant 0 : index
    %1 = vector.load %arg2[%c0_1, %c0_2] : memref<64x128xbf16, #tpu.memory_space<vmem>>, vector<64x128xbf16>
    %cst = arith.constant dense<0.000000e+00> : vector<64x128xf32>
    %2 = tpu.matmul %0, %1, %cst {dimension_numbers = #tpu.dot_dimension_numbers<[1], [0], [0], [1], [0, 0, 1, 1], [], []>} : vector<64x64xbf16>, vector<64x128xbf16>, vector<64x128xf32> -> vector<64x128xf32>
    %c0_3 = arith.constant 0 : index
    %c0_4 = arith.constant 0 : index
    %3 = vector.load %arg3[%c0_3, %c0_4] : memref<1x128xf32, #tpu.memory_space<vmem>>, vector<1x128xf32>
    %4 = vector.broadcast %3 : vector<1x128xf32> to vector<64x128xf32>
    %5 = arith.addf %2, %4 : vector<64x128xf32>
    %cst_5 = arith.constant 0.000000e+00 : f32
    %6 = vector.broadcast %cst_5 : f32 to vector<64x128xf32>
    %7 = arith.maximumf %5, %6 : vector<64x128xf32>
    %8 = arith.truncf %7 : vector<64x128xf32> to vector<64x128xbf16>
    %c0_6 = arith.constant 0 : index
    %c0_7 = arith.constant 0 : index
    %9 = vector.load %arg4[%c0_6, %c0_7] : memref<64x128xbf16, #tpu.memory_space<vmem>>, vector<64x128xbf16>
    tpu.vector_store %arg4[%c0_6, %c0_7], %8 {strides = array<i32>} : memref<64x128xbf16, #tpu.memory_space<vmem>>, vector<64x128xbf16>,
    return
  }
  func.func @transform_0(%arg0: i32) -> (i32, i32) {
    %c0_i32 = arith.constant 0 : i32
    %c0_i32_0 = arith.constant 0 : i32
    return %arg0, %c0_i32 : i32, i32
  }
  func.func @transform_1(%arg0: i32) -> (i32, i32) {
    %c0_i32 = arith.constant 0 : i32
    %c0_i32_0 = arith.constant 0 : i32
    %c0_i32_1 = arith.constant 0 : i32
    return %c0_i32, %c0_i32_0 : i32, i32
  }
  func.func @transform_2(%arg0: i32) -> (i32, i32) {
    %c0_i32 = arith.constant 0 : i32
    %c0_i32_0 = arith.constant 0 : i32
    %c0_i32_1 = arith.constant 0 : i32
    return %c0_i32, %c0_i32_0 : i32, i32
  }
  func.func @transform_3(%arg0: i32) -> (i32, i32) {
    %c0_i32 = arith.constant 0 : i32
    %c0_i32_0 = arith.constant 0 : i32
    return %arg0, %c0_i32 : i32, i32
  }
}

module attributes {stable_mosaic.version = 11 : i64} {
  func.func @_resize_kernel(%arg0: i32, %arg1: i32, %arg2: memref<16x8xbf16, #tpu.memory_space<vmem>>, %arg3: memref<1x8x1024xbf16, #tpu.memory_space<vmem>>, %arg4: memref<1x16x1024xbf16, #tpu.memory_space<vmem>>) attributes {dimension_semantics = [#tpu.dimension_semantics<parallel>, #tpu.dimension_semantics<parallel>], iteration_bounds = array<i64: 2, 1>, scalar_prefetch = 0 : i64, scratch_operands = 0 : i64, tpu.core_type = #tpu.core_type<tc>, window_params = [{pipeline_mode = #tpu.pipeline_mode<synchronous>, transform_indices = @transform_0, window_bounds = array<i64: 16, 8>}, {transform_indices = @transform_1, window_bounds = array<i64: 1, 8, 1024>}, {transform_indices = @transform_2, window_bounds = array<i64: 1, 16, 1024>}]} {
    %c0 = arith.constant 0 : index
    %c0_0 = arith.constant 0 : index
    %0 = vector.load %arg2[%c0, %c0_0] : memref<16x8xbf16, #tpu.memory_space<vmem>>, vector<16x8xbf16>
    %c0_1 = arith.constant 0 : index
    %c0_2 = arith.constant 0 : index
    %c0_3 = arith.constant 0 : index
    %1 = vector.load %arg3[%c0_1, %c0_2, %c0_3] : memref<1x8x1024xbf16, #tpu.memory_space<vmem>>, vector<1x8x1024xbf16>
    %2 = vector.shape_cast %1 : vector<1x8x1024xbf16> to vector<8x1024xbf16>
    %cst = arith.constant dense<0.000000e+00> : vector<16x1024xf32>
    %3 = tpu.matmul %0, %2, %cst {dimension_numbers = #tpu.dot_dimension_numbers<[1], [0], [0], [1], [0, 0, 1, 1], [], []>} : vector<16x8xbf16>, vector<8x1024xbf16>, vector<16x1024xf32> -> vector<16x1024xf32>
    %4 = arith.truncf %3 : vector<16x1024xf32> to vector<16x1024xbf16>
    %c0_4 = arith.constant 0 : index
    %c0_5 = arith.constant 0 : index
    %c0_6 = arith.constant 0 : index
    %5 = vector.load %arg4[%c0_4, %c0_5, %c0_6] : memref<1x16x1024xbf16, #tpu.memory_space<vmem>>, vector<1x16x1024xbf16>
    %6 = vector.shape_cast %5 : vector<1x16x1024xbf16> to vector<16x1024xbf16>
    %7 = vector.shape_cast %4 : vector<16x1024xbf16> to vector<1x16x1024xbf16>
    tpu.vector_store %arg4[%c0_4, %c0_5, %c0_6], %7 {strides = array<i32>} : memref<1x16x1024xbf16, #tpu.memory_space<vmem>>, vector<1x16x1024xbf16>,
    return
  }
  func.func @transform_0(%arg0: i32, %arg1: i32) -> (i32, i32) {
    %c0_i32 = arith.constant 0 : i32
    %c0_i32_0 = arith.constant 0 : i32
    %c0_i32_1 = arith.constant 0 : i32
    return %c0_i32, %c0_i32_0 : i32, i32
  }
  func.func @transform_1(%arg0: i32, %arg1: i32) -> (i32, i32, i32) {
    %c0_i32 = arith.constant 0 : i32
    %c0_i32_0 = arith.constant 0 : i32
    return %arg0, %c0_i32, %arg1 : i32, i32, i32
  }
  func.func @transform_2(%arg0: i32, %arg1: i32) -> (i32, i32, i32) {
    %c0_i32 = arith.constant 0 : i32
    %c0_i32_0 = arith.constant 0 : i32
    return %arg0, %c0_i32, %arg1 : i32, i32, i32
  }
}

module attributes {stable_mosaic.version = 11 : i64} {
  func.func @_resize_kernel(%arg0: i32, %arg1: i32, %arg2: memref<16x8xbf16, #tpu.memory_space<vmem>>, %arg3: memref<1x8x2048xbf16, #tpu.memory_space<vmem>>, %arg4: memref<1x16x2048xbf16, #tpu.memory_space<vmem>>) attributes {dimension_semantics = [#tpu.dimension_semantics<parallel>, #tpu.dimension_semantics<parallel>], iteration_bounds = array<i64: 2, 1>, scalar_prefetch = 0 : i64, scratch_operands = 0 : i64, tpu.core_type = #tpu.core_type<tc>, window_params = [{pipeline_mode = #tpu.pipeline_mode<synchronous>, transform_indices = @transform_0, window_bounds = array<i64: 16, 8>}, {transform_indices = @transform_1, window_bounds = array<i64: 1, 8, 2048>}, {transform_indices = @transform_2, window_bounds = array<i64: 1, 16, 2048>}]} {
    %c0 = arith.constant 0 : index
    %c0_0 = arith.constant 0 : index
    %0 = vector.load %arg2[%c0, %c0_0] : memref<16x8xbf16, #tpu.memory_space<vmem>>, vector<16x8xbf16>
    %c0_1 = arith.constant 0 : index
    %c0_2 = arith.constant 0 : index
    %c0_3 = arith.constant 0 : index
    %1 = vector.load %arg3[%c0_1, %c0_2, %c0_3] : memref<1x8x2048xbf16, #tpu.memory_space<vmem>>, vector<1x8x2048xbf16>
    %2 = vector.shape_cast %1 : vector<1x8x2048xbf16> to vector<8x2048xbf16>
    %cst = arith.constant dense<0.000000e+00> : vector<16x2048xf32>
    %3 = tpu.matmul %0, %2, %cst {dimension_numbers = #tpu.dot_dimension_numbers<[1], [0], [0], [1], [0, 0, 1, 1], [], []>} : vector<16x8xbf16>, vector<8x2048xbf16>, vector<16x2048xf32> -> vector<16x2048xf32>
    %4 = arith.truncf %3 : vector<16x2048xf32> to vector<16x2048xbf16>
    %c0_4 = arith.constant 0 : index
    %c0_5 = arith.constant 0 : index
    %c0_6 = arith.constant 0 : index
    %5 = vector.load %arg4[%c0_4, %c0_5, %c0_6] : memref<1x16x2048xbf16, #tpu.memory_space<vmem>>, vector<1x16x2048xbf16>
    %6 = vector.shape_cast %5 : vector<1x16x2048xbf16> to vector<16x2048xbf16>
    %7 = vector.shape_cast %4 : vector<16x2048xbf16> to vector<1x16x2048xbf16>
    tpu.vector_store %arg4[%c0_4, %c0_5, %c0_6], %7 {strides = array<i32>} : memref<1x16x2048xbf16, #tpu.memory_space<vmem>>, vector<1x16x2048xbf16>,
    return
  }
  func.func @transform_0(%arg0: i32, %arg1: i32) -> (i32, i32) {
    %c0_i32 = arith.constant 0 : i32
    %c0_i32_0 = arith.constant 0 : i32
    %c0_i32_1 = arith.constant 0 : i32
    return %c0_i32, %c0_i32_0 : i32, i32
  }
  func.func @transform_1(%arg0: i32, %arg1: i32) -> (i32, i32, i32) {
    %c0_i32 = arith.constant 0 : i32
    %c0_i32_0 = arith.constant 0 : i32
    return %arg0, %c0_i32, %arg1 : i32, i32, i32
  }
  func.func @transform_2(%arg0: i32, %arg1: i32) -> (i32, i32, i32) {
    %c0_i32 = arith.constant 0 : i32
    %c0_i32_0 = arith.constant 0 : i32
    return %arg0, %c0_i32, %arg1 : i32, i32, i32
  }
}

module attributes {stable_mosaic.version = 11 : i64} {
  func.func @_linear_kernel(%arg0: i32, %arg1: memref<16x576xbf16, #tpu.memory_space<vmem>>, %arg2: memref<576x160xbf16, #tpu.memory_space<vmem>>, %arg3: memref<1x160xf32, #tpu.memory_space<vmem>>, %arg4: memref<16x160xbf16, #tpu.memory_space<vmem>>) attributes {dimension_semantics = [#tpu.dimension_semantics<parallel>], iteration_bounds = array<i64: 2>, scalar_prefetch = 0 : i64, scratch_operands = 0 : i64, tpu.core_type = #tpu.core_type<tc>, window_params = [{transform_indices = @transform_0, window_bounds = array<i64: 16, 576>}, {pipeline_mode = #tpu.pipeline_mode<synchronous>, transform_indices = @transform_1, window_bounds = array<i64: 576, 160>}, {pipeline_mode = #tpu.pipeline_mode<synchronous>, transform_indices = @transform_2, window_bounds = array<i64: 1, 160>}, {transform_indices = @transform_3, window_bounds = array<i64: 16, 160>}]} {
    %c0 = arith.constant 0 : index
    %c0_0 = arith.constant 0 : index
    %0 = vector.load %arg1[%c0, %c0_0] : memref<16x576xbf16, #tpu.memory_space<vmem>>, vector<16x576xbf16>
    %c0_1 = arith.constant 0 : index
    %c0_2 = arith.constant 0 : index
    %1 = vector.load %arg2[%c0_1, %c0_2] : memref<576x160xbf16, #tpu.memory_space<vmem>>, vector<576x160xbf16>
    %cst = arith.constant dense<0.000000e+00> : vector<16x160xf32>
    %2 = tpu.matmul %0, %1, %cst {dimension_numbers = #tpu.dot_dimension_numbers<[1], [0], [0], [1], [0, 0, 1, 1], [], []>} : vector<16x576xbf16>, vector<576x160xbf16>, vector<16x160xf32> -> vector<16x160xf32>
    %c0_3 = arith.constant 0 : index
    %c0_4 = arith.constant 0 : index
    %3 = vector.load %arg3[%c0_3, %c0_4] : memref<1x160xf32, #tpu.memory_space<vmem>>, vector<1x160xf32>
    %4 = vector.broadcast %3 : vector<1x160xf32> to vector<16x160xf32>
    %5 = arith.addf %2, %4 : vector<16x160xf32>
    %cst_5 = arith.constant 0.000000e+00 : f32
    %6 = vector.broadcast %cst_5 : f32 to vector<16x160xf32>
    %7 = arith.maximumf %5, %6 : vector<16x160xf32>
    %8 = arith.truncf %7 : vector<16x160xf32> to vector<16x160xbf16>
    %c0_6 = arith.constant 0 : index
    %c0_7 = arith.constant 0 : index
    %9 = vector.load %arg4[%c0_6, %c0_7] : memref<16x160xbf16, #tpu.memory_space<vmem>>, vector<16x160xbf16>
    tpu.vector_store %arg4[%c0_6, %c0_7], %8 {strides = array<i32>} : memref<16x160xbf16, #tpu.memory_space<vmem>>, vector<16x160xbf16>,
    return
  }
  func.func @transform_0(%arg0: i32) -> (i32, i32) {
    %c0_i32 = arith.constant 0 : i32
    %c0_i32_0 = arith.constant 0 : i32
    return %arg0, %c0_i32 : i32, i32
  }
  func.func @transform_1(%arg0: i32) -> (i32, i32) {
    %c0_i32 = arith.constant 0 : i32
    %c0_i32_0 = arith.constant 0 : i32
    %c0_i32_1 = arith.constant 0 : i32
    return %c0_i32, %c0_i32_0 : i32, i32
  }
  func.func @transform_2(%arg0: i32) -> (i32, i32) {
    %c0_i32 = arith.constant 0 : i32
    %c0_i32_0 = arith.constant 0 : i32
    %c0_i32_1 = arith.constant 0 : i32
    return %c0_i32, %c0_i32_0 : i32, i32
  }
  func.func @transform_3(%arg0: i32) -> (i32, i32) {
    %c0_i32 = arith.constant 0 : i32
    %c0_i32_0 = arith.constant 0 : i32
    return %arg0, %c0_i32 : i32, i32
  }
}

module attributes {stable_mosaic.version = 11 : i64} {
  func.func @_linear_kernel(%arg0: i32, %arg1: memref<16x160xbf16, #tpu.memory_space<vmem>>, %arg2: memref<160x128xbf16, #tpu.memory_space<vmem>>, %arg3: memref<1x128xf32, #tpu.memory_space<vmem>>, %arg4: memref<16x128xbf16, #tpu.memory_space<vmem>>) attributes {dimension_semantics = [#tpu.dimension_semantics<parallel>], iteration_bounds = array<i64: 2>, scalar_prefetch = 0 : i64, scratch_operands = 0 : i64, tpu.core_type = #tpu.core_type<tc>, window_params = [{transform_indices = @transform_0, window_bounds = array<i64: 16, 160>}, {pipeline_mode = #tpu.pipeline_mode<synchronous>, transform_indices = @transform_1, window_bounds = array<i64: 160, 128>}, {pipeline_mode = #tpu.pipeline_mode<synchronous>, transform_indices = @transform_2, window_bounds = array<i64: 1, 128>}, {transform_indices = @transform_3, window_bounds = array<i64: 16, 128>}]} {
    %c0 = arith.constant 0 : index
    %c0_0 = arith.constant 0 : index
    %0 = vector.load %arg1[%c0, %c0_0] : memref<16x160xbf16, #tpu.memory_space<vmem>>, vector<16x160xbf16>
    %c0_1 = arith.constant 0 : index
    %c0_2 = arith.constant 0 : index
    %1 = vector.load %arg2[%c0_1, %c0_2] : memref<160x128xbf16, #tpu.memory_space<vmem>>, vector<160x128xbf16>
    %cst = arith.constant dense<0.000000e+00> : vector<16x128xf32>
    %2 = tpu.matmul %0, %1, %cst {dimension_numbers = #tpu.dot_dimension_numbers<[1], [0], [0], [1], [0, 0, 1, 1], [], []>} : vector<16x160xbf16>, vector<160x128xbf16>, vector<16x128xf32> -> vector<16x128xf32>
    %c0_3 = arith.constant 0 : index
    %c0_4 = arith.constant 0 : index
    %3 = vector.load %arg3[%c0_3, %c0_4] : memref<1x128xf32, #tpu.memory_space<vmem>>, vector<1x128xf32>
    %4 = vector.broadcast %3 : vector<1x128xf32> to vector<16x128xf32>
    %5 = arith.addf %2, %4 : vector<16x128xf32>
    %cst_5 = arith.constant 0.000000e+00 : f32
    %6 = vector.broadcast %cst_5 : f32 to vector<16x128xf32>
    %7 = arith.maximumf %5, %6 : vector<16x128xf32>
    %8 = arith.truncf %7 : vector<16x128xf32> to vector<16x128xbf16>
    %c0_6 = arith.constant 0 : index
    %c0_7 = arith.constant 0 : index
    %9 = vector.load %arg4[%c0_6, %c0_7] : memref<16x128xbf16, #tpu.memory_space<vmem>>, vector<16x128xbf16>
    tpu.vector_store %arg4[%c0_6, %c0_7], %8 {strides = array<i32>} : memref<16x128xbf16, #tpu.memory_space<vmem>>, vector<16x128xbf16>,
    return
  }
  func.func @transform_0(%arg0: i32) -> (i32, i32) {
    %c0_i32 = arith.constant 0 : i32
    %c0_i32_0 = arith.constant 0 : i32
    return %arg0, %c0_i32 : i32, i32
  }
  func.func @transform_1(%arg0: i32) -> (i32, i32) {
    %c0_i32 = arith.constant 0 : i32
    %c0_i32_0 = arith.constant 0 : i32
    %c0_i32_1 = arith.constant 0 : i32
    return %c0_i32, %c0_i32_0 : i32, i32
  }
  func.func @transform_2(%arg0: i32) -> (i32, i32) {
    %c0_i32 = arith.constant 0 : i32
    %c0_i32_0 = arith.constant 0 : i32
    %c0_i32_1 = arith.constant 0 : i32
    return %c0_i32, %c0_i32_0 : i32, i32
  }
  func.func @transform_3(%arg0: i32) -> (i32, i32) {
    %c0_i32 = arith.constant 0 : i32
    %c0_i32_0 = arith.constant 0 : i32
    return %arg0, %c0_i32 : i32, i32
  }
}

module attributes {stable_mosaic.version = 11 : i64} {
  func.func @_resize_kernel(%arg0: i32, %arg1: i32, %arg2: memref<16x4xbf16, #tpu.memory_space<vmem>>, %arg3: memref<1x4x512xbf16, #tpu.memory_space<vmem>>, %arg4: memref<1x16x512xbf16, #tpu.memory_space<vmem>>) attributes {dimension_semantics = [#tpu.dimension_semantics<parallel>, #tpu.dimension_semantics<parallel>], iteration_bounds = array<i64: 2, 1>, scalar_prefetch = 0 : i64, scratch_operands = 0 : i64, tpu.core_type = #tpu.core_type<tc>, window_params = [{pipeline_mode = #tpu.pipeline_mode<synchronous>, transform_indices = @transform_0, window_bounds = array<i64: 16, 4>}, {transform_indices = @transform_1, window_bounds = array<i64: 1, 4, 512>}, {transform_indices = @transform_2, window_bounds = array<i64: 1, 16, 512>}]} {
    %c0 = arith.constant 0 : index
    %c0_0 = arith.constant 0 : index
    %0 = vector.load %arg2[%c0, %c0_0] : memref<16x4xbf16, #tpu.memory_space<vmem>>, vector<16x4xbf16>
    %c0_1 = arith.constant 0 : index
    %c0_2 = arith.constant 0 : index
    %c0_3 = arith.constant 0 : index
    %1 = vector.load %arg3[%c0_1, %c0_2, %c0_3] : memref<1x4x512xbf16, #tpu.memory_space<vmem>>, vector<1x4x512xbf16>
    %2 = vector.shape_cast %1 : vector<1x4x512xbf16> to vector<4x512xbf16>
    %cst = arith.constant dense<0.000000e+00> : vector<16x512xf32>
    %3 = tpu.matmul %0, %2, %cst {dimension_numbers = #tpu.dot_dimension_numbers<[1], [0], [0], [1], [0, 0, 1, 1], [], []>} : vector<16x4xbf16>, vector<4x512xbf16>, vector<16x512xf32> -> vector<16x512xf32>
    %4 = arith.truncf %3 : vector<16x512xf32> to vector<16x512xbf16>
    %c0_4 = arith.constant 0 : index
    %c0_5 = arith.constant 0 : index
    %c0_6 = arith.constant 0 : index
    %5 = vector.load %arg4[%c0_4, %c0_5, %c0_6] : memref<1x16x512xbf16, #tpu.memory_space<vmem>>, vector<1x16x512xbf16>
    %6 = vector.shape_cast %5 : vector<1x16x512xbf16> to vector<16x512xbf16>
    %7 = vector.shape_cast %4 : vector<16x512xbf16> to vector<1x16x512xbf16>
    tpu.vector_store %arg4[%c0_4, %c0_5, %c0_6], %7 {strides = array<i32>} : memref<1x16x512xbf16, #tpu.memory_space<vmem>>, vector<1x16x512xbf16>,
    return
  }
  func.func @transform_0(%arg0: i32, %arg1: i32) -> (i32, i32) {
    %c0_i32 = arith.constant 0 : i32
    %c0_i32_0 = arith.constant 0 : i32
    %c0_i32_1 = arith.constant 0 : i32
    return %c0_i32, %c0_i32_0 : i32, i32
  }
  func.func @transform_1(%arg0: i32, %arg1: i32) -> (i32, i32, i32) {
    %c0_i32 = arith.constant 0 : i32
    %c0_i32_0 = arith.constant 0 : i32
    return %arg0, %c0_i32, %arg1 : i32, i32, i32
  }
  func.func @transform_2(%arg0: i32, %arg1: i32) -> (i32, i32, i32) {
    %c0_i32 = arith.constant 0 : i32
    %c0_i32_0 = arith.constant 0 : i32
    return %arg0, %c0_i32, %arg1 : i32, i32, i32
  }
}

module attributes {stable_mosaic.version = 11 : i64} {
  func.func @_resize_kernel(%arg0: i32, %arg1: i32, %arg2: memref<16x4xbf16, #tpu.memory_space<vmem>>, %arg3: memref<1x4x2048xbf16, #tpu.memory_space<vmem>>, %arg4: memref<1x16x2048xbf16, #tpu.memory_space<vmem>>) attributes {dimension_semantics = [#tpu.dimension_semantics<parallel>, #tpu.dimension_semantics<parallel>], iteration_bounds = array<i64: 2, 1>, scalar_prefetch = 0 : i64, scratch_operands = 0 : i64, tpu.core_type = #tpu.core_type<tc>, window_params = [{pipeline_mode = #tpu.pipeline_mode<synchronous>, transform_indices = @transform_0, window_bounds = array<i64: 16, 4>}, {transform_indices = @transform_1, window_bounds = array<i64: 1, 4, 2048>}, {transform_indices = @transform_2, window_bounds = array<i64: 1, 16, 2048>}]} {
    %c0 = arith.constant 0 : index
    %c0_0 = arith.constant 0 : index
    %0 = vector.load %arg2[%c0, %c0_0] : memref<16x4xbf16, #tpu.memory_space<vmem>>, vector<16x4xbf16>
    %c0_1 = arith.constant 0 : index
    %c0_2 = arith.constant 0 : index
    %c0_3 = arith.constant 0 : index
    %1 = vector.load %arg3[%c0_1, %c0_2, %c0_3] : memref<1x4x2048xbf16, #tpu.memory_space<vmem>>, vector<1x4x2048xbf16>
    %2 = vector.shape_cast %1 : vector<1x4x2048xbf16> to vector<4x2048xbf16>
    %cst = arith.constant dense<0.000000e+00> : vector<16x2048xf32>
    %3 = tpu.matmul %0, %2, %cst {dimension_numbers = #tpu.dot_dimension_numbers<[1], [0], [0], [1], [0, 0, 1, 1], [], []>} : vector<16x4xbf16>, vector<4x2048xbf16>, vector<16x2048xf32> -> vector<16x2048xf32>
    %4 = arith.truncf %3 : vector<16x2048xf32> to vector<16x2048xbf16>
    %c0_4 = arith.constant 0 : index
    %c0_5 = arith.constant 0 : index
    %c0_6 = arith.constant 0 : index
    %5 = vector.load %arg4[%c0_4, %c0_5, %c0_6] : memref<1x16x2048xbf16, #tpu.memory_space<vmem>>, vector<1x16x2048xbf16>
    %6 = vector.shape_cast %5 : vector<1x16x2048xbf16> to vector<16x2048xbf16>
    %7 = vector.shape_cast %4 : vector<16x2048xbf16> to vector<1x16x2048xbf16>
    tpu.vector_store %arg4[%c0_4, %c0_5, %c0_6], %7 {strides = array<i32>} : memref<1x16x2048xbf16, #tpu.memory_space<vmem>>, vector<1x16x2048xbf16>,
    return
  }
  func.func @transform_0(%arg0: i32, %arg1: i32) -> (i32, i32) {
    %c0_i32 = arith.constant 0 : i32
    %c0_i32_0 = arith.constant 0 : i32
    %c0_i32_1 = arith.constant 0 : i32
    return %c0_i32, %c0_i32_0 : i32, i32
  }
  func.func @transform_1(%arg0: i32, %arg1: i32) -> (i32, i32, i32) {
    %c0_i32 = arith.constant 0 : i32
    %c0_i32_0 = arith.constant 0 : i32
    return %arg0, %c0_i32, %arg1 : i32, i32, i32
  }
  func.func @transform_2(%arg0: i32, %arg1: i32) -> (i32, i32, i32) {
    %c0_i32 = arith.constant 0 : i32
    %c0_i32_0 = arith.constant 0 : i32
    return %arg0, %c0_i32, %arg1 : i32, i32, i32
  }
}

module attributes {stable_mosaic.version = 11 : i64} {
  func.func @_linear_kernel(%arg0: i32, %arg1: memref<8x1440xbf16, #tpu.memory_space<vmem>>, %arg2: memref<1440x256xbf16, #tpu.memory_space<vmem>>, %arg3: memref<1x256xf32, #tpu.memory_space<vmem>>, %arg4: memref<8x256xbf16, #tpu.memory_space<vmem>>) attributes {dimension_semantics = [#tpu.dimension_semantics<parallel>], iteration_bounds = array<i64: 1>, scalar_prefetch = 0 : i64, scratch_operands = 0 : i64, tpu.core_type = #tpu.core_type<tc>, window_params = [{transform_indices = @transform_0, window_bounds = array<i64: 8, 1440>}, {pipeline_mode = #tpu.pipeline_mode<synchronous>, transform_indices = @transform_1, window_bounds = array<i64: 1440, 256>}, {pipeline_mode = #tpu.pipeline_mode<synchronous>, transform_indices = @transform_2, window_bounds = array<i64: 1, 256>}, {transform_indices = @transform_3, window_bounds = array<i64: 8, 256>}]} {
    %c0 = arith.constant 0 : index
    %c0_0 = arith.constant 0 : index
    %0 = vector.load %arg1[%c0, %c0_0] : memref<8x1440xbf16, #tpu.memory_space<vmem>>, vector<8x1440xbf16>
    %c0_1 = arith.constant 0 : index
    %c0_2 = arith.constant 0 : index
    %1 = vector.load %arg2[%c0_1, %c0_2] : memref<1440x256xbf16, #tpu.memory_space<vmem>>, vector<1440x256xbf16>
    %cst = arith.constant dense<0.000000e+00> : vector<8x256xf32>
    %2 = tpu.matmul %0, %1, %cst {dimension_numbers = #tpu.dot_dimension_numbers<[1], [0], [0], [1], [0, 0, 1, 1], [], []>} : vector<8x1440xbf16>, vector<1440x256xbf16>, vector<8x256xf32> -> vector<8x256xf32>
    %c0_3 = arith.constant 0 : index
    %c0_4 = arith.constant 0 : index
    %3 = vector.load %arg3[%c0_3, %c0_4] : memref<1x256xf32, #tpu.memory_space<vmem>>, vector<1x256xf32>
    %4 = vector.broadcast %3 : vector<1x256xf32> to vector<8x256xf32>
    %5 = arith.addf %2, %4 : vector<8x256xf32>
    %cst_5 = arith.constant 0.000000e+00 : f32
    %6 = vector.broadcast %cst_5 : f32 to vector<8x256xf32>
    %7 = arith.maximumf %5, %6 : vector<8x256xf32>
    %8 = arith.truncf %7 : vector<8x256xf32> to vector<8x256xbf16>
    %c0_6 = arith.constant 0 : index
    %c0_7 = arith.constant 0 : index
    %9 = vector.load %arg4[%c0_6, %c0_7] : memref<8x256xbf16, #tpu.memory_space<vmem>>, vector<8x256xbf16>
    tpu.vector_store %arg4[%c0_6, %c0_7], %8 {strides = array<i32>} : memref<8x256xbf16, #tpu.memory_space<vmem>>, vector<8x256xbf16>,
    return
  }
  func.func @transform_0(%arg0: i32) -> (i32, i32) {
    %c0_i32 = arith.constant 0 : i32
    %c0_i32_0 = arith.constant 0 : i32
    return %arg0, %c0_i32 : i32, i32
  }
  func.func @transform_1(%arg0: i32) -> (i32, i32) {
    %c0_i32 = arith.constant 0 : i32
    %c0_i32_0 = arith.constant 0 : i32
    %c0_i32_1 = arith.constant 0 : i32
    return %c0_i32, %c0_i32_0 : i32, i32
  }
  func.func @transform_2(%arg0: i32) -> (i32, i32) {
    %c0_i32 = arith.constant 0 : i32
    %c0_i32_0 = arith.constant 0 : i32
    %c0_i32_1 = arith.constant 0 : i32
    return %c0_i32, %c0_i32_0 : i32, i32
  }
  func.func @transform_3(%arg0: i32) -> (i32, i32) {
    %c0_i32 = arith.constant 0 : i32
    %c0_i32_0 = arith.constant 0 : i32
    return %arg0, %c0_i32 : i32, i32
  }
}

module attributes {stable_mosaic.version = 11 : i64} {
  func.func @_linear_kernel(%arg0: i32, %arg1: memref<8x256xbf16, #tpu.memory_space<vmem>>, %arg2: memref<256x128xbf16, #tpu.memory_space<vmem>>, %arg3: memref<1x128xf32, #tpu.memory_space<vmem>>, %arg4: memref<8x128xbf16, #tpu.memory_space<vmem>>) attributes {dimension_semantics = [#tpu.dimension_semantics<parallel>], iteration_bounds = array<i64: 1>, scalar_prefetch = 0 : i64, scratch_operands = 0 : i64, tpu.core_type = #tpu.core_type<tc>, window_params = [{transform_indices = @transform_0, window_bounds = array<i64: 8, 256>}, {pipeline_mode = #tpu.pipeline_mode<synchronous>, transform_indices = @transform_1, window_bounds = array<i64: 256, 128>}, {pipeline_mode = #tpu.pipeline_mode<synchronous>, transform_indices = @transform_2, window_bounds = array<i64: 1, 128>}, {transform_indices = @transform_3, window_bounds = array<i64: 8, 128>}]} {
    %c0 = arith.constant 0 : index
    %c0_0 = arith.constant 0 : index
    %0 = vector.load %arg1[%c0, %c0_0] : memref<8x256xbf16, #tpu.memory_space<vmem>>, vector<8x256xbf16>
    %c0_1 = arith.constant 0 : index
    %c0_2 = arith.constant 0 : index
    %1 = vector.load %arg2[%c0_1, %c0_2] : memref<256x128xbf16, #tpu.memory_space<vmem>>, vector<256x128xbf16>
    %cst = arith.constant dense<0.000000e+00> : vector<8x128xf32>
    %2 = tpu.matmul %0, %1, %cst {dimension_numbers = #tpu.dot_dimension_numbers<[1], [0], [0], [1], [0, 0, 1, 1], [], []>} : vector<8x256xbf16>, vector<256x128xbf16>, vector<8x128xf32> -> vector<8x128xf32>
    %c0_3 = arith.constant 0 : index
    %c0_4 = arith.constant 0 : index
    %3 = vector.load %arg3[%c0_3, %c0_4] : memref<1x128xf32, #tpu.memory_space<vmem>>, vector<1x128xf32>
    %4 = vector.broadcast %3 : vector<1x128xf32> to vector<8x128xf32>
    %5 = arith.addf %2, %4 : vector<8x128xf32>
    %cst_5 = arith.constant 0.000000e+00 : f32
    %6 = vector.broadcast %cst_5 : f32 to vector<8x128xf32>
    %7 = arith.maximumf %5, %6 : vector<8x128xf32>
    %8 = arith.truncf %7 : vector<8x128xf32> to vector<8x128xbf16>
    %c0_6 = arith.constant 0 : index
    %c0_7 = arith.constant 0 : index
    %9 = vector.load %arg4[%c0_6, %c0_7] : memref<8x128xbf16, #tpu.memory_space<vmem>>, vector<8x128xbf16>
    tpu.vector_store %arg4[%c0_6, %c0_7], %8 {strides = array<i32>} : memref<8x128xbf16, #tpu.memory_space<vmem>>, vector<8x128xbf16>,
    return
  }
  func.func @transform_0(%arg0: i32) -> (i32, i32) {
    %c0_i32 = arith.constant 0 : i32
    %c0_i32_0 = arith.constant 0 : i32
    return %arg0, %c0_i32 : i32, i32
  }
  func.func @transform_1(%arg0: i32) -> (i32, i32) {
    %c0_i32 = arith.constant 0 : i32
    %c0_i32_0 = arith.constant 0 : i32
    %c0_i32_1 = arith.constant 0 : i32
    return %c0_i32, %c0_i32_0 : i32, i32
  }
  func.func @transform_2(%arg0: i32) -> (i32, i32) {
    %c0_i32 = arith.constant 0 : i32
    %c0_i32_0 = arith.constant 0 : i32
    %c0_i32_1 = arith.constant 0 : i32
    return %c0_i32, %c0_i32_0 : i32, i32
  }
  func.func @transform_3(%arg0: i32) -> (i32, i32) {
    %c0_i32 = arith.constant 0 : i32
    %c0_i32_0 = arith.constant 0 : i32
    return %arg0, %c0_i32 : i32, i32
  }
}

module attributes {stable_mosaic.version = 11 : i64} {
  func.func @_resize_kernel(%arg0: i32, %arg1: i32, %arg2: memref<16x2xbf16, #tpu.memory_space<vmem>>, %arg3: memref<1x2x256xbf16, #tpu.memory_space<vmem>>, %arg4: memref<1x16x256xbf16, #tpu.memory_space<vmem>>) attributes {dimension_semantics = [#tpu.dimension_semantics<parallel>, #tpu.dimension_semantics<parallel>], iteration_bounds = array<i64: 2, 1>, scalar_prefetch = 0 : i64, scratch_operands = 0 : i64, tpu.core_type = #tpu.core_type<tc>, window_params = [{pipeline_mode = #tpu.pipeline_mode<synchronous>, transform_indices = @transform_0, window_bounds = array<i64: 16, 2>}, {transform_indices = @transform_1, window_bounds = array<i64: 1, 2, 256>}, {transform_indices = @transform_2, window_bounds = array<i64: 1, 16, 256>}]} {
    %c0 = arith.constant 0 : index
    %c0_0 = arith.constant 0 : index
    %0 = vector.load %arg2[%c0, %c0_0] : memref<16x2xbf16, #tpu.memory_space<vmem>>, vector<16x2xbf16>
    %c0_1 = arith.constant 0 : index
    %c0_2 = arith.constant 0 : index
    %c0_3 = arith.constant 0 : index
    %1 = vector.load %arg3[%c0_1, %c0_2, %c0_3] : memref<1x2x256xbf16, #tpu.memory_space<vmem>>, vector<1x2x256xbf16>
    %2 = vector.shape_cast %1 : vector<1x2x256xbf16> to vector<2x256xbf16>
    %cst = arith.constant dense<0.000000e+00> : vector<16x256xf32>
    %3 = tpu.matmul %0, %2, %cst {dimension_numbers = #tpu.dot_dimension_numbers<[1], [0], [0], [1], [0, 0, 1, 1], [], []>} : vector<16x2xbf16>, vector<2x256xbf16>, vector<16x256xf32> -> vector<16x256xf32>
    %4 = arith.truncf %3 : vector<16x256xf32> to vector<16x256xbf16>
    %c0_4 = arith.constant 0 : index
    %c0_5 = arith.constant 0 : index
    %c0_6 = arith.constant 0 : index
    %5 = vector.load %arg4[%c0_4, %c0_5, %c0_6] : memref<1x16x256xbf16, #tpu.memory_space<vmem>>, vector<1x16x256xbf16>
    %6 = vector.shape_cast %5 : vector<1x16x256xbf16> to vector<16x256xbf16>
    %7 = vector.shape_cast %4 : vector<16x256xbf16> to vector<1x16x256xbf16>
    tpu.vector_store %arg4[%c0_4, %c0_5, %c0_6], %7 {strides = array<i32>} : memref<1x16x256xbf16, #tpu.memory_space<vmem>>, vector<1x16x256xbf16>,
    return
  }
  func.func @transform_0(%arg0: i32, %arg1: i32) -> (i32, i32) {
    %c0_i32 = arith.constant 0 : i32
    %c0_i32_0 = arith.constant 0 : i32
    %c0_i32_1 = arith.constant 0 : i32
    return %c0_i32, %c0_i32_0 : i32, i32
  }
  func.func @transform_1(%arg0: i32, %arg1: i32) -> (i32, i32, i32) {
    %c0_i32 = arith.constant 0 : i32
    %c0_i32_0 = arith.constant 0 : i32
    return %arg0, %c0_i32, %arg1 : i32, i32, i32
  }
  func.func @transform_2(%arg0: i32, %arg1: i32) -> (i32, i32, i32) {
    %c0_i32 = arith.constant 0 : i32
    %c0_i32_0 = arith.constant 0 : i32
    return %arg0, %c0_i32, %arg1 : i32, i32, i32
  }
}

module attributes {stable_mosaic.version = 11 : i64} {
  func.func @_resize_kernel(%arg0: i32, %arg1: i32, %arg2: memref<16x2xbf16, #tpu.memory_space<vmem>>, %arg3: memref<1x2x2048xbf16, #tpu.memory_space<vmem>>, %arg4: memref<1x16x2048xbf16, #tpu.memory_space<vmem>>) attributes {dimension_semantics = [#tpu.dimension_semantics<parallel>, #tpu.dimension_semantics<parallel>], iteration_bounds = array<i64: 2, 1>, scalar_prefetch = 0 : i64, scratch_operands = 0 : i64, tpu.core_type = #tpu.core_type<tc>, window_params = [{pipeline_mode = #tpu.pipeline_mode<synchronous>, transform_indices = @transform_0, window_bounds = array<i64: 16, 2>}, {transform_indices = @transform_1, window_bounds = array<i64: 1, 2, 2048>}, {transform_indices = @transform_2, window_bounds = array<i64: 1, 16, 2048>}]} {
    %c0 = arith.constant 0 : index
    %c0_0 = arith.constant 0 : index
    %0 = vector.load %arg2[%c0, %c0_0] : memref<16x2xbf16, #tpu.memory_space<vmem>>, vector<16x2xbf16>
    %c0_1 = arith.constant 0 : index
    %c0_2 = arith.constant 0 : index
    %c0_3 = arith.constant 0 : index
    %1 = vector.load %arg3[%c0_1, %c0_2, %c0_3] : memref<1x2x2048xbf16, #tpu.memory_space<vmem>>, vector<1x2x2048xbf16>
    %2 = vector.shape_cast %1 : vector<1x2x2048xbf16> to vector<2x2048xbf16>
    %cst = arith.constant dense<0.000000e+00> : vector<16x2048xf32>
    %3 = tpu.matmul %0, %2, %cst {dimension_numbers = #tpu.dot_dimension_numbers<[1], [0], [0], [1], [0, 0, 1, 1], [], []>} : vector<16x2xbf16>, vector<2x2048xbf16>, vector<16x2048xf32> -> vector<16x2048xf32>
    %4 = arith.truncf %3 : vector<16x2048xf32> to vector<16x2048xbf16>
    %c0_4 = arith.constant 0 : index
    %c0_5 = arith.constant 0 : index
    %c0_6 = arith.constant 0 : index
    %5 = vector.load %arg4[%c0_4, %c0_5, %c0_6] : memref<1x16x2048xbf16, #tpu.memory_space<vmem>>, vector<1x16x2048xbf16>
    %6 = vector.shape_cast %5 : vector<1x16x2048xbf16> to vector<16x2048xbf16>
    %7 = vector.shape_cast %4 : vector<16x2048xbf16> to vector<1x16x2048xbf16>
    tpu.vector_store %arg4[%c0_4, %c0_5, %c0_6], %7 {strides = array<i32>} : memref<1x16x2048xbf16, #tpu.memory_space<vmem>>, vector<1x16x2048xbf16>,
    return
  }
  func.func @transform_0(%arg0: i32, %arg1: i32) -> (i32, i32) {
    %c0_i32 = arith.constant 0 : i32
    %c0_i32_0 = arith.constant 0 : i32
    %c0_i32_1 = arith.constant 0 : i32
    return %c0_i32, %c0_i32_0 : i32, i32
  }
  func.func @transform_1(%arg0: i32, %arg1: i32) -> (i32, i32, i32) {
    %c0_i32 = arith.constant 0 : i32
    %c0_i32_0 = arith.constant 0 : i32
    return %arg0, %c0_i32, %arg1 : i32, i32, i32
  }
  func.func @transform_2(%arg0: i32, %arg1: i32) -> (i32, i32, i32) {
    %c0_i32 = arith.constant 0 : i32
    %c0_i32_0 = arith.constant 0 : i32
    return %arg0, %c0_i32, %arg1 : i32, i32, i32
  }
}

module attributes {stable_mosaic.version = 11 : i64} {
  func.func @_cat_head_kernel(%arg0: i32, %arg1: memref<256x128xbf16, #tpu.memory_space<vmem>>, %arg2: memref<256x128xbf16, #tpu.memory_space<vmem>>, %arg3: memref<256x128xbf16, #tpu.memory_space<vmem>>, %arg4: memref<256x128xbf16, #tpu.memory_space<vmem>>, %arg5: memref<512x128xbf16, #tpu.memory_space<vmem>>, %arg6: memref<1x128xf32, #tpu.memory_space<vmem>>, %arg7: memref<128x8xbf16, #tpu.memory_space<vmem>>, %arg8: memref<1x8xf32, #tpu.memory_space<vmem>>, %arg9: memref<256x8xbf16, #tpu.memory_space<vmem>>) attributes {dimension_semantics = [#tpu.dimension_semantics<parallel>], iteration_bounds = array<i64: 2>, scalar_prefetch = 0 : i64, scratch_operands = 0 : i64, tpu.core_type = #tpu.core_type<tc>, window_params = [{transform_indices = @transform_0, window_bounds = array<i64: 256, 128>}, {transform_indices = @transform_1, window_bounds = array<i64: 256, 128>}, {transform_indices = @transform_2, window_bounds = array<i64: 256, 128>}, {transform_indices = @transform_3, window_bounds = array<i64: 256, 128>}, {pipeline_mode = #tpu.pipeline_mode<synchronous>, transform_indices = @transform_4, window_bounds = array<i64: 512, 128>}, {pipeline_mode = #tpu.pipeline_mode<synchronous>, transform_indices = @transform_5, window_bounds = array<i64: 1, 128>}, {pipeline_mode = #tpu.pipeline_mode<synchronous>, transform_indices = @transform_6, window_bounds = array<i64: 128, 8>}, {pipeline_mode = #tpu.pipeline_mode<synchronous>, transform_indices = @transform_7, window_bounds = array<i64: 1, 8>}, {transform_indices = @transform_8, window_bounds = array<i64: 256, 8>}]} {
    %c0 = arith.constant 0 : index
    %c0_0 = arith.constant 0 : index
    %0 = vector.load %arg1[%c0, %c0_0] : memref<256x128xbf16, #tpu.memory_space<vmem>>, vector<256x128xbf16>
    %c0_1 = arith.constant 0 : index
    %c0_2 = arith.constant 0 : index
    %1 = vector.load %arg2[%c0_1, %c0_2] : memref<256x128xbf16, #tpu.memory_space<vmem>>, vector<256x128xbf16>
    %c0_3 = arith.constant 0 : index
    %c0_4 = arith.constant 0 : index
    %2 = vector.load %arg3[%c0_3, %c0_4] : memref<256x128xbf16, #tpu.memory_space<vmem>>, vector<256x128xbf16>
    %c0_5 = arith.constant 0 : index
    %c0_6 = arith.constant 0 : index
    %3 = vector.load %arg4[%c0_5, %c0_6] : memref<256x128xbf16, #tpu.memory_space<vmem>>, vector<256x128xbf16>
    %4 = tpu.concatenate %0, %1, %2, %3 in 1 : vector<256x128xbf16>, vector<256x128xbf16>, vector<256x128xbf16>, vector<256x128xbf16> -> vector<256x512xbf16>
    %c0_7 = arith.constant 0 : index
    %c0_8 = arith.constant 0 : index
    %5 = vector.load %arg5[%c0_7, %c0_8] : memref<512x128xbf16, #tpu.memory_space<vmem>>, vector<512x128xbf16>
    %cst = arith.constant dense<0.000000e+00> : vector<256x128xf32>
    %6 = tpu.matmul %4, %5, %cst {dimension_numbers = #tpu.dot_dimension_numbers<[1], [0], [0], [1], [0, 0, 1, 1], [], []>} : vector<256x512xbf16>, vector<512x128xbf16>, vector<256x128xf32> -> vector<256x128xf32>
    %c0_9 = arith.constant 0 : index
    %c0_10 = arith.constant 0 : index
    %7 = vector.load %arg6[%c0_9, %c0_10] : memref<1x128xf32, #tpu.memory_space<vmem>>, vector<1x128xf32>
    %8 = vector.broadcast %7 : vector<1x128xf32> to vector<256x128xf32>
    %9 = arith.addf %6, %8 : vector<256x128xf32>
    %cst_11 = arith.constant 0.000000e+00 : f32
    %10 = vector.broadcast %cst_11 : f32 to vector<256x128xf32>
    %11 = arith.maximumf %9, %10 : vector<256x128xf32>
    %12 = arith.truncf %11 : vector<256x128xf32> to vector<256x128xbf16>
    %c0_12 = arith.constant 0 : index
    %c0_13 = arith.constant 0 : index
    %13 = vector.load %arg7[%c0_12, %c0_13] : memref<128x8xbf16, #tpu.memory_space<vmem>>, vector<128x8xbf16>
    %cst_14 = arith.constant dense<0.000000e+00> : vector<256x8xf32>
    %14 = tpu.matmul %12, %13, %cst_14 {dimension_numbers = #tpu.dot_dimension_numbers<[1], [0], [0], [1], [0, 0, 1, 1], [], []>} : vector<256x128xbf16>, vector<128x8xbf16>, vector<256x8xf32> -> vector<256x8xf32>
    %c0_15 = arith.constant 0 : index
    %c0_16 = arith.constant 0 : index
    %15 = vector.load %arg8[%c0_15, %c0_16] : memref<1x8xf32, #tpu.memory_space<vmem>>, vector<1x8xf32>
    %16 = vector.broadcast %15 : vector<1x8xf32> to vector<256x8xf32>
    %17 = arith.addf %14, %16 : vector<256x8xf32>
    %18 = arith.truncf %17 : vector<256x8xf32> to vector<256x8xbf16>
    %c0_17 = arith.constant 0 : index
    %c0_18 = arith.constant 0 : index
    %19 = vector.load %arg9[%c0_17, %c0_18] : memref<256x8xbf16, #tpu.memory_space<vmem>>, vector<256x8xbf16>
    tpu.vector_store %arg9[%c0_17, %c0_18], %18 {strides = array<i32>} : memref<256x8xbf16, #tpu.memory_space<vmem>>, vector<256x8xbf16>,
    return
  }
  func.func @transform_0(%arg0: i32) -> (i32, i32) {
    %c0_i32 = arith.constant 0 : i32
    %c0_i32_0 = arith.constant 0 : i32
    return %arg0, %c0_i32 : i32, i32
  }
  func.func @transform_1(%arg0: i32) -> (i32, i32) {
    %c0_i32 = arith.constant 0 : i32
    %c0_i32_0 = arith.constant 0 : i32
    return %arg0, %c0_i32 : i32, i32
  }
  func.func @transform_2(%arg0: i32) -> (i32, i32) {
    %c0_i32 = arith.constant 0 : i32
    %c0_i32_0 = arith.constant 0 : i32
    return %arg0, %c0_i32 : i32, i32
  }
  func.func @transform_3(%arg0: i32) -> (i32, i32) {
    %c0_i32 = arith.constant 0 : i32
    %c0_i32_0 = arith.constant 0 : i32
    return %arg0, %c0_i32 : i32, i32
  }
  func.func @transform_4(%arg0: i32) -> (i32, i32) {
    %c0_i32 = arith.constant 0 : i32
    %c0_i32_0 = arith.constant 0 : i32
    %c0_i32_1 = arith.constant 0 : i32
    return %c0_i32, %c0_i32_0 : i32, i32
  }
  func.func @transform_5(%arg0: i32) -> (i32, i32) {
    %c0_i32 = arith.constant 0 : i32
    %c0_i32_0 = arith.constant 0 : i32
    %c0_i32_1 = arith.constant 0 : i32
    return %c0_i32, %c0_i32_0 : i32, i32
  }
  func.func @transform_6(%arg0: i32) -> (i32, i32) {
    %c0_i32 = arith.constant 0 : i32
    %c0_i32_0 = arith.constant 0 : i32
    %c0_i32_1 = arith.constant 0 : i32
    return %c0_i32, %c0_i32_0 : i32, i32
  }
  func.func @transform_7(%arg0: i32) -> (i32, i32) {
    %c0_i32 = arith.constant 0 : i32
    %c0_i32_0 = arith.constant 0 : i32
    %c0_i32_1 = arith.constant 0 : i32
    return %c0_i32, %c0_i32_0 : i32, i32
  }
  func.func @transform_8(%arg0: i32) -> (i32, i32) {
    %c0_i32 = arith.constant 0 : i32
    %c0_i32_0 = arith.constant 0 : i32
    return %arg0, %c0_i32 : i32, i32
  }
}

module attributes {stable_mosaic.version = 11 : i64} {
  func.func @_upsample2d_kernel(%arg0: i32, %arg1: i32, %arg2: i32, %arg3: memref<64x16xbf16, #tpu.memory_space<vmem>>, %arg4: memref<16x64xbf16, #tpu.memory_space<vmem>>, %arg5: memref<1x1x16x16xbf16, #tpu.memory_space<vmem>>, %arg6: memref<1x1x64x64xf32, #tpu.memory_space<vmem>>) attributes {dimension_semantics = [#tpu.dimension_semantics<parallel>, #tpu.dimension_semantics<parallel>, #tpu.dimension_semantics<parallel>], iteration_bounds = array<i64: 2, 8, 1>, scalar_prefetch = 0 : i64, scratch_operands = 0 : i64, tpu.core_type = #tpu.core_type<tc>, window_params = [{transform_indices = @transform_0, window_bounds = array<i64: 64, 16>}, {pipeline_mode = #tpu.pipeline_mode<synchronous>, transform_indices = @transform_1, window_bounds = array<i64: 16, 64>}, {transform_indices = @transform_2, window_bounds = array<i64: 1, 1, 16, 16>}, {transform_indices = @transform_3, window_bounds = array<i64: 1, 1, 64, 64>}]} {
    %c0 = arith.constant 0 : index
    %c0_0 = arith.constant 0 : index
    %0 = vector.load %arg3[%c0, %c0_0] : memref<64x16xbf16, #tpu.memory_space<vmem>>, vector<64x16xbf16>
    %c0_1 = arith.constant 0 : index
    %c0_2 = arith.constant 0 : index
    %c0_3 = arith.constant 0 : index
    %c0_4 = arith.constant 0 : index
    %1 = vector.load %arg5[%c0_1, %c0_2, %c0_3, %c0_4] : memref<1x1x16x16xbf16, #tpu.memory_space<vmem>>, vector<1x1x16x16xbf16>
    %2 = vector.shape_cast %1 : vector<1x1x16x16xbf16> to vector<16x16xbf16>
    %cst = arith.constant dense<0.000000e+00> : vector<64x16xf32>
    %3 = tpu.matmul %0, %2, %cst {dimension_numbers = #tpu.dot_dimension_numbers<[1], [0], [0], [1], [0, 0, 1, 1], [], []>} : vector<64x16xbf16>, vector<16x16xbf16>, vector<64x16xf32> -> vector<64x16xf32>
    %4 = arith.truncf %3 : vector<64x16xf32> to vector<64x16xbf16>
    %c0_5 = arith.constant 0 : index
    %c0_6 = arith.constant 0 : index
    %5 = vector.load %arg4[%c0_5, %c0_6] : memref<16x64xbf16, #tpu.memory_space<vmem>>, vector<16x64xbf16>
    %cst_7 = arith.constant dense<0.000000e+00> : vector<64x64xf32>
    %6 = tpu.matmul %4, %5, %cst_7 {dimension_numbers = #tpu.dot_dimension_numbers<[1], [0], [0], [1], [0, 0, 1, 1], [], []>} : vector<64x16xbf16>, vector<16x64xbf16>, vector<64x64xf32> -> vector<64x64xf32>
    %c0_8 = arith.constant 0 : index
    %c0_9 = arith.constant 0 : index
    %c0_10 = arith.constant 0 : index
    %c0_11 = arith.constant 0 : index
    %7 = vector.load %arg6[%c0_8, %c0_9, %c0_10, %c0_11] : memref<1x1x64x64xf32, #tpu.memory_space<vmem>>, vector<1x1x64x64xf32>
    %8 = vector.shape_cast %7 : vector<1x1x64x64xf32> to vector<64x64xf32>
    %9 = vector.shape_cast %6 : vector<64x64xf32> to vector<1x1x64x64xf32>
    tpu.vector_store %arg6[%c0_8, %c0_9, %c0_10, %c0_11], %9 {strides = array<i32>} : memref<1x1x64x64xf32, #tpu.memory_space<vmem>>, vector<1x1x64x64xf32>,
    return
  }
  func.func @transform_0(%arg0: i32, %arg1: i32, %arg2: i32) -> (i32, i32) {
    %c0_i32 = arith.constant 0 : i32
    %c0_i32_0 = arith.constant 0 : i32
    return %arg2, %c0_i32 : i32, i32
  }
  func.func @transform_1(%arg0: i32, %arg1: i32, %arg2: i32) -> (i32, i32) {
    %c0_i32 = arith.constant 0 : i32
    %c0_i32_0 = arith.constant 0 : i32
    %c0_i32_1 = arith.constant 0 : i32
    return %c0_i32, %c0_i32_0 : i32, i32
  }
  func.func @transform_2(%arg0: i32, %arg1: i32, %arg2: i32) -> (i32, i32, i32, i32) {
    %c0_i32 = arith.constant 0 : i32
    %c0_i32_0 = arith.constant 0 : i32
    %c0_i32_1 = arith.constant 0 : i32
    return %arg0, %arg1, %c0_i32, %c0_i32_0 : i32, i32, i32, i32
  }
  func.func @transform_3(%arg0: i32, %arg1: i32, %arg2: i32) -> (i32, i32, i32, i32) {
    %c0_i32 = arith.constant 0 : i32
    %c0_i32_0 = arith.constant 0 : i32
    return %arg0, %arg1, %arg2, %c0_i32 : i32, i32, i32, i32
  }
}

</mosaic_0001>

<llo_original>
// kernel: segformer_segmentation_forward.20
$region0: #{segformer_segmentation_forward.20}
  #allocation0 [shape = 'u32[]', space=smem, size = 0x4, offset = 0x4, fixed_abs, tag = 'smem constant byte address 0x4 - core index']
  #allocation1 [shape = 'u32[72,128]{1,0:T(1,128)}', space=vmem, size = 0x9000, scoped, tag = 'internal scratch']
  %s0 = inlined_call_operand.vmem [shape: bf16[512,32], index: 0, kind: input, shape index: {}]
  %s1 = inlined_call_operand.vmem [shape: bf16[32,128], index: 1, kind: input, shape index: {}]
  %s2 = inlined_call_operand.vmem [shape: f32[1,128], index: 2, kind: input, shape index: {}]
  %s3 = inlined_call_operand.vmem [shape: bf16[512,128], index: 3, kind: output, shape index: {}]
  %s4 = sld [smem:[#allocation0]]
  $region45: #{segformer_segmentation_forward.20} parent=0
    _
  %s6 = ssub.s32 1, %s4
  %s7 = scalar_select 0, %s6, %s4
  loop: start=0, step=1, limit=4
  $region2: #{segformer_segmentation_forward.20} parent=0 // loop_pre_header
    _
  $region3: #{segformer_segmentation_forward.20} parent=0 // loop_header
    %s9 = sphi 0, %s13
    %p10 = scmp.ge.s32.totalorder %s9, 4
    %s19 = sphi 0, %s21
    %s22 = sphi 0, %s19
    %s23 = sphi 0, %s22
    %s39 = sphi 0, %s23
    %s43 = sphi 0, %s43
    %s45 = sphi 0, %s43
    %s46 = sphi 0, %s45
    %s60 = sphi 0, %s46
    %s64 = sphi 0, %s64
    %s66 = sphi 0, %s64
    %s67 = sphi 0, %s66
    %s81 = sphi 0, %s67
    %s87 = sphi 0, %s89
    %s90 = sphi 0, %s87
    %s91 = sphi 0, %s90
    %s107 = sphi 0, %s91
  $region4: #{segformer_segmentation_forward.20} parent=0 // loop_header_branch
    %12 = sbr.rel (%p10) target = $region8
  $region5: #{segformer_segmentation_forward.20} parent=0 // loop_body
    %s14 = ssub.s32 %s9, 1
    %s15 = ssub.s32 %s9, 2
    %s16 = sadd.s32 %s9, 1
    %s17 = ssub.s32 %s9, %s16
    %p18 = scmp.eq.s32.totalorder %s17, 0
    %s20 = sadd.s32 %s19, 1
    %s21 = scalar_select %p18, %s19, %s20
    %p24 = pneg %p18
    %p25 = scmp.eq.s32.totalorder %s9, 1
    %p26 = por %p24, %p25
    %p27 = scmp.ne.s32.totalorder %s19, %s22
    %p28 = scmp.eq.s32.totalorder %s9, 0
    %p29 = por %p27, %p28
    %p30 = scmp.ne.s32.totalorder %s19, %s22
    %p31 = scmp.eq.s32.totalorder %s14, 1
    %p32 = por %p30, %p31
    %p33 = scmp.ne.s32.totalorder %s22, %s23
    %p34 = scmp.eq.s32.totalorder %s14, 0
    %p35 = por %p33, %p34
    %p36 = scmp.ne.s32.totalorder %s22, %s23
    %p37 = scmp.eq.s32.totalorder %s15, 1
    %p38 = por %p36, %p37
    %p40 = scmp.ne.s32.totalorder %s23, %s39
    %p41 = scmp.eq.s32.totalorder %s15, 0
    %p42 = por %p40, %p41
    %s44 = sadd.s32 %s43, 1
    %p47 = scmp.eq.s32.totalorder %s9, 1
    %p48 = scmp.ne.s32.totalorder %s43, %s45
    %p49 = scmp.eq.s32.totalorder %s9, 0
    %p50 = por %p48, %p49
    %p51 = scmp.ne.s32.totalorder %s43, %s45
    %p52 = scmp.eq.s32.totalorder %s14, 1
    %p53 = por %p51, %p52
    %p54 = scmp.ne.s32.totalorder %s45, %s46
    %p55 = scmp.eq.s32.totalorder %s14, 0
    %p56 = por %p54, %p55
    %p57 = scmp.ne.s32.totalorder %s45, %s46
    %p58 = scmp.eq.s32.totalorder %s15, 1
    %p59 = por %p57, %p58
    %p61 = scmp.ne.s32.totalorder %s46, %s60
    %p62 = scmp.eq.s32.totalorder %s15, 0
    %p63 = por %p61, %p62
    %s65 = sadd.s32 %s64, 1
    %p68 = scmp.eq.s32.totalorder %s9, 1
    %p69 = scmp.ne.s32.totalorder %s64, %s66
    %p70 = scmp.eq.s32.totalorder %s9, 0
    %p71 = por %p69, %p70
    %p72 = scmp.ne.s32.totalorder %s64, %s66
    %p73 = scmp.eq.s32.totalorder %s14, 1
    %p74 = por %p72, %p73
    %p75 = scmp.ne.s32.totalorder %s66, %s67
    %p76 = scmp.eq.s32.totalorder %s14, 0
    %p77 = por %p75, %p76
    %p78 = scmp.ne.s32.totalorder %s66, %s67
    %p79 = scmp.eq.s32.totalorder %s15, 1
    %p80 = por %p78, %p79
    %p82 = scmp.ne.s32.totalorder %s67, %s81
    %p83 = scmp.eq.s32.totalorder %s15, 0
    %p84 = por %p82, %p83
    %s85 = ssub.s32 %s9, %s16
    %p86 = scmp.eq.s32.totalorder %s85, 0
    %s88 = sadd.s32 %s87, 1
    %s89 = scalar_select %p86, %s87, %s88
    %p92 = pneg %p86
    %p93 = scmp.eq.s32.totalorder %s9, 1
    %p94 = por %p92, %p93
    %p95 = scmp.ne.s32.totalorder %s87, %s90
    %p96 = scmp.eq.s32.totalorder %s9, 0
    %p97 = por %p95, %p96
    %p98 = scmp.ne.s32.totalorder %s87, %s90
    %p99 = scmp.eq.s32.totalorder %s14, 1
    %p100 = por %p98, %p99
    %p101 = scmp.ne.s32.totalorder %s90, %s91
    %p102 = scmp.eq.s32.totalorder %s14, 0
    %p103 = por %p101, %p102
    %p104 = scmp.ne.s32.totalorder %s90, %s91
    %p105 = scmp.eq.s32.totalorder %s15, 1
    %p106 = por %p104, %p105
    %p108 = scmp.ne.s32.totalorder %s91, %s107
    %p109 = scmp.eq.s32.totalorder %s15, 0
    %p110 = por %p108, %p109
    %p111 = scmp.le.s32.totalorder 1, %s9
    %p112 = scmp.lt.s32.totalorder %s9, 3
    %p113 = pnand %p111, %p112
    %p114 = pneg %p113
    // Predicated region
    $region9: #{segformer_segmentation_forward.20} parent=5 // pred_check
      _
    $region10: #{segformer_segmentation_forward.20} parent=5 // pred_check_branch
      %116 = sbr.rel (%p113) target = $region12
    $region11: #{segformer_segmentation_forward.20} parent=5 // pred_region
      %s117 = ssub.s32 %s9, 1
      // Predicated region
      $region13: #{segformer_segmentation_forward.20} parent=11 // pred_check
        %p118 = pneg %p56
      $region14: #{segformer_segmentation_forward.20} parent=11 // pred_check_branch
        %120 = sbr.rel (%p118) target = $region16
      $region15: #{segformer_segmentation_forward.20} parent=11 // pred_region
        _
      $region16: #{segformer_segmentation_forward.20} parent=11 // pred_fallthru
        _
      // Predicated region
      $region17: #{segformer_segmentation_forward.20} parent=11 // pred_check
        %p121 = pneg %p77
      $region18: #{segformer_segmentation_forward.20} parent=11 // pred_check_branch
        %123 = sbr.rel (%p121) target = $region20
      $region19: #{segformer_segmentation_forward.20} parent=11 // pred_region
        _
      $region20: #{segformer_segmentation_forward.20} parent=11 // pred_fallthru
        _
    $region12: #{segformer_segmentation_forward.20} parent=5 // pred_fallthru
      _
    %p124 = scmp.lt.s32.totalorder %s9, 2
    // Predicated region
    $region21: #{segformer_segmentation_forward.20} parent=5 // pred_check
      %p125 = pneg %p124
    $region22: #{segformer_segmentation_forward.20} parent=5 // pred_check_branch
      %127 = sbr.rel (%p125) target = $region24
    $region23: #{segformer_segmentation_forward.20} parent=5 // pred_region
      // Predicated region
      $region25: #{segformer_segmentation_forward.20} parent=23 // pred_check
        %p128 = pneg %p29
      $region26: #{segformer_segmentation_forward.20} parent=23 // pred_check_branch
        %130 = sbr.rel (%p128) target = $region28
      $region27: #{segformer_segmentation_forward.20} parent=23 // pred_region
        %s131 = smul.u32 32, %s9
        %p132 = scmp.lt.s32.totalorder %s131, 63
        %s133 = scalar_select %p132, %s131, 63
        %s134 = smul.addr %s133, 4
        %s135 = scalar_lea.vmem %s0, %s134
        %s136 = smul.u32 32, %s9
      $region28: #{segformer_segmentation_forward.20} parent=23 // pred_fallthru
        _
    $region24: #{segformer_segmentation_forward.20} parent=5 // pred_fallthru
      _
    %p137 = scmp.le.s32.totalorder 1, %s9
    %p138 = scmp.lt.s32.totalorder %s9, 3
    %p139 = pnand %p137, %p138
    %p140 = pneg %p139
    // Predicated region
    $region29: #{segformer_segmentation_forward.20} parent=5 // pred_check
      _
    $region30: #{segformer_segmentation_forward.20} parent=5 // pred_check_branch
      %142 = sbr.rel (%p139) target = $region32
    $region31: #{segformer_segmentation_forward.20} parent=5 // pred_region
      %s143 = ssub.s32 %s9, 1
      %s144 = smul.u32 32, %s14
      %p145 = scmp.lt.s32.totalorder %s144, 63
      %s146 = scalar_select %p145, %s144, 63
      %s147 = smul.addr %s146, 4
      %s148 = scalar_lea.vmem %s0, %s147
      %p149 = pneg %p35
      %p150 = pneg %p32
      %p151 = pneg %p56
      %p152 = pneg %p53
      %p153 = pneg %p77
      %p154 = pneg %p74
      %p155 = pneg %p103
      %p156 = pneg %p100
      %s157 = smul.u32 32, %s14
      %p158 = scmp.lt.s32.totalorder %s157, 63
      %s159 = scalar_select %p158, %s157, 63
      %s160 = smul.addr %s159, 4
      %s161 = scalar_lea.vmem %s3, %s160
      %s162 = smul.u32 32, %s14
      %p163 = scmp.lt.s32.totalorder %s162, 63
      %s164 = scalar_select %p163, %s162, 63
      %s165 = smul.addr %s164, 4
      %s166 = scalar_lea.vmem %s0, %s165
      %s167 = smul.u32 32, %s14
      %s168 = smul.u32 32, %s14
      %p169 = scmp.lt.s32.totalorder %s168, 63
      %s170 = scalar_select %p169, %s168, 63
      %s171 = smul.addr %s170, 4
      %s172 = scalar_lea.vmem %s3, %s171
      %s173 = smul.u32 32, %s14
      %v175 = vld [vmem:[%s166] sm:$0xf]
      %v176 = vld [vmem:[%s166 + $0x4] sm:$0xf]
      %v177 = vld [vmem:[%s166 + $0x8] sm:$0xf]
      %v178 = vld [vmem:[%s166 + $0xc] sm:$0xf]
      %v179 = vld [vmem:[%s166 + $0x10] sm:$0xf]
      %v180 = vld [vmem:[%s166 + $0x14] sm:$0xf]
      %v181 = vld [vmem:[%s166 + $0x18] sm:$0xf]
      %v182 = vld [vmem:[%s166 + $0x1c] sm:$0xf]
      %v183 = vld [vmem:[%s166 + $0x20] sm:$0xf]
      %v184 = vld [vmem:[%s166 + $0x24] sm:$0xf]
      %v185 = vld [vmem:[%s166 + $0x28] sm:$0xf]
      %v186 = vld [vmem:[%s166 + $0x2c] sm:$0xf]
      %v187 = vld [vmem:[%s166 + $0x30] sm:$0xf]
      %v188 = vld [vmem:[%s166 + $0x34] sm:$0xf]
      %v189 = vld [vmem:[%s166 + $0x38] sm:$0xf]
      %v190 = vld [vmem:[%s166 + $0x3c] sm:$0xf]
      %v191 = vld [vmem:[%s166 + $0x40] sm:$0xf]
      %v192 = vld [vmem:[%s166 + $0x44] sm:$0xf]
      %v193 = vld [vmem:[%s166 + $0x48] sm:$0xf]
      %v194 = vld [vmem:[%s166 + $0x4c] sm:$0xf]
      %v195 = vld [vmem:[%s166 + $0x50] sm:$0xf]
      %v196 = vld [vmem:[%s166 + $0x54] sm:$0xf]
      %v197 = vld [vmem:[%s166 + $0x58] sm:$0xf]
      %v198 = vld [vmem:[%s166 + $0x5c] sm:$0xf]
      %v199 = vld [vmem:[%s166 + $0x60] sm:$0xf]
      %v200 = vld [vmem:[%s166 + $0x64] sm:$0xf]
      %v201 = vld [vmem:[%s166 + $0x68] sm:$0xf]
      %v202 = vld [vmem:[%s166 + $0x6c] sm:$0xf]
      %v203 = vld [vmem:[%s166 + $0x70] sm:$0xf]
      %v204 = vld [vmem:[%s166 + $0x74] sm:$0xf]
      %v205 = vld [vmem:[%s166 + $0x78] sm:$0xf]
      %v206 = vld [vmem:[%s166 + $0x7c] sm:$0xf]
      %v207 = vld [vmem:[%s1] sm:$0xf]
      %v208 = vld [vmem:[%s1 + $0x4] sm:$0xf]
      %v209 = vld [vmem:[%s1 + $0x8] sm:$0xf]
      %v210 = vld [vmem:[%s1 + $0xc] sm:$0xf]
      %v211 = vld [vmem:[%s2] sm:$0x1]
      %v213 = vperm.slane %v211, 0
      %v247 = vunpack.c.l.b16 %v175
      %v248 = vunpack.c.l.b16 %v176
      %v249 = vunpack.c.l.b16 %v177
      %v250 = vunpack.c.l.b16 %v178
      %v251 = vunpack.c.l.b16 %v179
      %v252 = vunpack.c.l.b16 %v180
      %v253 = vunpack.c.l.b16 %v181
      %v254 = vunpack.c.l.b16 %v182
      %v255 = vunpack.c.l.b16 %v183
      %v256 = vunpack.c.l.b16 %v184
      %v257 = vunpack.c.l.b16 %v185
      %v258 = vunpack.c.l.b16 %v186
      %v259 = vunpack.c.l.b16 %v187
      %v260 = vunpack.c.l.b16 %v188
      %v261 = vunpack.c.l.b16 %v189
      %v262 = vunpack.c.l.b16 %v190
      %v263 = vunpack.c.l.b16 %v191
      %v264 = vunpack.c.l.b16 %v192
      %v265 = vunpack.c.l.b16 %v193
      %v266 = vunpack.c.l.b16 %v194
      %v267 = vunpack.c.l.b16 %v195
      %v268 = vunpack.c.l.b16 %v196
      %v269 = vunpack.c.l.b16 %v197
      %v270 = vunpack.c.l.b16 %v198
      %v271 = vunpack.c.l.b16 %v199
      %v272 = vunpack.c.l.b16 %v200
      %v273 = vunpack.c.l.b16 %v201
      %v274 = vunpack.c.l.b16 %v202
      %v275 = vunpack.c.l.b16 %v203
      %v276 = vunpack.c.l.b16 %v204
      %v277 = vunpack.c.l.b16 %v205
      %v278 = vunpack.c.l.b16 %v206
      %v279 = vpack.c.b16 %v248, %v247
      %v280 = vpack.c.b16 %v250, %v249
      %v281 = vpack.c.b16 %v252, %v251
      %v282 = vpack.c.b16 %v254, %v253
      %v283 = vpack.c.b16 %v256, %v255
      %v284 = vpack.c.b16 %v258, %v257
      %v285 = vpack.c.b16 %v260, %v259
      %v286 = vpack.c.b16 %v262, %v261
      %v287 = vpack.c.b16 %v264, %v263
      %v288 = vpack.c.b16 %v266, %v265
      %v289 = vpack.c.b16 %v268, %v267
      %v290 = vpack.c.b16 %v270, %v269
      %v291 = vpack.c.b16 %v272, %v271
      %v292 = vpack.c.b16 %v274, %v273
      %v293 = vpack.c.b16 %v276, %v275
      %v294 = vpack.c.b16 %v278, %v277
      %v299 = vunpack.c.l.b16 %v207
      %v300 = vunpack.c.l.b16 %v208
      %v301 = vunpack.c.l.b16 %v209
      %v302 = vunpack.c.l.b16 %v210
      %v303 = vpack.c.b16 %v300, %v299
      %v304 = vpack.c.b16 %v302, %v301
      %vm307 = vcmask 261120
      %v309 = vsel %vm307, %v279, 0
      %v312 = vsel %vm307, %v280, 0
      %v315 = vsel %vm307, %v281, 0
      %v318 = vsel %vm307, %v282, 0
      %v321 = vsel %vm307, %v283, 0
      %v324 = vsel %vm307, %v284, 0
      %v327 = vsel %vm307, %v285, 0
      %v330 = vsel %vm307, %v286, 0
      %v333 = vsel %vm307, %v287, 0
      %v336 = vsel %vm307, %v288, 0
      %v339 = vsel %vm307, %v289, 0
      %v342 = vsel %vm307, %v290, 0
      %v345 = vsel %vm307, %v291, 0
      %v348 = vsel %vm307, %v292, 0
      %v351 = vsel %vm307, %v293, 0
      %v354 = vsel %vm307, %v294, 0
      %356 = vmatpush.bf16.msra.mxu0 0
      %357 = vmatpush.bf16.msra.mxu0 0
      %358 = vmatpush.bf16.msra.mxu0 0
      %359 = vmatpush.bf16.msra.mxu0 0
      %360 = vmatpush.bf16.msra.mxu0 0
      %361 = vmatpush.bf16.msra.mxu0 0
      %362 = vmatpush.bf16.msra.mxu0 %v304
      %363 = vmatpush.bf16.msra.mxu0 %v303
      %364 = vmatmul.bf16.gmra.mxu0 %v309
      %v365 = vpop.f32.mrf.mxu0
      %v366 = vadd.f32 %v213, %v365
      %v367 = vpop.f32.mrf.mxu0
      %v368 = vadd.f32 %v213, %v367
      %369 = vmatmul.bf16.gmra.mxu0 %v312
      %v370 = vpop.f32.mrf.mxu0
      %v371 = vadd.f32 %v213, %v370
      %v372 = vpop.f32.mrf.mxu0
      %v373 = vadd.f32 %v213, %v372
      %374 = vmatmul.bf16.gmra.mxu0 %v315
      %v375 = vpop.f32.mrf.mxu0
      %v376 = vadd.f32 %v213, %v375
      %v377 = vpop.f32.mrf.mxu0
      %v378 = vadd.f32 %v213, %v377
      %379 = vmatmul.bf16.gmra.mxu0 %v318
      %v380 = vpop.f32.mrf.mxu0
      %v381 = vadd.f32 %v213, %v380
      %v382 = vpop.f32.mrf.mxu0
      %v383 = vadd.f32 %v213, %v382
      %384 = vmatmul.bf16.gmra.mxu0 %v321
      %v385 = vpop.f32.mrf.mxu0
      %v386 = vadd.f32 %v213, %v385
      %v387 = vpop.f32.mrf.mxu0
      %v388 = vadd.f32 %v213, %v387
      %389 = vmatmul.bf16.gmra.mxu0 %v324
      %v390 = vpop.f32.mrf.mxu0
      %v391 = vadd.f32 %v213, %v390
      %v392 = vpop.f32.mrf.mxu0
      %v393 = vadd.f32 %v213, %v392
      %394 = vmatmul.bf16.gmra.mxu0 %v327
      %v395 = vpop.f32.mrf.mxu0
      %v396 = vadd.f32 %v213, %v395
      %v397 = vpop.f32.mrf.mxu0
      %v398 = vadd.f32 %v213, %v397
      %399 = vmatmul.bf16.gmra.mxu0 %v330
      %v400 = vpop.f32.mrf.mxu0
      %v401 = vadd.f32 %v213, %v400
      %v402 = vpop.f32.mrf.mxu0
      %v403 = vadd.f32 %v213, %v402
      %404 = vmatmul.bf16.gmra.mxu0 %v333
      %v405 = vpop.f32.mrf.mxu0
      %v406 = vadd.f32 %v213, %v405
      %v407 = vpop.f32.mrf.mxu0
      %v408 = vadd.f32 %v213, %v407
      %409 = vmatmul.bf16.gmra.mxu0 %v336
      %v410 = vpop.f32.mrf.mxu0
      %v411 = vadd.f32 %v213, %v410
      %v412 = vpop.f32.mrf.mxu0
      %v413 = vadd.f32 %v213, %v412
      %414 = vmatmul.bf16.gmra.mxu0 %v339
      %v415 = vpop.f32.mrf.mxu0
      %v416 = vadd.f32 %v213, %v415
      %v417 = vpop.f32.mrf.mxu0
      %v418 = vadd.f32 %v213, %v417
      %419 = vmatmul.bf16.gmra.mxu0 %v342
      %v420 = vpop.f32.mrf.mxu0
      %v421 = vadd.f32 %v213, %v420
      %v422 = vpop.f32.mrf.mxu0
      %v423 = vadd.f32 %v213, %v422
      %424 = vmatmul.bf16.gmra.mxu0 %v345
      %v425 = vpop.f32.mrf.mxu0
      %v426 = vadd.f32 %v213, %v425
      %v427 = vpop.f32.mrf.mxu0
      %v428 = vadd.f32 %v213, %v427
      %429 = vmatmul.bf16.gmra.mxu0 %v348
      %v430 = vpop.f32.mrf.mxu0
      %v431 = vadd.f32 %v213, %v430
      %v432 = vpop.f32.mrf.mxu0
      %v433 = vadd.f32 %v213, %v432
      %434 = vmatmul.bf16.gmra.mxu0 %v351
      %v435 = vpop.f32.mrf.mxu0
      %v436 = vadd.f32 %v213, %v435
      %v437 = vpop.f32.mrf.mxu0
      %v438 = vadd.f32 %v213, %v437
      %439 = vmatmul.bf16.gmra.mxu0 %v354
      %v440 = vpop.f32.mrf.mxu0
      %v441 = vadd.f32 %v213, %v440
      %v442 = vpop.f32.mrf.mxu0
      %v443 = vadd.f32 %v213, %v442
      %444 = vdwg.mxu0
      %v445 = vmax.f32 %v366, 0.0
      %v446 = vmax.f32 %v368, 0.0
      %v447 = vmax.f32 %v371, 0.0
      %v448 = vmax.f32 %v373, 0.0
      %v449 = vmax.f32 %v376, 0.0
      %v450 = vmax.f32 %v378, 0.0
      %v451 = vmax.f32 %v381, 0.0
      %v452 = vmax.f32 %v383, 0.0
      %v453 = vmax.f32 %v386, 0.0
      %v454 = vmax.f32 %v388, 0.0
      %v455 = vmax.f32 %v391, 0.0
      %v456 = vmax.f32 %v393, 0.0
      %v457 = vmax.f32 %v396, 0.0
      %v458 = vmax.f32 %v398, 0.0
      %v459 = vmax.f32 %v401, 0.0
      %v460 = vmax.f32 %v403, 0.0
      %v461 = vmax.f32 %v406, 0.0
      %v462 = vmax.f32 %v408, 0.0
      %v463 = vmax.f32 %v411, 0.0
      %v464 = vmax.f32 %v413, 0.0
      %v465 = vmax.f32 %v416, 0.0
      %v466 = vmax.f32 %v418, 0.0
      %v467 = vmax.f32 %v421, 0.0
      %v468 = vmax.f32 %v423, 0.0
      %v469 = vmax.f32 %v426, 0.0
      %v470 = vmax.f32 %v428, 0.0
      %v471 = vmax.f32 %v431, 0.0
      %v472 = vmax.f32 %v433, 0.0
      %v473 = vmax.f32 %v436, 0.0
      %v474 = vmax.f32 %v438, 0.0
      %v475 = vmax.f32 %v441, 0.0
      %v476 = vmax.f32 %v443, 0.0
      %v477 = vpack.c.bf16 %v445, %v445
      %v478 = vpack.c.bf16 %v446, %v446
      %v479 = vpack.c.bf16 %v447, %v447
      %v480 = vpack.c.bf16 %v448, %v448
      %v481 = vpack.c.bf16 %v449, %v449
      %v482 = vpack.c.bf16 %v450, %v450
      %v483 = vpack.c.bf16 %v451, %v451
      %v484 = vpack.c.bf16 %v452, %v452
      %v485 = vpack.c.bf16 %v453, %v453
      %v486 = vpack.c.bf16 %v454, %v454
      %v487 = vpack.c.bf16 %v455, %v455
      %v488 = vpack.c.bf16 %v456, %v456
      %v489 = vpack.c.bf16 %v457, %v457
      %v490 = vpack.c.bf16 %v458, %v458
      %v491 = vpack.c.bf16 %v459, %v459
      %v492 = vpack.c.bf16 %v460, %v460
      %v493 = vpack.c.bf16 %v461, %v461
      %v494 = vpack.c.bf16 %v462, %v462
      %v495 = vpack.c.bf16 %v463, %v463
      %v496 = vpack.c.bf16 %v464, %v464
      %v497 = vpack.c.bf16 %v465, %v465
      %v498 = vpack.c.bf16 %v466, %v466
      %v499 = vpack.c.bf16 %v467, %v467
      %v500 = vpack.c.bf16 %v468, %v468
      %v501 = vpack.c.bf16 %v469, %v469
      %v502 = vpack.c.bf16 %v470, %v470
      %v503 = vpack.c.bf16 %v471, %v471
      %v504 = vpack.c.bf16 %v472, %v472
      %v505 = vpack.c.bf16 %v473, %v473
      %v506 = vpack.c.bf16 %v474, %v474
      %v507 = vpack.c.bf16 %v475, %v475
      %v508 = vpack.c.bf16 %v476, %v476
      %509 = vst [vmem:[%s172] sm:$0xf] %v477
      %510 = vst [vmem:[%s172 + $0x4] sm:$0xf] %v478
      %511 = vst [vmem:[%s172 + $0x8] sm:$0xf] %v479
      %512 = vst [vmem:[%s172 + $0xc] sm:$0xf] %v480
      %513 = vst [vmem:[%s172 + $0x10] sm:$0xf] %v481
      %514 = vst [vmem:[%s172 + $0x14] sm:$0xf] %v482
      %515 = vst [vmem:[%s172 + $0x18] sm:$0xf] %v483
      %516 = vst [vmem:[%s172 + $0x1c] sm:$0xf] %v484
      %517 = vst [vmem:[%s172 + $0x20] sm:$0xf] %v485
      %518 = vst [vmem:[%s172 + $0x24] sm:$0xf] %v486
      %519 = vst [vmem:[%s172 + $0x28] sm:$0xf] %v487
      %520 = vst [vmem:[%s172 + $0x2c] sm:$0xf] %v488
      %521 = vst [vmem:[%s172 + $0x30] sm:$0xf] %v489
      %522 = vst [vmem:[%s172 + $0x34] sm:$0xf] %v490
      %523 = vst [vmem:[%s172 + $0x38] sm:$0xf] %v491
      %524 = vst [vmem:[%s172 + $0x3c] sm:$0xf] %v492
      %525 = vst [vmem:[%s172 + $0x40] sm:$0xf] %v493
      %526 = vst [vmem:[%s172 + $0x44] sm:$0xf] %v494
      %527 = vst [vmem:[%s172 + $0x48] sm:$0xf] %v495
      %528 = vst [vmem:[%s172 + $0x4c] sm:$0xf] %v496
      %529 = vst [vmem:[%s172 + $0x50] sm:$0xf] %v497
      %530 = vst [vmem:[%s172 + $0x54] sm:$0xf] %v498
      %531 = vst [vmem:[%s172 + $0x58] sm:$0xf] %v499
      %532 = vst [vmem:[%s172 + $0x5c] sm:$0xf] %v500
      %533 = vst [vmem:[%s172 + $0x60] sm:$0xf] %v501
      %534 = vst [vmem:[%s172 + $0x64] sm:$0xf] %v502
      %535 = vst [vmem:[%s172 + $0x68] sm:$0xf] %v503
      %536 = vst [vmem:[%s172 + $0x6c] sm:$0xf] %v504
      %537 = vst [vmem:[%s172 + $0x70] sm:$0xf] %v505
      %538 = vst [vmem:[%s172 + $0x74] sm:$0xf] %v506
      %539 = vst [vmem:[%s172 + $0x78] sm:$0xf] %v507
      %540 = vst [vmem:[%s172 + $0x7c] sm:$0xf] %v508
      %s541 = smul.u32 32, %s14
      %p542 = scmp.lt.s32.totalorder %s541, 63
      %s543 = scalar_select %p542, %s541, 63
      %s544 = smul.addr %s543, 4
      %s545 = scalar_lea.vmem %s3, %s544
      // Predicated region
      $region33: #{segformer_segmentation_forward.20} parent=31 // pred_check
        %p546 = pneg %p100
      $region34: #{segformer_segmentation_forward.20} parent=31 // pred_check_branch
        %548 = sbr.rel (%p546) target = $region36
      $region35: #{segformer_segmentation_forward.20} parent=31 // pred_region
        %s549 = smul.u32 32, %s14
      $region36: #{segformer_segmentation_forward.20} parent=31 // pred_fallthru
        _
    $region32: #{segformer_segmentation_forward.20} parent=5 // pred_fallthru
      _
    %p550 = scmp.le.s32.totalorder 2, %s9
    // Predicated region
    $region37: #{segformer_segmentation_forward.20} parent=5 // pred_check
      %p551 = pneg %p550
    $region38: #{segformer_segmentation_forward.20} parent=5 // pred_check_branch
      %553 = sbr.rel (%p551) target = $region40
    $region39: #{segformer_segmentation_forward.20} parent=5 // pred_region
      %s554 = ssub.s32 %s9, 2
      // Predicated region
      $region41: #{segformer_segmentation_forward.20} parent=39 // pred_check
        %p555 = pneg %p106
      $region42: #{segformer_segmentation_forward.20} parent=39 // pred_check_branch
        %557 = sbr.rel (%p555) target = $region44
      $region43: #{segformer_segmentation_forward.20} parent=39 // pred_region
        %s558 = smul.u32 32, %s15
        %p559 = scmp.lt.s32.totalorder %s558, 63
        %s560 = scalar_select %p559, %s558, 63
        %s561 = smul.addr %s560, 4
        %s562 = scalar_lea.vmem %s3, %s561
      $region44: #{segformer_segmentation_forward.20} parent=39 // pred_fallthru
        _
    $region40: #{segformer_segmentation_forward.20} parent=5 // pred_fallthru
      _
  $region6: #{segformer_segmentation_forward.20} parent=0 // loop_footer
    %s13 = sadd.s32 1, %s9
  $region7: #{segformer_segmentation_forward.20} parent=0 // loop_footer_branch
    %8 = sbr.rel target = $region3
  $region8: #{segformer_segmentation_forward.20} parent=0 // loop_exit
    _

// kernel: segformer_segmentation_forward.16
$region0: #{segformer_segmentation_forward.16}
  #allocation0 [shape = 'u32[]', space=smem, size = 0x4, offset = 0x4, fixed_abs, tag = 'smem constant byte address 0x4 - core index']
  #allocation1 [shape = 'u32[72,128]{1,0:T(1,128)}', space=vmem, size = 0x9000, scoped, tag = 'internal scratch']
  %s0 = inlined_call_operand.vmem [shape: bf16[512,147], index: 0, kind: input, shape index: {}]
  %s1 = inlined_call_operand.vmem [shape: bf16[147,32], index: 1, kind: input, shape index: {}]
  %s2 = inlined_call_operand.vmem [shape: f32[1,32], index: 2, kind: input, shape index: {}]
  %s3 = inlined_call_operand.vmem [shape: bf16[512,32], index: 3, kind: output, shape index: {}]
  %s4 = sld [smem:[#allocation0]]
  $region45: #{segformer_segmentation_forward.16} parent=0
    _
  %s6 = ssub.s32 1, %s4
  %s7 = scalar_select 0, %s6, %s4
  loop: start=0, step=1, limit=4
  $region2: #{segformer_segmentation_forward.16} parent=0 // loop_pre_header
    _
  $region3: #{segformer_segmentation_forward.16} parent=0 // loop_header
    %s9 = sphi 0, %s13
    %p10 = scmp.ge.s32.totalorder %s9, 4
    %s19 = sphi 0, %s21
    %s22 = sphi 0, %s19
    %s23 = sphi 0, %s22
    %s39 = sphi 0, %s23
    %s43 = sphi 0, %s43
    %s45 = sphi 0, %s43
    %s46 = sphi 0, %s45
    %s60 = sphi 0, %s46
    %s64 = sphi 0, %s64
    %s66 = sphi 0, %s64
    %s67 = sphi 0, %s66
    %s81 = sphi 0, %s67
    %s87 = sphi 0, %s89
    %s90 = sphi 0, %s87
    %s91 = sphi 0, %s90
    %s107 = sphi 0, %s91
  $region4: #{segformer_segmentation_forward.16} parent=0 // loop_header_branch
    %12 = sbr.rel (%p10) target = $region8
  $region5: #{segformer_segmentation_forward.16} parent=0 // loop_body
    %s14 = ssub.s32 %s9, 1
    %s15 = ssub.s32 %s9, 2
    %s16 = sadd.s32 %s9, 1
    %s17 = ssub.s32 %s9, %s16
    %p18 = scmp.eq.s32.totalorder %s17, 0
    %s20 = sadd.s32 %s19, 1
    %s21 = scalar_select %p18, %s19, %s20
    %p24 = pneg %p18
    %p25 = scmp.eq.s32.totalorder %s9, 1
    %p26 = por %p24, %p25
    %p27 = scmp.ne.s32.totalorder %s19, %s22
    %p28 = scmp.eq.s32.totalorder %s9, 0
    %p29 = por %p27, %p28
    %p30 = scmp.ne.s32.totalorder %s19, %s22
    %p31 = scmp.eq.s32.totalorder %s14, 1
    %p32 = por %p30, %p31
    %p33 = scmp.ne.s32.totalorder %s22, %s23
    %p34 = scmp.eq.s32.totalorder %s14, 0
    %p35 = por %p33, %p34
    %p36 = scmp.ne.s32.totalorder %s22, %s23
    %p37 = scmp.eq.s32.totalorder %s15, 1
    %p38 = por %p36, %p37
    %p40 = scmp.ne.s32.totalorder %s23, %s39
    %p41 = scmp.eq.s32.totalorder %s15, 0
    %p42 = por %p40, %p41
    %s44 = sadd.s32 %s43, 1
    %p47 = scmp.eq.s32.totalorder %s9, 1
    %p48 = scmp.ne.s32.totalorder %s43, %s45
    %p49 = scmp.eq.s32.totalorder %s9, 0
    %p50 = por %p48, %p49
    %p51 = scmp.ne.s32.totalorder %s43, %s45
    %p52 = scmp.eq.s32.totalorder %s14, 1
    %p53 = por %p51, %p52
    %p54 = scmp.ne.s32.totalorder %s45, %s46
    %p55 = scmp.eq.s32.totalorder %s14, 0
    %p56 = por %p54, %p55
    %p57 = scmp.ne.s32.totalorder %s45, %s46
    %p58 = scmp.eq.s32.totalorder %s15, 1
    %p59 = por %p57, %p58
    %p61 = scmp.ne.s32.totalorder %s46, %s60
    %p62 = scmp.eq.s32.totalorder %s15, 0
    %p63 = por %p61, %p62
    %s65 = sadd.s32 %s64, 1
    %p68 = scmp.eq.s32.totalorder %s9, 1
    %p69 = scmp.ne.s32.totalorder %s64, %s66
    %p70 = scmp.eq.s32.totalorder %s9, 0
    %p71 = por %p69, %p70
    %p72 = scmp.ne.s32.totalorder %s64, %s66
    %p73 = scmp.eq.s32.totalorder %s14, 1
    %p74 = por %p72, %p73
    %p75 = scmp.ne.s32.totalorder %s66, %s67
    %p76 = scmp.eq.s32.totalorder %s14, 0
    %p77 = por %p75, %p76
    %p78 = scmp.ne.s32.totalorder %s66, %s67
    %p79 = scmp.eq.s32.totalorder %s15, 1
    %p80 = por %p78, %p79
    %p82 = scmp.ne.s32.totalorder %s67, %s81
    %p83 = scmp.eq.s32.totalorder %s15, 0
    %p84 = por %p82, %p83
    %s85 = ssub.s32 %s9, %s16
    %p86 = scmp.eq.s32.totalorder %s85, 0
    %s88 = sadd.s32 %s87, 1
    %s89 = scalar_select %p86, %s87, %s88
    %p92 = pneg %p86
    %p93 = scmp.eq.s32.totalorder %s9, 1
    %p94 = por %p92, %p93
    %p95 = scmp.ne.s32.totalorder %s87, %s90
    %p96 = scmp.eq.s32.totalorder %s9, 0
    %p97 = por %p95, %p96
    %p98 = scmp.ne.s32.totalorder %s87, %s90
    %p99 = scmp.eq.s32.totalorder %s14, 1
    %p100 = por %p98, %p99
    %p101 = scmp.ne.s32.totalorder %s90, %s91
    %p102 = scmp.eq.s32.totalorder %s14, 0
    %p103 = por %p101, %p102
    %p104 = scmp.ne.s32.totalorder %s90, %s91
    %p105 = scmp.eq.s32.totalorder %s15, 1
    %p106 = por %p104, %p105
    %p108 = scmp.ne.s32.totalorder %s91, %s107
    %p109 = scmp.eq.s32.totalorder %s15, 0
    %p110 = por %p108, %p109
    %p111 = scmp.le.s32.totalorder 1, %s9
    %p112 = scmp.lt.s32.totalorder %s9, 3
    %p113 = pnand %p111, %p112
    %p114 = pneg %p113
    // Predicated region
    $region9: #{segformer_segmentation_forward.16} parent=5 // pred_check
      _
    $region10: #{segformer_segmentation_forward.16} parent=5 // pred_check_branch
      %116 = sbr.rel (%p113) target = $region12
    $region11: #{segformer_segmentation_forward.16} parent=5 // pred_region
      %s117 = ssub.s32 %s9, 1
      // Predicated region
      $region13: #{segformer_segmentation_forward.16} parent=11 // pred_check
        %p118 = pneg %p56
      $region14: #{segformer_segmentation_forward.16} parent=11 // pred_check_branch
        %120 = sbr.rel (%p118) target = $region16
      $region15: #{segformer_segmentation_forward.16} parent=11 // pred_region
        _
      $region16: #{segformer_segmentation_forward.16} parent=11 // pred_fallthru
        _
      // Predicated region
      $region17: #{segformer_segmentation_forward.16} parent=11 // pred_check
        %p121 = pneg %p77
      $region18: #{segformer_segmentation_forward.16} parent=11 // pred_check_branch
        %123 = sbr.rel (%p121) target = $region20
      $region19: #{segformer_segmentation_forward.16} parent=11 // pred_region
        _
      $region20: #{segformer_segmentation_forward.16} parent=11 // pred_fallthru
        _
    $region12: #{segformer_segmentation_forward.16} parent=5 // pred_fallthru
      _
    %p124 = scmp.lt.s32.totalorder %s9, 2
    // Predicated region
    $region21: #{segformer_segmentation_forward.16} parent=5 // pred_check
      %p125 = pneg %p124
    $region22: #{segformer_segmentation_forward.16} parent=5 // pred_check_branch
      %127 = sbr.rel (%p125) target = $region24
    $region23: #{segformer_segmentation_forward.16} parent=5 // pred_region
      // Predicated region
      $region25: #{segformer_segmentation_forward.16} parent=23 // pred_check
        %p128 = pneg %p29
      $region26: #{segformer_segmentation_forward.16} parent=23 // pred_check_branch
        %130 = sbr.rel (%p128) target = $region28
      $region27: #{segformer_segmentation_forward.16} parent=23 // pred_region
        %s131 = smul.u32 32, %s9
        %p132 = scmp.lt.s32.totalorder %s131, 63
        %s133 = scalar_select %p132, %s131, 63
        %s134 = smul.addr %s133, 2
        %s135 = smul.addr %s134, 4
        %s136 = scalar_lea.vmem %s0, %s135
        %s137 = smul.u32 32, %s9
      $region28: #{segformer_segmentation_forward.16} parent=23 // pred_fallthru
        _
    $region24: #{segformer_segmentation_forward.16} parent=5 // pred_fallthru
      _
    %p138 = scmp.le.s32.totalorder 1, %s9
    %p139 = scmp.lt.s32.totalorder %s9, 3
    %p140 = pnand %p138, %p139
    %p141 = pneg %p140
    // Predicated region
    $region29: #{segformer_segmentation_forward.16} parent=5 // pred_check
      _
    $region30: #{segformer_segmentation_forward.16} parent=5 // pred_check_branch
      %143 = sbr.rel (%p140) target = $region32
    $region31: #{segformer_segmentation_forward.16} parent=5 // pred_region
      %s144 = ssub.s32 %s9, 1
      %s145 = smul.u32 32, %s14
      %p146 = scmp.lt.s32.totalorder %s145, 63
      %s147 = scalar_select %p146, %s145, 63
      %s148 = smul.addr %s147, 2
      %s149 = smul.addr %s148, 4
      %s150 = scalar_lea.vmem %s0, %s149
      %p151 = pneg %p35
      %p152 = pneg %p32
      %p153 = pneg %p56
      %p154 = pneg %p53
      %p155 = pneg %p77
      %p156 = pneg %p74
      %p157 = pneg %p103
      %p158 = pneg %p100
      %s159 = smul.u32 32, %s14
      %p160 = scmp.lt.s32.totalorder %s159, 63
      %s161 = scalar_select %p160, %s159, 63
      %s162 = smul.addr %s161, 4
      %s163 = scalar_lea.vmem %s3, %s162
      %s164 = smul.u32 32, %s14
      %p165 = scmp.lt.s32.totalorder %s164, 63
      %s166 = scalar_select %p165, %s164, 63
      %s167 = smul.addr %s166, 2
      %s168 = smul.addr %s167, 4
      %s169 = scalar_lea.vmem %s0, %s168
      %s170 = smul.u32 32, %s14
      %s171 = smul.u32 32, %s14
      %p172 = scmp.lt.s32.totalorder %s171, 63
      %s173 = scalar_select %p172, %s171, 63
      %s174 = smul.addr %s173, 4
      %s175 = scalar_lea.vmem %s3, %s174
      %s176 = smul.u32 32, %s14
      %v178 = vld [vmem:[%s169] sm:$0xff]
      %v179 = vld [vmem:[%s169 + $0x8] sm:$0xff]
      %v180 = vld [vmem:[%s169 + $0x10] sm:$0xff]
      %v181 = vld [vmem:[%s169 + $0x18] sm:$0xff]
      %v182 = vld [vmem:[%s169 + $0x20] sm:$0xff]
      %v183 = vld [vmem:[%s169 + $0x28] sm:$0xff]
      %v184 = vld [vmem:[%s169 + $0x30] sm:$0xff]
      %v185 = vld [vmem:[%s169 + $0x38] sm:$0xff]
      %v186 = vld [vmem:[%s169 + $0x40] sm:$0xff]
      %v187 = vld [vmem:[%s169 + $0x48] sm:$0xff]
      %v188 = vld [vmem:[%s169 + $0x50] sm:$0xff]
      %v189 = vld [vmem:[%s169 + $0x58] sm:$0xff]
      %v190 = vld [vmem:[%s169 + $0x60] sm:$0xff]
      %v191 = vld [vmem:[%s169 + $0x68] sm:$0xff]
      %v192 = vld [vmem:[%s169 + $0x70] sm:$0xff]
      %v193 = vld [vmem:[%s169 + $0x78] sm:$0xff]
      %v194 = vld [vmem:[%s169 + $0x80] sm:$0xff]
      %v195 = vld [vmem:[%s169 + $0x88] sm:$0xff]
      %v196 = vld [vmem:[%s169 + $0x90] sm:$0xff]
      %v197 = vld [vmem:[%s169 + $0x98] sm:$0xff]
      %v198 = vld [vmem:[%s169 + $0xa0] sm:$0xff]
      %v199 = vld [vmem:[%s169 + $0xa8] sm:$0xff]
      %v200 = vld [vmem:[%s169 + $0xb0] sm:$0xff]
      %v201 = vld [vmem:[%s169 + $0xb8] sm:$0xff]
      %v202 = vld [vmem:[%s169 + $0xc0] sm:$0xff]
      %v203 = vld [vmem:[%s169 + $0xc8] sm:$0xff]
      %v204 = vld [vmem:[%s169 + $0xd0] sm:$0xff]
      %v205 = vld [vmem:[%s169 + $0xd8] sm:$0xff]
      %v206 = vld [vmem:[%s169 + $0xe0] sm:$0xff]
      %v207 = vld [vmem:[%s169 + $0xe8] sm:$0xff]
      %v208 = vld [vmem:[%s169 + $0xf0] sm:$0xff]
      %v209 = vld [vmem:[%s169 + $0xf8] sm:$0xff]
      %v210 = vld [vmem:[%s1] sm:$0xf]
      %v211 = vld [vmem:[%s1 + $0x4] sm:$0xf]
      %v212 = vld [vmem:[%s1 + $0x8] sm:$0xf]
      %v213 = vld [vmem:[%s1 + $0xc] sm:$0xf]
      %v214 = vld [vmem:[%s1 + $0x10] sm:$0xf]
      %v215 = vld [vmem:[%s1 + $0x14] sm:$0xf]
      %v216 = vld [vmem:[%s1 + $0x18] sm:$0xf]
      %v217 = vld [vmem:[%s1 + $0x1c] sm:$0xf]
      %v218 = vld [vmem:[%s1 + $0x20] sm:$0xf]
      %v219 = vld [vmem:[%s1 + $0x24] sm:$0xf]
      %v220 = vld [vmem:[%s1 + $0x28] sm:$0xf]
      %v221 = vld [vmem:[%s1 + $0x2c] sm:$0xf]
      %v222 = vld [vmem:[%s1 + $0x30] sm:$0xf]
      %v223 = vld [vmem:[%s1 + $0x34] sm:$0xf]
      %v224 = vld [vmem:[%s1 + $0x38] sm:$0xf]
      %v225 = vld [vmem:[%s1 + $0x3c] sm:$0xf]
      %v226 = vld [vmem:[%s1 + $0x40] sm:$0xf]
      %v227 = vld [vmem:[%s1 + $0x44] sm:$0xf]
      %v228 = vld [vmem:[%s1 + $0x48] sm:$0x3]
      %v229 = vld [vmem:[%s2] sm:$0x1]
      %v231 = vperm.slane %v229, 0
      %v265 = vunpack.c.l.b16 %v178
      %v266 = vunpack.c.h.b16 %v178
      %v267 = vunpack.c.l.b16 %v179
      %v268 = vunpack.c.h.b16 %v179
      %v269 = vunpack.c.l.b16 %v180
      %v270 = vunpack.c.h.b16 %v180
      %v271 = vunpack.c.l.b16 %v181
      %v272 = vunpack.c.h.b16 %v181
      %v273 = vunpack.c.l.b16 %v182
      %v274 = vunpack.c.h.b16 %v182
      %v275 = vunpack.c.l.b16 %v183
      %v276 = vunpack.c.h.b16 %v183
      %v277 = vunpack.c.l.b16 %v184
      %v278 = vunpack.c.h.b16 %v184
      %v279 = vunpack.c.l.b16 %v185
      %v280 = vunpack.c.h.b16 %v185
      %v281 = vunpack.c.l.b16 %v186
      %v282 = vunpack.c.h.b16 %v186
      %v283 = vunpack.c.l.b16 %v187
      %v284 = vunpack.c.h.b16 %v187
      %v285 = vunpack.c.l.b16 %v188
      %v286 = vunpack.c.h.b16 %v188
      %v287 = vunpack.c.l.b16 %v189
      %v288 = vunpack.c.h.b16 %v189
      %v289 = vunpack.c.l.b16 %v190
      %v290 = vunpack.c.h.b16 %v190
      %v291 = vunpack.c.l.b16 %v191
      %v292 = vunpack.c.h.b16 %v191
      %v293 = vunpack.c.l.b16 %v192
      %v294 = vunpack.c.h.b16 %v192
      %v295 = vunpack.c.l.b16 %v193
      %v296 = vunpack.c.h.b16 %v193
      %v297 = vunpack.c.l.b16 %v194
      %v298 = vunpack.c.h.b16 %v194
      %v299 = vunpack.c.l.b16 %v195
      %v300 = vunpack.c.h.b16 %v195
      %v301 = vunpack.c.l.b16 %v196
      %v302 = vunpack.c.h.b16 %v196
      %v303 = vunpack.c.l.b16 %v197
      %v304 = vunpack.c.h.b16 %v197
      %v305 = vunpack.c.l.b16 %v198
      %v306 = vunpack.c.h.b16 %v198
      %v307 = vunpack.c.l.b16 %v199
      %v308 = vunpack.c.h.b16 %v199
      %v309 = vunpack.c.l.b16 %v200
      %v310 = vunpack.c.h.b16 %v200
      %v311 = vunpack.c.l.b16 %v201
      %v312 = vunpack.c.h.b16 %v201
      %v313 = vunpack.c.l.b16 %v202
      %v314 = vunpack.c.h.b16 %v202
      %v315 = vunpack.c.l.b16 %v203
      %v316 = vunpack.c.h.b16 %v203
      %v317 = vunpack.c.l.b16 %v204
      %v318 = vunpack.c.h.b16 %v204
      %v319 = vunpack.c.l.b16 %v205
      %v320 = vunpack.c.h.b16 %v205
      %v321 = vunpack.c.l.b16 %v206
      %v322 = vunpack.c.h.b16 %v206
      %v323 = vunpack.c.l.b16 %v207
      %v324 = vunpack.c.h.b16 %v207
      %v325 = vunpack.c.l.b16 %v208
      %v326 = vunpack.c.h.b16 %v208
      %v327 = vunpack.c.l.b16 %v209
      %v328 = vunpack.c.h.b16 %v209
      %v329 = vpack.c.b16 %v267, %v265
      %v330 = vpack.c.b16 %v268, %v266
      %v331 = vpack.c.b16 %v271, %v269
      %v332 = vpack.c.b16 %v272, %v270
      %v333 = vpack.c.b16 %v275, %v273
      %v334 = vpack.c.b16 %v276, %v274
      %v335 = vpack.c.b16 %v279, %v277
      %v336 = vpack.c.b16 %v280, %v278
      %v337 = vpack.c.b16 %v283, %v281
      %v338 = vpack.c.b16 %v284, %v282
      %v339 = vpack.c.b16 %v287, %v285
      %v340 = vpack.c.b16 %v288, %v286
      %v341 = vpack.c.b16 %v291, %v289
      %v342 = vpack.c.b16 %v292, %v290
      %v343 = vpack.c.b16 %v295, %v293
      %v344 = vpack.c.b16 %v296, %v294
      %v345 = vpack.c.b16 %v299, %v297
      %v346 = vpack.c.b16 %v300, %v298
      %v347 = vpack.c.b16 %v303, %v301
      %v348 = vpack.c.b16 %v304, %v302
      %v349 = vpack.c.b16 %v307, %v305
      %v350 = vpack.c.b16 %v308, %v306
      %v351 = vpack.c.b16 %v311, %v309
      %v352 = vpack.c.b16 %v312, %v310
      %v353 = vpack.c.b16 %v315, %v313
      %v354 = vpack.c.b16 %v316, %v314
      %v355 = vpack.c.b16 %v319, %v317
      %v356 = vpack.c.b16 %v320, %v318
      %v357 = vpack.c.b16 %v323, %v321
      %v358 = vpack.c.b16 %v324, %v322
      %v359 = vpack.c.b16 %v327, %v325
      %v360 = vpack.c.b16 %v328, %v326
      %v396 = vunpack.c.l.b16 %v210
      %v397 = vunpack.c.l.b16 %v211
      %v398 = vunpack.c.l.b16 %v212
      %v399 = vunpack.c.l.b16 %v213
      %v400 = vunpack.c.l.b16 %v214
      %v401 = vunpack.c.l.b16 %v215
      %v402 = vunpack.c.l.b16 %v216
      %v403 = vunpack.c.l.b16 %v217
      %v404 = vunpack.c.l.b16 %v218
      %v405 = vunpack.c.l.b16 %v219
      %v406 = vunpack.c.l.b16 %v220
      %v407 = vunpack.c.l.b16 %v221
      %v408 = vunpack.c.l.b16 %v222
      %v409 = vunpack.c.l.b16 %v223
      %v410 = vunpack.c.l.b16 %v224
      %v411 = vunpack.c.l.b16 %v225
      %v412 = vunpack.c.l.b16 %v226
      %v413 = vunpack.c.l.b16 %v227
      %v414 = vunpack.c.l.b16 %v228
      %v415 = vpack.c.b16 %v397, %v396
      %v416 = vpack.c.b16 %v399, %v398
      %v417 = vpack.c.b16 %v401, %v400
      %v418 = vpack.c.b16 %v403, %v402
      %v419 = vpack.c.b16 %v405, %v404
      %v420 = vpack.c.b16 %v407, %v406
      %v421 = vpack.c.b16 %v409, %v408
      %v422 = vpack.c.b16 %v411, %v410
      %v423 = vpack.c.b16 %v413, %v412
      %v424 = vpack.c.b16 %v414, %v414
      %vm434 = vcmask 154624
      %v436 = vsel %vm434, %v330, 0
      %v439 = vsel %vm434, %v332, 0
      %v442 = vsel %vm434, %v334, 0
      %v445 = vsel %vm434, %v336, 0
      %v448 = vsel %vm434, %v338, 0
      %v451 = vsel %vm434, %v340, 0
      %v454 = vsel %vm434, %v342, 0
      %v457 = vsel %vm434, %v344, 0
      %v460 = vsel %vm434, %v346, 0
      %v463 = vsel %vm434, %v348, 0
      %v466 = vsel %vm434, %v350, 0
      %v469 = vsel %vm434, %v352, 0
      %v472 = vsel %vm434, %v354, 0
      %v475 = vsel %vm434, %v356, 0
      %v478 = vsel %vm434, %v358, 0
      %v481 = vsel %vm434, %v360, 0
      %vm483 = vcmask 1040384
      %vm484 = vcmask 1041408
      %v485 = vsel %vm483, 4294967295, 65535
      %v486 = vsel %vm484, %v485, 0
      %v488 = vand.u32 %v424, %v486
      %490 = vmatpush.bf16.msra.mxu0 %v422
      %491 = vmatpush.bf16.msra.mxu0 %v421
      %492 = vmatpush.bf16.msra.mxu0 %v420
      %493 = vmatpush.bf16.msra.mxu0 %v419
      %494 = vmatpush.bf16.msra.mxu0 %v418
      %495 = vmatpush.bf16.msra.mxu0 %v417
      %496 = vmatpush.bf16.msra.mxu0 %v416
      %497 = vmatpush.bf16.msra.mxu0 %v415
      %498 = vmatmul.bf16.gmra.mxu0 %v329
      %v499 = vpop.f32.mrf.mxu0
      %v500 = vadd.f32 %v231, %v499
      %v501 = vpop.f32.mrf.mxu0
      %v502 = vadd.f32 %v231, %v501
      %503 = vmatmul.bf16.gmra.mxu0 %v331
      %v504 = vpop.f32.mrf.mxu0
      %v505 = vadd.f32 %v231, %v504
      %v506 = vpop.f32.mrf.mxu0
      %v507 = vadd.f32 %v231, %v506
      %508 = vmatmul.bf16.gmra.mxu0 %v333
      %v509 = vpop.f32.mrf.mxu0
      %v510 = vadd.f32 %v231, %v509
      %v511 = vpop.f32.mrf.mxu0
      %v512 = vadd.f32 %v231, %v511
      %513 = vmatmul.bf16.gmra.mxu0 %v335
      %v514 = vpop.f32.mrf.mxu0
      %v515 = vadd.f32 %v231, %v514
      %v516 = vpop.f32.mrf.mxu0
      %v517 = vadd.f32 %v231, %v516
      %518 = vmatmul.bf16.gmra.mxu0 %v337
      %v519 = vpop.f32.mrf.mxu0
      %v520 = vadd.f32 %v231, %v519
      %v521 = vpop.f32.mrf.mxu0
      %v522 = vadd.f32 %v231, %v521
      %523 = vmatmul.bf16.gmra.mxu0 %v339
      %v524 = vpop.f32.mrf.mxu0
      %v525 = vadd.f32 %v231, %v524
      %v526 = vpop.f32.mrf.mxu0
      %v527 = vadd.f32 %v231, %v526
      %528 = vmatmul.bf16.gmra.mxu0 %v341
      %v529 = vpop.f32.mrf.mxu0
      %v530 = vadd.f32 %v231, %v529
      %v531 = vpop.f32.mrf.mxu0
      %v532 = vadd.f32 %v231, %v531
      %533 = vmatmul.bf16.gmra.mxu0 %v343
      %v534 = vpop.f32.mrf.mxu0
      %v535 = vadd.f32 %v231, %v534
      %v536 = vpop.f32.mrf.mxu0
      %v537 = vadd.f32 %v231, %v536
      %538 = vmatmul.bf16.gmra.mxu0 %v345
      %v539 = vpop.f32.mrf.mxu0
      %v540 = vadd.f32 %v231, %v539
      %v541 = vpop.f32.mrf.mxu0
      %v542 = vadd.f32 %v231, %v541
      %543 = vmatmul.bf16.gmra.mxu0 %v347
      %v544 = vpop.f32.mrf.mxu0
      %v545 = vadd.f32 %v231, %v544
      %v546 = vpop.f32.mrf.mxu0
      %v547 = vadd.f32 %v231, %v546
      %548 = vmatmul.bf16.gmra.mxu0 %v349
      %v549 = vpop.f32.mrf.mxu0
      %v550 = vadd.f32 %v231, %v549
      %v551 = vpop.f32.mrf.mxu0
      %v552 = vadd.f32 %v231, %v551
      %553 = vmatmul.bf16.gmra.mxu0 %v351
      %v554 = vpop.f32.mrf.mxu0
      %v555 = vadd.f32 %v231, %v554
      %v556 = vpop.f32.mrf.mxu0
      %v557 = vadd.f32 %v231, %v556
      %558 = vmatmul.bf16.gmra.mxu0 %v353
      %v559 = vpop.f32.mrf.mxu0
      %v560 = vadd.f32 %v231, %v559
      %v561 = vpop.f32.mrf.mxu0
      %v562 = vadd.f32 %v231, %v561
      %563 = vmatmul.bf16.gmra.mxu0 %v355
      %v564 = vpop.f32.mrf.mxu0
      %v565 = vadd.f32 %v231, %v564
      %v566 = vpop.f32.mrf.mxu0
      %v567 = vadd.f32 %v231, %v566
      %568 = vmatmul.bf16.gmra.mxu0 %v357
      %v569 = vpop.f32.mrf.mxu0
      %v570 = vadd.f32 %v231, %v569
      %v571 = vpop.f32.mrf.mxu0
      %v572 = vadd.f32 %v231, %v571
      %573 = vmatmul.bf16.gmra.mxu0 %v359
      %v574 = vpop.f32.mrf.mxu0
      %v575 = vadd.f32 %v231, %v574
      %v576 = vpop.f32.mrf.mxu0
      %v577 = vadd.f32 %v231, %v576
      %578 = vdwg.mxu0
      %579 = vmatpush.bf16.msra.mxu0 0
      %580 = vmatpush.bf16.msra.mxu0 0
      %581 = vmatpush.bf16.msra.mxu0 0
      %582 = vmatpush.bf16.msra.mxu0 0
      %583 = vmatpush.bf16.msra.mxu0 0
      %584 = vmatpush.bf16.msra.mxu0 0
      %585 = vmatpush.bf16.msra.mxu0 %v488
      %586 = vmatpush.bf16.msra.mxu0 %v423
      %587 = vmatmul.bf16.gmra.mxu0 %v436
      %v588 = vpop.f32.mrf.mxu0
      %v589 = vadd.f32 %v500, %v588
      %v590 = vpop.f32.mrf.mxu0
      %v591 = vadd.f32 %v502, %v590
      %592 = vmatmul.bf16.gmra.mxu0 %v439
      %v593 = vpop.f32.mrf.mxu0
      %v594 = vadd.f32 %v505, %v593
      %v595 = vpop.f32.mrf.mxu0
      %v596 = vadd.f32 %v507, %v595
      %597 = vmatmul.bf16.gmra.mxu0 %v442
      %v598 = vpop.f32.mrf.mxu0
      %v599 = vadd.f32 %v510, %v598
      %v600 = vpop.f32.mrf.mxu0
      %v601 = vadd.f32 %v512, %v600
      %602 = vmatmul.bf16.gmra.mxu0 %v445
      %v603 = vpop.f32.mrf.mxu0
      %v604 = vadd.f32 %v515, %v603
      %v605 = vpop.f32.mrf.mxu0
      %v606 = vadd.f32 %v517, %v605
      %607 = vmatmul.bf16.gmra.mxu0 %v448
      %v608 = vpop.f32.mrf.mxu0
      %v609 = vadd.f32 %v520, %v608
      %v610 = vpop.f32.mrf.mxu0
      %v611 = vadd.f32 %v522, %v610
      %612 = vmatmul.bf16.gmra.mxu0 %v451
      %v613 = vpop.f32.mrf.mxu0
      %v614 = vadd.f32 %v525, %v613
      %v615 = vpop.f32.mrf.mxu0
      %v616 = vadd.f32 %v527, %v615
      %617 = vmatmul.bf16.gmra.mxu0 %v454
      %v618 = vpop.f32.mrf.mxu0
      %v619 = vadd.f32 %v530, %v618
      %v620 = vpop.f32.mrf.mxu0
      %v621 = vadd.f32 %v532, %v620
      %622 = vmatmul.bf16.gmra.mxu0 %v457
      %v623 = vpop.f32.mrf.mxu0
      %v624 = vadd.f32 %v535, %v623
      %v625 = vpop.f32.mrf.mxu0
      %v626 = vadd.f32 %v537, %v625
      %627 = vmatmul.bf16.gmra.mxu0 %v460
      %v628 = vpop.f32.mrf.mxu0
      %v629 = vadd.f32 %v540, %v628
      %v630 = vpop.f32.mrf.mxu0
      %v631 = vadd.f32 %v542, %v630
      %632 = vmatmul.bf16.gmra.mxu0 %v463
      %v633 = vpop.f32.mrf.mxu0
      %v634 = vadd.f32 %v545, %v633
      %v635 = vpop.f32.mrf.mxu0
      %v636 = vadd.f32 %v547, %v635
      %637 = vmatmul.bf16.gmra.mxu0 %v466
      %v638 = vpop.f32.mrf.mxu0
      %v639 = vadd.f32 %v550, %v638
      %v640 = vpop.f32.mrf.mxu0
      %v641 = vadd.f32 %v552, %v640
      %642 = vmatmul.bf16.gmra.mxu0 %v469
      %v643 = vpop.f32.mrf.mxu0
      %v644 = vadd.f32 %v555, %v643
      %v645 = vpop.f32.mrf.mxu0
      %v646 = vadd.f32 %v557, %v645
      %647 = vmatmul.bf16.gmra.mxu0 %v472
      %v648 = vpop.f32.mrf.mxu0
      %v649 = vadd.f32 %v560, %v648
      %v650 = vpop.f32.mrf.mxu0
      %v651 = vadd.f32 %v562, %v650
      %652 = vmatmul.bf16.gmra.mxu0 %v475
      %v653 = vpop.f32.mrf.mxu0
      %v654 = vadd.f32 %v565, %v653
      %v655 = vpop.f32.mrf.mxu0
      %v656 = vadd.f32 %v567, %v655
      %657 = vmatmul.bf16.gmra.mxu0 %v478
      %v658 = vpop.f32.mrf.mxu0
      %v659 = vadd.f32 %v570, %v658
      %v660 = vpop.f32.mrf.mxu0
      %v661 = vadd.f32 %v572, %v660
      %662 = vmatmul.bf16.gmra.mxu0 %v481
      %v663 = vpop.f32.mrf.mxu0
      %v664 = vadd.f32 %v575, %v663
      %v665 = vpop.f32.mrf.mxu0
      %v666 = vadd.f32 %v577, %v665
      %667 = vdwg.mxu0
      %v668 = vmax.f32 %v589, 0.0
      %v669 = vmax.f32 %v591, 0.0
      %v670 = vmax.f32 %v594, 0.0
      %v671 = vmax.f32 %v596, 0.0
      %v672 = vmax.f32 %v599, 0.0
      %v673 = vmax.f32 %v601, 0.0
      %v674 = vmax.f32 %v604, 0.0
      %v675 = vmax.f32 %v606, 0.0
      %v676 = vmax.f32 %v609, 0.0
      %v677 = vmax.f32 %v611, 0.0
      %v678 = vmax.f32 %v614, 0.0
      %v679 = vmax.f32 %v616, 0.0
      %v680 = vmax.f32 %v619, 0.0
      %v681 = vmax.f32 %v621, 0.0
      %v682 = vmax.f32 %v624, 0.0
      %v683 = vmax.f32 %v626, 0.0
      %v684 = vmax.f32 %v629, 0.0
      %v685 = vmax.f32 %v631, 0.0
      %v686 = vmax.f32 %v634, 0.0
      %v687 = vmax.f32 %v636, 0.0
      %v688 = vmax.f32 %v639, 0.0
      %v689 = vmax.f32 %v641, 0.0
      %v690 = vmax.f32 %v644, 0.0
      %v691 = vmax.f32 %v646, 0.0
      %v692 = vmax.f32 %v649, 0.0
      %v693 = vmax.f32 %v651, 0.0
      %v694 = vmax.f32 %v654, 0.0
      %v695 = vmax.f32 %v656, 0.0
      %v696 = vmax.f32 %v659, 0.0
      %v697 = vmax.f32 %v661, 0.0
      %v698 = vmax.f32 %v664, 0.0
      %v699 = vmax.f32 %v666, 0.0
      %v700 = vpack.c.bf16 %v668, %v668
      %v701 = vpack.c.bf16 %v669, %v669
      %v702 = vpack.c.bf16 %v670, %v670
      %v703 = vpack.c.bf16 %v671, %v671
      %v704 = vpack.c.bf16 %v672, %v672
      %v705 = vpack.c.bf16 %v673, %v673
      %v706 = vpack.c.bf16 %v674, %v674
      %v707 = vpack.c.bf16 %v675, %v675
      %v708 = vpack.c.bf16 %v676, %v676
      %v709 = vpack.c.bf16 %v677, %v677
      %v710 = vpack.c.bf16 %v678, %v678
      %v711 = vpack.c.bf16 %v679, %v679
      %v712 = vpack.c.bf16 %v680, %v680
      %v713 = vpack.c.bf16 %v681, %v681
      %v714 = vpack.c.bf16 %v682, %v682
      %v715 = vpack.c.bf16 %v683, %v683
      %v716 = vpack.c.bf16 %v684, %v684
      %v717 = vpack.c.bf16 %v685, %v685
      %v718 = vpack.c.bf16 %v686, %v686
      %v719 = vpack.c.bf16 %v687, %v687
      %v720 = vpack.c.bf16 %v688, %v688
      %v721 = vpack.c.bf16 %v689, %v689
      %v722 = vpack.c.bf16 %v690, %v690
      %v723 = vpack.c.bf16 %v691, %v691
      %v724 = vpack.c.bf16 %v692, %v692
      %v725 = vpack.c.bf16 %v693, %v693
      %v726 = vpack.c.bf16 %v694, %v694
      %v727 = vpack.c.bf16 %v695, %v695
      %v728 = vpack.c.bf16 %v696, %v696
      %v729 = vpack.c.bf16 %v697, %v697
      %v730 = vpack.c.bf16 %v698, %v698
      %v731 = vpack.c.bf16 %v699, %v699
      %vm732 = vcmask 257024
      %733 = vst.msk [vmem:[%s175] sm:$0xf] %vm732, %v700
      %734 = vst.msk [vmem:[%s175 + $0x4] sm:$0xf] %vm732, %v701
      %735 = vst.msk [vmem:[%s175 + $0x8] sm:$0xf] %vm732, %v702
      %736 = vst.msk [vmem:[%s175 + $0xc] sm:$0xf] %vm732, %v703
      %737 = vst.msk [vmem:[%s175 + $0x10] sm:$0xf] %vm732, %v704
      %738 = vst.msk [vmem:[%s175 + $0x14] sm:$0xf] %vm732, %v705
      %739 = vst.msk [vmem:[%s175 + $0x18] sm:$0xf] %vm732, %v706
      %740 = vst.msk [vmem:[%s175 + $0x1c] sm:$0xf] %vm732, %v707
      %741 = vst.msk [vmem:[%s175 + $0x20] sm:$0xf] %vm732, %v708
      %742 = vst.msk [vmem:[%s175 + $0x24] sm:$0xf] %vm732, %v709
      %743 = vst.msk [vmem:[%s175 + $0x28] sm:$0xf] %vm732, %v710
      %744 = vst.msk [vmem:[%s175 + $0x2c] sm:$0xf] %vm732, %v711
      %745 = vst.msk [vmem:[%s175 + $0x30] sm:$0xf] %vm732, %v712
      %746 = vst.msk [vmem:[%s175 + $0x34] sm:$0xf] %vm732, %v713
      %747 = vst.msk [vmem:[%s175 + $0x38] sm:$0xf] %vm732, %v714
      %748 = vst.msk [vmem:[%s175 + $0x3c] sm:$0xf] %vm732, %v715
      %749 = vst.msk [vmem:[%s175 + $0x40] sm:$0xf] %vm732, %v716
      %750 = vst.msk [vmem:[%s175 + $0x44] sm:$0xf] %vm732, %v717
      %751 = vst.msk [vmem:[%s175 + $0x48] sm:$0xf] %vm732, %v718
      %752 = vst.msk [vmem:[%s175 + $0x4c] sm:$0xf] %vm732, %v719
      %753 = vst.msk [vmem:[%s175 + $0x50] sm:$0xf] %vm732, %v720
      %754 = vst.msk [vmem:[%s175 + $0x54] sm:$0xf] %vm732, %v721
      %755 = vst.msk [vmem:[%s175 + $0x58] sm:$0xf] %vm732, %v722
      %756 = vst.msk [vmem:[%s175 + $0x5c] sm:$0xf] %vm732, %v723
      %757 = vst.msk [vmem:[%s175 + $0x60] sm:$0xf] %vm732, %v724
      %758 = vst.msk [vmem:[%s175 + $0x64] sm:$0xf] %vm732, %v725
      %759 = vst.msk [vmem:[%s175 + $0x68] sm:$0xf] %vm732, %v726
      %760 = vst.msk [vmem:[%s175 + $0x6c] sm:$0xf] %vm732, %v727
      %761 = vst.msk [vmem:[%s175 + $0x70] sm:$0xf] %vm732, %v728
      %762 = vst.msk [vmem:[%s175 + $0x74] sm:$0xf] %vm732, %v729
      %763 = vst.msk [vmem:[%s175 + $0x78] sm:$0xf] %vm732, %v730
      %764 = vst.msk [vmem:[%s175 + $0x7c] sm:$0xf] %vm732, %v731
      %s765 = smul.u32 32, %s14
      %p766 = scmp.lt.s32.totalorder %s765, 63
      %s767 = scalar_select %p766, %s765, 63
      %s768 = smul.addr %s767, 4
      %s769 = scalar_lea.vmem %s3, %s768
      // Predicated region
      $region33: #{segformer_segmentation_forward.16} parent=31 // pred_check
        %p770 = pneg %p100
      $region34: #{segformer_segmentation_forward.16} parent=31 // pred_check_branch
        %772 = sbr.rel (%p770) target = $region36
      $region35: #{segformer_segmentation_forward.16} parent=31 // pred_region
        %s773 = smul.u32 32, %s14
      $region36: #{segformer_segmentation_forward.16} parent=31 // pred_fallthru
        _
    $region32: #{segformer_segmentation_forward.16} parent=5 // pred_fallthru
      _
    %p774 = scmp.le.s32.totalorder 2, %s9
    // Predicated region
    $region37: #{segformer_segmentation_forward.16} parent=5 // pred_check
      %p775 = pneg %p774
    $region38: #{segformer_segmentation_forward.16} parent=5 // pred_check_branch
      %777 = sbr.rel (%p775) target = $region40
    $region39: #{segformer_segmentation_forward.16} parent=5 // pred_region
      %s778 = ssub.s32 %s9, 2
      // Predicated region
      $region41: #{segformer_segmentation_forward.16} parent=39 // pred_check
        %p779 = pneg %p106
      $region42: #{segformer_segmentation_forward.16} parent=39 // pred_check_branch
        %781 = sbr.rel (%p779) target = $region44
      $region43: #{segformer_segmentation_forward.16} parent=39 // pred_region
        %s782 = smul.u32 32, %s15
        %p783 = scmp.lt.s32.totalorder %s782, 63
        %s784 = scalar_select %p783, %s782, 63
        %s785 = smul.addr %s784, 4
        %s786 = scalar_lea.vmem %s3, %s785
      $region44: #{segformer_segmentation_forward.16} parent=39 // pred_fallthru
        _
    $region40: #{segformer_segmentation_forward.16} parent=5 // pred_fallthru
      _
  $region6: #{segformer_segmentation_forward.16} parent=0 // loop_footer
    %s13 = sadd.s32 1, %s9
  $region7: #{segformer_segmentation_forward.16} parent=0 // loop_footer_branch
    %8 = sbr.rel target = $region3
  $region8: #{segformer_segmentation_forward.16} parent=0 // loop_exit
    _

// kernel: segformer_segmentation_forward.17
$region0: #{segformer_segmentation_forward.17}
  #allocation0 [shape = 'u32[]', space=smem, size = 0x4, offset = 0x4, fixed_abs, tag = 'smem constant byte address 0x4 - core index']
  #allocation1 [shape = 'u32[72,128]{1,0:T(1,128)}', space=vmem, size = 0x9000, scoped, tag = 'internal scratch']
  %s0 = inlined_call_operand.vmem [shape: bf16[128,288], index: 0, kind: input, shape index: {}]
  %s1 = inlined_call_operand.vmem [shape: bf16[288,64], index: 1, kind: input, shape index: {}]
  %s2 = inlined_call_operand.vmem [shape: f32[1,64], index: 2, kind: input, shape index: {}]
  %s3 = inlined_call_operand.vmem [shape: bf16[128,64], index: 3, kind: output, shape index: {}]
  %s4 = sld [smem:[#allocation0]]
  $region45: #{segformer_segmentation_forward.17} parent=0
    _
  %s6 = ssub.s32 1, %s4
  %s7 = scalar_select 0, %s6, %s4
  loop: start=0, step=1, limit=4
  $region2: #{segformer_segmentation_forward.17} parent=0 // loop_pre_header
    _
  $region3: #{segformer_segmentation_forward.17} parent=0 // loop_header
    %s9 = sphi 0, %s13
    %p10 = scmp.ge.s32.totalorder %s9, 4
    %s19 = sphi 0, %s21
    %s22 = sphi 0, %s19
    %s23 = sphi 0, %s22
    %s39 = sphi 0, %s23
    %s43 = sphi 0, %s43
    %s45 = sphi 0, %s43
    %s46 = sphi 0, %s45
    %s60 = sphi 0, %s46
    %s64 = sphi 0, %s64
    %s66 = sphi 0, %s64
    %s67 = sphi 0, %s66
    %s81 = sphi 0, %s67
    %s87 = sphi 0, %s89
    %s90 = sphi 0, %s87
    %s91 = sphi 0, %s90
    %s107 = sphi 0, %s91
  $region4: #{segformer_segmentation_forward.17} parent=0 // loop_header_branch
    %12 = sbr.rel (%p10) target = $region8
  $region5: #{segformer_segmentation_forward.17} parent=0 // loop_body
    %s14 = ssub.s32 %s9, 1
    %s15 = ssub.s32 %s9, 2
    %s16 = sadd.s32 %s9, 1
    %s17 = ssub.s32 %s9, %s16
    %p18 = scmp.eq.s32.totalorder %s17, 0
    %s20 = sadd.s32 %s19, 1
    %s21 = scalar_select %p18, %s19, %s20
    %p24 = pneg %p18
    %p25 = scmp.eq.s32.totalorder %s9, 1
    %p26 = por %p24, %p25
    %p27 = scmp.ne.s32.totalorder %s19, %s22
    %p28 = scmp.eq.s32.totalorder %s9, 0
    %p29 = por %p27, %p28
    %p30 = scmp.ne.s32.totalorder %s19, %s22
    %p31 = scmp.eq.s32.totalorder %s14, 1
    %p32 = por %p30, %p31
    %p33 = scmp.ne.s32.totalorder %s22, %s23
    %p34 = scmp.eq.s32.totalorder %s14, 0
    %p35 = por %p33, %p34
    %p36 = scmp.ne.s32.totalorder %s22, %s23
    %p37 = scmp.eq.s32.totalorder %s15, 1
    %p38 = por %p36, %p37
    %p40 = scmp.ne.s32.totalorder %s23, %s39
    %p41 = scmp.eq.s32.totalorder %s15, 0
    %p42 = por %p40, %p41
    %s44 = sadd.s32 %s43, 1
    %p47 = scmp.eq.s32.totalorder %s9, 1
    %p48 = scmp.ne.s32.totalorder %s43, %s45
    %p49 = scmp.eq.s32.totalorder %s9, 0
    %p50 = por %p48, %p49
    %p51 = scmp.ne.s32.totalorder %s43, %s45
    %p52 = scmp.eq.s32.totalorder %s14, 1
    %p53 = por %p51, %p52
    %p54 = scmp.ne.s32.totalorder %s45, %s46
    %p55 = scmp.eq.s32.totalorder %s14, 0
    %p56 = por %p54, %p55
    %p57 = scmp.ne.s32.totalorder %s45, %s46
    %p58 = scmp.eq.s32.totalorder %s15, 1
    %p59 = por %p57, %p58
    %p61 = scmp.ne.s32.totalorder %s46, %s60
    %p62 = scmp.eq.s32.totalorder %s15, 0
    %p63 = por %p61, %p62
    %s65 = sadd.s32 %s64, 1
    %p68 = scmp.eq.s32.totalorder %s9, 1
    %p69 = scmp.ne.s32.totalorder %s64, %s66
    %p70 = scmp.eq.s32.totalorder %s9, 0
    %p71 = por %p69, %p70
    %p72 = scmp.ne.s32.totalorder %s64, %s66
    %p73 = scmp.eq.s32.totalorder %s14, 1
    %p74 = por %p72, %p73
    %p75 = scmp.ne.s32.totalorder %s66, %s67
    %p76 = scmp.eq.s32.totalorder %s14, 0
    %p77 = por %p75, %p76
    %p78 = scmp.ne.s32.totalorder %s66, %s67
    %p79 = scmp.eq.s32.totalorder %s15, 1
    %p80 = por %p78, %p79
    %p82 = scmp.ne.s32.totalorder %s67, %s81
    %p83 = scmp.eq.s32.totalorder %s15, 0
    %p84 = por %p82, %p83
    %s85 = ssub.s32 %s9, %s16
    %p86 = scmp.eq.s32.totalorder %s85, 0
    %s88 = sadd.s32 %s87, 1
    %s89 = scalar_select %p86, %s87, %s88
    %p92 = pneg %p86
    %p93 = scmp.eq.s32.totalorder %s9, 1
    %p94 = por %p92, %p93
    %p95 = scmp.ne.s32.totalorder %s87, %s90
    %p96 = scmp.eq.s32.totalorder %s9, 0
    %p97 = por %p95, %p96
    %p98 = scmp.ne.s32.totalorder %s87, %s90
    %p99 = scmp.eq.s32.totalorder %s14, 1
    %p100 = por %p98, %p99
    %p101 = scmp.ne.s32.totalorder %s90, %s91
    %p102 = scmp.eq.s32.totalorder %s14, 0
    %p103 = por %p101, %p102
    %p104 = scmp.ne.s32.totalorder %s90, %s91
    %p105 = scmp.eq.s32.totalorder %s15, 1
    %p106 = por %p104, %p105
    %p108 = scmp.ne.s32.totalorder %s91, %s107
    %p109 = scmp.eq.s32.totalorder %s15, 0
    %p110 = por %p108, %p109
    %p111 = scmp.le.s32.totalorder 1, %s9
    %p112 = scmp.lt.s32.totalorder %s9, 3
    %p113 = pnand %p111, %p112
    %p114 = pneg %p113
    // Predicated region
    $region9: #{segformer_segmentation_forward.17} parent=5 // pred_check
      _
    $region10: #{segformer_segmentation_forward.17} parent=5 // pred_check_branch
      %116 = sbr.rel (%p113) target = $region12
    $region11: #{segformer_segmentation_forward.17} parent=5 // pred_region
      %s117 = ssub.s32 %s9, 1
      // Predicated region
      $region13: #{segformer_segmentation_forward.17} parent=11 // pred_check
        %p118 = pneg %p56
      $region14: #{segformer_segmentation_forward.17} parent=11 // pred_check_branch
        %120 = sbr.rel (%p118) target = $region16
      $region15: #{segformer_segmentation_forward.17} parent=11 // pred_region
        _
      $region16: #{segformer_segmentation_forward.17} parent=11 // pred_fallthru
        _
      // Predicated region
      $region17: #{segformer_segmentation_forward.17} parent=11 // pred_check
        %p121 = pneg %p77
      $region18: #{segformer_segmentation_forward.17} parent=11 // pred_check_branch
        %123 = sbr.rel (%p121) target = $region20
      $region19: #{segformer_segmentation_forward.17} parent=11 // pred_region
        _
      $region20: #{segformer_segmentation_forward.17} parent=11 // pred_fallthru
        _
    $region12: #{segformer_segmentation_forward.17} parent=5 // pred_fallthru
      _
    %p124 = scmp.lt.s32.totalorder %s9, 2
    // Predicated region
    $region21: #{segformer_segmentation_forward.17} parent=5 // pred_check
      %p125 = pneg %p124
    $region22: #{segformer_segmentation_forward.17} parent=5 // pred_check_branch
      %127 = sbr.rel (%p125) target = $region24
    $region23: #{segformer_segmentation_forward.17} parent=5 // pred_region
      // Predicated region
      $region25: #{segformer_segmentation_forward.17} parent=23 // pred_check
        %p128 = pneg %p29
      $region26: #{segformer_segmentation_forward.17} parent=23 // pred_check_branch
        %130 = sbr.rel (%p128) target = $region28
      $region27: #{segformer_segmentation_forward.17} parent=23 // pred_region
        %s131 = smul.u32 8, %s9
        %p132 = scmp.lt.s32.totalorder %s131, 15
        %s133 = scalar_select %p132, %s131, 15
        %s134 = smul.addr %s133, 3
        %s135 = smul.addr %s134, 4
        %s136 = scalar_lea.vmem %s0, %s135
        %s137 = smul.u32 8, %s9
      $region28: #{segformer_segmentation_forward.17} parent=23 // pred_fallthru
        _
    $region24: #{segformer_segmentation_forward.17} parent=5 // pred_fallthru
      _
    %p138 = scmp.le.s32.totalorder 1, %s9
    %p139 = scmp.lt.s32.totalorder %s9, 3
    %p140 = pnand %p138, %p139
    %p141 = pneg %p140
    // Predicated region
    $region29: #{segformer_segmentation_forward.17} parent=5 // pred_check
      _
    $region30: #{segformer_segmentation_forward.17} parent=5 // pred_check_branch
      %143 = sbr.rel (%p140) target = $region32
    $region31: #{segformer_segmentation_forward.17} parent=5 // pred_region
      %s144 = ssub.s32 %s9, 1
      %s145 = smul.u32 8, %s14
      %p146 = scmp.lt.s32.totalorder %s145, 15
      %s147 = scalar_select %p146, %s145, 15
      %s148 = smul.addr %s147, 3
      %s149 = smul.addr %s148, 4
      %s150 = scalar_lea.vmem %s0, %s149
      %p151 = pneg %p35
      %p152 = pneg %p32
      %p153 = pneg %p56
      %p154 = pneg %p53
      %p155 = pneg %p77
      %p156 = pneg %p74
      %p157 = pneg %p103
      %p158 = pneg %p100
      %s159 = smul.u32 8, %s14
      %p160 = scmp.lt.s32.totalorder %s159, 15
      %s161 = scalar_select %p160, %s159, 15
      %s162 = smul.addr %s161, 4
      %s163 = scalar_lea.vmem %s3, %s162
      %s164 = smul.u32 8, %s14
      %p165 = scmp.lt.s32.totalorder %s164, 15
      %s166 = scalar_select %p165, %s164, 15
      %s167 = smul.addr %s166, 3
      %s168 = smul.addr %s167, 4
      %s169 = scalar_lea.vmem %s0, %s168
      %s170 = smul.u32 8, %s14
      %s171 = smul.u32 8, %s14
      %p172 = scmp.lt.s32.totalorder %s171, 15
      %s173 = scalar_select %p172, %s171, 15
      %s174 = smul.addr %s173, 4
      %s175 = scalar_lea.vmem %s3, %s174
      %s176 = smul.u32 8, %s14
      %v178 = vld [vmem:[%s169] sm:$0xff]
      %v179 = vld [vmem:[%s169 + $0x8] sm:$0xf]
      %v180 = vld [vmem:[%s169 + $0xc] sm:$0xff]
      %v181 = vld [vmem:[%s169 + $0x14] sm:$0xf]
      %v182 = vld [vmem:[%s169 + $0x18] sm:$0xff]
      %v183 = vld [vmem:[%s169 + $0x20] sm:$0xf]
      %v184 = vld [vmem:[%s169 + $0x24] sm:$0xff]
      %v185 = vld [vmem:[%s169 + $0x2c] sm:$0xf]
      %v186 = vld [vmem:[%s169 + $0x30] sm:$0xff]
      %v187 = vld [vmem:[%s169 + $0x38] sm:$0xf]
      %v188 = vld [vmem:[%s169 + $0x3c] sm:$0xff]
      %v189 = vld [vmem:[%s169 + $0x44] sm:$0xf]
      %v190 = vld [vmem:[%s169 + $0x48] sm:$0xff]
      %v191 = vld [vmem:[%s169 + $0x50] sm:$0xf]
      %v192 = vld [vmem:[%s169 + $0x54] sm:$0xff]
      %v193 = vld [vmem:[%s169 + $0x5c] sm:$0xf]
      %v194 = vld [vmem:[%s1] sm:$0xf]
      %v195 = vld [vmem:[%s1 + $0x4] sm:$0xf]
      %v196 = vld [vmem:[%s1 + $0x8] sm:$0xf]
      %v197 = vld [vmem:[%s1 + $0xc] sm:$0xf]
      %v198 = vld [vmem:[%s1 + $0x10] sm:$0xf]
      %v199 = vld [vmem:[%s1 + $0x14] sm:$0xf]
      %v200 = vld [vmem:[%s1 + $0x18] sm:$0xf]
      %v201 = vld [vmem:[%s1 + $0x1c] sm:$0xf]
      %v202 = vld [vmem:[%s1 + $0x20] sm:$0xf]
      %v203 = vld [vmem:[%s1 + $0x24] sm:$0xf]
      %v204 = vld [vmem:[%s1 + $0x28] sm:$0xf]
      %v205 = vld [vmem:[%s1 + $0x2c] sm:$0xf]
      %v206 = vld [vmem:[%s1 + $0x30] sm:$0xf]
      %v207 = vld [vmem:[%s1 + $0x34] sm:$0xf]
      %v208 = vld [vmem:[%s1 + $0x38] sm:$0xf]
      %v209 = vld [vmem:[%s1 + $0x3c] sm:$0xf]
      %v210 = vld [vmem:[%s1 + $0x40] sm:$0xf]
      %v211 = vld [vmem:[%s1 + $0x44] sm:$0xf]
      %v212 = vld [vmem:[%s1 + $0x48] sm:$0xf]
      %v213 = vld [vmem:[%s1 + $0x4c] sm:$0xf]
      %v214 = vld [vmem:[%s1 + $0x50] sm:$0xf]
      %v215 = vld [vmem:[%s1 + $0x54] sm:$0xf]
      %v216 = vld [vmem:[%s1 + $0x58] sm:$0xf]
      %v217 = vld [vmem:[%s1 + $0x5c] sm:$0xf]
      %v218 = vld [vmem:[%s1 + $0x60] sm:$0xf]
      %v219 = vld [vmem:[%s1 + $0x64] sm:$0xf]
      %v220 = vld [vmem:[%s1 + $0x68] sm:$0xf]
      %v221 = vld [vmem:[%s1 + $0x6c] sm:$0xf]
      %v222 = vld [vmem:[%s1 + $0x70] sm:$0xf]
      %v223 = vld [vmem:[%s1 + $0x74] sm:$0xf]
      %v224 = vld [vmem:[%s1 + $0x78] sm:$0xf]
      %v225 = vld [vmem:[%s1 + $0x7c] sm:$0xf]
      %v226 = vld [vmem:[%s1 + $0x80] sm:$0xf]
      %v227 = vld [vmem:[%s1 + $0x84] sm:$0xf]
      %v228 = vld [vmem:[%s1 + $0x88] sm:$0xf]
      %v229 = vld [vmem:[%s1 + $0x8c] sm:$0xf]
      %v230 = vld [vmem:[%s2] sm:$0x1]
      %v232 = vperm.slane %v230, 0
      %v250 = vunpack.c.l.b16 %v178
      %v251 = vunpack.c.h.b16 %v178
      %v252 = vunpack.c.l.b16 %v179
      %v253 = vunpack.c.l.b16 %v180
      %v254 = vunpack.c.h.b16 %v180
      %v255 = vunpack.c.l.b16 %v181
      %v256 = vunpack.c.l.b16 %v182
      %v257 = vunpack.c.h.b16 %v182
      %v258 = vunpack.c.l.b16 %v183
      %v259 = vunpack.c.l.b16 %v184
      %v260 = vunpack.c.h.b16 %v184
      %v261 = vunpack.c.l.b16 %v185
      %v262 = vunpack.c.l.b16 %v186
      %v263 = vunpack.c.h.b16 %v186
      %v264 = vunpack.c.l.b16 %v187
      %v265 = vunpack.c.l.b16 %v188
      %v266 = vunpack.c.h.b16 %v188
      %v267 = vunpack.c.l.b16 %v189
      %v268 = vunpack.c.l.b16 %v190
      %v269 = vunpack.c.h.b16 %v190
      %v270 = vunpack.c.l.b16 %v191
      %v271 = vunpack.c.l.b16 %v192
      %v272 = vunpack.c.h.b16 %v192
      %v273 = vunpack.c.l.b16 %v193
      %v274 = vpack.c.b16 %v253, %v250
      %v275 = vpack.c.b16 %v254, %v251
      %v276 = vpack.c.b16 %v255, %v252
      %v277 = vpack.c.b16 %v259, %v256
      %v278 = vpack.c.b16 %v260, %v257
      %v279 = vpack.c.b16 %v261, %v258
      %v280 = vpack.c.b16 %v265, %v262
      %v281 = vpack.c.b16 %v266, %v263
      %v282 = vpack.c.b16 %v267, %v264
      %v283 = vpack.c.b16 %v271, %v268
      %v284 = vpack.c.b16 %v272, %v269
      %v285 = vpack.c.b16 %v273, %v270
      %v330 = vunpack.c.l.b16 %v194
      %v331 = vunpack.c.l.b16 %v195
      %v332 = vunpack.c.l.b16 %v196
      %v333 = vunpack.c.l.b16 %v197
      %v334 = vunpack.c.l.b16 %v198
      %v335 = vunpack.c.l.b16 %v199
      %v336 = vunpack.c.l.b16 %v200
      %v337 = vunpack.c.l.b16 %v201
      %v338 = vunpack.c.l.b16 %v202
      %v339 = vunpack.c.l.b16 %v203
      %v340 = vunpack.c.l.b16 %v204
      %v341 = vunpack.c.l.b16 %v205
      %v342 = vunpack.c.l.b16 %v206
      %v343 = vunpack.c.l.b16 %v207
      %v344 = vunpack.c.l.b16 %v208
      %v345 = vunpack.c.l.b16 %v209
      %v346 = vunpack.c.l.b16 %v210
      %v347 = vunpack.c.l.b16 %v211
      %v348 = vunpack.c.l.b16 %v212
      %v349 = vunpack.c.l.b16 %v213
      %v350 = vunpack.c.l.b16 %v214
      %v351 = vunpack.c.l.b16 %v215
      %v352 = vunpack.c.l.b16 %v216
      %v353 = vunpack.c.l.b16 %v217
      %v354 = vunpack.c.l.b16 %v218
      %v355 = vunpack.c.l.b16 %v219
      %v356 = vunpack.c.l.b16 %v220
      %v357 = vunpack.c.l.b16 %v221
      %v358 = vunpack.c.l.b16 %v222
      %v359 = vunpack.c.l.b16 %v223
      %v360 = vunpack.c.l.b16 %v224
      %v361 = vunpack.c.l.b16 %v225
      %v362 = vunpack.c.l.b16 %v226
      %v363 = vunpack.c.l.b16 %v227
      %v364 = vunpack.c.l.b16 %v228
      %v365 = vunpack.c.l.b16 %v229
      %v366 = vpack.c.b16 %v331, %v330
      %v367 = vpack.c.b16 %v333, %v332
      %v368 = vpack.c.b16 %v335, %v334
      %v369 = vpack.c.b16 %v337, %v336
      %v370 = vpack.c.b16 %v339, %v338
      %v371 = vpack.c.b16 %v341, %v340
      %v372 = vpack.c.b16 %v343, %v342
      %v373 = vpack.c.b16 %v345, %v344
      %v374 = vpack.c.b16 %v347, %v346
      %v375 = vpack.c.b16 %v349, %v348
      %v376 = vpack.c.b16 %v351, %v350
      %v377 = vpack.c.b16 %v353, %v352
      %v378 = vpack.c.b16 %v355, %v354
      %v379 = vpack.c.b16 %v357, %v356
      %v380 = vpack.c.b16 %v359, %v358
      %v381 = vpack.c.b16 %v361, %v360
      %v382 = vpack.c.b16 %v363, %v362
      %v383 = vpack.c.b16 %v365, %v364
      %vm402 = vcmask 261120
      %v404 = vsel %vm402, %v276, 0
      %v407 = vsel %vm402, %v279, 0
      %v410 = vsel %vm402, %v282, 0
      %v413 = vsel %vm402, %v285, 0
      %415 = vmatpush.bf16.msra.mxu0 %v373
      %416 = vmatpush.bf16.msra.mxu0 %v372
      %417 = vmatpush.bf16.msra.mxu0 %v371
      %418 = vmatpush.bf16.msra.mxu0 %v370
      %419 = vmatpush.bf16.msra.mxu0 %v369
      %420 = vmatpush.bf16.msra.mxu0 %v368
      %421 = vmatpush.bf16.msra.mxu0 %v367
      %422 = vmatpush.bf16.msra.mxu0 %v366
      %423 = vmatmul.bf16.gmra.mxu0 %v274
      %v424 = vpop.f32.mrf.mxu0
      %v425 = vadd.f32 %v232, %v424
      %v426 = vpop.f32.mrf.mxu0
      %v427 = vadd.f32 %v232, %v426
      %428 = vmatmul.bf16.gmra.mxu0 %v277
      %v429 = vpop.f32.mrf.mxu0
      %v430 = vadd.f32 %v232, %v429
      %v431 = vpop.f32.mrf.mxu0
      %v432 = vadd.f32 %v232, %v431
      %433 = vmatmul.bf16.gmra.mxu0 %v280
      %v434 = vpop.f32.mrf.mxu0
      %v435 = vadd.f32 %v232, %v434
      %v436 = vpop.f32.mrf.mxu0
      %v437 = vadd.f32 %v232, %v436
      %438 = vmatmul.bf16.gmra.mxu0 %v283
      %v439 = vpop.f32.mrf.mxu0
      %v440 = vadd.f32 %v232, %v439
      %v441 = vpop.f32.mrf.mxu0
      %v442 = vadd.f32 %v232, %v441
      %443 = vdwg.mxu0
      %444 = vmatpush.bf16.msra.mxu0 %v381
      %445 = vmatpush.bf16.msra.mxu0 %v380
      %446 = vmatpush.bf16.msra.mxu0 %v379
      %447 = vmatpush.bf16.msra.mxu0 %v378
      %448 = vmatpush.bf16.msra.mxu0 %v377
      %449 = vmatpush.bf16.msra.mxu0 %v376
      %450 = vmatpush.bf16.msra.mxu0 %v375
      %451 = vmatpush.bf16.msra.mxu0 %v374
      %452 = vmatmul.bf16.gmra.mxu0 %v275
      %v453 = vpop.f32.mrf.mxu0
      %v454 = vadd.f32 %v425, %v453
      %v455 = vpop.f32.mrf.mxu0
      %v456 = vadd.f32 %v427, %v455
      %457 = vmatmul.bf16.gmra.mxu0 %v278
      %v458 = vpop.f32.mrf.mxu0
      %v459 = vadd.f32 %v430, %v458
      %v460 = vpop.f32.mrf.mxu0
      %v461 = vadd.f32 %v432, %v460
      %462 = vmatmul.bf16.gmra.mxu0 %v281
      %v463 = vpop.f32.mrf.mxu0
      %v464 = vadd.f32 %v435, %v463
      %v465 = vpop.f32.mrf.mxu0
      %v466 = vadd.f32 %v437, %v465
      %467 = vmatmul.bf16.gmra.mxu0 %v284
      %v468 = vpop.f32.mrf.mxu0
      %v469 = vadd.f32 %v440, %v468
      %v470 = vpop.f32.mrf.mxu0
      %v471 = vadd.f32 %v442, %v470
      %472 = vdwg.mxu0
      %473 = vmatpush.bf16.msra.mxu0 0
      %474 = vmatpush.bf16.msra.mxu0 0
      %475 = vmatpush.bf16.msra.mxu0 0
      %476 = vmatpush.bf16.msra.mxu0 0
      %477 = vmatpush.bf16.msra.mxu0 0
      %478 = vmatpush.bf16.msra.mxu0 0
      %479 = vmatpush.bf16.msra.mxu0 %v383
      %480 = vmatpush.bf16.msra.mxu0 %v382
      %481 = vmatmul.bf16.gmra.mxu0 %v404
      %v482 = vpop.f32.mrf.mxu0
      %v483 = vadd.f32 %v454, %v482
      %v484 = vpop.f32.mrf.mxu0
      %v485 = vadd.f32 %v456, %v484
      %486 = vmatmul.bf16.gmra.mxu0 %v407
      %v487 = vpop.f32.mrf.mxu0
      %v488 = vadd.f32 %v459, %v487
      %v489 = vpop.f32.mrf.mxu0
      %v490 = vadd.f32 %v461, %v489
      %491 = vmatmul.bf16.gmra.mxu0 %v410
      %v492 = vpop.f32.mrf.mxu0
      %v493 = vadd.f32 %v464, %v492
      %v494 = vpop.f32.mrf.mxu0
      %v495 = vadd.f32 %v466, %v494
      %496 = vmatmul.bf16.gmra.mxu0 %v413
      %v497 = vpop.f32.mrf.mxu0
      %v498 = vadd.f32 %v469, %v497
      %v499 = vpop.f32.mrf.mxu0
      %v500 = vadd.f32 %v471, %v499
      %501 = vdwg.mxu0
      %v502 = vmax.f32 %v483, 0.0
      %v503 = vmax.f32 %v485, 0.0
      %v504 = vmax.f32 %v488, 0.0
      %v505 = vmax.f32 %v490, 0.0
      %v506 = vmax.f32 %v493, 0.0
      %v507 = vmax.f32 %v495, 0.0
      %v508 = vmax.f32 %v498, 0.0
      %v509 = vmax.f32 %v500, 0.0
      %v510 = vpack.c.bf16 %v502, %v502
      %v511 = vpack.c.bf16 %v503, %v503
      %v512 = vpack.c.bf16 %v504, %v504
      %v513 = vpack.c.bf16 %v505, %v505
      %v514 = vpack.c.bf16 %v506, %v506
      %v515 = vpack.c.bf16 %v507, %v507
      %v516 = vpack.c.bf16 %v508, %v508
      %v517 = vpack.c.bf16 %v509, %v509
      %vm518 = vcmask 519168
      %519 = vst.msk [vmem:[%s175] sm:$0xf] %vm518, %v510
      %520 = vst.msk [vmem:[%s175 + $0x4] sm:$0xf] %vm518, %v511
      %521 = vst.msk [vmem:[%s175 + $0x8] sm:$0xf] %vm518, %v512
      %522 = vst.msk [vmem:[%s175 + $0xc] sm:$0xf] %vm518, %v513
      %523 = vst.msk [vmem:[%s175 + $0x10] sm:$0xf] %vm518, %v514
      %524 = vst.msk [vmem:[%s175 + $0x14] sm:$0xf] %vm518, %v515
      %525 = vst.msk [vmem:[%s175 + $0x18] sm:$0xf] %vm518, %v516
      %526 = vst.msk [vmem:[%s175 + $0x1c] sm:$0xf] %vm518, %v517
      %s527 = smul.u32 8, %s14
      %p528 = scmp.lt.s32.totalorder %s527, 15
      %s529 = scalar_select %p528, %s527, 15
      %s530 = smul.addr %s529, 4
      %s531 = scalar_lea.vmem %s3, %s530
      // Predicated region
      $region33: #{segformer_segmentation_forward.17} parent=31 // pred_check
        %p532 = pneg %p100
      $region34: #{segformer_segmentation_forward.17} parent=31 // pred_check_branch
        %534 = sbr.rel (%p532) target = $region36
      $region35: #{segformer_segmentation_forward.17} parent=31 // pred_region
        %s535 = smul.u32 8, %s14
      $region36: #{segformer_segmentation_forward.17} parent=31 // pred_fallthru
        _
    $region32: #{segformer_segmentation_forward.17} parent=5 // pred_fallthru
      _
    %p536 = scmp.le.s32.totalorder 2, %s9
    // Predicated region
    $region37: #{segformer_segmentation_forward.17} parent=5 // pred_check
      %p537 = pneg %p536
    $region38: #{segformer_segmentation_forward.17} parent=5 // pred_check_branch
      %539 = sbr.rel (%p537) target = $region40
    $region39: #{segformer_segmentation_forward.17} parent=5 // pred_region
      %s540 = ssub.s32 %s9, 2
      // Predicated region
      $region41: #{segformer_segmentation_forward.17} parent=39 // pred_check
        %p541 = pneg %p106
      $region42: #{segformer_segmentation_forward.17} parent=39 // pred_check_branch
        %543 = sbr.rel (%p541) target = $region44
      $region43: #{segformer_segmentation_forward.17} parent=39 // pred_region
        %s544 = smul.u32 8, %s15
        %p545 = scmp.lt.s32.totalorder %s544, 15
        %s546 = scalar_select %p545, %s544, 15
        %s547 = smul.addr %s546, 4
        %s548 = scalar_lea.vmem %s3, %s547
      $region44: #{segformer_segmentation_forward.17} parent=39 // pred_fallthru
        _
    $region40: #{segformer_segmentation_forward.17} parent=5 // pred_fallthru
      _
  $region6: #{segformer_segmentation_forward.17} parent=0 // loop_footer
    %s13 = sadd.s32 1, %s9
  $region7: #{segformer_segmentation_forward.17} parent=0 // loop_footer_branch
    %8 = sbr.rel target = $region3
  $region8: #{segformer_segmentation_forward.17} parent=0 // loop_exit
    _

// kernel: segformer_segmentation_forward.21
$region0: #{segformer_segmentation_forward.21}
  #allocation0 [shape = 'u32[]', space=smem, size = 0x4, offset = 0x4, fixed_abs, tag = 'smem constant byte address 0x4 - core index']
  #allocation1 [shape = 'u32[72,128]{1,0:T(1,128)}', space=vmem, size = 0x9000, scoped, tag = 'internal scratch']
  %s0 = inlined_call_operand.vmem [shape: bf16[128,64], index: 0, kind: input, shape index: {}]
  %s1 = inlined_call_operand.vmem [shape: bf16[64,128], index: 1, kind: input, shape index: {}]
  %s2 = inlined_call_operand.vmem [shape: f32[1,128], index: 2, kind: input, shape index: {}]
  %s3 = inlined_call_operand.vmem [shape: bf16[128,128], index: 3, kind: output, shape index: {}]
  %s4 = sld [smem:[#allocation0]]
  $region45: #{segformer_segmentation_forward.21} parent=0
    _
  %s6 = ssub.s32 1, %s4
  %s7 = scalar_select 0, %s6, %s4
  loop: start=0, step=1, limit=4
  $region2: #{segformer_segmentation_forward.21} parent=0 // loop_pre_header
    _
  $region3: #{segformer_segmentation_forward.21} parent=0 // loop_header
    %s9 = sphi 0, %s13
    %p10 = scmp.ge.s32.totalorder %s9, 4
    %s19 = sphi 0, %s21
    %s22 = sphi 0, %s19
    %s23 = sphi 0, %s22
    %s39 = sphi 0, %s23
    %s43 = sphi 0, %s43
    %s45 = sphi 0, %s43
    %s46 = sphi 0, %s45
    %s60 = sphi 0, %s46
    %s64 = sphi 0, %s64
    %s66 = sphi 0, %s64
    %s67 = sphi 0, %s66
    %s81 = sphi 0, %s67
    %s87 = sphi 0, %s89
    %s90 = sphi 0, %s87
    %s91 = sphi 0, %s90
    %s107 = sphi 0, %s91
  $region4: #{segformer_segmentation_forward.21} parent=0 // loop_header_branch
    %12 = sbr.rel (%p10) target = $region8
  $region5: #{segformer_segmentation_forward.21} parent=0 // loop_body
    %s14 = ssub.s32 %s9, 1
    %s15 = ssub.s32 %s9, 2
    %s16 = sadd.s32 %s9, 1
    %s17 = ssub.s32 %s9, %s16
    %p18 = scmp.eq.s32.totalorder %s17, 0
    %s20 = sadd.s32 %s19, 1
    %s21 = scalar_select %p18, %s19, %s20
    %p24 = pneg %p18
    %p25 = scmp.eq.s32.totalorder %s9, 1
    %p26 = por %p24, %p25
    %p27 = scmp.ne.s32.totalorder %s19, %s22
    %p28 = scmp.eq.s32.totalorder %s9, 0
    %p29 = por %p27, %p28
    %p30 = scmp.ne.s32.totalorder %s19, %s22
    %p31 = scmp.eq.s32.totalorder %s14, 1
    %p32 = por %p30, %p31
    %p33 = scmp.ne.s32.totalorder %s22, %s23
    %p34 = scmp.eq.s32.totalorder %s14, 0
    %p35 = por %p33, %p34
    %p36 = scmp.ne.s32.totalorder %s22, %s23
    %p37 = scmp.eq.s32.totalorder %s15, 1
    %p38 = por %p36, %p37
    %p40 = scmp.ne.s32.totalorder %s23, %s39
    %p41 = scmp.eq.s32.totalorder %s15, 0
    %p42 = por %p40, %p41
    %s44 = sadd.s32 %s43, 1
    %p47 = scmp.eq.s32.totalorder %s9, 1
    %p48 = scmp.ne.s32.totalorder %s43, %s45
    %p49 = scmp.eq.s32.totalorder %s9, 0
    %p50 = por %p48, %p49
    %p51 = scmp.ne.s32.totalorder %s43, %s45
    %p52 = scmp.eq.s32.totalorder %s14, 1
    %p53 = por %p51, %p52
    %p54 = scmp.ne.s32.totalorder %s45, %s46
    %p55 = scmp.eq.s32.totalorder %s14, 0
    %p56 = por %p54, %p55
    %p57 = scmp.ne.s32.totalorder %s45, %s46
    %p58 = scmp.eq.s32.totalorder %s15, 1
    %p59 = por %p57, %p58
    %p61 = scmp.ne.s32.totalorder %s46, %s60
    %p62 = scmp.eq.s32.totalorder %s15, 0
    %p63 = por %p61, %p62
    %s65 = sadd.s32 %s64, 1
    %p68 = scmp.eq.s32.totalorder %s9, 1
    %p69 = scmp.ne.s32.totalorder %s64, %s66
    %p70 = scmp.eq.s32.totalorder %s9, 0
    %p71 = por %p69, %p70
    %p72 = scmp.ne.s32.totalorder %s64, %s66
    %p73 = scmp.eq.s32.totalorder %s14, 1
    %p74 = por %p72, %p73
    %p75 = scmp.ne.s32.totalorder %s66, %s67
    %p76 = scmp.eq.s32.totalorder %s14, 0
    %p77 = por %p75, %p76
    %p78 = scmp.ne.s32.totalorder %s66, %s67
    %p79 = scmp.eq.s32.totalorder %s15, 1
    %p80 = por %p78, %p79
    %p82 = scmp.ne.s32.totalorder %s67, %s81
    %p83 = scmp.eq.s32.totalorder %s15, 0
    %p84 = por %p82, %p83
    %s85 = ssub.s32 %s9, %s16
    %p86 = scmp.eq.s32.totalorder %s85, 0
    %s88 = sadd.s32 %s87, 1
    %s89 = scalar_select %p86, %s87, %s88
    %p92 = pneg %p86
    %p93 = scmp.eq.s32.totalorder %s9, 1
    %p94 = por %p92, %p93
    %p95 = scmp.ne.s32.totalorder %s87, %s90
    %p96 = scmp.eq.s32.totalorder %s9, 0
    %p97 = por %p95, %p96
    %p98 = scmp.ne.s32.totalorder %s87, %s90
    %p99 = scmp.eq.s32.totalorder %s14, 1
    %p100 = por %p98, %p99
    %p101 = scmp.ne.s32.totalorder %s90, %s91
    %p102 = scmp.eq.s32.totalorder %s14, 0
    %p103 = por %p101, %p102
    %p104 = scmp.ne.s32.totalorder %s90, %s91
    %p105 = scmp.eq.s32.totalorder %s15, 1
    %p106 = por %p104, %p105
    %p108 = scmp.ne.s32.totalorder %s91, %s107
    %p109 = scmp.eq.s32.totalorder %s15, 0
    %p110 = por %p108, %p109
    %p111 = scmp.le.s32.totalorder 1, %s9
    %p112 = scmp.lt.s32.totalorder %s9, 3
    %p113 = pnand %p111, %p112
    %p114 = pneg %p113
    // Predicated region
    $region9: #{segformer_segmentation_forward.21} parent=5 // pred_check
      _
    $region10: #{segformer_segmentation_forward.21} parent=5 // pred_check_branch
      %116 = sbr.rel (%p113) target = $region12
    $region11: #{segformer_segmentation_forward.21} parent=5 // pred_region
      %s117 = ssub.s32 %s9, 1
      // Predicated region
      $region13: #{segformer_segmentation_forward.21} parent=11 // pred_check
        %p118 = pneg %p56
      $region14: #{segformer_segmentation_forward.21} parent=11 // pred_check_branch
        %120 = sbr.rel (%p118) target = $region16
      $region15: #{segformer_segmentation_forward.21} parent=11 // pred_region
        _
      $region16: #{segformer_segmentation_forward.21} parent=11 // pred_fallthru
        _
      // Predicated region
      $region17: #{segformer_segmentation_forward.21} parent=11 // pred_check
        %p121 = pneg %p77
      $region18: #{segformer_segmentation_forward.21} parent=11 // pred_check_branch
        %123 = sbr.rel (%p121) target = $region20
      $region19: #{segformer_segmentation_forward.21} parent=11 // pred_region
        _
      $region20: #{segformer_segmentation_forward.21} parent=11 // pred_fallthru
        _
    $region12: #{segformer_segmentation_forward.21} parent=5 // pred_fallthru
      _
    %p124 = scmp.lt.s32.totalorder %s9, 2
    // Predicated region
    $region21: #{segformer_segmentation_forward.21} parent=5 // pred_check
      %p125 = pneg %p124
    $region22: #{segformer_segmentation_forward.21} parent=5 // pred_check_branch
      %127 = sbr.rel (%p125) target = $region24
    $region23: #{segformer_segmentation_forward.21} parent=5 // pred_region
      // Predicated region
      $region25: #{segformer_segmentation_forward.21} parent=23 // pred_check
        %p128 = pneg %p29
      $region26: #{segformer_segmentation_forward.21} parent=23 // pred_check_branch
        %130 = sbr.rel (%p128) target = $region28
      $region27: #{segformer_segmentation_forward.21} parent=23 // pred_region
        %s131 = smul.u32 8, %s9
        %p132 = scmp.lt.s32.totalorder %s131, 15
        %s133 = scalar_select %p132, %s131, 15
        %s134 = smul.addr %s133, 4
        %s135 = scalar_lea.vmem %s0, %s134
        %s136 = smul.u32 8, %s9
      $region28: #{segformer_segmentation_forward.21} parent=23 // pred_fallthru
        _
    $region24: #{segformer_segmentation_forward.21} parent=5 // pred_fallthru
      _
    %p137 = scmp.le.s32.totalorder 1, %s9
    %p138 = scmp.lt.s32.totalorder %s9, 3
    %p139 = pnand %p137, %p138
    %p140 = pneg %p139
    // Predicated region
    $region29: #{segformer_segmentation_forward.21} parent=5 // pred_check
      _
    $region30: #{segformer_segmentation_forward.21} parent=5 // pred_check_branch
      %142 = sbr.rel (%p139) target = $region32
    $region31: #{segformer_segmentation_forward.21} parent=5 // pred_region
      %s143 = ssub.s32 %s9, 1
      %s144 = smul.u32 8, %s14
      %p145 = scmp.lt.s32.totalorder %s144, 15
      %s146 = scalar_select %p145, %s144, 15
      %s147 = smul.addr %s146, 4
      %s148 = scalar_lea.vmem %s0, %s147
      %p149 = pneg %p35
      %p150 = pneg %p32
      %p151 = pneg %p56
      %p152 = pneg %p53
      %p153 = pneg %p77
      %p154 = pneg %p74
      %p155 = pneg %p103
      %p156 = pneg %p100
      %s157 = smul.u32 8, %s14
      %p158 = scmp.lt.s32.totalorder %s157, 15
      %s159 = scalar_select %p158, %s157, 15
      %s160 = smul.addr %s159, 4
      %s161 = scalar_lea.vmem %s3, %s160
      %s162 = smul.u32 8, %s14
      %p163 = scmp.lt.s32.totalorder %s162, 15
      %s164 = scalar_select %p163, %s162, 15
      %s165 = smul.addr %s164, 4
      %s166 = scalar_lea.vmem %s0, %s165
      %s167 = smul.u32 8, %s14
      %s168 = smul.u32 8, %s14
      %p169 = scmp.lt.s32.totalorder %s168, 15
      %s170 = scalar_select %p169, %s168, 15
      %s171 = smul.addr %s170, 4
      %s172 = scalar_lea.vmem %s3, %s171
      %s173 = smul.u32 8, %s14
      %v175 = vld [vmem:[%s166] sm:$0xf]
      %v176 = vld [vmem:[%s166 + $0x4] sm:$0xf]
      %v177 = vld [vmem:[%s166 + $0x8] sm:$0xf]
      %v178 = vld [vmem:[%s166 + $0xc] sm:$0xf]
      %v179 = vld [vmem:[%s166 + $0x10] sm:$0xf]
      %v180 = vld [vmem:[%s166 + $0x14] sm:$0xf]
      %v181 = vld [vmem:[%s166 + $0x18] sm:$0xf]
      %v182 = vld [vmem:[%s166 + $0x1c] sm:$0xf]
      %v183 = vld [vmem:[%s1] sm:$0xf]
      %v184 = vld [vmem:[%s1 + $0x4] sm:$0xf]
      %v185 = vld [vmem:[%s1 + $0x8] sm:$0xf]
      %v186 = vld [vmem:[%s1 + $0xc] sm:$0xf]
      %v187 = vld [vmem:[%s1 + $0x10] sm:$0xf]
      %v188 = vld [vmem:[%s1 + $0x14] sm:$0xf]
      %v189 = vld [vmem:[%s1 + $0x18] sm:$0xf]
      %v190 = vld [vmem:[%s1 + $0x1c] sm:$0xf]
      %v191 = vld [vmem:[%s2] sm:$0x1]
      %v193 = vperm.slane %v191, 0
      %v203 = vunpack.c.l.b16 %v175
      %v204 = vunpack.c.l.b16 %v176
      %v205 = vunpack.c.l.b16 %v177
      %v206 = vunpack.c.l.b16 %v178
      %v207 = vunpack.c.l.b16 %v179
      %v208 = vunpack.c.l.b16 %v180
      %v209 = vunpack.c.l.b16 %v181
      %v210 = vunpack.c.l.b16 %v182
      %v211 = vpack.c.b16 %v204, %v203
      %v212 = vpack.c.b16 %v206, %v205
      %v213 = vpack.c.b16 %v208, %v207
      %v214 = vpack.c.b16 %v210, %v209
      %v223 = vunpack.c.l.b16 %v183
      %v224 = vunpack.c.l.b16 %v184
      %v225 = vunpack.c.l.b16 %v185
      %v226 = vunpack.c.l.b16 %v186
      %v227 = vunpack.c.l.b16 %v187
      %v228 = vunpack.c.l.b16 %v188
      %v229 = vunpack.c.l.b16 %v189
      %v230 = vunpack.c.l.b16 %v190
      %v231 = vpack.c.b16 %v224, %v223
      %v232 = vpack.c.b16 %v226, %v225
      %v233 = vpack.c.b16 %v228, %v227
      %v234 = vpack.c.b16 %v230, %v229
      %vm239 = vcmask 523264
      %v241 = vsel %vm239, %v211, 0
      %v244 = vsel %vm239, %v212, 0
      %v247 = vsel %vm239, %v213, 0
      %v250 = vsel %vm239, %v214, 0
      %252 = vmatpush.bf16.msra.mxu0 0
      %253 = vmatpush.bf16.msra.mxu0 0
      %254 = vmatpush.bf16.msra.mxu0 0
      %255 = vmatpush.bf16.msra.mxu0 0
      %256 = vmatpush.bf16.msra.mxu0 %v234
      %257 = vmatpush.bf16.msra.mxu0 %v233
      %258 = vmatpush.bf16.msra.mxu0 %v232
      %259 = vmatpush.bf16.msra.mxu0 %v231
      %260 = vmatmul.bf16.gmra.mxu0 %v241
      %v261 = vpop.f32.mrf.mxu0
      %v262 = vadd.f32 %v193, %v261
      %v263 = vpop.f32.mrf.mxu0
      %v264 = vadd.f32 %v193, %v263
      %265 = vmatmul.bf16.gmra.mxu0 %v244
      %v266 = vpop.f32.mrf.mxu0
      %v267 = vadd.f32 %v193, %v266
      %v268 = vpop.f32.mrf.mxu0
      %v269 = vadd.f32 %v193, %v268
      %270 = vmatmul.bf16.gmra.mxu0 %v247
      %v271 = vpop.f32.mrf.mxu0
      %v272 = vadd.f32 %v193, %v271
      %v273 = vpop.f32.mrf.mxu0
      %v274 = vadd.f32 %v193, %v273
      %275 = vmatmul.bf16.gmra.mxu0 %v250
      %v276 = vpop.f32.mrf.mxu0
      %v277 = vadd.f32 %v193, %v276
      %v278 = vpop.f32.mrf.mxu0
      %v279 = vadd.f32 %v193, %v278
      %280 = vdwg.mxu0
      %v281 = vmax.f32 %v262, 0.0
      %v282 = vmax.f32 %v264, 0.0
      %v283 = vmax.f32 %v267, 0.0
      %v284 = vmax.f32 %v269, 0.0
      %v285 = vmax.f32 %v272, 0.0
      %v286 = vmax.f32 %v274, 0.0
      %v287 = vmax.f32 %v277, 0.0
      %v288 = vmax.f32 %v279, 0.0
      %v289 = vpack.c.bf16 %v281, %v281
      %v290 = vpack.c.bf16 %v282, %v282
      %v291 = vpack.c.bf16 %v283, %v283
      %v292 = vpack.c.bf16 %v284, %v284
      %v293 = vpack.c.bf16 %v285, %v285
      %v294 = vpack.c.bf16 %v286, %v286
      %v295 = vpack.c.bf16 %v287, %v287
      %v296 = vpack.c.bf16 %v288, %v288
      %297 = vst [vmem:[%s172] sm:$0xf] %v289
      %298 = vst [vmem:[%s172 + $0x4] sm:$0xf] %v290
      %299 = vst [vmem:[%s172 + $0x8] sm:$0xf] %v291
      %300 = vst [vmem:[%s172 + $0xc] sm:$0xf] %v292
      %301 = vst [vmem:[%s172 + $0x10] sm:$0xf] %v293
      %302 = vst [vmem:[%s172 + $0x14] sm:$0xf] %v294
      %303 = vst [vmem:[%s172 + $0x18] sm:$0xf] %v295
      %304 = vst [vmem:[%s172 + $0x1c] sm:$0xf] %v296
      %s305 = smul.u32 8, %s14
      %p306 = scmp.lt.s32.totalorder %s305, 15
      %s307 = scalar_select %p306, %s305, 15
      %s308 = smul.addr %s307, 4
      %s309 = scalar_lea.vmem %s3, %s308
      // Predicated region
      $region33: #{segformer_segmentation_forward.21} parent=31 // pred_check
        %p310 = pneg %p100
      $region34: #{segformer_segmentation_forward.21} parent=31 // pred_check_branch
        %312 = sbr.rel (%p310) target = $region36
      $region35: #{segformer_segmentation_forward.21} parent=31 // pred_region
        %s313 = smul.u32 8, %s14
      $region36: #{segformer_segmentation_forward.21} parent=31 // pred_fallthru
        _
    $region32: #{segformer_segmentation_forward.21} parent=5 // pred_fallthru
      _
    %p314 = scmp.le.s32.totalorder 2, %s9
    // Predicated region
    $region37: #{segformer_segmentation_forward.21} parent=5 // pred_check
      %p315 = pneg %p314
    $region38: #{segformer_segmentation_forward.21} parent=5 // pred_check_branch
      %317 = sbr.rel (%p315) target = $region40
    $region39: #{segformer_segmentation_forward.21} parent=5 // pred_region
      %s318 = ssub.s32 %s9, 2
      // Predicated region
      $region41: #{segformer_segmentation_forward.21} parent=39 // pred_check
        %p319 = pneg %p106
      $region42: #{segformer_segmentation_forward.21} parent=39 // pred_check_branch
        %321 = sbr.rel (%p319) target = $region44
      $region43: #{segformer_segmentation_forward.21} parent=39 // pred_region
        %s322 = smul.u32 8, %s15
        %p323 = scmp.lt.s32.totalorder %s322, 15
        %s324 = scalar_select %p323, %s322, 15
        %s325 = smul.addr %s324, 4
        %s326 = scalar_lea.vmem %s3, %s325
      $region44: #{segformer_segmentation_forward.21} parent=39 // pred_fallthru
        _
    $region40: #{segformer_segmentation_forward.21} parent=5 // pred_fallthru
      _
  $region6: #{segformer_segmentation_forward.21} parent=0 // loop_footer
    %s13 = sadd.s32 1, %s9
  $region7: #{segformer_segmentation_forward.21} parent=0 // loop_footer_branch
    %8 = sbr.rel target = $region3
  $region8: #{segformer_segmentation_forward.21} parent=0 // loop_exit
    _

// kernel: segformer_segmentation_forward.22
$region0: #{segformer_segmentation_forward.22}
  #allocation0 [shape = 'u32[]', space=smem, size = 0x4, offset = 0x4, fixed_abs, tag = 'smem constant byte address 0x4 - core index']
  #allocation1 [shape = 'u32[72,128]{1,0:T(1,128)}', space=vmem, size = 0x9000, scoped, tag = 'internal scratch']
  %s0 = inlined_call_operand.vmem [shape: bf16[16,8], index: 0, kind: input, shape index: {}]
  %s1 = inlined_call_operand.vmem [shape: bf16[2,8,1024], index: 1, kind: input, shape index: {}]
  %s2 = inlined_call_operand.vmem [shape: bf16[2,16,1024], index: 2, kind: output, shape index: {}]
  %s3 = sld [smem:[#allocation0]]
  $region41: #{segformer_segmentation_forward.22} parent=0
    _
  %s5 = ssub.s32 1, %s3
  %s6 = scalar_select 0, %s5, %s3
  loop: start=0, step=1, limit=4
  $region2: #{segformer_segmentation_forward.22} parent=0 // loop_pre_header
    _
  $region3: #{segformer_segmentation_forward.22} parent=0 // loop_header
    %s8 = sphi 0, %s12
    %p9 = scmp.ge.s32.totalorder %s8, 4
    %s15 = sphi 0, %s27
    %s16 = sphi 0, %s23
    %s17 = sphi 0, %s15
    %s18 = sphi 0, %s16
    %s19 = sphi 0, %s17
    %s20 = sphi 0, %s18
    %s28 = sphi 0, %s28
    %s30 = sphi 0, %s28
    %s31 = sphi 0, %s30
    %s45 = sphi 0, %s31
    %s53 = sphi 0, %s55
    %s56 = sphi 0, %s53
    %s57 = sphi 0, %s56
    %s73 = sphi 0, %s57
    %s81 = sphi 0, %s83
    %s84 = sphi 0, %s81
    %s85 = sphi 0, %s84
    %s101 = sphi 0, %s85
  $region4: #{segformer_segmentation_forward.22} parent=0 // loop_header_branch
    %11 = sbr.rel (%p9) target = $region8
  $region5: #{segformer_segmentation_forward.22} parent=0 // loop_body
    %s13 = ssub.s32 %s8, 1
    %s14 = ssub.s32 %s8, 2
    %s21 = sadd.s32 1, %s16
    %p22 = scmp.ge.s32.totalorder %s21, 1
    %s23 = scalar_select %p22, 0, %s21
    %s24 = sadd.s32 1, %s15
    %s25 = scalar_select %p22, %s24, %s15
    %p26 = scmp.ge.s32.totalorder %s25, 2
    %s27 = scalar_select %p26, 0, %s25
    %s29 = sadd.s32 %s28, 1
    %p32 = scmp.eq.s32.totalorder %s8, 1
    %p33 = scmp.ne.s32.totalorder %s28, %s30
    %p34 = scmp.eq.s32.totalorder %s8, 0
    %p35 = por %p33, %p34
    %p36 = scmp.ne.s32.totalorder %s28, %s30
    %p37 = scmp.eq.s32.totalorder %s13, 1
    %p38 = por %p36, %p37
    %p39 = scmp.ne.s32.totalorder %s30, %s31
    %p40 = scmp.eq.s32.totalorder %s13, 0
    %p41 = por %p39, %p40
    %p42 = scmp.ne.s32.totalorder %s30, %s31
    %p43 = scmp.eq.s32.totalorder %s14, 1
    %p44 = por %p42, %p43
    %p46 = scmp.ne.s32.totalorder %s31, %s45
    %p47 = scmp.eq.s32.totalorder %s14, 0
    %p48 = por %p46, %p47
    %s49 = ssub.s32 %s15, %s27
    %s50 = ssub.s32 %s16, %s23
    %s51 = sor.u32 %s49, %s50
    %p52 = scmp.eq.s32.totalorder %s51, 0
    %s54 = sadd.s32 %s53, 1
    %s55 = scalar_select %p52, %s53, %s54
    %p58 = pneg %p52
    %p59 = scmp.eq.s32.totalorder %s8, 1
    %p60 = por %p58, %p59
    %p61 = scmp.ne.s32.totalorder %s53, %s56
    %p62 = scmp.eq.s32.totalorder %s8, 0
    %p63 = por %p61, %p62
    %p64 = scmp.ne.s32.totalorder %s53, %s56
    %p65 = scmp.eq.s32.totalorder %s13, 1
    %p66 = por %p64, %p65
    %p67 = scmp.ne.s32.totalorder %s56, %s57
    %p68 = scmp.eq.s32.totalorder %s13, 0
    %p69 = por %p67, %p68
    %p70 = scmp.ne.s32.totalorder %s56, %s57
    %p71 = scmp.eq.s32.totalorder %s14, 1
    %p72 = por %p70, %p71
    %p74 = scmp.ne.s32.totalorder %s57, %s73
    %p75 = scmp.eq.s32.totalorder %s14, 0
    %p76 = por %p74, %p75
    %s77 = ssub.s32 %s15, %s27
    %s78 = ssub.s32 %s16, %s23
    %s79 = sor.u32 %s77, %s78
    %p80 = scmp.eq.s32.totalorder %s79, 0
    %s82 = sadd.s32 %s81, 1
    %s83 = scalar_select %p80, %s81, %s82
    %p86 = pneg %p80
    %p87 = scmp.eq.s32.totalorder %s8, 1
    %p88 = por %p86, %p87
    %p89 = scmp.ne.s32.totalorder %s81, %s84
    %p90 = scmp.eq.s32.totalorder %s8, 0
    %p91 = por %p89, %p90
    %p92 = scmp.ne.s32.totalorder %s81, %s84
    %p93 = scmp.eq.s32.totalorder %s13, 1
    %p94 = por %p92, %p93
    %p95 = scmp.ne.s32.totalorder %s84, %s85
    %p96 = scmp.eq.s32.totalorder %s13, 0
    %p97 = por %p95, %p96
    %p98 = scmp.ne.s32.totalorder %s84, %s85
    %p99 = scmp.eq.s32.totalorder %s14, 1
    %p100 = por %p98, %p99
    %p102 = scmp.ne.s32.totalorder %s85, %s101
    %p103 = scmp.eq.s32.totalorder %s14, 0
    %p104 = por %p102, %p103
    %p105 = scmp.le.s32.totalorder 1, %s8
    %p106 = scmp.lt.s32.totalorder %s8, 3
    %p107 = pnand %p105, %p106
    %p108 = pneg %p107
    // Predicated region
    $region9: #{segformer_segmentation_forward.22} parent=5 // pred_check
      _
    $region10: #{segformer_segmentation_forward.22} parent=5 // pred_check_branch
      %110 = sbr.rel (%p107) target = $region12
    $region11: #{segformer_segmentation_forward.22} parent=5 // pred_region
      %s111 = ssub.s32 %s8, 1
      // Predicated region
      $region13: #{segformer_segmentation_forward.22} parent=11 // pred_check
        %p112 = pneg %p41
      $region14: #{segformer_segmentation_forward.22} parent=11 // pred_check_branch
        %114 = sbr.rel (%p112) target = $region16
      $region15: #{segformer_segmentation_forward.22} parent=11 // pred_region
        _
      $region16: #{segformer_segmentation_forward.22} parent=11 // pred_fallthru
        _
    $region12: #{segformer_segmentation_forward.22} parent=5 // pred_fallthru
      _
    %p115 = scmp.lt.s32.totalorder %s8, 2
    // Predicated region
    $region17: #{segformer_segmentation_forward.22} parent=5 // pred_check
      %p116 = pneg %p115
    $region18: #{segformer_segmentation_forward.22} parent=5 // pred_check_branch
      %118 = sbr.rel (%p116) target = $region20
    $region19: #{segformer_segmentation_forward.22} parent=5 // pred_region
      // Predicated region
      $region21: #{segformer_segmentation_forward.22} parent=19 // pred_check
        %p119 = pneg %p63
      $region22: #{segformer_segmentation_forward.22} parent=19 // pred_check_branch
        %121 = sbr.rel (%p119) target = $region24
      $region23: #{segformer_segmentation_forward.22} parent=19 // pred_region
        %s122 = smul.u32 8, %s16
        %p123 = scmp.lt.s32.totalorder %s15, 1
        %s124 = scalar_select %p123, %s15, 1
        %p125 = scmp.lt.s32.totalorder %s122, 7
        %s126 = scalar_select %p125, %s122, 7
        %s127 = smul.addr %s124, 8
        %s128 = sadd.s32 %s126, %s127
        %s129 = smul.addr %s128, 4
        %s130 = scalar_lea.vmem %s1, %s129
        %s131 = smul.u32 8, %s16
      $region24: #{segformer_segmentation_forward.22} parent=19 // pred_fallthru
        _
    $region20: #{segformer_segmentation_forward.22} parent=5 // pred_fallthru
      _
    %p132 = scmp.le.s32.totalorder 1, %s8
    %p133 = scmp.lt.s32.totalorder %s8, 3
    %p134 = pnand %p132, %p133
    %p135 = pneg %p134
    // Predicated region
    $region25: #{segformer_segmentation_forward.22} parent=5 // pred_check
      _
    $region26: #{segformer_segmentation_forward.22} parent=5 // pred_check_branch
      %137 = sbr.rel (%p134) target = $region28
    $region27: #{segformer_segmentation_forward.22} parent=5 // pred_region
      %s138 = ssub.s32 %s8, 1
      %p139 = pneg %p41
      %p140 = pneg %p38
      %s141 = smul.u32 8, %s18
      %p142 = scmp.lt.s32.totalorder %s17, 1
      %s143 = scalar_select %p142, %s17, 1
      %p144 = scmp.lt.s32.totalorder %s141, 7
      %s145 = scalar_select %p144, %s141, 7
      %s146 = smul.addr %s143, 8
      %s147 = sadd.s32 %s145, %s146
      %s148 = smul.addr %s147, 4
      %s149 = scalar_lea.vmem %s1, %s148
      %p150 = pneg %p69
      %p151 = pneg %p66
      %p152 = pneg %p97
      %p153 = pneg %p94
      %s154 = smul.u32 8, %s18
      %p155 = scmp.lt.s32.totalorder %s17, 1
      %s156 = scalar_select %p155, %s17, 1
      %p157 = scmp.lt.s32.totalorder %s154, 7
      %s158 = scalar_select %p157, %s154, 7
      %s159 = smul.addr %s156, 16
      %s160 = sadd.s32 %s158, %s159
      %s161 = smul.addr %s160, 4
      %s162 = scalar_lea.vmem %s2, %s161
      %s163 = smul.u32 8, %s18
      %p164 = scmp.lt.s32.totalorder %s17, 1
      %s165 = scalar_select %p164, %s17, 1
      %p166 = scmp.lt.s32.totalorder %s163, 7
      %s167 = scalar_select %p166, %s163, 7
      %s168 = smul.addr %s165, 8
      %s169 = sadd.s32 %s167, %s168
      %s170 = smul.addr %s169, 4
      %s171 = scalar_lea.vmem %s1, %s170
      %s172 = smul.u32 8, %s18
      %s173 = smul.u32 8, %s18
      %p174 = scmp.lt.s32.totalorder %s17, 1
      %s175 = scalar_select %p174, %s17, 1
      %p176 = scmp.lt.s32.totalorder %s173, 7
      %s177 = scalar_select %p176, %s173, 7
      %s178 = smul.addr %s175, 16
      %s179 = sadd.s32 %s177, %s178
      %s180 = smul.addr %s179, 4
      %s181 = scalar_lea.vmem %s2, %s180
      %s182 = smul.u32 8, %s18
      %v184 = vld [vmem:[%s0] sm:$0xf]
      %v185 = vld [vmem:[%s0 + $0x4] sm:$0xf]
      %v186 = vld [vmem:[%s171] sm:$0xff]
      %v187 = vld [vmem:[%s171 + $0x8] sm:$0xff]
      %v188 = vld [vmem:[%s171 + $0x10] sm:$0xff]
      %v189 = vld [vmem:[%s171 + $0x18] sm:$0xff]
      %v192 = vunpack.c.l.b16 %v184
      %v193 = vunpack.c.l.b16 %v185
      %v194 = vpack.c.b16 %v193, %v192
      %v199 = vunpack.c.l.b16 %v186
      %v200 = vunpack.c.h.b16 %v186
      %v201 = vunpack.c.l.b16 %v187
      %v202 = vunpack.c.h.b16 %v187
      %v203 = vunpack.c.l.b16 %v188
      %v204 = vunpack.c.h.b16 %v188
      %v205 = vunpack.c.l.b16 %v189
      %v206 = vunpack.c.h.b16 %v189
      %v207 = vpack.c.b16 %v199, %v199
      %v208 = vpack.c.b16 %v200, %v200
      %v209 = vpack.c.b16 %v201, %v201
      %v210 = vpack.c.b16 %v202, %v202
      %v211 = vpack.c.b16 %v203, %v203
      %v212 = vpack.c.b16 %v204, %v204
      %v213 = vpack.c.b16 %v205, %v205
      %v214 = vpack.c.b16 %v206, %v206
      %vm215 = vcmask 64512
      %v217 = vsel %vm215, %v194, 0
      %vm219 = vcmask 1043456
      %v221 = vsel %vm219, %v207, 0
      %v224 = vsel %vm219, %v208, 0
      %v227 = vsel %vm219, %v209, 0
      %v230 = vsel %vm219, %v210, 0
      %v233 = vsel %vm219, %v211, 0
      %v236 = vsel %vm219, %v212, 0
      %v239 = vsel %vm219, %v213, 0
      %v242 = vsel %vm219, %v214, 0
      %244 = vmatpush.bf16.msra.mxu0 0
      %245 = vmatpush.bf16.msra.mxu0 0
      %246 = vmatpush.bf16.msra.mxu0 0
      %247 = vmatpush.bf16.msra.mxu0 0
      %248 = vmatpush.bf16.msra.mxu0 0
      %249 = vmatpush.bf16.msra.mxu0 0
      %250 = vmatpush.bf16.msra.mxu0 0
      %251 = vmatpush.bf16.msra.mxu0 %v221
      %252 = vmatmul.bf16.gmra.mxu0 %v217
      %v253 = vpop.f32.mrf.mxu0
      %v254 = vadd.f32 0.0, %v253
      %v255 = vpop.f32.mrf.mxu0
      %v256 = vadd.f32 0.0, %v255
      %257 = vdwg.mxu0
      %258 = vmatpush.bf16.msra.mxu0 0
      %259 = vmatpush.bf16.msra.mxu0 0
      %260 = vmatpush.bf16.msra.mxu0 0
      %261 = vmatpush.bf16.msra.mxu0 0
      %262 = vmatpush.bf16.msra.mxu0 0
      %263 = vmatpush.bf16.msra.mxu0 0
      %264 = vmatpush.bf16.msra.mxu0 0
      %265 = vmatpush.bf16.msra.mxu0 %v224
      %266 = vmatmul.bf16.gmra.mxu0 %v217
      %v267 = vpop.f32.mrf.mxu0
      %v268 = vadd.f32 0.0, %v267
      %v269 = vpop.f32.mrf.mxu0
      %v270 = vadd.f32 0.0, %v269
      %271 = vdwg.mxu0
      %272 = vmatpush.bf16.msra.mxu0 0
      %273 = vmatpush.bf16.msra.mxu0 0
      %274 = vmatpush.bf16.msra.mxu0 0
      %275 = vmatpush.bf16.msra.mxu0 0
      %276 = vmatpush.bf16.msra.mxu0 0
      %277 = vmatpush.bf16.msra.mxu0 0
      %278 = vmatpush.bf16.msra.mxu0 0
      %279 = vmatpush.bf16.msra.mxu0 %v227
      %280 = vmatmul.bf16.gmra.mxu0 %v217
      %v281 = vpop.f32.mrf.mxu0
      %v282 = vadd.f32 0.0, %v281
      %v283 = vpop.f32.mrf.mxu0
      %v284 = vadd.f32 0.0, %v283
      %285 = vdwg.mxu0
      %286 = vmatpush.bf16.msra.mxu0 0
      %287 = vmatpush.bf16.msra.mxu0 0
      %288 = vmatpush.bf16.msra.mxu0 0
      %289 = vmatpush.bf16.msra.mxu0 0
      %290 = vmatpush.bf16.msra.mxu0 0
      %291 = vmatpush.bf16.msra.mxu0 0
      %292 = vmatpush.bf16.msra.mxu0 0
      %293 = vmatpush.bf16.msra.mxu0 %v230
      %294 = vmatmul.bf16.gmra.mxu0 %v217
      %v295 = vpop.f32.mrf.mxu0
      %v296 = vadd.f32 0.0, %v295
      %v297 = vpop.f32.mrf.mxu0
      %v298 = vadd.f32 0.0, %v297
      %299 = vdwg.mxu0
      %300 = vmatpush.bf16.msra.mxu0 0
      %301 = vmatpush.bf16.msra.mxu0 0
      %302 = vmatpush.bf16.msra.mxu0 0
      %303 = vmatpush.bf16.msra.mxu0 0
      %304 = vmatpush.bf16.msra.mxu0 0
      %305 = vmatpush.bf16.msra.mxu0 0
      %306 = vmatpush.bf16.msra.mxu0 0
      %307 = vmatpush.bf16.msra.mxu0 %v233
      %308 = vmatmul.bf16.gmra.mxu0 %v217
      %v309 = vpop.f32.mrf.mxu0
      %v310 = vadd.f32 0.0, %v309
      %v311 = vpop.f32.mrf.mxu0
      %v312 = vadd.f32 0.0, %v311
      %313 = vdwg.mxu0
      %314 = vmatpush.bf16.msra.mxu0 0
      %315 = vmatpush.bf16.msra.mxu0 0
      %316 = vmatpush.bf16.msra.mxu0 0
      %317 = vmatpush.bf16.msra.mxu0 0
      %318 = vmatpush.bf16.msra.mxu0 0
      %319 = vmatpush.bf16.msra.mxu0 0
      %320 = vmatpush.bf16.msra.mxu0 0
      %321 = vmatpush.bf16.msra.mxu0 %v236
      %322 = vmatmul.bf16.gmra.mxu0 %v217
      %v323 = vpop.f32.mrf.mxu0
      %v324 = vadd.f32 0.0, %v323
      %v325 = vpop.f32.mrf.mxu0
      %v326 = vadd.f32 0.0, %v325
      %327 = vdwg.mxu0
      %328 = vmatpush.bf16.msra.mxu0 0
      %329 = vmatpush.bf16.msra.mxu0 0
      %330 = vmatpush.bf16.msra.mxu0 0
      %331 = vmatpush.bf16.msra.mxu0 0
      %332 = vmatpush.bf16.msra.mxu0 0
      %333 = vmatpush.bf16.msra.mxu0 0
      %334 = vmatpush.bf16.msra.mxu0 0
      %335 = vmatpush.bf16.msra.mxu0 %v239
      %336 = vmatmul.bf16.gmra.mxu0 %v217
      %v337 = vpop.f32.mrf.mxu0
      %v338 = vadd.f32 0.0, %v337
      %v339 = vpop.f32.mrf.mxu0
      %v340 = vadd.f32 0.0, %v339
      %341 = vdwg.mxu0
      %342 = vmatpush.bf16.msra.mxu0 0
      %343 = vmatpush.bf16.msra.mxu0 0
      %344 = vmatpush.bf16.msra.mxu0 0
      %345 = vmatpush.bf16.msra.mxu0 0
      %346 = vmatpush.bf16.msra.mxu0 0
      %347 = vmatpush.bf16.msra.mxu0 0
      %348 = vmatpush.bf16.msra.mxu0 0
      %349 = vmatpush.bf16.msra.mxu0 %v242
      %350 = vmatmul.bf16.gmra.mxu0 %v217
      %v351 = vpop.f32.mrf.mxu0
      %v352 = vadd.f32 0.0, %v351
      %v353 = vpop.f32.mrf.mxu0
      %v354 = vadd.f32 0.0, %v353
      %355 = vdwg.mxu0
      %v356 = vpack.c.bf16 %v268, %v254
      %v357 = vpack.c.bf16 %v296, %v282
      %v358 = vpack.c.bf16 %v324, %v310
      %v359 = vpack.c.bf16 %v352, %v338
      %v360 = vpack.c.bf16 %v270, %v256
      %v361 = vpack.c.bf16 %v298, %v284
      %v362 = vpack.c.bf16 %v326, %v312
      %v363 = vpack.c.bf16 %v354, %v340
      %364 = vst [vmem:[%s181] sm:$0xff] %v356
      %365 = vst [vmem:[%s181 + $0x8] sm:$0xff] %v357
      %366 = vst [vmem:[%s181 + $0x10] sm:$0xff] %v358
      %367 = vst [vmem:[%s181 + $0x18] sm:$0xff] %v359
      %368 = vst [vmem:[%s181 + $0x20] sm:$0xff] %v360
      %369 = vst [vmem:[%s181 + $0x28] sm:$0xff] %v361
      %370 = vst [vmem:[%s181 + $0x30] sm:$0xff] %v362
      %371 = vst [vmem:[%s181 + $0x38] sm:$0xff] %v363
      %s372 = smul.u32 8, %s18
      %p373 = scmp.lt.s32.totalorder %s17, 1
      %s374 = scalar_select %p373, %s17, 1
      %p375 = scmp.lt.s32.totalorder %s372, 7
      %s376 = scalar_select %p375, %s372, 7
      %s377 = smul.addr %s374, 16
      %s378 = sadd.s32 %s376, %s377
      %s379 = smul.addr %s378, 4
      %s380 = scalar_lea.vmem %s2, %s379
      // Predicated region
      $region29: #{segformer_segmentation_forward.22} parent=27 // pred_check
        %p381 = pneg %p94
      $region30: #{segformer_segmentation_forward.22} parent=27 // pred_check_branch
        %383 = sbr.rel (%p381) target = $region32
      $region31: #{segformer_segmentation_forward.22} parent=27 // pred_region
        %s384 = smul.u32 8, %s18
      $region32: #{segformer_segmentation_forward.22} parent=27 // pred_fallthru
        _
    $region28: #{segformer_segmentation_forward.22} parent=5 // pred_fallthru
      _
    %p385 = scmp.le.s32.totalorder 2, %s8
    // Predicated region
    $region33: #{segformer_segmentation_forward.22} parent=5 // pred_check
      %p386 = pneg %p385
    $region34: #{segformer_segmentation_forward.22} parent=5 // pred_check_branch
      %388 = sbr.rel (%p386) target = $region36
    $region35: #{segformer_segmentation_forward.22} parent=5 // pred_region
      %s389 = ssub.s32 %s8, 2
      // Predicated region
      $region37: #{segformer_segmentation_forward.22} parent=35 // pred_check
        %p390 = pneg %p100
      $region38: #{segformer_segmentation_forward.22} parent=35 // pred_check_branch
        %392 = sbr.rel (%p390) target = $region40
      $region39: #{segformer_segmentation_forward.22} parent=35 // pred_region
        %s393 = smul.u32 8, %s20
        %p394 = scmp.lt.s32.totalorder %s19, 1
        %s395 = scalar_select %p394, %s19, 1
        %p396 = scmp.lt.s32.totalorder %s393, 7
        %s397 = scalar_select %p396, %s393, 7
        %s398 = smul.addr %s395, 16
        %s399 = sadd.s32 %s397, %s398
        %s400 = smul.addr %s399, 4
        %s401 = scalar_lea.vmem %s2, %s400
      $region40: #{segformer_segmentation_forward.22} parent=35 // pred_fallthru
        _
    $region36: #{segformer_segmentation_forward.22} parent=5 // pred_fallthru
      _
  $region6: #{segformer_segmentation_forward.22} parent=0 // loop_footer
    %s12 = sadd.s32 1, %s8
  $region7: #{segformer_segmentation_forward.22} parent=0 // loop_footer_branch
    %7 = sbr.rel target = $region3
  $region8: #{segformer_segmentation_forward.22} parent=0 // loop_exit
    _

// kernel: segformer_segmentation_forward.23
$region0: #{segformer_segmentation_forward.23}
  #allocation0 [shape = 'u32[]', space=smem, size = 0x4, offset = 0x4, fixed_abs, tag = 'smem constant byte address 0x4 - core index']
  #allocation1 [shape = 'u32[72,128]{1,0:T(1,128)}', space=vmem, size = 0x9000, scoped, tag = 'internal scratch']
  %s0 = inlined_call_operand.vmem [shape: bf16[16,8], index: 0, kind: input, shape index: {}]
  %s1 = inlined_call_operand.vmem [shape: bf16[2,8,2048], index: 1, kind: input, shape index: {}]
  %s2 = inlined_call_operand.vmem [shape: bf16[2,16,2048], index: 2, kind: output, shape index: {}]
  %s3 = sld [smem:[#allocation0]]
  $region41: #{segformer_segmentation_forward.23} parent=0
    _
  %s5 = ssub.s32 1, %s3
  %s6 = scalar_select 0, %s5, %s3
  loop: start=0, step=1, limit=4
  $region2: #{segformer_segmentation_forward.23} parent=0 // loop_pre_header
    _
  $region3: #{segformer_segmentation_forward.23} parent=0 // loop_header
    %s8 = sphi 0, %s12
    %p9 = scmp.ge.s32.totalorder %s8, 4
    %s15 = sphi 0, %s27
    %s16 = sphi 0, %s23
    %s17 = sphi 0, %s15
    %s18 = sphi 0, %s16
    %s19 = sphi 0, %s17
    %s20 = sphi 0, %s18
    %s28 = sphi 0, %s28
    %s30 = sphi 0, %s28
    %s31 = sphi 0, %s30
    %s45 = sphi 0, %s31
    %s53 = sphi 0, %s55
    %s56 = sphi 0, %s53
    %s57 = sphi 0, %s56
    %s73 = sphi 0, %s57
    %s81 = sphi 0, %s83
    %s84 = sphi 0, %s81
    %s85 = sphi 0, %s84
    %s101 = sphi 0, %s85
  $region4: #{segformer_segmentation_forward.23} parent=0 // loop_header_branch
    %11 = sbr.rel (%p9) target = $region8
  $region5: #{segformer_segmentation_forward.23} parent=0 // loop_body
    %s13 = ssub.s32 %s8, 1
    %s14 = ssub.s32 %s8, 2
    %s21 = sadd.s32 1, %s16
    %p22 = scmp.ge.s32.totalorder %s21, 1
    %s23 = scalar_select %p22, 0, %s21
    %s24 = sadd.s32 1, %s15
    %s25 = scalar_select %p22, %s24, %s15
    %p26 = scmp.ge.s32.totalorder %s25, 2
    %s27 = scalar_select %p26, 0, %s25
    %s29 = sadd.s32 %s28, 1
    %p32 = scmp.eq.s32.totalorder %s8, 1
    %p33 = scmp.ne.s32.totalorder %s28, %s30
    %p34 = scmp.eq.s32.totalorder %s8, 0
    %p35 = por %p33, %p34
    %p36 = scmp.ne.s32.totalorder %s28, %s30
    %p37 = scmp.eq.s32.totalorder %s13, 1
    %p38 = por %p36, %p37
    %p39 = scmp.ne.s32.totalorder %s30, %s31
    %p40 = scmp.eq.s32.totalorder %s13, 0
    %p41 = por %p39, %p40
    %p42 = scmp.ne.s32.totalorder %s30, %s31
    %p43 = scmp.eq.s32.totalorder %s14, 1
    %p44 = por %p42, %p43
    %p46 = scmp.ne.s32.totalorder %s31, %s45
    %p47 = scmp.eq.s32.totalorder %s14, 0
    %p48 = por %p46, %p47
    %s49 = ssub.s32 %s15, %s27
    %s50 = ssub.s32 %s16, %s23
    %s51 = sor.u32 %s49, %s50
    %p52 = scmp.eq.s32.totalorder %s51, 0
    %s54 = sadd.s32 %s53, 1
    %s55 = scalar_select %p52, %s53, %s54
    %p58 = pneg %p52
    %p59 = scmp.eq.s32.totalorder %s8, 1
    %p60 = por %p58, %p59
    %p61 = scmp.ne.s32.totalorder %s53, %s56
    %p62 = scmp.eq.s32.totalorder %s8, 0
    %p63 = por %p61, %p62
    %p64 = scmp.ne.s32.totalorder %s53, %s56
    %p65 = scmp.eq.s32.totalorder %s13, 1
    %p66 = por %p64, %p65
    %p67 = scmp.ne.s32.totalorder %s56, %s57
    %p68 = scmp.eq.s32.totalorder %s13, 0
    %p69 = por %p67, %p68
    %p70 = scmp.ne.s32.totalorder %s56, %s57
    %p71 = scmp.eq.s32.totalorder %s14, 1
    %p72 = por %p70, %p71
    %p74 = scmp.ne.s32.totalorder %s57, %s73
    %p75 = scmp.eq.s32.totalorder %s14, 0
    %p76 = por %p74, %p75
    %s77 = ssub.s32 %s15, %s27
    %s78 = ssub.s32 %s16, %s23
    %s79 = sor.u32 %s77, %s78
    %p80 = scmp.eq.s32.totalorder %s79, 0
    %s82 = sadd.s32 %s81, 1
    %s83 = scalar_select %p80, %s81, %s82
    %p86 = pneg %p80
    %p87 = scmp.eq.s32.totalorder %s8, 1
    %p88 = por %p86, %p87
    %p89 = scmp.ne.s32.totalorder %s81, %s84
    %p90 = scmp.eq.s32.totalorder %s8, 0
    %p91 = por %p89, %p90
    %p92 = scmp.ne.s32.totalorder %s81, %s84
    %p93 = scmp.eq.s32.totalorder %s13, 1
    %p94 = por %p92, %p93
    %p95 = scmp.ne.s32.totalorder %s84, %s85
    %p96 = scmp.eq.s32.totalorder %s13, 0
    %p97 = por %p95, %p96
    %p98 = scmp.ne.s32.totalorder %s84, %s85
    %p99 = scmp.eq.s32.totalorder %s14, 1
    %p100 = por %p98, %p99
    %p102 = scmp.ne.s32.totalorder %s85, %s101
    %p103 = scmp.eq.s32.totalorder %s14, 0
    %p104 = por %p102, %p103
    %p105 = scmp.le.s32.totalorder 1, %s8
    %p106 = scmp.lt.s32.totalorder %s8, 3
    %p107 = pnand %p105, %p106
    %p108 = pneg %p107
    // Predicated region
    $region9: #{segformer_segmentation_forward.23} parent=5 // pred_check
      _
    $region10: #{segformer_segmentation_forward.23} parent=5 // pred_check_branch
      %110 = sbr.rel (%p107) target = $region12
    $region11: #{segformer_segmentation_forward.23} parent=5 // pred_region
      %s111 = ssub.s32 %s8, 1
      // Predicated region
      $region13: #{segformer_segmentation_forward.23} parent=11 // pred_check
        %p112 = pneg %p41
      $region14: #{segformer_segmentation_forward.23} parent=11 // pred_check_branch
        %114 = sbr.rel (%p112) target = $region16
      $region15: #{segformer_segmentation_forward.23} parent=11 // pred_region
        _
      $region16: #{segformer_segmentation_forward.23} parent=11 // pred_fallthru
        _
    $region12: #{segformer_segmentation_forward.23} parent=5 // pred_fallthru
      _
    %p115 = scmp.lt.s32.totalorder %s8, 2
    // Predicated region
    $region17: #{segformer_segmentation_forward.23} parent=5 // pred_check
      %p116 = pneg %p115
    $region18: #{segformer_segmentation_forward.23} parent=5 // pred_check_branch
      %118 = sbr.rel (%p116) target = $region20
    $region19: #{segformer_segmentation_forward.23} parent=5 // pred_region
      // Predicated region
      $region21: #{segformer_segmentation_forward.23} parent=19 // pred_check
        %p119 = pneg %p63
      $region22: #{segformer_segmentation_forward.23} parent=19 // pred_check_branch
        %121 = sbr.rel (%p119) target = $region24
      $region23: #{segformer_segmentation_forward.23} parent=19 // pred_region
        %s122 = smul.u32 16, %s16
        %p123 = scmp.lt.s32.totalorder %s15, 1
        %s124 = scalar_select %p123, %s15, 1
        %p125 = scmp.lt.s32.totalorder %s122, 15
        %s126 = scalar_select %p125, %s122, 15
        %s127 = smul.addr %s124, 16
        %s128 = sadd.s32 %s126, %s127
        %s129 = smul.addr %s128, 4
        %s130 = scalar_lea.vmem %s1, %s129
        %s131 = smul.u32 16, %s16
      $region24: #{segformer_segmentation_forward.23} parent=19 // pred_fallthru
        _
    $region20: #{segformer_segmentation_forward.23} parent=5 // pred_fallthru
      _
    %p132 = scmp.le.s32.totalorder 1, %s8
    %p133 = scmp.lt.s32.totalorder %s8, 3
    %p134 = pnand %p132, %p133
    %p135 = pneg %p134
    // Predicated region
    $region25: #{segformer_segmentation_forward.23} parent=5 // pred_check
      _
    $region26: #{segformer_segmentation_forward.23} parent=5 // pred_check_branch
      %137 = sbr.rel (%p134) target = $region28
    $region27: #{segformer_segmentation_forward.23} parent=5 // pred_region
      %s138 = ssub.s32 %s8, 1
      %p139 = pneg %p41
      %p140 = pneg %p38
      %s141 = smul.u32 16, %s18
      %p142 = scmp.lt.s32.totalorder %s17, 1
      %s143 = scalar_select %p142, %s17, 1
      %p144 = scmp.lt.s32.totalorder %s141, 15
      %s145 = scalar_select %p144, %s141, 15
      %s146 = smul.addr %s143, 16
      %s147 = sadd.s32 %s145, %s146
      %s148 = smul.addr %s147, 4
      %s149 = scalar_lea.vmem %s1, %s148
      %p150 = pneg %p69
      %p151 = pneg %p66
      %p152 = pneg %p97
      %p153 = pneg %p94
      %s154 = smul.u32 16, %s18
      %p155 = scmp.lt.s32.totalorder %s17, 1
      %s156 = scalar_select %p155, %s17, 1
      %p157 = scmp.lt.s32.totalorder %s154, 15
      %s158 = scalar_select %p157, %s154, 15
      %s159 = smul.addr %s156, 32
      %s160 = sadd.s32 %s158, %s159
      %s161 = smul.addr %s160, 4
      %s162 = scalar_lea.vmem %s2, %s161
      %s163 = smul.u32 16, %s18
      %p164 = scmp.lt.s32.totalorder %s17, 1
      %s165 = scalar_select %p164, %s17, 1
      %p166 = scmp.lt.s32.totalorder %s163, 15
      %s167 = scalar_select %p166, %s163, 15
      %s168 = smul.addr %s165, 16
      %s169 = sadd.s32 %s167, %s168
      %s170 = smul.addr %s169, 4
      %s171 = scalar_lea.vmem %s1, %s170
      %s172 = smul.u32 16, %s18
      %s173 = smul.u32 16, %s18
      %p174 = scmp.lt.s32.totalorder %s17, 1
      %s175 = scalar_select %p174, %s17, 1
      %p176 = scmp.lt.s32.totalorder %s173, 15
      %s177 = scalar_select %p176, %s173, 15
      %s178 = smul.addr %s175, 32
      %s179 = sadd.s32 %s177, %s178
      %s180 = smul.addr %s179, 4
      %s181 = scalar_lea.vmem %s2, %s180
      %s182 = smul.u32 16, %s18
      %v184 = vld [vmem:[%s0] sm:$0xf]
      %v185 = vld [vmem:[%s0 + $0x4] sm:$0xf]
      %v186 = vld [vmem:[%s171] sm:$0xff]
      %v187 = vld [vmem:[%s171 + $0x8] sm:$0xff]
      %v188 = vld [vmem:[%s171 + $0x10] sm:$0xff]
      %v189 = vld [vmem:[%s171 + $0x18] sm:$0xff]
      %v190 = vld [vmem:[%s171 + $0x20] sm:$0xff]
      %v191 = vld [vmem:[%s171 + $0x28] sm:$0xff]
      %v192 = vld [vmem:[%s171 + $0x30] sm:$0xff]
      %v193 = vld [vmem:[%s171 + $0x38] sm:$0xff]
      %v196 = vunpack.c.l.b16 %v184
      %v197 = vunpack.c.l.b16 %v185
      %v198 = vpack.c.b16 %v197, %v196
      %v207 = vunpack.c.l.b16 %v186
      %v208 = vunpack.c.h.b16 %v186
      %v209 = vunpack.c.l.b16 %v187
      %v210 = vunpack.c.h.b16 %v187
      %v211 = vunpack.c.l.b16 %v188
      %v212 = vunpack.c.h.b16 %v188
      %v213 = vunpack.c.l.b16 %v189
      %v214 = vunpack.c.h.b16 %v189
      %v215 = vunpack.c.l.b16 %v190
      %v216 = vunpack.c.h.b16 %v190
      %v217 = vunpack.c.l.b16 %v191
      %v218 = vunpack.c.h.b16 %v191
      %v219 = vunpack.c.l.b16 %v192
      %v220 = vunpack.c.h.b16 %v192
      %v221 = vunpack.c.l.b16 %v193
      %v222 = vunpack.c.h.b16 %v193
      %v223 = vpack.c.b16 %v207, %v207
      %v224 = vpack.c.b16 %v208, %v208
      %v225 = vpack.c.b16 %v209, %v209
      %v226 = vpack.c.b16 %v210, %v210
      %v227 = vpack.c.b16 %v211, %v211
      %v228 = vpack.c.b16 %v212, %v212
      %v229 = vpack.c.b16 %v213, %v213
      %v230 = vpack.c.b16 %v214, %v214
      %v231 = vpack.c.b16 %v215, %v215
      %v232 = vpack.c.b16 %v216, %v216
      %v233 = vpack.c.b16 %v217, %v217
      %v234 = vpack.c.b16 %v218, %v218
      %v235 = vpack.c.b16 %v219, %v219
      %v236 = vpack.c.b16 %v220, %v220
      %v237 = vpack.c.b16 %v221, %v221
      %v238 = vpack.c.b16 %v222, %v222
      %vm239 = vcmask 64512
      %v241 = vsel %vm239, %v198, 0
      %vm243 = vcmask 1043456
      %v245 = vsel %vm243, %v223, 0
      %v248 = vsel %vm243, %v224, 0
      %v251 = vsel %vm243, %v225, 0
      %v254 = vsel %vm243, %v226, 0
      %v257 = vsel %vm243, %v227, 0
      %v260 = vsel %vm243, %v228, 0
      %v263 = vsel %vm243, %v229, 0
      %v266 = vsel %vm243, %v230, 0
      %v269 = vsel %vm243, %v231, 0
      %v272 = vsel %vm243, %v232, 0
      %v275 = vsel %vm243, %v233, 0
      %v278 = vsel %vm243, %v234, 0
      %v281 = vsel %vm243, %v235, 0
      %v284 = vsel %vm243, %v236, 0
      %v287 = vsel %vm243, %v237, 0
      %v290 = vsel %vm243, %v238, 0
      %292 = vmatpush.bf16.msra.mxu0 0
      %293 = vmatpush.bf16.msra.mxu0 0
      %294 = vmatpush.bf16.msra.mxu0 0
      %295 = vmatpush.bf16.msra.mxu0 0
      %296 = vmatpush.bf16.msra.mxu0 0
      %297 = vmatpush.bf16.msra.mxu0 0
      %298 = vmatpush.bf16.msra.mxu0 0
      %299 = vmatpush.bf16.msra.mxu0 %v245
      %300 = vmatmul.bf16.gmra.mxu0 %v241
      %v301 = vpop.f32.mrf.mxu0
      %v302 = vadd.f32 0.0, %v301
      %v303 = vpop.f32.mrf.mxu0
      %v304 = vadd.f32 0.0, %v303
      %305 = vdwg.mxu0
      %306 = vmatpush.bf16.msra.mxu0 0
      %307 = vmatpush.bf16.msra.mxu0 0
      %308 = vmatpush.bf16.msra.mxu0 0
      %309 = vmatpush.bf16.msra.mxu0 0
      %310 = vmatpush.bf16.msra.mxu0 0
      %311 = vmatpush.bf16.msra.mxu0 0
      %312 = vmatpush.bf16.msra.mxu0 0
      %313 = vmatpush.bf16.msra.mxu0 %v248
      %314 = vmatmul.bf16.gmra.mxu0 %v241
      %v315 = vpop.f32.mrf.mxu0
      %v316 = vadd.f32 0.0, %v315
      %v317 = vpop.f32.mrf.mxu0
      %v318 = vadd.f32 0.0, %v317
      %319 = vdwg.mxu0
      %320 = vmatpush.bf16.msra.mxu0 0
      %321 = vmatpush.bf16.msra.mxu0 0
      %322 = vmatpush.bf16.msra.mxu0 0
      %323 = vmatpush.bf16.msra.mxu0 0
      %324 = vmatpush.bf16.msra.mxu0 0
      %325 = vmatpush.bf16.msra.mxu0 0
      %326 = vmatpush.bf16.msra.mxu0 0
      %327 = vmatpush.bf16.msra.mxu0 %v251
      %328 = vmatmul.bf16.gmra.mxu0 %v241
      %v329 = vpop.f32.mrf.mxu0
      %v330 = vadd.f32 0.0, %v329
      %v331 = vpop.f32.mrf.mxu0
      %v332 = vadd.f32 0.0, %v331
      %333 = vdwg.mxu0
      %334 = vmatpush.bf16.msra.mxu0 0
      %335 = vmatpush.bf16.msra.mxu0 0
      %336 = vmatpush.bf16.msra.mxu0 0
      %337 = vmatpush.bf16.msra.mxu0 0
      %338 = vmatpush.bf16.msra.mxu0 0
      %339 = vmatpush.bf16.msra.mxu0 0
      %340 = vmatpush.bf16.msra.mxu0 0
      %341 = vmatpush.bf16.msra.mxu0 %v254
      %342 = vmatmul.bf16.gmra.mxu0 %v241
      %v343 = vpop.f32.mrf.mxu0
      %v344 = vadd.f32 0.0, %v343
      %v345 = vpop.f32.mrf.mxu0
      %v346 = vadd.f32 0.0, %v345
      %347 = vdwg.mxu0
      %348 = vmatpush.bf16.msra.mxu0 0
      %349 = vmatpush.bf16.msra.mxu0 0
      %350 = vmatpush.bf16.msra.mxu0 0
      %351 = vmatpush.bf16.msra.mxu0 0
      %352 = vmatpush.bf16.msra.mxu0 0
      %353 = vmatpush.bf16.msra.mxu0 0
      %354 = vmatpush.bf16.msra.mxu0 0
      %355 = vmatpush.bf16.msra.mxu0 %v257
      %356 = vmatmul.bf16.gmra.mxu0 %v241
      %v357 = vpop.f32.mrf.mxu0
      %v358 = vadd.f32 0.0, %v357
      %v359 = vpop.f32.mrf.mxu0
      %v360 = vadd.f32 0.0, %v359
      %361 = vdwg.mxu0
      %362 = vmatpush.bf16.msra.mxu0 0
      %363 = vmatpush.bf16.msra.mxu0 0
      %364 = vmatpush.bf16.msra.mxu0 0
      %365 = vmatpush.bf16.msra.mxu0 0
      %366 = vmatpush.bf16.msra.mxu0 0
      %367 = vmatpush.bf16.msra.mxu0 0
      %368 = vmatpush.bf16.msra.mxu0 0
      %369 = vmatpush.bf16.msra.mxu0 %v260
      %370 = vmatmul.bf16.gmra.mxu0 %v241
      %v371 = vpop.f32.mrf.mxu0
      %v372 = vadd.f32 0.0, %v371
      %v373 = vpop.f32.mrf.mxu0
      %v374 = vadd.f32 0.0, %v373
      %375 = vdwg.mxu0
      %376 = vmatpush.bf16.msra.mxu0 0
      %377 = vmatpush.bf16.msra.mxu0 0
      %378 = vmatpush.bf16.msra.mxu0 0
      %379 = vmatpush.bf16.msra.mxu0 0
      %380 = vmatpush.bf16.msra.mxu0 0
      %381 = vmatpush.bf16.msra.mxu0 0
      %382 = vmatpush.bf16.msra.mxu0 0
      %383 = vmatpush.bf16.msra.mxu0 %v263
      %384 = vmatmul.bf16.gmra.mxu0 %v241
      %v385 = vpop.f32.mrf.mxu0
      %v386 = vadd.f32 0.0, %v385
      %v387 = vpop.f32.mrf.mxu0
      %v388 = vadd.f32 0.0, %v387
      %389 = vdwg.mxu0
      %390 = vmatpush.bf16.msra.mxu0 0
      %391 = vmatpush.bf16.msra.mxu0 0
      %392 = vmatpush.bf16.msra.mxu0 0
      %393 = vmatpush.bf16.msra.mxu0 0
      %394 = vmatpush.bf16.msra.mxu0 0
      %395 = vmatpush.bf16.msra.mxu0 0
      %396 = vmatpush.bf16.msra.mxu0 0
      %397 = vmatpush.bf16.msra.mxu0 %v266
      %398 = vmatmul.bf16.gmra.mxu0 %v241
      %v399 = vpop.f32.mrf.mxu0
      %v400 = vadd.f32 0.0, %v399
      %v401 = vpop.f32.mrf.mxu0
      %v402 = vadd.f32 0.0, %v401
      %403 = vdwg.mxu0
      %404 = vmatpush.bf16.msra.mxu0 0
      %405 = vmatpush.bf16.msra.mxu0 0
      %406 = vmatpush.bf16.msra.mxu0 0
      %407 = vmatpush.bf16.msra.mxu0 0
      %408 = vmatpush.bf16.msra.mxu0 0
      %409 = vmatpush.bf16.msra.mxu0 0
      %410 = vmatpush.bf16.msra.mxu0 0
      %411 = vmatpush.bf16.msra.mxu0 %v269
      %412 = vmatmul.bf16.gmra.mxu0 %v241
      %v413 = vpop.f32.mrf.mxu0
      %v414 = vadd.f32 0.0, %v413
      %v415 = vpop.f32.mrf.mxu0
      %v416 = vadd.f32 0.0, %v415
      %417 = vdwg.mxu0
      %418 = vmatpush.bf16.msra.mxu0 0
      %419 = vmatpush.bf16.msra.mxu0 0
      %420 = vmatpush.bf16.msra.mxu0 0
      %421 = vmatpush.bf16.msra.mxu0 0
      %422 = vmatpush.bf16.msra.mxu0 0
      %423 = vmatpush.bf16.msra.mxu0 0
      %424 = vmatpush.bf16.msra.mxu0 0
      %425 = vmatpush.bf16.msra.mxu0 %v272
      %426 = vmatmul.bf16.gmra.mxu0 %v241
      %v427 = vpop.f32.mrf.mxu0
      %v428 = vadd.f32 0.0, %v427
      %v429 = vpop.f32.mrf.mxu0
      %v430 = vadd.f32 0.0, %v429
      %431 = vdwg.mxu0
      %432 = vmatpush.bf16.msra.mxu0 0
      %433 = vmatpush.bf16.msra.mxu0 0
      %434 = vmatpush.bf16.msra.mxu0 0
      %435 = vmatpush.bf16.msra.mxu0 0
      %436 = vmatpush.bf16.msra.mxu0 0
      %437 = vmatpush.bf16.msra.mxu0 0
      %438 = vmatpush.bf16.msra.mxu0 0
      %439 = vmatpush.bf16.msra.mxu0 %v275
      %440 = vmatmul.bf16.gmra.mxu0 %v241
      %v441 = vpop.f32.mrf.mxu0
      %v442 = vadd.f32 0.0, %v441
      %v443 = vpop.f32.mrf.mxu0
      %v444 = vadd.f32 0.0, %v443
      %445 = vdwg.mxu0
      %446 = vmatpush.bf16.msra.mxu0 0
      %447 = vmatpush.bf16.msra.mxu0 0
      %448 = vmatpush.bf16.msra.mxu0 0
      %449 = vmatpush.bf16.msra.mxu0 0
      %450 = vmatpush.bf16.msra.mxu0 0
      %451 = vmatpush.bf16.msra.mxu0 0
      %452 = vmatpush.bf16.msra.mxu0 0
      %453 = vmatpush.bf16.msra.mxu0 %v278
      %454 = vmatmul.bf16.gmra.mxu0 %v241
      %v455 = vpop.f32.mrf.mxu0
      %v456 = vadd.f32 0.0, %v455
      %v457 = vpop.f32.mrf.mxu0
      %v458 = vadd.f32 0.0, %v457
      %459 = vdwg.mxu0
      %460 = vmatpush.bf16.msra.mxu0 0
      %461 = vmatpush.bf16.msra.mxu0 0
      %462 = vmatpush.bf16.msra.mxu0 0
      %463 = vmatpush.bf16.msra.mxu0 0
      %464 = vmatpush.bf16.msra.mxu0 0
      %465 = vmatpush.bf16.msra.mxu0 0
      %466 = vmatpush.bf16.msra.mxu0 0
      %467 = vmatpush.bf16.msra.mxu0 %v281
      %468 = vmatmul.bf16.gmra.mxu0 %v241
      %v469 = vpop.f32.mrf.mxu0
      %v470 = vadd.f32 0.0, %v469
      %v471 = vpop.f32.mrf.mxu0
      %v472 = vadd.f32 0.0, %v471
      %473 = vdwg.mxu0
      %474 = vmatpush.bf16.msra.mxu0 0
      %475 = vmatpush.bf16.msra.mxu0 0
      %476 = vmatpush.bf16.msra.mxu0 0
      %477 = vmatpush.bf16.msra.mxu0 0
      %478 = vmatpush.bf16.msra.mxu0 0
      %479 = vmatpush.bf16.msra.mxu0 0
      %480 = vmatpush.bf16.msra.mxu0 0
      %481 = vmatpush.bf16.msra.mxu0 %v284
      %482 = vmatmul.bf16.gmra.mxu0 %v241
      %v483 = vpop.f32.mrf.mxu0
      %v484 = vadd.f32 0.0, %v483
      %v485 = vpop.f32.mrf.mxu0
      %v486 = vadd.f32 0.0, %v485
      %487 = vdwg.mxu0
      %488 = vmatpush.bf16.msra.mxu0 0
      %489 = vmatpush.bf16.msra.mxu0 0
      %490 = vmatpush.bf16.msra.mxu0 0
      %491 = vmatpush.bf16.msra.mxu0 0
      %492 = vmatpush.bf16.msra.mxu0 0
      %493 = vmatpush.bf16.msra.mxu0 0
      %494 = vmatpush.bf16.msra.mxu0 0
      %495 = vmatpush.bf16.msra.mxu0 %v287
      %496 = vmatmul.bf16.gmra.mxu0 %v241
      %v497 = vpop.f32.mrf.mxu0
      %v498 = vadd.f32 0.0, %v497
      %v499 = vpop.f32.mrf.mxu0
      %v500 = vadd.f32 0.0, %v499
      %501 = vdwg.mxu0
      %502 = vmatpush.bf16.msra.mxu0 0
      %503 = vmatpush.bf16.msra.mxu0 0
      %504 = vmatpush.bf16.msra.mxu0 0
      %505 = vmatpush.bf16.msra.mxu0 0
      %506 = vmatpush.bf16.msra.mxu0 0
      %507 = vmatpush.bf16.msra.mxu0 0
      %508 = vmatpush.bf16.msra.mxu0 0
      %509 = vmatpush.bf16.msra.mxu0 %v290
      %510 = vmatmul.bf16.gmra.mxu0 %v241
      %v511 = vpop.f32.mrf.mxu0
      %v512 = vadd.f32 0.0, %v511
      %v513 = vpop.f32.mrf.mxu0
      %v514 = vadd.f32 0.0, %v513
      %515 = vdwg.mxu0
      %v516 = vpack.c.bf16 %v316, %v302
      %v517 = vpack.c.bf16 %v344, %v330
      %v518 = vpack.c.bf16 %v372, %v358
      %v519 = vpack.c.bf16 %v400, %v386
      %v520 = vpack.c.bf16 %v428, %v414
      %v521 = vpack.c.bf16 %v456, %v442
      %v522 = vpack.c.bf16 %v484, %v470
      %v523 = vpack.c.bf16 %v512, %v498
      %v524 = vpack.c.bf16 %v318, %v304
      %v525 = vpack.c.bf16 %v346, %v332
      %v526 = vpack.c.bf16 %v374, %v360
      %v527 = vpack.c.bf16 %v402, %v388
      %v528 = vpack.c.bf16 %v430, %v416
      %v529 = vpack.c.bf16 %v458, %v444
      %v530 = vpack.c.bf16 %v486, %v472
      %v531 = vpack.c.bf16 %v514, %v500
      %532 = vst [vmem:[%s181] sm:$0xff] %v516
      %533 = vst [vmem:[%s181 + $0x8] sm:$0xff] %v517
      %534 = vst [vmem:[%s181 + $0x10] sm:$0xff] %v518
      %535 = vst [vmem:[%s181 + $0x18] sm:$0xff] %v519
      %536 = vst [vmem:[%s181 + $0x20] sm:$0xff] %v520
      %537 = vst [vmem:[%s181 + $0x28] sm:$0xff] %v521
      %538 = vst [vmem:[%s181 + $0x30] sm:$0xff] %v522
      %539 = vst [vmem:[%s181 + $0x38] sm:$0xff] %v523
      %540 = vst [vmem:[%s181 + $0x40] sm:$0xff] %v524
      %541 = vst [vmem:[%s181 + $0x48] sm:$0xff] %v525
      %542 = vst [vmem:[%s181 + $0x50] sm:$0xff] %v526
      %543 = vst [vmem:[%s181 + $0x58] sm:$0xff] %v527
      %544 = vst [vmem:[%s181 + $0x60] sm:$0xff] %v528
      %545 = vst [vmem:[%s181 + $0x68] sm:$0xff] %v529
      %546 = vst [vmem:[%s181 + $0x70] sm:$0xff] %v530
      %547 = vst [vmem:[%s181 + $0x78] sm:$0xff] %v531
      %s548 = smul.u32 16, %s18
      %p549 = scmp.lt.s32.totalorder %s17, 1
      %s550 = scalar_select %p549, %s17, 1
      %p551 = scmp.lt.s32.totalorder %s548, 15
      %s552 = scalar_select %p551, %s548, 15
      %s553 = smul.addr %s550, 32
      %s554 = sadd.s32 %s552, %s553
      %s555 = smul.addr %s554, 4
      %s556 = scalar_lea.vmem %s2, %s555
      // Predicated region
      $region29: #{segformer_segmentation_forward.23} parent=27 // pred_check
        %p557 = pneg %p94
      $region30: #{segformer_segmentation_forward.23} parent=27 // pred_check_branch
        %559 = sbr.rel (%p557) target = $region32
      $region31: #{segformer_segmentation_forward.23} parent=27 // pred_region
        %s560 = smul.u32 16, %s18
      $region32: #{segformer_segmentation_forward.23} parent=27 // pred_fallthru
        _
    $region28: #{segformer_segmentation_forward.23} parent=5 // pred_fallthru
      _
    %p561 = scmp.le.s32.totalorder 2, %s8
    // Predicated region
    $region33: #{segformer_segmentation_forward.23} parent=5 // pred_check
      %p562 = pneg %p561
    $region34: #{segformer_segmentation_forward.23} parent=5 // pred_check_branch
      %564 = sbr.rel (%p562) target = $region36
    $region35: #{segformer_segmentation_forward.23} parent=5 // pred_region
      %s565 = ssub.s32 %s8, 2
      // Predicated region
      $region37: #{segformer_segmentation_forward.23} parent=35 // pred_check
        %p566 = pneg %p100
      $region38: #{segformer_segmentation_forward.23} parent=35 // pred_check_branch
        %568 = sbr.rel (%p566) target = $region40
      $region39: #{segformer_segmentation_forward.23} parent=35 // pred_region
        %s569 = smul.u32 16, %s20
        %p570 = scmp.lt.s32.totalorder %s19, 1
        %s571 = scalar_select %p570, %s19, 1
        %p572 = scmp.lt.s32.totalorder %s569, 15
        %s573 = scalar_select %p572, %s569, 15
        %s574 = smul.addr %s571, 32
        %s575 = sadd.s32 %s573, %s574
        %s576 = smul.addr %s575, 4
        %s577 = scalar_lea.vmem %s2, %s576
      $region40: #{segformer_segmentation_forward.23} parent=35 // pred_fallthru
        _
    $region36: #{segformer_segmentation_forward.23} parent=5 // pred_fallthru
      _
  $region6: #{segformer_segmentation_forward.23} parent=0 // loop_footer
    %s12 = sadd.s32 1, %s8
  $region7: #{segformer_segmentation_forward.23} parent=0 // loop_footer_branch
    %7 = sbr.rel target = $region3
  $region8: #{segformer_segmentation_forward.23} parent=0 // loop_exit
    _

// kernel: segformer_segmentation_forward.18
$region0: #{segformer_segmentation_forward.18}
  #allocation0 [shape = 'u32[]', space=smem, size = 0x4, offset = 0x4, fixed_abs, tag = 'smem constant byte address 0x4 - core index']
  #allocation1 [shape = 'u32[72,128]{1,0:T(1,128)}', space=vmem, size = 0x9000, scoped, tag = 'internal scratch']
  %s0 = inlined_call_operand.vmem [shape: bf16[32,576], index: 0, kind: input, shape index: {}]
  %s1 = inlined_call_operand.vmem [shape: bf16[576,160], index: 1, kind: input, shape index: {}]
  %s2 = inlined_call_operand.vmem [shape: f32[1,160], index: 2, kind: input, shape index: {}]
  %s3 = inlined_call_operand.vmem [shape: bf16[32,160], index: 3, kind: output, shape index: {}]
  %s4 = sld [smem:[#allocation0]]
  $region45: #{segformer_segmentation_forward.18} parent=0
    _
  %s6 = ssub.s32 1, %s4
  %s7 = scalar_select 0, %s6, %s4
  loop: start=0, step=1, limit=4
  $region2: #{segformer_segmentation_forward.18} parent=0 // loop_pre_header
    _
  $region3: #{segformer_segmentation_forward.18} parent=0 // loop_header
    %s9 = sphi 0, %s13
    %p10 = scmp.ge.s32.totalorder %s9, 4
    %s19 = sphi 0, %s21
    %s22 = sphi 0, %s19
    %s23 = sphi 0, %s22
    %s39 = sphi 0, %s23
    %s43 = sphi 0, %s43
    %s45 = sphi 0, %s43
    %s46 = sphi 0, %s45
    %s60 = sphi 0, %s46
    %s64 = sphi 0, %s64
    %s66 = sphi 0, %s64
    %s67 = sphi 0, %s66
    %s81 = sphi 0, %s67
    %s87 = sphi 0, %s89
    %s90 = sphi 0, %s87
    %s91 = sphi 0, %s90
    %s107 = sphi 0, %s91
  $region4: #{segformer_segmentation_forward.18} parent=0 // loop_header_branch
    %12 = sbr.rel (%p10) target = $region8
  $region5: #{segformer_segmentation_forward.18} parent=0 // loop_body
    %s14 = ssub.s32 %s9, 1
    %s15 = ssub.s32 %s9, 2
    %s16 = sadd.s32 %s9, 1
    %s17 = ssub.s32 %s9, %s16
    %p18 = scmp.eq.s32.totalorder %s17, 0
    %s20 = sadd.s32 %s19, 1
    %s21 = scalar_select %p18, %s19, %s20
    %p24 = pneg %p18
    %p25 = scmp.eq.s32.totalorder %s9, 1
    %p26 = por %p24, %p25
    %p27 = scmp.ne.s32.totalorder %s19, %s22
    %p28 = scmp.eq.s32.totalorder %s9, 0
    %p29 = por %p27, %p28
    %p30 = scmp.ne.s32.totalorder %s19, %s22
    %p31 = scmp.eq.s32.totalorder %s14, 1
    %p32 = por %p30, %p31
    %p33 = scmp.ne.s32.totalorder %s22, %s23
    %p34 = scmp.eq.s32.totalorder %s14, 0
    %p35 = por %p33, %p34
    %p36 = scmp.ne.s32.totalorder %s22, %s23
    %p37 = scmp.eq.s32.totalorder %s15, 1
    %p38 = por %p36, %p37
    %p40 = scmp.ne.s32.totalorder %s23, %s39
    %p41 = scmp.eq.s32.totalorder %s15, 0
    %p42 = por %p40, %p41
    %s44 = sadd.s32 %s43, 1
    %p47 = scmp.eq.s32.totalorder %s9, 1
    %p48 = scmp.ne.s32.totalorder %s43, %s45
    %p49 = scmp.eq.s32.totalorder %s9, 0
    %p50 = por %p48, %p49
    %p51 = scmp.ne.s32.totalorder %s43, %s45
    %p52 = scmp.eq.s32.totalorder %s14, 1
    %p53 = por %p51, %p52
    %p54 = scmp.ne.s32.totalorder %s45, %s46
    %p55 = scmp.eq.s32.totalorder %s14, 0
    %p56 = por %p54, %p55
    %p57 = scmp.ne.s32.totalorder %s45, %s46
    %p58 = scmp.eq.s32.totalorder %s15, 1
    %p59 = por %p57, %p58
    %p61 = scmp.ne.s32.totalorder %s46, %s60
    %p62 = scmp.eq.s32.totalorder %s15, 0
    %p63 = por %p61, %p62
    %s65 = sadd.s32 %s64, 1
    %p68 = scmp.eq.s32.totalorder %s9, 1
    %p69 = scmp.ne.s32.totalorder %s64, %s66
    %p70 = scmp.eq.s32.totalorder %s9, 0
    %p71 = por %p69, %p70
    %p72 = scmp.ne.s32.totalorder %s64, %s66
    %p73 = scmp.eq.s32.totalorder %s14, 1
    %p74 = por %p72, %p73
    %p75 = scmp.ne.s32.totalorder %s66, %s67
    %p76 = scmp.eq.s32.totalorder %s14, 0
    %p77 = por %p75, %p76
    %p78 = scmp.ne.s32.totalorder %s66, %s67
    %p79 = scmp.eq.s32.totalorder %s15, 1
    %p80 = por %p78, %p79
    %p82 = scmp.ne.s32.totalorder %s67, %s81
    %p83 = scmp.eq.s32.totalorder %s15, 0
    %p84 = por %p82, %p83
    %s85 = ssub.s32 %s9, %s16
    %p86 = scmp.eq.s32.totalorder %s85, 0
    %s88 = sadd.s32 %s87, 1
    %s89 = scalar_select %p86, %s87, %s88
    %p92 = pneg %p86
    %p93 = scmp.eq.s32.totalorder %s9, 1
    %p94 = por %p92, %p93
    %p95 = scmp.ne.s32.totalorder %s87, %s90
    %p96 = scmp.eq.s32.totalorder %s9, 0
    %p97 = por %p95, %p96
    %p98 = scmp.ne.s32.totalorder %s87, %s90
    %p99 = scmp.eq.s32.totalorder %s14, 1
    %p100 = por %p98, %p99
    %p101 = scmp.ne.s32.totalorder %s90, %s91
    %p102 = scmp.eq.s32.totalorder %s14, 0
    %p103 = por %p101, %p102
    %p104 = scmp.ne.s32.totalorder %s90, %s91
    %p105 = scmp.eq.s32.totalorder %s15, 1
    %p106 = por %p104, %p105
    %p108 = scmp.ne.s32.totalorder %s91, %s107
    %p109 = scmp.eq.s32.totalorder %s15, 0
    %p110 = por %p108, %p109
    %p111 = scmp.le.s32.totalorder 1, %s9
    %p112 = scmp.lt.s32.totalorder %s9, 3
    %p113 = pnand %p111, %p112
    %p114 = pneg %p113
    // Predicated region
    $region9: #{segformer_segmentation_forward.18} parent=5 // pred_check
      _
    $region10: #{segformer_segmentation_forward.18} parent=5 // pred_check_branch
      %116 = sbr.rel (%p113) target = $region12
    $region11: #{segformer_segmentation_forward.18} parent=5 // pred_region
      %s117 = ssub.s32 %s9, 1
      // Predicated region
      $region13: #{segformer_segmentation_forward.18} parent=11 // pred_check
        %p118 = pneg %p56
      $region14: #{segformer_segmentation_forward.18} parent=11 // pred_check_branch
        %120 = sbr.rel (%p118) target = $region16
      $region15: #{segformer_segmentation_forward.18} parent=11 // pred_region
        _
      $region16: #{segformer_segmentation_forward.18} parent=11 // pred_fallthru
        _
      // Predicated region
      $region17: #{segformer_segmentation_forward.18} parent=11 // pred_check
        %p121 = pneg %p77
      $region18: #{segformer_segmentation_forward.18} parent=11 // pred_check_branch
        %123 = sbr.rel (%p121) target = $region20
      $region19: #{segformer_segmentation_forward.18} parent=11 // pred_region
        _
      $region20: #{segformer_segmentation_forward.18} parent=11 // pred_fallthru
        _
    $region12: #{segformer_segmentation_forward.18} parent=5 // pred_fallthru
      _
    %p124 = scmp.lt.s32.totalorder %s9, 2
    // Predicated region
    $region21: #{segformer_segmentation_forward.18} parent=5 // pred_check
      %p125 = pneg %p124
    $region22: #{segformer_segmentation_forward.18} parent=5 // pred_check_branch
      %127 = sbr.rel (%p125) target = $region24
    $region23: #{segformer_segmentation_forward.18} parent=5 // pred_region
      // Predicated region
      $region25: #{segformer_segmentation_forward.18} parent=23 // pred_check
        %p128 = pneg %p29
      $region26: #{segformer_segmentation_forward.18} parent=23 // pred_check_branch
        %130 = sbr.rel (%p128) target = $region28
      $region27: #{segformer_segmentation_forward.18} parent=23 // pred_region
        %s131 = smul.u32 2, %s9
        %p132 = scmp.lt.s32.totalorder %s131, 3
        %s133 = scalar_select %p132, %s131, 3
        %s134 = smul.addr %s133, 5
        %s135 = smul.addr %s134, 4
        %s136 = scalar_lea.vmem %s0, %s135
        %s137 = smul.u32 2, %s9
      $region28: #{segformer_segmentation_forward.18} parent=23 // pred_fallthru
        _
    $region24: #{segformer_segmentation_forward.18} parent=5 // pred_fallthru
      _
    %p138 = scmp.le.s32.totalorder 1, %s9
    %p139 = scmp.lt.s32.totalorder %s9, 3
    %p140 = pnand %p138, %p139
    %p141 = pneg %p140
    // Predicated region
    $region29: #{segformer_segmentation_forward.18} parent=5 // pred_check
      _
    $region30: #{segformer_segmentation_forward.18} parent=5 // pred_check_branch
      %143 = sbr.rel (%p140) target = $region32
    $region31: #{segformer_segmentation_forward.18} parent=5 // pred_region
      %s144 = ssub.s32 %s9, 1
      %s145 = smul.u32 2, %s14
      %p146 = scmp.lt.s32.totalorder %s145, 3
      %s147 = scalar_select %p146, %s145, 3
      %s148 = smul.addr %s147, 5
      %s149 = smul.addr %s148, 4
      %s150 = scalar_lea.vmem %s0, %s149
      %p151 = pneg %p35
      %p152 = pneg %p32
      %p153 = pneg %p56
      %p154 = pneg %p53
      %p155 = pneg %p77
      %p156 = pneg %p74
      %p157 = pneg %p103
      %p158 = pneg %p100
      %s159 = smul.u32 2, %s14
      %p160 = scmp.lt.s32.totalorder %s159, 3
      %s161 = scalar_select %p160, %s159, 3
      %s162 = smul.addr %s161, 2
      %s163 = smul.addr %s162, 4
      %s164 = scalar_lea.vmem %s3, %s163
      %s165 = smul.u32 2, %s14
      %p166 = scmp.lt.s32.totalorder %s165, 3
      %s167 = scalar_select %p166, %s165, 3
      %s168 = smul.addr %s167, 5
      %s169 = smul.addr %s168, 4
      %s170 = scalar_lea.vmem %s0, %s169
      %s171 = smul.u32 2, %s14
      %s172 = smul.u32 2, %s14
      %p173 = scmp.lt.s32.totalorder %s172, 3
      %s174 = scalar_select %p173, %s172, 3
      %s175 = smul.addr %s174, 2
      %s176 = smul.addr %s175, 4
      %s177 = scalar_lea.vmem %s3, %s176
      %s178 = smul.u32 2, %s14
      %v180 = vld [vmem:[%s170] sm:$0xff]
      %v181 = vld [vmem:[%s170 + $0x8] sm:$0xff]
      %v182 = vld [vmem:[%s170 + $0x10] sm:$0xf]
      %v183 = vld [vmem:[%s170 + $0x14] sm:$0xff]
      %v184 = vld [vmem:[%s170 + $0x1c] sm:$0xff]
      %v185 = vld [vmem:[%s170 + $0x24] sm:$0xf]
      %v186 = vld [vmem:[%s1] sm:$0xff]
      %v187 = vld [vmem:[%s1 + $0x8] sm:$0xff]
      %v188 = vld [vmem:[%s1 + $0x10] sm:$0xff]
      %v189 = vld [vmem:[%s1 + $0x18] sm:$0xff]
      %v190 = vld [vmem:[%s1 + $0x20] sm:$0xff]
      %v191 = vld [vmem:[%s1 + $0x28] sm:$0xff]
      %v192 = vld [vmem:[%s1 + $0x30] sm:$0xff]
      %v193 = vld [vmem:[%s1 + $0x38] sm:$0xff]
      %v194 = vld [vmem:[%s1 + $0x40] sm:$0xff]
      %v195 = vld [vmem:[%s1 + $0x48] sm:$0xff]
      %v196 = vld [vmem:[%s1 + $0x50] sm:$0xff]
      %v197 = vld [vmem:[%s1 + $0x58] sm:$0xff]
      %v198 = vld [vmem:[%s1 + $0x60] sm:$0xff]
      %v199 = vld [vmem:[%s1 + $0x68] sm:$0xff]
      %v200 = vld [vmem:[%s1 + $0x70] sm:$0xff]
      %v201 = vld [vmem:[%s1 + $0x78] sm:$0xff]
      %v202 = vld [vmem:[%s1 + $0x80] sm:$0xff]
      %v203 = vld [vmem:[%s1 + $0x88] sm:$0xff]
      %v204 = vld [vmem:[%s1 + $0x90] sm:$0xff]
      %v205 = vld [vmem:[%s1 + $0x98] sm:$0xff]
      %v206 = vld [vmem:[%s1 + $0xa0] sm:$0xff]
      %v207 = vld [vmem:[%s1 + $0xa8] sm:$0xff]
      %v208 = vld [vmem:[%s1 + $0xb0] sm:$0xff]
      %v209 = vld [vmem:[%s1 + $0xb8] sm:$0xff]
      %v210 = vld [vmem:[%s1 + $0xc0] sm:$0xff]
      %v211 = vld [vmem:[%s1 + $0xc8] sm:$0xff]
      %v212 = vld [vmem:[%s1 + $0xd0] sm:$0xff]
      %v213 = vld [vmem:[%s1 + $0xd8] sm:$0xff]
      %v214 = vld [vmem:[%s1 + $0xe0] sm:$0xff]
      %v215 = vld [vmem:[%s1 + $0xe8] sm:$0xff]
      %v216 = vld [vmem:[%s1 + $0xf0] sm:$0xff]
      %v217 = vld [vmem:[%s1 + $0xf8] sm:$0xff]
      %v218 = vld [vmem:[%s1 + $0x100] sm:$0xff]
      %v219 = vld [vmem:[%s1 + $0x108] sm:$0xff]
      %v220 = vld [vmem:[%s1 + $0x110] sm:$0xff]
      %v221 = vld [vmem:[%s1 + $0x118] sm:$0xff]
      %v222 = vld [vmem:[%s1 + $0x120] sm:$0xff]
      %v223 = vld [vmem:[%s1 + $0x128] sm:$0xff]
      %v224 = vld [vmem:[%s1 + $0x130] sm:$0xff]
      %v225 = vld [vmem:[%s1 + $0x138] sm:$0xff]
      %v226 = vld [vmem:[%s1 + $0x140] sm:$0xff]
      %v227 = vld [vmem:[%s1 + $0x148] sm:$0xff]
      %v228 = vld [vmem:[%s1 + $0x150] sm:$0xff]
      %v229 = vld [vmem:[%s1 + $0x158] sm:$0xff]
      %v230 = vld [vmem:[%s1 + $0x160] sm:$0xff]
      %v231 = vld [vmem:[%s1 + $0x168] sm:$0xff]
      %v232 = vld [vmem:[%s1 + $0x170] sm:$0xff]
      %v233 = vld [vmem:[%s1 + $0x178] sm:$0xff]
      %v234 = vld [vmem:[%s1 + $0x180] sm:$0xff]
      %v235 = vld [vmem:[%s1 + $0x188] sm:$0xff]
      %v236 = vld [vmem:[%s1 + $0x190] sm:$0xff]
      %v237 = vld [vmem:[%s1 + $0x198] sm:$0xff]
      %v238 = vld [vmem:[%s1 + $0x1a0] sm:$0xff]
      %v239 = vld [vmem:[%s1 + $0x1a8] sm:$0xff]
      %v240 = vld [vmem:[%s1 + $0x1b0] sm:$0xff]
      %v241 = vld [vmem:[%s1 + $0x1b8] sm:$0xff]
      %v242 = vld [vmem:[%s1 + $0x1c0] sm:$0xff]
      %v243 = vld [vmem:[%s1 + $0x1c8] sm:$0xff]
      %v244 = vld [vmem:[%s1 + $0x1d0] sm:$0xff]
      %v245 = vld [vmem:[%s1 + $0x1d8] sm:$0xff]
      %v246 = vld [vmem:[%s1 + $0x1e0] sm:$0xff]
      %v247 = vld [vmem:[%s1 + $0x1e8] sm:$0xff]
      %v248 = vld [vmem:[%s1 + $0x1f0] sm:$0xff]
      %v249 = vld [vmem:[%s1 + $0x1f8] sm:$0xff]
      %v250 = vld [vmem:[%s1 + $0x200] sm:$0xff]
      %v251 = vld [vmem:[%s1 + $0x208] sm:$0xff]
      %v252 = vld [vmem:[%s1 + $0x210] sm:$0xff]
      %v253 = vld [vmem:[%s1 + $0x218] sm:$0xff]
      %v254 = vld [vmem:[%s1 + $0x220] sm:$0xff]
      %v255 = vld [vmem:[%s1 + $0x228] sm:$0xff]
      %v256 = vld [vmem:[%s1 + $0x230] sm:$0xff]
      %v257 = vld [vmem:[%s1 + $0x238] sm:$0xff]
      %v258 = vld [vmem:[%s2] sm:$0x3]
      %v260 = vperm.slane %v258, 0
      %v261 = vperm.slane %v258, 1
      %v270 = vunpack.c.l.b16 %v180
      %v271 = vunpack.c.h.b16 %v180
      %v272 = vunpack.c.l.b16 %v181
      %v273 = vunpack.c.h.b16 %v181
      %v274 = vunpack.c.l.b16 %v182
      %v275 = vunpack.c.l.b16 %v183
      %v276 = vunpack.c.h.b16 %v183
      %v277 = vunpack.c.l.b16 %v184
      %v278 = vunpack.c.h.b16 %v184
      %v279 = vunpack.c.l.b16 %v185
      %v280 = vpack.c.b16 %v275, %v270
      %v281 = vpack.c.b16 %v276, %v271
      %v282 = vpack.c.b16 %v277, %v272
      %v283 = vpack.c.b16 %v278, %v273
      %v284 = vpack.c.b16 %v279, %v274
      %v361 = vunpack.c.l.b16 %v186
      %v362 = vunpack.c.h.b16 %v186
      %v363 = vunpack.c.l.b16 %v187
      %v364 = vunpack.c.h.b16 %v187
      %v365 = vunpack.c.l.b16 %v188
      %v366 = vunpack.c.h.b16 %v188
      %v367 = vunpack.c.l.b16 %v189
      %v368 = vunpack.c.h.b16 %v189
      %v369 = vunpack.c.l.b16 %v190
      %v370 = vunpack.c.h.b16 %v190
      %v371 = vunpack.c.l.b16 %v191
      %v372 = vunpack.c.h.b16 %v191
      %v373 = vunpack.c.l.b16 %v192
      %v374 = vunpack.c.h.b16 %v192
      %v375 = vunpack.c.l.b16 %v193
      %v376 = vunpack.c.h.b16 %v193
      %v377 = vunpack.c.l.b16 %v194
      %v378 = vunpack.c.h.b16 %v194
      %v379 = vunpack.c.l.b16 %v195
      %v380 = vunpack.c.h.b16 %v195
      %v381 = vunpack.c.l.b16 %v196
      %v382 = vunpack.c.h.b16 %v196
      %v383 = vunpack.c.l.b16 %v197
      %v384 = vunpack.c.h.b16 %v197
      %v385 = vunpack.c.l.b16 %v198
      %v386 = vunpack.c.h.b16 %v198
      %v387 = vunpack.c.l.b16 %v199
      %v388 = vunpack.c.h.b16 %v199
      %v389 = vunpack.c.l.b16 %v200
      %v390 = vunpack.c.h.b16 %v200
      %v391 = vunpack.c.l.b16 %v201
      %v392 = vunpack.c.h.b16 %v201
      %v393 = vunpack.c.l.b16 %v202
      %v394 = vunpack.c.h.b16 %v202
      %v395 = vunpack.c.l.b16 %v203
      %v396 = vunpack.c.h.b16 %v203
      %v397 = vunpack.c.l.b16 %v204
      %v398 = vunpack.c.h.b16 %v204
      %v399 = vunpack.c.l.b16 %v205
      %v400 = vunpack.c.h.b16 %v205
      %v401 = vunpack.c.l.b16 %v206
      %v402 = vunpack.c.h.b16 %v206
      %v403 = vunpack.c.l.b16 %v207
      %v404 = vunpack.c.h.b16 %v207
      %v405 = vunpack.c.l.b16 %v208
      %v406 = vunpack.c.h.b16 %v208
      %v407 = vunpack.c.l.b16 %v209
      %v408 = vunpack.c.h.b16 %v209
      %v409 = vunpack.c.l.b16 %v210
      %v410 = vunpack.c.h.b16 %v210
      %v411 = vunpack.c.l.b16 %v211
      %v412 = vunpack.c.h.b16 %v211
      %v413 = vunpack.c.l.b16 %v212
      %v414 = vunpack.c.h.b16 %v212
      %v415 = vunpack.c.l.b16 %v213
      %v416 = vunpack.c.h.b16 %v213
      %v417 = vunpack.c.l.b16 %v214
      %v418 = vunpack.c.h.b16 %v214
      %v419 = vunpack.c.l.b16 %v215
      %v420 = vunpack.c.h.b16 %v215
      %v421 = vunpack.c.l.b16 %v216
      %v422 = vunpack.c.h.b16 %v216
      %v423 = vunpack.c.l.b16 %v217
      %v424 = vunpack.c.h.b16 %v217
      %v425 = vunpack.c.l.b16 %v218
      %v426 = vunpack.c.h.b16 %v218
      %v427 = vunpack.c.l.b16 %v219
      %v428 = vunpack.c.h.b16 %v219
      %v429 = vunpack.c.l.b16 %v220
      %v430 = vunpack.c.h.b16 %v220
      %v431 = vunpack.c.l.b16 %v221
      %v432 = vunpack.c.h.b16 %v221
      %v433 = vunpack.c.l.b16 %v222
      %v434 = vunpack.c.h.b16 %v222
      %v435 = vunpack.c.l.b16 %v223
      %v436 = vunpack.c.h.b16 %v223
      %v437 = vunpack.c.l.b16 %v224
      %v438 = vunpack.c.h.b16 %v224
      %v439 = vunpack.c.l.b16 %v225
      %v440 = vunpack.c.h.b16 %v225
      %v441 = vunpack.c.l.b16 %v226
      %v442 = vunpack.c.h.b16 %v226
      %v443 = vunpack.c.l.b16 %v227
      %v444 = vunpack.c.h.b16 %v227
      %v445 = vunpack.c.l.b16 %v228
      %v446 = vunpack.c.h.b16 %v228
      %v447 = vunpack.c.l.b16 %v229
      %v448 = vunpack.c.h.b16 %v229
      %v449 = vunpack.c.l.b16 %v230
      %v450 = vunpack.c.h.b16 %v230
      %v451 = vunpack.c.l.b16 %v231
      %v452 = vunpack.c.h.b16 %v231
      %v453 = vunpack.c.l.b16 %v232
      %v454 = vunpack.c.h.b16 %v232
      %v455 = vunpack.c.l.b16 %v233
      %v456 = vunpack.c.h.b16 %v233
      %v457 = vunpack.c.l.b16 %v234
      %v458 = vunpack.c.h.b16 %v234
      %v459 = vunpack.c.l.b16 %v235
      %v460 = vunpack.c.h.b16 %v235
      %v461 = vunpack.c.l.b16 %v236
      %v462 = vunpack.c.h.b16 %v236
      %v463 = vunpack.c.l.b16 %v237
      %v464 = vunpack.c.h.b16 %v237
      %v465 = vunpack.c.l.b16 %v238
      %v466 = vunpack.c.h.b16 %v238
      %v467 = vunpack.c.l.b16 %v239
      %v468 = vunpack.c.h.b16 %v239
      %v469 = vunpack.c.l.b16 %v240
      %v470 = vunpack.c.h.b16 %v240
      %v471 = vunpack.c.l.b16 %v241
      %v472 = vunpack.c.h.b16 %v241
      %v473 = vunpack.c.l.b16 %v242
      %v474 = vunpack.c.h.b16 %v242
      %v475 = vunpack.c.l.b16 %v243
      %v476 = vunpack.c.h.b16 %v243
      %v477 = vunpack.c.l.b16 %v244
      %v478 = vunpack.c.h.b16 %v244
      %v479 = vunpack.c.l.b16 %v245
      %v480 = vunpack.c.h.b16 %v245
      %v481 = vunpack.c.l.b16 %v246
      %v482 = vunpack.c.h.b16 %v246
      %v483 = vunpack.c.l.b16 %v247
      %v484 = vunpack.c.h.b16 %v247
      %v485 = vunpack.c.l.b16 %v248
      %v486 = vunpack.c.h.b16 %v248
      %v487 = vunpack.c.l.b16 %v249
      %v488 = vunpack.c.h.b16 %v249
      %v489 = vunpack.c.l.b16 %v250
      %v490 = vunpack.c.h.b16 %v250
      %v491 = vunpack.c.l.b16 %v251
      %v492 = vunpack.c.h.b16 %v251
      %v493 = vunpack.c.l.b16 %v252
      %v494 = vunpack.c.h.b16 %v252
      %v495 = vunpack.c.l.b16 %v253
      %v496 = vunpack.c.h.b16 %v253
      %v497 = vunpack.c.l.b16 %v254
      %v498 = vunpack.c.h.b16 %v254
      %v499 = vunpack.c.l.b16 %v255
      %v500 = vunpack.c.h.b16 %v255
      %v501 = vunpack.c.l.b16 %v256
      %v502 = vunpack.c.h.b16 %v256
      %v503 = vunpack.c.l.b16 %v257
      %v504 = vunpack.c.h.b16 %v257
      %v505 = vpack.c.b16 %v363, %v361
      %v506 = vpack.c.b16 %v364, %v362
      %v507 = vpack.c.b16 %v367, %v365
      %v508 = vpack.c.b16 %v368, %v366
      %v509 = vpack.c.b16 %v371, %v369
      %v510 = vpack.c.b16 %v372, %v370
      %v511 = vpack.c.b16 %v375, %v373
      %v512 = vpack.c.b16 %v376, %v374
      %v513 = vpack.c.b16 %v379, %v377
      %v514 = vpack.c.b16 %v380, %v378
      %v515 = vpack.c.b16 %v383, %v381
      %v516 = vpack.c.b16 %v384, %v382
      %v517 = vpack.c.b16 %v387, %v385
      %v518 = vpack.c.b16 %v388, %v386
      %v519 = vpack.c.b16 %v391, %v389
      %v520 = vpack.c.b16 %v392, %v390
      %v521 = vpack.c.b16 %v395, %v393
      %v522 = vpack.c.b16 %v396, %v394
      %v523 = vpack.c.b16 %v399, %v397
      %v524 = vpack.c.b16 %v400, %v398
      %v525 = vpack.c.b16 %v403, %v401
      %v526 = vpack.c.b16 %v404, %v402
      %v527 = vpack.c.b16 %v407, %v405
      %v528 = vpack.c.b16 %v408, %v406
      %v529 = vpack.c.b16 %v411, %v409
      %v530 = vpack.c.b16 %v412, %v410
      %v531 = vpack.c.b16 %v415, %v413
      %v532 = vpack.c.b16 %v416, %v414
      %v533 = vpack.c.b16 %v419, %v417
      %v534 = vpack.c.b16 %v420, %v418
      %v535 = vpack.c.b16 %v423, %v421
      %v536 = vpack.c.b16 %v424, %v422
      %v537 = vpack.c.b16 %v427, %v425
      %v538 = vpack.c.b16 %v428, %v426
      %v539 = vpack.c.b16 %v431, %v429
      %v540 = vpack.c.b16 %v432, %v430
      %v541 = vpack.c.b16 %v435, %v433
      %v542 = vpack.c.b16 %v436, %v434
      %v543 = vpack.c.b16 %v439, %v437
      %v544 = vpack.c.b16 %v440, %v438
      %v545 = vpack.c.b16 %v443, %v441
      %v546 = vpack.c.b16 %v444, %v442
      %v547 = vpack.c.b16 %v447, %v445
      %v548 = vpack.c.b16 %v448, %v446
      %v549 = vpack.c.b16 %v451, %v449
      %v550 = vpack.c.b16 %v452, %v450
      %v551 = vpack.c.b16 %v455, %v453
      %v552 = vpack.c.b16 %v456, %v454
      %v553 = vpack.c.b16 %v459, %v457
      %v554 = vpack.c.b16 %v460, %v458
      %v555 = vpack.c.b16 %v463, %v461
      %v556 = vpack.c.b16 %v464, %v462
      %v557 = vpack.c.b16 %v467, %v465
      %v558 = vpack.c.b16 %v468, %v466
      %v559 = vpack.c.b16 %v471, %v469
      %v560 = vpack.c.b16 %v472, %v470
      %v561 = vpack.c.b16 %v475, %v473
      %v562 = vpack.c.b16 %v476, %v474
      %v563 = vpack.c.b16 %v479, %v477
      %v564 = vpack.c.b16 %v480, %v478
      %v565 = vpack.c.b16 %v483, %v481
      %v566 = vpack.c.b16 %v484, %v482
      %v567 = vpack.c.b16 %v487, %v485
      %v568 = vpack.c.b16 %v488, %v486
      %v569 = vpack.c.b16 %v491, %v489
      %v570 = vpack.c.b16 %v492, %v490
      %v571 = vpack.c.b16 %v495, %v493
      %v572 = vpack.c.b16 %v496, %v494
      %v573 = vpack.c.b16 %v499, %v497
      %v574 = vpack.c.b16 %v500, %v498
      %v575 = vpack.c.b16 %v503, %v501
      %v576 = vpack.c.b16 %v504, %v502
      %vm649 = vcmask 523264
      %v651 = vsel %vm649, %v284, 0
      %653 = vmatpush.bf16.msra.mxu0 %v519
      %654 = vmatpush.bf16.msra.mxu0 %v517
      %655 = vmatpush.bf16.msra.mxu0 %v515
      %656 = vmatpush.bf16.msra.mxu0 %v513
      %657 = vmatpush.bf16.msra.mxu0 %v511
      %658 = vmatpush.bf16.msra.mxu0 %v509
      %659 = vmatpush.bf16.msra.mxu0 %v507
      %660 = vmatpush.bf16.msra.mxu0 %v505
      %661 = vmatmul.bf16.gmra.mxu0 %v280
      %v662 = vpop.f32.mrf.mxu0
      %v663 = vadd.f32 %v260, %v662
      %v664 = vpop.f32.mrf.mxu0
      %v665 = vadd.f32 %v260, %v664
      %666 = vdwg.mxu0
      %667 = vmatpush.bf16.msra.mxu0 %v535
      %668 = vmatpush.bf16.msra.mxu0 %v533
      %669 = vmatpush.bf16.msra.mxu0 %v531
      %670 = vmatpush.bf16.msra.mxu0 %v529
      %671 = vmatpush.bf16.msra.mxu0 %v527
      %672 = vmatpush.bf16.msra.mxu0 %v525
      %673 = vmatpush.bf16.msra.mxu0 %v523
      %674 = vmatpush.bf16.msra.mxu0 %v521
      %675 = vmatmul.bf16.gmra.mxu0 %v281
      %v676 = vpop.f32.mrf.mxu0
      %v677 = vadd.f32 %v663, %v676
      %v678 = vpop.f32.mrf.mxu0
      %v679 = vadd.f32 %v665, %v678
      %680 = vdwg.mxu0
      %681 = vmatpush.bf16.msra.mxu0 %v551
      %682 = vmatpush.bf16.msra.mxu0 %v549
      %683 = vmatpush.bf16.msra.mxu0 %v547
      %684 = vmatpush.bf16.msra.mxu0 %v545
      %685 = vmatpush.bf16.msra.mxu0 %v543
      %686 = vmatpush.bf16.msra.mxu0 %v541
      %687 = vmatpush.bf16.msra.mxu0 %v539
      %688 = vmatpush.bf16.msra.mxu0 %v537
      %689 = vmatmul.bf16.gmra.mxu0 %v282
      %v690 = vpop.f32.mrf.mxu0
      %v691 = vadd.f32 %v677, %v690
      %v692 = vpop.f32.mrf.mxu0
      %v693 = vadd.f32 %v679, %v692
      %694 = vdwg.mxu0
      %695 = vmatpush.bf16.msra.mxu0 %v567
      %696 = vmatpush.bf16.msra.mxu0 %v565
      %697 = vmatpush.bf16.msra.mxu0 %v563
      %698 = vmatpush.bf16.msra.mxu0 %v561
      %699 = vmatpush.bf16.msra.mxu0 %v559
      %700 = vmatpush.bf16.msra.mxu0 %v557
      %701 = vmatpush.bf16.msra.mxu0 %v555
      %702 = vmatpush.bf16.msra.mxu0 %v553
      %703 = vmatmul.bf16.gmra.mxu0 %v283
      %v704 = vpop.f32.mrf.mxu0
      %v705 = vadd.f32 %v691, %v704
      %v706 = vpop.f32.mrf.mxu0
      %v707 = vadd.f32 %v693, %v706
      %708 = vdwg.mxu0
      %709 = vmatpush.bf16.msra.mxu0 0
      %710 = vmatpush.bf16.msra.mxu0 0
      %711 = vmatpush.bf16.msra.mxu0 0
      %712 = vmatpush.bf16.msra.mxu0 0
      %713 = vmatpush.bf16.msra.mxu0 %v575
      %714 = vmatpush.bf16.msra.mxu0 %v573
      %715 = vmatpush.bf16.msra.mxu0 %v571
      %716 = vmatpush.bf16.msra.mxu0 %v569
      %717 = vmatmul.bf16.gmra.mxu0 %v651
      %v718 = vpop.f32.mrf.mxu0
      %v719 = vadd.f32 %v705, %v718
      %v720 = vpop.f32.mrf.mxu0
      %v721 = vadd.f32 %v707, %v720
      %722 = vdwg.mxu0
      %723 = vmatpush.bf16.msra.mxu0 %v520
      %724 = vmatpush.bf16.msra.mxu0 %v518
      %725 = vmatpush.bf16.msra.mxu0 %v516
      %726 = vmatpush.bf16.msra.mxu0 %v514
      %727 = vmatpush.bf16.msra.mxu0 %v512
      %728 = vmatpush.bf16.msra.mxu0 %v510
      %729 = vmatpush.bf16.msra.mxu0 %v508
      %730 = vmatpush.bf16.msra.mxu0 %v506
      %731 = vmatmul.bf16.gmra.mxu0 %v280
      %v732 = vpop.f32.mrf.mxu0
      %v733 = vadd.f32 %v261, %v732
      %v734 = vpop.f32.mrf.mxu0
      %v735 = vadd.f32 %v261, %v734
      %736 = vdwg.mxu0
      %737 = vmatpush.bf16.msra.mxu0 %v536
      %738 = vmatpush.bf16.msra.mxu0 %v534
      %739 = vmatpush.bf16.msra.mxu0 %v532
      %740 = vmatpush.bf16.msra.mxu0 %v530
      %741 = vmatpush.bf16.msra.mxu0 %v528
      %742 = vmatpush.bf16.msra.mxu0 %v526
      %743 = vmatpush.bf16.msra.mxu0 %v524
      %744 = vmatpush.bf16.msra.mxu0 %v522
      %745 = vmatmul.bf16.gmra.mxu0 %v281
      %v746 = vpop.f32.mrf.mxu0
      %v747 = vadd.f32 %v733, %v746
      %v748 = vpop.f32.mrf.mxu0
      %v749 = vadd.f32 %v735, %v748
      %750 = vdwg.mxu0
      %751 = vmatpush.bf16.msra.mxu0 %v552
      %752 = vmatpush.bf16.msra.mxu0 %v550
      %753 = vmatpush.bf16.msra.mxu0 %v548
      %754 = vmatpush.bf16.msra.mxu0 %v546
      %755 = vmatpush.bf16.msra.mxu0 %v544
      %756 = vmatpush.bf16.msra.mxu0 %v542
      %757 = vmatpush.bf16.msra.mxu0 %v540
      %758 = vmatpush.bf16.msra.mxu0 %v538
      %759 = vmatmul.bf16.gmra.mxu0 %v282
      %v760 = vpop.f32.mrf.mxu0
      %v761 = vadd.f32 %v747, %v760
      %v762 = vpop.f32.mrf.mxu0
      %v763 = vadd.f32 %v749, %v762
      %764 = vdwg.mxu0
      %765 = vmatpush.bf16.msra.mxu0 %v568
      %766 = vmatpush.bf16.msra.mxu0 %v566
      %767 = vmatpush.bf16.msra.mxu0 %v564
      %768 = vmatpush.bf16.msra.mxu0 %v562
      %769 = vmatpush.bf16.msra.mxu0 %v560
      %770 = vmatpush.bf16.msra.mxu0 %v558
      %771 = vmatpush.bf16.msra.mxu0 %v556
      %772 = vmatpush.bf16.msra.mxu0 %v554
      %773 = vmatmul.bf16.gmra.mxu0 %v283
      %v774 = vpop.f32.mrf.mxu0
      %v775 = vadd.f32 %v761, %v774
      %v776 = vpop.f32.mrf.mxu0
      %v777 = vadd.f32 %v763, %v776
      %778 = vdwg.mxu0
      %779 = vmatpush.bf16.msra.mxu0 0
      %780 = vmatpush.bf16.msra.mxu0 0
      %781 = vmatpush.bf16.msra.mxu0 0
      %782 = vmatpush.bf16.msra.mxu0 0
      %783 = vmatpush.bf16.msra.mxu0 %v576
      %784 = vmatpush.bf16.msra.mxu0 %v574
      %785 = vmatpush.bf16.msra.mxu0 %v572
      %786 = vmatpush.bf16.msra.mxu0 %v570
      %787 = vmatmul.bf16.gmra.mxu0 %v651
      %v788 = vpop.f32.mrf.mxu0
      %v789 = vadd.f32 %v775, %v788
      %v790 = vpop.f32.mrf.mxu0
      %v791 = vadd.f32 %v777, %v790
      %792 = vdwg.mxu0
      %v793 = vmax.f32 %v719, 0.0
      %v794 = vmax.f32 %v789, 0.0
      %v795 = vmax.f32 %v721, 0.0
      %v796 = vmax.f32 %v791, 0.0
      %v797 = vpack.c.bf16 %v794, %v793
      %v798 = vpack.c.bf16 %v796, %v795
      %vm799 = vcmask 1043456
      %vm800 = vcmask 261124
      %vm801 = vmor %vm800, %vm799
      %802 = vst.msk [vmem:[%s177] sm:$0xff] %vm801, %v797
      %803 = vst.msk [vmem:[%s177 + $0x8] sm:$0xff] %vm801, %v798
      %s804 = smul.u32 2, %s14
      %p805 = scmp.lt.s32.totalorder %s804, 3
      %s806 = scalar_select %p805, %s804, 3
      %s807 = smul.addr %s806, 2
      %s808 = smul.addr %s807, 4
      %s809 = scalar_lea.vmem %s3, %s808
      // Predicated region
      $region33: #{segformer_segmentation_forward.18} parent=31 // pred_check
        %p810 = pneg %p100
      $region34: #{segformer_segmentation_forward.18} parent=31 // pred_check_branch
        %812 = sbr.rel (%p810) target = $region36
      $region35: #{segformer_segmentation_forward.18} parent=31 // pred_region
        %s813 = smul.u32 2, %s14
      $region36: #{segformer_segmentation_forward.18} parent=31 // pred_fallthru
        _
    $region32: #{segformer_segmentation_forward.18} parent=5 // pred_fallthru
      _
    %p814 = scmp.le.s32.totalorder 2, %s9
    // Predicated region
    $region37: #{segformer_segmentation_forward.18} parent=5 // pred_check
      %p815 = pneg %p814
    $region38: #{segformer_segmentation_forward.18} parent=5 // pred_check_branch
      %817 = sbr.rel (%p815) target = $region40
    $region39: #{segformer_segmentation_forward.18} parent=5 // pred_region
      %s818 = ssub.s32 %s9, 2
      // Predicated region
      $region41: #{segformer_segmentation_forward.18} parent=39 // pred_check
        %p819 = pneg %p106
      $region42: #{segformer_segmentation_forward.18} parent=39 // pred_check_branch
        %821 = sbr.rel (%p819) target = $region44
      $region43: #{segformer_segmentation_forward.18} parent=39 // pred_region
        %s822 = smul.u32 2, %s15
        %p823 = scmp.lt.s32.totalorder %s822, 3
        %s824 = scalar_select %p823, %s822, 3
        %s825 = smul.addr %s824, 2
        %s826 = smul.addr %s825, 4
        %s827 = scalar_lea.vmem %s3, %s826
      $region44: #{segformer_segmentation_forward.18} parent=39 // pred_fallthru
        _
    $region40: #{segformer_segmentation_forward.18} parent=5 // pred_fallthru
      _
  $region6: #{segformer_segmentation_forward.18} parent=0 // loop_footer
    %s13 = sadd.s32 1, %s9
  $region7: #{segformer_segmentation_forward.18} parent=0 // loop_footer_branch
    %8 = sbr.rel target = $region3
  $region8: #{segformer_segmentation_forward.18} parent=0 // loop_exit
    _

// kernel: segformer_segmentation_forward.24
$region0: #{segformer_segmentation_forward.24}
  #allocation0 [shape = 'u32[]', space=smem, size = 0x4, offset = 0x4, fixed_abs, tag = 'smem constant byte address 0x4 - core index']
  #allocation1 [shape = 'u32[72,128]{1,0:T(1,128)}', space=vmem, size = 0x9000, scoped, tag = 'internal scratch']
  %s0 = inlined_call_operand.vmem [shape: bf16[32,160], index: 0, kind: input, shape index: {}]
  %s1 = inlined_call_operand.vmem [shape: bf16[160,128], index: 1, kind: input, shape index: {}]
  %s2 = inlined_call_operand.vmem [shape: f32[1,128], index: 2, kind: input, shape index: {}]
  %s3 = inlined_call_operand.vmem [shape: bf16[32,128], index: 3, kind: output, shape index: {}]
  %s4 = sld [smem:[#allocation0]]
  $region45: #{segformer_segmentation_forward.24} parent=0
    _
  %s6 = ssub.s32 1, %s4
  %s7 = scalar_select 0, %s6, %s4
  loop: start=0, step=1, limit=4
  $region2: #{segformer_segmentation_forward.24} parent=0 // loop_pre_header
    _
  $region3: #{segformer_segmentation_forward.24} parent=0 // loop_header
    %s9 = sphi 0, %s13
    %p10 = scmp.ge.s32.totalorder %s9, 4
    %s19 = sphi 0, %s21
    %s22 = sphi 0, %s19
    %s23 = sphi 0, %s22
    %s39 = sphi 0, %s23
    %s43 = sphi 0, %s43
    %s45 = sphi 0, %s43
    %s46 = sphi 0, %s45
    %s60 = sphi 0, %s46
    %s64 = sphi 0, %s64
    %s66 = sphi 0, %s64
    %s67 = sphi 0, %s66
    %s81 = sphi 0, %s67
    %s87 = sphi 0, %s89
    %s90 = sphi 0, %s87
    %s91 = sphi 0, %s90
    %s107 = sphi 0, %s91
  $region4: #{segformer_segmentation_forward.24} parent=0 // loop_header_branch
    %12 = sbr.rel (%p10) target = $region8
  $region5: #{segformer_segmentation_forward.24} parent=0 // loop_body
    %s14 = ssub.s32 %s9, 1
    %s15 = ssub.s32 %s9, 2
    %s16 = sadd.s32 %s9, 1
    %s17 = ssub.s32 %s9, %s16
    %p18 = scmp.eq.s32.totalorder %s17, 0
    %s20 = sadd.s32 %s19, 1
    %s21 = scalar_select %p18, %s19, %s20
    %p24 = pneg %p18
    %p25 = scmp.eq.s32.totalorder %s9, 1
    %p26 = por %p24, %p25
    %p27 = scmp.ne.s32.totalorder %s19, %s22
    %p28 = scmp.eq.s32.totalorder %s9, 0
    %p29 = por %p27, %p28
    %p30 = scmp.ne.s32.totalorder %s19, %s22
    %p31 = scmp.eq.s32.totalorder %s14, 1
    %p32 = por %p30, %p31
    %p33 = scmp.ne.s32.totalorder %s22, %s23
    %p34 = scmp.eq.s32.totalorder %s14, 0
    %p35 = por %p33, %p34
    %p36 = scmp.ne.s32.totalorder %s22, %s23
    %p37 = scmp.eq.s32.totalorder %s15, 1
    %p38 = por %p36, %p37
    %p40 = scmp.ne.s32.totalorder %s23, %s39
    %p41 = scmp.eq.s32.totalorder %s15, 0
    %p42 = por %p40, %p41
    %s44 = sadd.s32 %s43, 1
    %p47 = scmp.eq.s32.totalorder %s9, 1
    %p48 = scmp.ne.s32.totalorder %s43, %s45
    %p49 = scmp.eq.s32.totalorder %s9, 0
    %p50 = por %p48, %p49
    %p51 = scmp.ne.s32.totalorder %s43, %s45
    %p52 = scmp.eq.s32.totalorder %s14, 1
    %p53 = por %p51, %p52
    %p54 = scmp.ne.s32.totalorder %s45, %s46
    %p55 = scmp.eq.s32.totalorder %s14, 0
    %p56 = por %p54, %p55
    %p57 = scmp.ne.s32.totalorder %s45, %s46
    %p58 = scmp.eq.s32.totalorder %s15, 1
    %p59 = por %p57, %p58
    %p61 = scmp.ne.s32.totalorder %s46, %s60
    %p62 = scmp.eq.s32.totalorder %s15, 0
    %p63 = por %p61, %p62
    %s65 = sadd.s32 %s64, 1
    %p68 = scmp.eq.s32.totalorder %s9, 1
    %p69 = scmp.ne.s32.totalorder %s64, %s66
    %p70 = scmp.eq.s32.totalorder %s9, 0
    %p71 = por %p69, %p70
    %p72 = scmp.ne.s32.totalorder %s64, %s66
    %p73 = scmp.eq.s32.totalorder %s14, 1
    %p74 = por %p72, %p73
    %p75 = scmp.ne.s32.totalorder %s66, %s67
    %p76 = scmp.eq.s32.totalorder %s14, 0
    %p77 = por %p75, %p76
    %p78 = scmp.ne.s32.totalorder %s66, %s67
    %p79 = scmp.eq.s32.totalorder %s15, 1
    %p80 = por %p78, %p79
    %p82 = scmp.ne.s32.totalorder %s67, %s81
    %p83 = scmp.eq.s32.totalorder %s15, 0
    %p84 = por %p82, %p83
    %s85 = ssub.s32 %s9, %s16
    %p86 = scmp.eq.s32.totalorder %s85, 0
    %s88 = sadd.s32 %s87, 1
    %s89 = scalar_select %p86, %s87, %s88
    %p92 = pneg %p86
    %p93 = scmp.eq.s32.totalorder %s9, 1
    %p94 = por %p92, %p93
    %p95 = scmp.ne.s32.totalorder %s87, %s90
    %p96 = scmp.eq.s32.totalorder %s9, 0
    %p97 = por %p95, %p96
    %p98 = scmp.ne.s32.totalorder %s87, %s90
    %p99 = scmp.eq.s32.totalorder %s14, 1
    %p100 = por %p98, %p99
    %p101 = scmp.ne.s32.totalorder %s90, %s91
    %p102 = scmp.eq.s32.totalorder %s14, 0
    %p103 = por %p101, %p102
    %p104 = scmp.ne.s32.totalorder %s90, %s91
    %p105 = scmp.eq.s32.totalorder %s15, 1
    %p106 = por %p104, %p105
    %p108 = scmp.ne.s32.totalorder %s91, %s107
    %p109 = scmp.eq.s32.totalorder %s15, 0
    %p110 = por %p108, %p109
    %p111 = scmp.le.s32.totalorder 1, %s9
    %p112 = scmp.lt.s32.totalorder %s9, 3
    %p113 = pnand %p111, %p112
    %p114 = pneg %p113
    // Predicated region
    $region9: #{segformer_segmentation_forward.24} parent=5 // pred_check
      _
    $region10: #{segformer_segmentation_forward.24} parent=5 // pred_check_branch
      %116 = sbr.rel (%p113) target = $region12
    $region11: #{segformer_segmentation_forward.24} parent=5 // pred_region
      %s117 = ssub.s32 %s9, 1
      // Predicated region
      $region13: #{segformer_segmentation_forward.24} parent=11 // pred_check
        %p118 = pneg %p56
      $region14: #{segformer_segmentation_forward.24} parent=11 // pred_check_branch
        %120 = sbr.rel (%p118) target = $region16
      $region15: #{segformer_segmentation_forward.24} parent=11 // pred_region
        _
      $region16: #{segformer_segmentation_forward.24} parent=11 // pred_fallthru
        _
      // Predicated region
      $region17: #{segformer_segmentation_forward.24} parent=11 // pred_check
        %p121 = pneg %p77
      $region18: #{segformer_segmentation_forward.24} parent=11 // pred_check_branch
        %123 = sbr.rel (%p121) target = $region20
      $region19: #{segformer_segmentation_forward.24} parent=11 // pred_region
        _
      $region20: #{segformer_segmentation_forward.24} parent=11 // pred_fallthru
        _
    $region12: #{segformer_segmentation_forward.24} parent=5 // pred_fallthru
      _
    %p124 = scmp.lt.s32.totalorder %s9, 2
    // Predicated region
    $region21: #{segformer_segmentation_forward.24} parent=5 // pred_check
      %p125 = pneg %p124
    $region22: #{segformer_segmentation_forward.24} parent=5 // pred_check_branch
      %127 = sbr.rel (%p125) target = $region24
    $region23: #{segformer_segmentation_forward.24} parent=5 // pred_region
      // Predicated region
      $region25: #{segformer_segmentation_forward.24} parent=23 // pred_check
        %p128 = pneg %p29
      $region26: #{segformer_segmentation_forward.24} parent=23 // pred_check_branch
        %130 = sbr.rel (%p128) target = $region28
      $region27: #{segformer_segmentation_forward.24} parent=23 // pred_region
        %s131 = smul.u32 2, %s9
        %p132 = scmp.lt.s32.totalorder %s131, 3
        %s133 = scalar_select %p132, %s131, 3
        %s134 = smul.addr %s133, 2
        %s135 = smul.addr %s134, 4
        %s136 = scalar_lea.vmem %s0, %s135
        %s137 = smul.u32 2, %s9
      $region28: #{segformer_segmentation_forward.24} parent=23 // pred_fallthru
        _
    $region24: #{segformer_segmentation_forward.24} parent=5 // pred_fallthru
      _
    %p138 = scmp.le.s32.totalorder 1, %s9
    %p139 = scmp.lt.s32.totalorder %s9, 3
    %p140 = pnand %p138, %p139
    %p141 = pneg %p140
    // Predicated region
    $region29: #{segformer_segmentation_forward.24} parent=5 // pred_check
      _
    $region30: #{segformer_segmentation_forward.24} parent=5 // pred_check_branch
      %143 = sbr.rel (%p140) target = $region32
    $region31: #{segformer_segmentation_forward.24} parent=5 // pred_region
      %s144 = ssub.s32 %s9, 1
      %s145 = smul.u32 2, %s14
      %p146 = scmp.lt.s32.totalorder %s145, 3
      %s147 = scalar_select %p146, %s145, 3
      %s148 = smul.addr %s147, 2
      %s149 = smul.addr %s148, 4
      %s150 = scalar_lea.vmem %s0, %s149
      %p151 = pneg %p35
      %p152 = pneg %p32
      %p153 = pneg %p56
      %p154 = pneg %p53
      %p155 = pneg %p77
      %p156 = pneg %p74
      %p157 = pneg %p103
      %p158 = pneg %p100
      %s159 = smul.u32 2, %s14
      %p160 = scmp.lt.s32.totalorder %s159, 3
      %s161 = scalar_select %p160, %s159, 3
      %s162 = smul.addr %s161, 4
      %s163 = scalar_lea.vmem %s3, %s162
      %s164 = smul.u32 2, %s14
      %p165 = scmp.lt.s32.totalorder %s164, 3
      %s166 = scalar_select %p165, %s164, 3
      %s167 = smul.addr %s166, 2
      %s168 = smul.addr %s167, 4
      %s169 = scalar_lea.vmem %s0, %s168
      %s170 = smul.u32 2, %s14
      %s171 = smul.u32 2, %s14
      %p172 = scmp.lt.s32.totalorder %s171, 3
      %s173 = scalar_select %p172, %s171, 3
      %s174 = smul.addr %s173, 4
      %s175 = scalar_lea.vmem %s3, %s174
      %s176 = smul.u32 2, %s14
      %v178 = vld [vmem:[%s169] sm:$0xff]
      %v179 = vld [vmem:[%s169 + $0x8] sm:$0xff]
      %v180 = vld [vmem:[%s1] sm:$0xf]
      %v181 = vld [vmem:[%s1 + $0x4] sm:$0xf]
      %v182 = vld [vmem:[%s1 + $0x8] sm:$0xf]
      %v183 = vld [vmem:[%s1 + $0xc] sm:$0xf]
      %v184 = vld [vmem:[%s1 + $0x10] sm:$0xf]
      %v185 = vld [vmem:[%s1 + $0x14] sm:$0xf]
      %v186 = vld [vmem:[%s1 + $0x18] sm:$0xf]
      %v187 = vld [vmem:[%s1 + $0x1c] sm:$0xf]
      %v188 = vld [vmem:[%s1 + $0x20] sm:$0xf]
      %v189 = vld [vmem:[%s1 + $0x24] sm:$0xf]
      %v190 = vld [vmem:[%s1 + $0x28] sm:$0xf]
      %v191 = vld [vmem:[%s1 + $0x2c] sm:$0xf]
      %v192 = vld [vmem:[%s1 + $0x30] sm:$0xf]
      %v193 = vld [vmem:[%s1 + $0x34] sm:$0xf]
      %v194 = vld [vmem:[%s1 + $0x38] sm:$0xf]
      %v195 = vld [vmem:[%s1 + $0x3c] sm:$0xf]
      %v196 = vld [vmem:[%s1 + $0x40] sm:$0xf]
      %v197 = vld [vmem:[%s1 + $0x44] sm:$0xf]
      %v198 = vld [vmem:[%s1 + $0x48] sm:$0xf]
      %v199 = vld [vmem:[%s1 + $0x4c] sm:$0xf]
      %v200 = vld [vmem:[%s2] sm:$0x1]
      %v202 = vperm.slane %v200, 0
      %v206 = vunpack.c.l.b16 %v178
      %v207 = vunpack.c.h.b16 %v178
      %v208 = vunpack.c.l.b16 %v179
      %v209 = vunpack.c.h.b16 %v179
      %v210 = vpack.c.b16 %v208, %v206
      %v211 = vpack.c.b16 %v209, %v207
      %v233 = vunpack.c.l.b16 %v180
      %v234 = vunpack.c.l.b16 %v181
      %v235 = vunpack.c.l.b16 %v182
      %v236 = vunpack.c.l.b16 %v183
      %v237 = vunpack.c.l.b16 %v184
      %v238 = vunpack.c.l.b16 %v185
      %v239 = vunpack.c.l.b16 %v186
      %v240 = vunpack.c.l.b16 %v187
      %v241 = vunpack.c.l.b16 %v188
      %v242 = vunpack.c.l.b16 %v189
      %v243 = vunpack.c.l.b16 %v190
      %v244 = vunpack.c.l.b16 %v191
      %v245 = vunpack.c.l.b16 %v192
      %v246 = vunpack.c.l.b16 %v193
      %v247 = vunpack.c.l.b16 %v194
      %v248 = vunpack.c.l.b16 %v195
      %v249 = vunpack.c.l.b16 %v196
      %v250 = vunpack.c.l.b16 %v197
      %v251 = vunpack.c.l.b16 %v198
      %v252 = vunpack.c.l.b16 %v199
      %v253 = vpack.c.b16 %v234, %v233
      %v254 = vpack.c.b16 %v236, %v235
      %v255 = vpack.c.b16 %v238, %v237
      %v256 = vpack.c.b16 %v240, %v239
      %v257 = vpack.c.b16 %v242, %v241
      %v258 = vpack.c.b16 %v244, %v243
      %v259 = vpack.c.b16 %v246, %v245
      %v260 = vpack.c.b16 %v248, %v247
      %v261 = vpack.c.b16 %v250, %v249
      %v262 = vpack.c.b16 %v252, %v251
      %vm273 = vcmask 261120
      %v275 = vsel %vm273, %v211, 0
      %277 = vmatpush.bf16.msra.mxu0 %v260
      %278 = vmatpush.bf16.msra.mxu0 %v259
      %279 = vmatpush.bf16.msra.mxu0 %v258
      %280 = vmatpush.bf16.msra.mxu0 %v257
      %281 = vmatpush.bf16.msra.mxu0 %v256
      %282 = vmatpush.bf16.msra.mxu0 %v255
      %283 = vmatpush.bf16.msra.mxu0 %v254
      %284 = vmatpush.bf16.msra.mxu0 %v253
      %285 = vmatmul.bf16.gmra.mxu0 %v210
      %v286 = vpop.f32.mrf.mxu0
      %v287 = vadd.f32 %v202, %v286
      %v288 = vpop.f32.mrf.mxu0
      %v289 = vadd.f32 %v202, %v288
      %290 = vdwg.mxu0
      %291 = vmatpush.bf16.msra.mxu0 0
      %292 = vmatpush.bf16.msra.mxu0 0
      %293 = vmatpush.bf16.msra.mxu0 0
      %294 = vmatpush.bf16.msra.mxu0 0
      %295 = vmatpush.bf16.msra.mxu0 0
      %296 = vmatpush.bf16.msra.mxu0 0
      %297 = vmatpush.bf16.msra.mxu0 %v262
      %298 = vmatpush.bf16.msra.mxu0 %v261
      %299 = vmatmul.bf16.gmra.mxu0 %v275
      %v300 = vpop.f32.mrf.mxu0
      %v301 = vadd.f32 %v287, %v300
      %v302 = vpop.f32.mrf.mxu0
      %v303 = vadd.f32 %v289, %v302
      %304 = vdwg.mxu0
      %v305 = vmax.f32 %v301, 0.0
      %v306 = vmax.f32 %v303, 0.0
      %v307 = vpack.c.bf16 %v305, %v305
      %v308 = vpack.c.bf16 %v306, %v306
      %309 = vst [vmem:[%s175] sm:$0xf] %v307
      %310 = vst [vmem:[%s175 + $0x4] sm:$0xf] %v308
      %s311 = smul.u32 2, %s14
      %p312 = scmp.lt.s32.totalorder %s311, 3
      %s313 = scalar_select %p312, %s311, 3
      %s314 = smul.addr %s313, 4
      %s315 = scalar_lea.vmem %s3, %s314
      // Predicated region
      $region33: #{segformer_segmentation_forward.24} parent=31 // pred_check
        %p316 = pneg %p100
      $region34: #{segformer_segmentation_forward.24} parent=31 // pred_check_branch
        %318 = sbr.rel (%p316) target = $region36
      $region35: #{segformer_segmentation_forward.24} parent=31 // pred_region
        %s319 = smul.u32 2, %s14
      $region36: #{segformer_segmentation_forward.24} parent=31 // pred_fallthru
        _
    $region32: #{segformer_segmentation_forward.24} parent=5 // pred_fallthru
      _
    %p320 = scmp.le.s32.totalorder 2, %s9
    // Predicated region
    $region37: #{segformer_segmentation_forward.24} parent=5 // pred_check
      %p321 = pneg %p320
    $region38: #{segformer_segmentation_forward.24} parent=5 // pred_check_branch
      %323 = sbr.rel (%p321) target = $region40
    $region39: #{segformer_segmentation_forward.24} parent=5 // pred_region
      %s324 = ssub.s32 %s9, 2
      // Predicated region
      $region41: #{segformer_segmentation_forward.24} parent=39 // pred_check
        %p325 = pneg %p106
      $region42: #{segformer_segmentation_forward.24} parent=39 // pred_check_branch
        %327 = sbr.rel (%p325) target = $region44
      $region43: #{segformer_segmentation_forward.24} parent=39 // pred_region
        %s328 = smul.u32 2, %s15
        %p329 = scmp.lt.s32.totalorder %s328, 3
        %s330 = scalar_select %p329, %s328, 3
        %s331 = smul.addr %s330, 4
        %s332 = scalar_lea.vmem %s3, %s331
      $region44: #{segformer_segmentation_forward.24} parent=39 // pred_fallthru
        _
    $region40: #{segformer_segmentation_forward.24} parent=5 // pred_fallthru
      _
  $region6: #{segformer_segmentation_forward.24} parent=0 // loop_footer
    %s13 = sadd.s32 1, %s9
  $region7: #{segformer_segmentation_forward.24} parent=0 // loop_footer_branch
    %8 = sbr.rel target = $region3
  $region8: #{segformer_segmentation_forward.24} parent=0 // loop_exit
    _

// kernel: segformer_segmentation_forward.25
$region0: #{segformer_segmentation_forward.25}
  #allocation0 [shape = 'u32[]', space=smem, size = 0x4, offset = 0x4, fixed_abs, tag = 'smem constant byte address 0x4 - core index']
  #allocation1 [shape = 'u32[72,128]{1,0:T(1,128)}', space=vmem, size = 0x9000, scoped, tag = 'internal scratch']
  %s0 = inlined_call_operand.vmem [shape: bf16[16,4], index: 0, kind: input, shape index: {}]
  %s1 = inlined_call_operand.vmem [shape: bf16[2,4,512], index: 1, kind: input, shape index: {}]
  %s2 = inlined_call_operand.vmem [shape: bf16[2,16,512], index: 2, kind: output, shape index: {}]
  %s3 = sld [smem:[#allocation0]]
  $region41: #{segformer_segmentation_forward.25} parent=0
    _
  %s5 = ssub.s32 1, %s3
  %s6 = scalar_select 0, %s5, %s3
  loop: start=0, step=1, limit=4
  $region2: #{segformer_segmentation_forward.25} parent=0 // loop_pre_header
    _
  $region3: #{segformer_segmentation_forward.25} parent=0 // loop_header
    %s8 = sphi 0, %s12
    %p9 = scmp.ge.s32.totalorder %s8, 4
    %s15 = sphi 0, %s27
    %s16 = sphi 0, %s23
    %s17 = sphi 0, %s15
    %s18 = sphi 0, %s16
    %s19 = sphi 0, %s17
    %s20 = sphi 0, %s18
    %s28 = sphi 0, %s28
    %s30 = sphi 0, %s28
    %s31 = sphi 0, %s30
    %s45 = sphi 0, %s31
    %s53 = sphi 0, %s55
    %s56 = sphi 0, %s53
    %s57 = sphi 0, %s56
    %s73 = sphi 0, %s57
    %s81 = sphi 0, %s83
    %s84 = sphi 0, %s81
    %s85 = sphi 0, %s84
    %s101 = sphi 0, %s85
  $region4: #{segformer_segmentation_forward.25} parent=0 // loop_header_branch
    %11 = sbr.rel (%p9) target = $region8
  $region5: #{segformer_segmentation_forward.25} parent=0 // loop_body
    %s13 = ssub.s32 %s8, 1
    %s14 = ssub.s32 %s8, 2
    %s21 = sadd.s32 1, %s16
    %p22 = scmp.ge.s32.totalorder %s21, 1
    %s23 = scalar_select %p22, 0, %s21
    %s24 = sadd.s32 1, %s15
    %s25 = scalar_select %p22, %s24, %s15
    %p26 = scmp.ge.s32.totalorder %s25, 2
    %s27 = scalar_select %p26, 0, %s25
    %s29 = sadd.s32 %s28, 1
    %p32 = scmp.eq.s32.totalorder %s8, 1
    %p33 = scmp.ne.s32.totalorder %s28, %s30
    %p34 = scmp.eq.s32.totalorder %s8, 0
    %p35 = por %p33, %p34
    %p36 = scmp.ne.s32.totalorder %s28, %s30
    %p37 = scmp.eq.s32.totalorder %s13, 1
    %p38 = por %p36, %p37
    %p39 = scmp.ne.s32.totalorder %s30, %s31
    %p40 = scmp.eq.s32.totalorder %s13, 0
    %p41 = por %p39, %p40
    %p42 = scmp.ne.s32.totalorder %s30, %s31
    %p43 = scmp.eq.s32.totalorder %s14, 1
    %p44 = por %p42, %p43
    %p46 = scmp.ne.s32.totalorder %s31, %s45
    %p47 = scmp.eq.s32.totalorder %s14, 0
    %p48 = por %p46, %p47
    %s49 = ssub.s32 %s15, %s27
    %s50 = ssub.s32 %s16, %s23
    %s51 = sor.u32 %s49, %s50
    %p52 = scmp.eq.s32.totalorder %s51, 0
    %s54 = sadd.s32 %s53, 1
    %s55 = scalar_select %p52, %s53, %s54
    %p58 = pneg %p52
    %p59 = scmp.eq.s32.totalorder %s8, 1
    %p60 = por %p58, %p59
    %p61 = scmp.ne.s32.totalorder %s53, %s56
    %p62 = scmp.eq.s32.totalorder %s8, 0
    %p63 = por %p61, %p62
    %p64 = scmp.ne.s32.totalorder %s53, %s56
    %p65 = scmp.eq.s32.totalorder %s13, 1
    %p66 = por %p64, %p65
    %p67 = scmp.ne.s32.totalorder %s56, %s57
    %p68 = scmp.eq.s32.totalorder %s13, 0
    %p69 = por %p67, %p68
    %p70 = scmp.ne.s32.totalorder %s56, %s57
    %p71 = scmp.eq.s32.totalorder %s14, 1
    %p72 = por %p70, %p71
    %p74 = scmp.ne.s32.totalorder %s57, %s73
    %p75 = scmp.eq.s32.totalorder %s14, 0
    %p76 = por %p74, %p75
    %s77 = ssub.s32 %s15, %s27
    %s78 = ssub.s32 %s16, %s23
    %s79 = sor.u32 %s77, %s78
    %p80 = scmp.eq.s32.totalorder %s79, 0
    %s82 = sadd.s32 %s81, 1
    %s83 = scalar_select %p80, %s81, %s82
    %p86 = pneg %p80
    %p87 = scmp.eq.s32.totalorder %s8, 1
    %p88 = por %p86, %p87
    %p89 = scmp.ne.s32.totalorder %s81, %s84
    %p90 = scmp.eq.s32.totalorder %s8, 0
    %p91 = por %p89, %p90
    %p92 = scmp.ne.s32.totalorder %s81, %s84
    %p93 = scmp.eq.s32.totalorder %s13, 1
    %p94 = por %p92, %p93
    %p95 = scmp.ne.s32.totalorder %s84, %s85
    %p96 = scmp.eq.s32.totalorder %s13, 0
    %p97 = por %p95, %p96
    %p98 = scmp.ne.s32.totalorder %s84, %s85
    %p99 = scmp.eq.s32.totalorder %s14, 1
    %p100 = por %p98, %p99
    %p102 = scmp.ne.s32.totalorder %s85, %s101
    %p103 = scmp.eq.s32.totalorder %s14, 0
    %p104 = por %p102, %p103
    %p105 = scmp.le.s32.totalorder 1, %s8
    %p106 = scmp.lt.s32.totalorder %s8, 3
    %p107 = pnand %p105, %p106
    %p108 = pneg %p107
    // Predicated region
    $region9: #{segformer_segmentation_forward.25} parent=5 // pred_check
      _
    $region10: #{segformer_segmentation_forward.25} parent=5 // pred_check_branch
      %110 = sbr.rel (%p107) target = $region12
    $region11: #{segformer_segmentation_forward.25} parent=5 // pred_region
      %s111 = ssub.s32 %s8, 1
      // Predicated region
      $region13: #{segformer_segmentation_forward.25} parent=11 // pred_check
        %p112 = pneg %p41
      $region14: #{segformer_segmentation_forward.25} parent=11 // pred_check_branch
        %114 = sbr.rel (%p112) target = $region16
      $region15: #{segformer_segmentation_forward.25} parent=11 // pred_region
        _
      $region16: #{segformer_segmentation_forward.25} parent=11 // pred_fallthru
        _
    $region12: #{segformer_segmentation_forward.25} parent=5 // pred_fallthru
      _
    %p115 = scmp.lt.s32.totalorder %s8, 2
    // Predicated region
    $region17: #{segformer_segmentation_forward.25} parent=5 // pred_check
      %p116 = pneg %p115
    $region18: #{segformer_segmentation_forward.25} parent=5 // pred_check_branch
      %118 = sbr.rel (%p116) target = $region20
    $region19: #{segformer_segmentation_forward.25} parent=5 // pred_region
      // Predicated region
      $region21: #{segformer_segmentation_forward.25} parent=19 // pred_check
        %p119 = pneg %p63
      $region22: #{segformer_segmentation_forward.25} parent=19 // pred_check_branch
        %121 = sbr.rel (%p119) target = $region24
      $region23: #{segformer_segmentation_forward.25} parent=19 // pred_region
        %s122 = smul.u32 4, %s16
        %p123 = scmp.lt.s32.totalorder %s15, 1
        %s124 = scalar_select %p123, %s15, 1
        %p125 = scmp.lt.s32.totalorder %s122, 3
        %s126 = scalar_select %p125, %s122, 3
        %s127 = smul.addr %s124, 4
        %s128 = sadd.s32 %s126, %s127
        %s129 = smul.addr %s128, 2
        %s130 = scalar_lea.vmem %s1, %s129
        %s131 = smul.u32 4, %s16
      $region24: #{segformer_segmentation_forward.25} parent=19 // pred_fallthru
        _
    $region20: #{segformer_segmentation_forward.25} parent=5 // pred_fallthru
      _
    %p132 = scmp.le.s32.totalorder 1, %s8
    %p133 = scmp.lt.s32.totalorder %s8, 3
    %p134 = pnand %p132, %p133
    %p135 = pneg %p134
    // Predicated region
    $region25: #{segformer_segmentation_forward.25} parent=5 // pred_check
      _
    $region26: #{segformer_segmentation_forward.25} parent=5 // pred_check_branch
      %137 = sbr.rel (%p134) target = $region28
    $region27: #{segformer_segmentation_forward.25} parent=5 // pred_region
      %s138 = ssub.s32 %s8, 1
      %p139 = pneg %p41
      %p140 = pneg %p38
      %s141 = smul.u32 4, %s18
      %p142 = scmp.lt.s32.totalorder %s17, 1
      %s143 = scalar_select %p142, %s17, 1
      %p144 = scmp.lt.s32.totalorder %s141, 3
      %s145 = scalar_select %p144, %s141, 3
      %s146 = smul.addr %s143, 4
      %s147 = sadd.s32 %s145, %s146
      %s148 = smul.addr %s147, 2
      %s149 = scalar_lea.vmem %s1, %s148
      %p150 = pneg %p69
      %p151 = pneg %p66
      %p152 = pneg %p97
      %p153 = pneg %p94
      %s154 = smul.u32 4, %s18
      %p155 = scmp.lt.s32.totalorder %s17, 1
      %s156 = scalar_select %p155, %s17, 1
      %p157 = scmp.lt.s32.totalorder %s154, 3
      %s158 = scalar_select %p157, %s154, 3
      %s159 = smul.addr %s156, 8
      %s160 = sadd.s32 %s158, %s159
      %s161 = smul.addr %s160, 4
      %s162 = scalar_lea.vmem %s2, %s161
      %s163 = smul.u32 4, %s18
      %p164 = scmp.lt.s32.totalorder %s17, 1
      %s165 = scalar_select %p164, %s17, 1
      %p166 = scmp.lt.s32.totalorder %s163, 3
      %s167 = scalar_select %p166, %s163, 3
      %s168 = smul.addr %s165, 4
      %s169 = sadd.s32 %s167, %s168
      %s170 = smul.addr %s169, 2
      %s171 = scalar_lea.vmem %s1, %s170
      %s172 = smul.u32 4, %s18
      %s173 = smul.u32 4, %s18
      %p174 = scmp.lt.s32.totalorder %s17, 1
      %s175 = scalar_select %p174, %s17, 1
      %p176 = scmp.lt.s32.totalorder %s173, 3
      %s177 = scalar_select %p176, %s173, 3
      %s178 = smul.addr %s175, 8
      %s179 = sadd.s32 %s177, %s178
      %s180 = smul.addr %s179, 4
      %s181 = scalar_lea.vmem %s2, %s180
      %s182 = smul.u32 4, %s18
      %v184 = vld [vmem:[%s0] sm:$0xf]
      %v185 = vld [vmem:[%s0 + $0x4] sm:$0xf]
      %v186 = vld [vmem:[%s171] sm:$0xff]
      %v189 = vunpack.c.l.b16 %v184
      %v190 = vunpack.c.l.b16 %v185
      %v191 = vpack.c.b16 %v190, %v189
      %193 = vst [vmem:[#allocation1] ss:$4 sm:$0xff] %v186
      %v194 = vld.sshfl [vmem:[#allocation1] sm:$0xff pattern:$0x73625140]
      %v195 = vld.sshfl [vmem:[#allocation1 + $0x8] sm:$0xff pattern:$0x73625140]
      %v196 = vld.sshfl [vmem:[#allocation1 + $0x10] sm:$0xff pattern:$0x73625140]
      %v197 = vld.sshfl [vmem:[#allocation1 + $0x18] sm:$0xff pattern:$0x73625140]
      %vm198 = vcmask 31744
      %v200 = vsel %vm198, %v191, 0
      %vm202 = vcmask 1041408
      %v203 = vsel %vm202, %v194, 0
      %v205 = vsel %vm202, %v195, 0
      %v207 = vsel %vm202, %v196, 0
      %v209 = vsel %vm202, %v197, 0
      %211 = vmatpush.bf16.msra.mxu0 0
      %212 = vmatpush.bf16.msra.mxu0 0
      %213 = vmatpush.bf16.msra.mxu0 0
      %214 = vmatpush.bf16.msra.mxu0 0
      %215 = vmatpush.bf16.msra.mxu0 0
      %216 = vmatpush.bf16.msra.mxu0 0
      %217 = vmatpush.bf16.msra.mxu0 0
      %218 = vmatpush.bf16.msra.mxu0 %v203
      %219 = vmatmul.bf16.gmra.mxu0 %v200
      %v220 = vpop.f32.mrf.mxu0
      %v221 = vadd.f32 0.0, %v220
      %v222 = vpop.f32.mrf.mxu0
      %v223 = vadd.f32 0.0, %v222
      %224 = vdwg.mxu0
      %225 = vmatpush.bf16.msra.mxu0 0
      %226 = vmatpush.bf16.msra.mxu0 0
      %227 = vmatpush.bf16.msra.mxu0 0
      %228 = vmatpush.bf16.msra.mxu0 0
      %229 = vmatpush.bf16.msra.mxu0 0
      %230 = vmatpush.bf16.msra.mxu0 0
      %231 = vmatpush.bf16.msra.mxu0 0
      %232 = vmatpush.bf16.msra.mxu0 %v205
      %233 = vmatmul.bf16.gmra.mxu0 %v200
      %v234 = vpop.f32.mrf.mxu0
      %v235 = vadd.f32 0.0, %v234
      %v236 = vpop.f32.mrf.mxu0
      %v237 = vadd.f32 0.0, %v236
      %238 = vdwg.mxu0
      %239 = vmatpush.bf16.msra.mxu0 0
      %240 = vmatpush.bf16.msra.mxu0 0
      %241 = vmatpush.bf16.msra.mxu0 0
      %242 = vmatpush.bf16.msra.mxu0 0
      %243 = vmatpush.bf16.msra.mxu0 0
      %244 = vmatpush.bf16.msra.mxu0 0
      %245 = vmatpush.bf16.msra.mxu0 0
      %246 = vmatpush.bf16.msra.mxu0 %v207
      %247 = vmatmul.bf16.gmra.mxu0 %v200
      %v248 = vpop.f32.mrf.mxu0
      %v249 = vadd.f32 0.0, %v248
      %v250 = vpop.f32.mrf.mxu0
      %v251 = vadd.f32 0.0, %v250
      %252 = vdwg.mxu0
      %253 = vmatpush.bf16.msra.mxu0 0
      %254 = vmatpush.bf16.msra.mxu0 0
      %255 = vmatpush.bf16.msra.mxu0 0
      %256 = vmatpush.bf16.msra.mxu0 0
      %257 = vmatpush.bf16.msra.mxu0 0
      %258 = vmatpush.bf16.msra.mxu0 0
      %259 = vmatpush.bf16.msra.mxu0 0
      %260 = vmatpush.bf16.msra.mxu0 %v209
      %261 = vmatmul.bf16.gmra.mxu0 %v200
      %v262 = vpop.f32.mrf.mxu0
      %v263 = vadd.f32 0.0, %v262
      %v264 = vpop.f32.mrf.mxu0
      %v265 = vadd.f32 0.0, %v264
      %266 = vdwg.mxu0
      %v267 = vpack.c.bf16 %v235, %v221
      %v268 = vpack.c.bf16 %v263, %v249
      %v269 = vpack.c.bf16 %v237, %v223
      %v270 = vpack.c.bf16 %v265, %v251
      %271 = vst [vmem:[%s181] sm:$0xff] %v267
      %272 = vst [vmem:[%s181 + $0x8] sm:$0xff] %v268
      %273 = vst [vmem:[%s181 + $0x10] sm:$0xff] %v269
      %274 = vst [vmem:[%s181 + $0x18] sm:$0xff] %v270
      %s275 = smul.u32 4, %s18
      %p276 = scmp.lt.s32.totalorder %s17, 1
      %s277 = scalar_select %p276, %s17, 1
      %p278 = scmp.lt.s32.totalorder %s275, 3
      %s279 = scalar_select %p278, %s275, 3
      %s280 = smul.addr %s277, 8
      %s281 = sadd.s32 %s279, %s280
      %s282 = smul.addr %s281, 4
      %s283 = scalar_lea.vmem %s2, %s282
      // Predicated region
      $region29: #{segformer_segmentation_forward.25} parent=27 // pred_check
        %p284 = pneg %p94
      $region30: #{segformer_segmentation_forward.25} parent=27 // pred_check_branch
        %286 = sbr.rel (%p284) target = $region32
      $region31: #{segformer_segmentation_forward.25} parent=27 // pred_region
        %s287 = smul.u32 4, %s18
      $region32: #{segformer_segmentation_forward.25} parent=27 // pred_fallthru
        _
    $region28: #{segformer_segmentation_forward.25} parent=5 // pred_fallthru
      _
    %p288 = scmp.le.s32.totalorder 2, %s8
    // Predicated region
    $region33: #{segformer_segmentation_forward.25} parent=5 // pred_check
      %p289 = pneg %p288
    $region34: #{segformer_segmentation_forward.25} parent=5 // pred_check_branch
      %291 = sbr.rel (%p289) target = $region36
    $region35: #{segformer_segmentation_forward.25} parent=5 // pred_region
      %s292 = ssub.s32 %s8, 2
      // Predicated region
      $region37: #{segformer_segmentation_forward.25} parent=35 // pred_check
        %p293 = pneg %p100
      $region38: #{segformer_segmentation_forward.25} parent=35 // pred_check_branch
        %295 = sbr.rel (%p293) target = $region40
      $region39: #{segformer_segmentation_forward.25} parent=35 // pred_region
        %s296 = smul.u32 4, %s20
        %p297 = scmp.lt.s32.totalorder %s19, 1
        %s298 = scalar_select %p297, %s19, 1
        %p299 = scmp.lt.s32.totalorder %s296, 3
        %s300 = scalar_select %p299, %s296, 3
        %s301 = smul.addr %s298, 8
        %s302 = sadd.s32 %s300, %s301
        %s303 = smul.addr %s302, 4
        %s304 = scalar_lea.vmem %s2, %s303
      $region40: #{segformer_segmentation_forward.25} parent=35 // pred_fallthru
        _
    $region36: #{segformer_segmentation_forward.25} parent=5 // pred_fallthru
      _
  $region6: #{segformer_segmentation_forward.25} parent=0 // loop_footer
    %s12 = sadd.s32 1, %s8
  $region7: #{segformer_segmentation_forward.25} parent=0 // loop_footer_branch
    %7 = sbr.rel target = $region3
  $region8: #{segformer_segmentation_forward.25} parent=0 // loop_exit
    _

// kernel: segformer_segmentation_forward.26
$region0: #{segformer_segmentation_forward.26}
  #allocation0 [shape = 'u32[]', space=smem, size = 0x4, offset = 0x4, fixed_abs, tag = 'smem constant byte address 0x4 - core index']
  #allocation1 [shape = 'u32[72,128]{1,0:T(1,128)}', space=vmem, size = 0x9000, scoped, tag = 'internal scratch']
  %s0 = inlined_call_operand.vmem [shape: bf16[16,4], index: 0, kind: input, shape index: {}]
  %s1 = inlined_call_operand.vmem [shape: bf16[2,4,2048], index: 1, kind: input, shape index: {}]
  %s2 = inlined_call_operand.vmem [shape: bf16[2,16,2048], index: 2, kind: output, shape index: {}]
  %s3 = sld [smem:[#allocation0]]
  $region41: #{segformer_segmentation_forward.26} parent=0
    _
  %s5 = ssub.s32 1, %s3
  %s6 = scalar_select 0, %s5, %s3
  loop: start=0, step=1, limit=4
  $region2: #{segformer_segmentation_forward.26} parent=0 // loop_pre_header
    _
  $region3: #{segformer_segmentation_forward.26} parent=0 // loop_header
    %s8 = sphi 0, %s12
    %p9 = scmp.ge.s32.totalorder %s8, 4
    %s15 = sphi 0, %s27
    %s16 = sphi 0, %s23
    %s17 = sphi 0, %s15
    %s18 = sphi 0, %s16
    %s19 = sphi 0, %s17
    %s20 = sphi 0, %s18
    %s28 = sphi 0, %s28
    %s30 = sphi 0, %s28
    %s31 = sphi 0, %s30
    %s45 = sphi 0, %s31
    %s53 = sphi 0, %s55
    %s56 = sphi 0, %s53
    %s57 = sphi 0, %s56
    %s73 = sphi 0, %s57
    %s81 = sphi 0, %s83
    %s84 = sphi 0, %s81
    %s85 = sphi 0, %s84
    %s101 = sphi 0, %s85
  $region4: #{segformer_segmentation_forward.26} parent=0 // loop_header_branch
    %11 = sbr.rel (%p9) target = $region8
  $region5: #{segformer_segmentation_forward.26} parent=0 // loop_body
    %s13 = ssub.s32 %s8, 1
    %s14 = ssub.s32 %s8, 2
    %s21 = sadd.s32 1, %s16
    %p22 = scmp.ge.s32.totalorder %s21, 1
    %s23 = scalar_select %p22, 0, %s21
    %s24 = sadd.s32 1, %s15
    %s25 = scalar_select %p22, %s24, %s15
    %p26 = scmp.ge.s32.totalorder %s25, 2
    %s27 = scalar_select %p26, 0, %s25
    %s29 = sadd.s32 %s28, 1
    %p32 = scmp.eq.s32.totalorder %s8, 1
    %p33 = scmp.ne.s32.totalorder %s28, %s30
    %p34 = scmp.eq.s32.totalorder %s8, 0
    %p35 = por %p33, %p34
    %p36 = scmp.ne.s32.totalorder %s28, %s30
    %p37 = scmp.eq.s32.totalorder %s13, 1
    %p38 = por %p36, %p37
    %p39 = scmp.ne.s32.totalorder %s30, %s31
    %p40 = scmp.eq.s32.totalorder %s13, 0
    %p41 = por %p39, %p40
    %p42 = scmp.ne.s32.totalorder %s30, %s31
    %p43 = scmp.eq.s32.totalorder %s14, 1
    %p44 = por %p42, %p43
    %p46 = scmp.ne.s32.totalorder %s31, %s45
    %p47 = scmp.eq.s32.totalorder %s14, 0
    %p48 = por %p46, %p47
    %s49 = ssub.s32 %s15, %s27
    %s50 = ssub.s32 %s16, %s23
    %s51 = sor.u32 %s49, %s50
    %p52 = scmp.eq.s32.totalorder %s51, 0
    %s54 = sadd.s32 %s53, 1
    %s55 = scalar_select %p52, %s53, %s54
    %p58 = pneg %p52
    %p59 = scmp.eq.s32.totalorder %s8, 1
    %p60 = por %p58, %p59
    %p61 = scmp.ne.s32.totalorder %s53, %s56
    %p62 = scmp.eq.s32.totalorder %s8, 0
    %p63 = por %p61, %p62
    %p64 = scmp.ne.s32.totalorder %s53, %s56
    %p65 = scmp.eq.s32.totalorder %s13, 1
    %p66 = por %p64, %p65
    %p67 = scmp.ne.s32.totalorder %s56, %s57
    %p68 = scmp.eq.s32.totalorder %s13, 0
    %p69 = por %p67, %p68
    %p70 = scmp.ne.s32.totalorder %s56, %s57
    %p71 = scmp.eq.s32.totalorder %s14, 1
    %p72 = por %p70, %p71
    %p74 = scmp.ne.s32.totalorder %s57, %s73
    %p75 = scmp.eq.s32.totalorder %s14, 0
    %p76 = por %p74, %p75
    %s77 = ssub.s32 %s15, %s27
    %s78 = ssub.s32 %s16, %s23
    %s79 = sor.u32 %s77, %s78
    %p80 = scmp.eq.s32.totalorder %s79, 0
    %s82 = sadd.s32 %s81, 1
    %s83 = scalar_select %p80, %s81, %s82
    %p86 = pneg %p80
    %p87 = scmp.eq.s32.totalorder %s8, 1
    %p88 = por %p86, %p87
    %p89 = scmp.ne.s32.totalorder %s81, %s84
    %p90 = scmp.eq.s32.totalorder %s8, 0
    %p91 = por %p89, %p90
    %p92 = scmp.ne.s32.totalorder %s81, %s84
    %p93 = scmp.eq.s32.totalorder %s13, 1
    %p94 = por %p92, %p93
    %p95 = scmp.ne.s32.totalorder %s84, %s85
    %p96 = scmp.eq.s32.totalorder %s13, 0
    %p97 = por %p95, %p96
    %p98 = scmp.ne.s32.totalorder %s84, %s85
    %p99 = scmp.eq.s32.totalorder %s14, 1
    %p100 = por %p98, %p99
    %p102 = scmp.ne.s32.totalorder %s85, %s101
    %p103 = scmp.eq.s32.totalorder %s14, 0
    %p104 = por %p102, %p103
    %p105 = scmp.le.s32.totalorder 1, %s8
    %p106 = scmp.lt.s32.totalorder %s8, 3
    %p107 = pnand %p105, %p106
    %p108 = pneg %p107
    // Predicated region
    $region9: #{segformer_segmentation_forward.26} parent=5 // pred_check
      _
    $region10: #{segformer_segmentation_forward.26} parent=5 // pred_check_branch
      %110 = sbr.rel (%p107) target = $region12
    $region11: #{segformer_segmentation_forward.26} parent=5 // pred_region
      %s111 = ssub.s32 %s8, 1
      // Predicated region
      $region13: #{segformer_segmentation_forward.26} parent=11 // pred_check
        %p112 = pneg %p41
      $region14: #{segformer_segmentation_forward.26} parent=11 // pred_check_branch
        %114 = sbr.rel (%p112) target = $region16
      $region15: #{segformer_segmentation_forward.26} parent=11 // pred_region
        _
      $region16: #{segformer_segmentation_forward.26} parent=11 // pred_fallthru
        _
    $region12: #{segformer_segmentation_forward.26} parent=5 // pred_fallthru
      _
    %p115 = scmp.lt.s32.totalorder %s8, 2
    // Predicated region
    $region17: #{segformer_segmentation_forward.26} parent=5 // pred_check
      %p116 = pneg %p115
    $region18: #{segformer_segmentation_forward.26} parent=5 // pred_check_branch
      %118 = sbr.rel (%p116) target = $region20
    $region19: #{segformer_segmentation_forward.26} parent=5 // pred_region
      // Predicated region
      $region21: #{segformer_segmentation_forward.26} parent=19 // pred_check
        %p119 = pneg %p63
      $region22: #{segformer_segmentation_forward.26} parent=19 // pred_check_branch
        %121 = sbr.rel (%p119) target = $region24
      $region23: #{segformer_segmentation_forward.26} parent=19 // pred_region
        %s122 = smul.u32 16, %s16
        %p123 = scmp.lt.s32.totalorder %s15, 1
        %s124 = scalar_select %p123, %s15, 1
        %p125 = scmp.lt.s32.totalorder %s122, 15
        %s126 = scalar_select %p125, %s122, 15
        %s127 = smul.addr %s124, 16
        %s128 = sadd.s32 %s126, %s127
        %s129 = smul.addr %s128, 2
        %s130 = scalar_lea.vmem %s1, %s129
        %s131 = smul.u32 16, %s16
      $region24: #{segformer_segmentation_forward.26} parent=19 // pred_fallthru
        _
    $region20: #{segformer_segmentation_forward.26} parent=5 // pred_fallthru
      _
    %p132 = scmp.le.s32.totalorder 1, %s8
    %p133 = scmp.lt.s32.totalorder %s8, 3
    %p134 = pnand %p132, %p133
    %p135 = pneg %p134
    // Predicated region
    $region25: #{segformer_segmentation_forward.26} parent=5 // pred_check
      _
    $region26: #{segformer_segmentation_forward.26} parent=5 // pred_check_branch
      %137 = sbr.rel (%p134) target = $region28
    $region27: #{segformer_segmentation_forward.26} parent=5 // pred_region
      %s138 = ssub.s32 %s8, 1
      %p139 = pneg %p41
      %p140 = pneg %p38
      %s141 = smul.u32 16, %s18
      %p142 = scmp.lt.s32.totalorder %s17, 1
      %s143 = scalar_select %p142, %s17, 1
      %p144 = scmp.lt.s32.totalorder %s141, 15
      %s145 = scalar_select %p144, %s141, 15
      %s146 = smul.addr %s143, 16
      %s147 = sadd.s32 %s145, %s146
      %s148 = smul.addr %s147, 2
      %s149 = scalar_lea.vmem %s1, %s148
      %p150 = pneg %p69
      %p151 = pneg %p66
      %p152 = pneg %p97
      %p153 = pneg %p94
      %s154 = smul.u32 16, %s18
      %p155 = scmp.lt.s32.totalorder %s17, 1
      %s156 = scalar_select %p155, %s17, 1
      %p157 = scmp.lt.s32.totalorder %s154, 15
      %s158 = scalar_select %p157, %s154, 15
      %s159 = smul.addr %s156, 32
      %s160 = sadd.s32 %s158, %s159
      %s161 = smul.addr %s160, 4
      %s162 = scalar_lea.vmem %s2, %s161
      %s163 = smul.u32 16, %s18
      %p164 = scmp.lt.s32.totalorder %s17, 1
      %s165 = scalar_select %p164, %s17, 1
      %p166 = scmp.lt.s32.totalorder %s163, 15
      %s167 = scalar_select %p166, %s163, 15
      %s168 = smul.addr %s165, 16
      %s169 = sadd.s32 %s167, %s168
      %s170 = smul.addr %s169, 2
      %s171 = scalar_lea.vmem %s1, %s170
      %s172 = smul.u32 16, %s18
      %s173 = smul.u32 16, %s18
      %p174 = scmp.lt.s32.totalorder %s17, 1
      %s175 = scalar_select %p174, %s17, 1
      %p176 = scmp.lt.s32.totalorder %s173, 15
      %s177 = scalar_select %p176, %s173, 15
      %s178 = smul.addr %s175, 32
      %s179 = sadd.s32 %s177, %s178
      %s180 = smul.addr %s179, 4
      %s181 = scalar_lea.vmem %s2, %s180
      %s182 = smul.u32 16, %s18
      %v184 = vld [vmem:[%s0] sm:$0xf]
      %v185 = vld [vmem:[%s0 + $0x4] sm:$0xf]
      %v186 = vld [vmem:[%s171] sm:$0xff]
      %v187 = vld [vmem:[%s171 + $0x8] sm:$0xff]
      %v188 = vld [vmem:[%s171 + $0x10] sm:$0xff]
      %v189 = vld [vmem:[%s171 + $0x18] sm:$0xff]
      %v192 = vunpack.c.l.b16 %v184
      %v193 = vunpack.c.l.b16 %v185
      %v194 = vpack.c.b16 %v193, %v192
      %196 = vst [vmem:[#allocation1] ss:$4 sm:$0xff] %v186
      %s198 = scalar_lea.vmem [#allocation1], 32
      %199 = vst [vmem:[%s198] ss:$4 sm:$0xff] %v187
      %v200 = vld.sshfl [vmem:[#allocation1] sm:$0xff pattern:$0x73625140]
      %v201 = vld.sshfl [vmem:[#allocation1 + $0x8] sm:$0xff pattern:$0x73625140]
      %v202 = vld.sshfl [vmem:[#allocation1 + $0x10] sm:$0xff pattern:$0x73625140]
      %v203 = vld.sshfl [vmem:[#allocation1 + $0x18] sm:$0xff pattern:$0x73625140]
      %v204 = vld.sshfl [vmem:[#allocation1 + $0x20] sm:$0xff pattern:$0x73625140]
      %v205 = vld.sshfl [vmem:[#allocation1 + $0x28] sm:$0xff pattern:$0x73625140]
      %v206 = vld.sshfl [vmem:[#allocation1 + $0x30] sm:$0xff pattern:$0x73625140]
      %v207 = vld.sshfl [vmem:[#allocation1 + $0x38] sm:$0xff pattern:$0x73625140]
      %209 = vst [vmem:[#allocation1] ss:$4 sm:$0xff] %v188
      %211 = vst [vmem:[%s198] ss:$4 sm:$0xff] %v189
      %v212 = vld.sshfl [vmem:[#allocation1] sm:$0xff pattern:$0x73625140]
      %v213 = vld.sshfl [vmem:[#allocation1 + $0x8] sm:$0xff pattern:$0x73625140]
      %v214 = vld.sshfl [vmem:[#allocation1 + $0x10] sm:$0xff pattern:$0x73625140]
      %v215 = vld.sshfl [vmem:[#allocation1 + $0x18] sm:$0xff pattern:$0x73625140]
      %v216 = vld.sshfl [vmem:[#allocation1 + $0x20] sm:$0xff pattern:$0x73625140]
      %v217 = vld.sshfl [vmem:[#allocation1 + $0x28] sm:$0xff pattern:$0x73625140]
      %v218 = vld.sshfl [vmem:[#allocation1 + $0x30] sm:$0xff pattern:$0x73625140]
      %v219 = vld.sshfl [vmem:[#allocation1 + $0x38] sm:$0xff pattern:$0x73625140]
      %vm220 = vcmask 31744
      %v222 = vsel %vm220, %v194, 0
      %vm224 = vcmask 1041408
      %v225 = vsel %vm224, %v200, 0
      %v227 = vsel %vm224, %v201, 0
      %v229 = vsel %vm224, %v202, 0
      %v231 = vsel %vm224, %v203, 0
      %v233 = vsel %vm224, %v204, 0
      %v235 = vsel %vm224, %v205, 0
      %v237 = vsel %vm224, %v206, 0
      %v239 = vsel %vm224, %v207, 0
      %v241 = vsel %vm224, %v212, 0
      %v243 = vsel %vm224, %v213, 0
      %v245 = vsel %vm224, %v214, 0
      %v247 = vsel %vm224, %v215, 0
      %v249 = vsel %vm224, %v216, 0
      %v251 = vsel %vm224, %v217, 0
      %v253 = vsel %vm224, %v218, 0
      %v255 = vsel %vm224, %v219, 0
      %257 = vmatpush.bf16.msra.mxu0 0
      %258 = vmatpush.bf16.msra.mxu0 0
      %259 = vmatpush.bf16.msra.mxu0 0
      %260 = vmatpush.bf16.msra.mxu0 0
      %261 = vmatpush.bf16.msra.mxu0 0
      %262 = vmatpush.bf16.msra.mxu0 0
      %263 = vmatpush.bf16.msra.mxu0 0
      %264 = vmatpush.bf16.msra.mxu0 %v225
      %265 = vmatmul.bf16.gmra.mxu0 %v222
      %v266 = vpop.f32.mrf.mxu0
      %v267 = vadd.f32 0.0, %v266
      %v268 = vpop.f32.mrf.mxu0
      %v269 = vadd.f32 0.0, %v268
      %270 = vdwg.mxu0
      %271 = vmatpush.bf16.msra.mxu0 0
      %272 = vmatpush.bf16.msra.mxu0 0
      %273 = vmatpush.bf16.msra.mxu0 0
      %274 = vmatpush.bf16.msra.mxu0 0
      %275 = vmatpush.bf16.msra.mxu0 0
      %276 = vmatpush.bf16.msra.mxu0 0
      %277 = vmatpush.bf16.msra.mxu0 0
      %278 = vmatpush.bf16.msra.mxu0 %v227
      %279 = vmatmul.bf16.gmra.mxu0 %v222
      %v280 = vpop.f32.mrf.mxu0
      %v281 = vadd.f32 0.0, %v280
      %v282 = vpop.f32.mrf.mxu0
      %v283 = vadd.f32 0.0, %v282
      %284 = vdwg.mxu0
      %285 = vmatpush.bf16.msra.mxu0 0
      %286 = vmatpush.bf16.msra.mxu0 0
      %287 = vmatpush.bf16.msra.mxu0 0
      %288 = vmatpush.bf16.msra.mxu0 0
      %289 = vmatpush.bf16.msra.mxu0 0
      %290 = vmatpush.bf16.msra.mxu0 0
      %291 = vmatpush.bf16.msra.mxu0 0
      %292 = vmatpush.bf16.msra.mxu0 %v229
      %293 = vmatmul.bf16.gmra.mxu0 %v222
      %v294 = vpop.f32.mrf.mxu0
      %v295 = vadd.f32 0.0, %v294
      %v296 = vpop.f32.mrf.mxu0
      %v297 = vadd.f32 0.0, %v296
      %298 = vdwg.mxu0
      %299 = vmatpush.bf16.msra.mxu0 0
      %300 = vmatpush.bf16.msra.mxu0 0
      %301 = vmatpush.bf16.msra.mxu0 0
      %302 = vmatpush.bf16.msra.mxu0 0
      %303 = vmatpush.bf16.msra.mxu0 0
      %304 = vmatpush.bf16.msra.mxu0 0
      %305 = vmatpush.bf16.msra.mxu0 0
      %306 = vmatpush.bf16.msra.mxu0 %v231
      %307 = vmatmul.bf16.gmra.mxu0 %v222
      %v308 = vpop.f32.mrf.mxu0
      %v309 = vadd.f32 0.0, %v308
      %v310 = vpop.f32.mrf.mxu0
      %v311 = vadd.f32 0.0, %v310
      %312 = vdwg.mxu0
      %313 = vmatpush.bf16.msra.mxu0 0
      %314 = vmatpush.bf16.msra.mxu0 0
      %315 = vmatpush.bf16.msra.mxu0 0
      %316 = vmatpush.bf16.msra.mxu0 0
      %317 = vmatpush.bf16.msra.mxu0 0
      %318 = vmatpush.bf16.msra.mxu0 0
      %319 = vmatpush.bf16.msra.mxu0 0
      %320 = vmatpush.bf16.msra.mxu0 %v233
      %321 = vmatmul.bf16.gmra.mxu0 %v222
      %v322 = vpop.f32.mrf.mxu0
      %v323 = vadd.f32 0.0, %v322
      %v324 = vpop.f32.mrf.mxu0
      %v325 = vadd.f32 0.0, %v324
      %326 = vdwg.mxu0
      %327 = vmatpush.bf16.msra.mxu0 0
      %328 = vmatpush.bf16.msra.mxu0 0
      %329 = vmatpush.bf16.msra.mxu0 0
      %330 = vmatpush.bf16.msra.mxu0 0
      %331 = vmatpush.bf16.msra.mxu0 0
      %332 = vmatpush.bf16.msra.mxu0 0
      %333 = vmatpush.bf16.msra.mxu0 0
      %334 = vmatpush.bf16.msra.mxu0 %v235
      %335 = vmatmul.bf16.gmra.mxu0 %v222
      %v336 = vpop.f32.mrf.mxu0
      %v337 = vadd.f32 0.0, %v336
      %v338 = vpop.f32.mrf.mxu0
      %v339 = vadd.f32 0.0, %v338
      %340 = vdwg.mxu0
      %341 = vmatpush.bf16.msra.mxu0 0
      %342 = vmatpush.bf16.msra.mxu0 0
      %343 = vmatpush.bf16.msra.mxu0 0
      %344 = vmatpush.bf16.msra.mxu0 0
      %345 = vmatpush.bf16.msra.mxu0 0
      %346 = vmatpush.bf16.msra.mxu0 0
      %347 = vmatpush.bf16.msra.mxu0 0
      %348 = vmatpush.bf16.msra.mxu0 %v237
      %349 = vmatmul.bf16.gmra.mxu0 %v222
      %v350 = vpop.f32.mrf.mxu0
      %v351 = vadd.f32 0.0, %v350
      %v352 = vpop.f32.mrf.mxu0
      %v353 = vadd.f32 0.0, %v352
      %354 = vdwg.mxu0
      %355 = vmatpush.bf16.msra.mxu0 0
      %356 = vmatpush.bf16.msra.mxu0 0
      %357 = vmatpush.bf16.msra.mxu0 0
      %358 = vmatpush.bf16.msra.mxu0 0
      %359 = vmatpush.bf16.msra.mxu0 0
      %360 = vmatpush.bf16.msra.mxu0 0
      %361 = vmatpush.bf16.msra.mxu0 0
      %362 = vmatpush.bf16.msra.mxu0 %v239
      %363 = vmatmul.bf16.gmra.mxu0 %v222
      %v364 = vpop.f32.mrf.mxu0
      %v365 = vadd.f32 0.0, %v364
      %v366 = vpop.f32.mrf.mxu0
      %v367 = vadd.f32 0.0, %v366
      %368 = vdwg.mxu0
      %369 = vmatpush.bf16.msra.mxu0 0
      %370 = vmatpush.bf16.msra.mxu0 0
      %371 = vmatpush.bf16.msra.mxu0 0
      %372 = vmatpush.bf16.msra.mxu0 0
      %373 = vmatpush.bf16.msra.mxu0 0
      %374 = vmatpush.bf16.msra.mxu0 0
      %375 = vmatpush.bf16.msra.mxu0 0
      %376 = vmatpush.bf16.msra.mxu0 %v241
      %377 = vmatmul.bf16.gmra.mxu0 %v222
      %v378 = vpop.f32.mrf.mxu0
      %v379 = vadd.f32 0.0, %v378
      %v380 = vpop.f32.mrf.mxu0
      %v381 = vadd.f32 0.0, %v380
      %382 = vdwg.mxu0
      %383 = vmatpush.bf16.msra.mxu0 0
      %384 = vmatpush.bf16.msra.mxu0 0
      %385 = vmatpush.bf16.msra.mxu0 0
      %386 = vmatpush.bf16.msra.mxu0 0
      %387 = vmatpush.bf16.msra.mxu0 0
      %388 = vmatpush.bf16.msra.mxu0 0
      %389 = vmatpush.bf16.msra.mxu0 0
      %390 = vmatpush.bf16.msra.mxu0 %v243
      %391 = vmatmul.bf16.gmra.mxu0 %v222
      %v392 = vpop.f32.mrf.mxu0
      %v393 = vadd.f32 0.0, %v392
      %v394 = vpop.f32.mrf.mxu0
      %v395 = vadd.f32 0.0, %v394
      %396 = vdwg.mxu0
      %397 = vmatpush.bf16.msra.mxu0 0
      %398 = vmatpush.bf16.msra.mxu0 0
      %399 = vmatpush.bf16.msra.mxu0 0
      %400 = vmatpush.bf16.msra.mxu0 0
      %401 = vmatpush.bf16.msra.mxu0 0
      %402 = vmatpush.bf16.msra.mxu0 0
      %403 = vmatpush.bf16.msra.mxu0 0
      %404 = vmatpush.bf16.msra.mxu0 %v245
      %405 = vmatmul.bf16.gmra.mxu0 %v222
      %v406 = vpop.f32.mrf.mxu0
      %v407 = vadd.f32 0.0, %v406
      %v408 = vpop.f32.mrf.mxu0
      %v409 = vadd.f32 0.0, %v408
      %410 = vdwg.mxu0
      %411 = vmatpush.bf16.msra.mxu0 0
      %412 = vmatpush.bf16.msra.mxu0 0
      %413 = vmatpush.bf16.msra.mxu0 0
      %414 = vmatpush.bf16.msra.mxu0 0
      %415 = vmatpush.bf16.msra.mxu0 0
      %416 = vmatpush.bf16.msra.mxu0 0
      %417 = vmatpush.bf16.msra.mxu0 0
      %418 = vmatpush.bf16.msra.mxu0 %v247
      %419 = vmatmul.bf16.gmra.mxu0 %v222
      %v420 = vpop.f32.mrf.mxu0
      %v421 = vadd.f32 0.0, %v420
      %v422 = vpop.f32.mrf.mxu0
      %v423 = vadd.f32 0.0, %v422
      %424 = vdwg.mxu0
      %425 = vmatpush.bf16.msra.mxu0 0
      %426 = vmatpush.bf16.msra.mxu0 0
      %427 = vmatpush.bf16.msra.mxu0 0
      %428 = vmatpush.bf16.msra.mxu0 0
      %429 = vmatpush.bf16.msra.mxu0 0
      %430 = vmatpush.bf16.msra.mxu0 0
      %431 = vmatpush.bf16.msra.mxu0 0
      %432 = vmatpush.bf16.msra.mxu0 %v249
      %433 = vmatmul.bf16.gmra.mxu0 %v222
      %v434 = vpop.f32.mrf.mxu0
      %v435 = vadd.f32 0.0, %v434
      %v436 = vpop.f32.mrf.mxu0
      %v437 = vadd.f32 0.0, %v436
      %438 = vdwg.mxu0
      %439 = vmatpush.bf16.msra.mxu0 0
      %440 = vmatpush.bf16.msra.mxu0 0
      %441 = vmatpush.bf16.msra.mxu0 0
      %442 = vmatpush.bf16.msra.mxu0 0
      %443 = vmatpush.bf16.msra.mxu0 0
      %444 = vmatpush.bf16.msra.mxu0 0
      %445 = vmatpush.bf16.msra.mxu0 0
      %446 = vmatpush.bf16.msra.mxu0 %v251
      %447 = vmatmul.bf16.gmra.mxu0 %v222
      %v448 = vpop.f32.mrf.mxu0
      %v449 = vadd.f32 0.0, %v448
      %v450 = vpop.f32.mrf.mxu0
      %v451 = vadd.f32 0.0, %v450
      %452 = vdwg.mxu0
      %453 = vmatpush.bf16.msra.mxu0 0
      %454 = vmatpush.bf16.msra.mxu0 0
      %455 = vmatpush.bf16.msra.mxu0 0
      %456 = vmatpush.bf16.msra.mxu0 0
      %457 = vmatpush.bf16.msra.mxu0 0
      %458 = vmatpush.bf16.msra.mxu0 0
      %459 = vmatpush.bf16.msra.mxu0 0
      %460 = vmatpush.bf16.msra.mxu0 %v253
      %461 = vmatmul.bf16.gmra.mxu0 %v222
      %v462 = vpop.f32.mrf.mxu0
      %v463 = vadd.f32 0.0, %v462
      %v464 = vpop.f32.mrf.mxu0
      %v465 = vadd.f32 0.0, %v464
      %466 = vdwg.mxu0
      %467 = vmatpush.bf16.msra.mxu0 0
      %468 = vmatpush.bf16.msra.mxu0 0
      %469 = vmatpush.bf16.msra.mxu0 0
      %470 = vmatpush.bf16.msra.mxu0 0
      %471 = vmatpush.bf16.msra.mxu0 0
      %472 = vmatpush.bf16.msra.mxu0 0
      %473 = vmatpush.bf16.msra.mxu0 0
      %474 = vmatpush.bf16.msra.mxu0 %v255
      %475 = vmatmul.bf16.gmra.mxu0 %v222
      %v476 = vpop.f32.mrf.mxu0
      %v477 = vadd.f32 0.0, %v476
      %v478 = vpop.f32.mrf.mxu0
      %v479 = vadd.f32 0.0, %v478
      %480 = vdwg.mxu0
      %v481 = vpack.c.bf16 %v281, %v267
      %v482 = vpack.c.bf16 %v309, %v295
      %v483 = vpack.c.bf16 %v337, %v323
      %v484 = vpack.c.bf16 %v365, %v351
      %v485 = vpack.c.bf16 %v393, %v379
      %v486 = vpack.c.bf16 %v421, %v407
      %v487 = vpack.c.bf16 %v449, %v435
      %v488 = vpack.c.bf16 %v477, %v463
      %v489 = vpack.c.bf16 %v283, %v269
      %v490 = vpack.c.bf16 %v311, %v297
      %v491 = vpack.c.bf16 %v339, %v325
      %v492 = vpack.c.bf16 %v367, %v353
      %v493 = vpack.c.bf16 %v395, %v381
      %v494 = vpack.c.bf16 %v423, %v409
      %v495 = vpack.c.bf16 %v451, %v437
      %v496 = vpack.c.bf16 %v479, %v465
      %497 = vst [vmem:[%s181] sm:$0xff] %v481
      %498 = vst [vmem:[%s181 + $0x8] sm:$0xff] %v482
      %499 = vst [vmem:[%s181 + $0x10] sm:$0xff] %v483
      %500 = vst [vmem:[%s181 + $0x18] sm:$0xff] %v484
      %501 = vst [vmem:[%s181 + $0x20] sm:$0xff] %v485
      %502 = vst [vmem:[%s181 + $0x28] sm:$0xff] %v486
      %503 = vst [vmem:[%s181 + $0x30] sm:$0xff] %v487
      %504 = vst [vmem:[%s181 + $0x38] sm:$0xff] %v488
      %505 = vst [vmem:[%s181 + $0x40] sm:$0xff] %v489
      %506 = vst [vmem:[%s181 + $0x48] sm:$0xff] %v490
      %507 = vst [vmem:[%s181 + $0x50] sm:$0xff] %v491
      %508 = vst [vmem:[%s181 + $0x58] sm:$0xff] %v492
      %509 = vst [vmem:[%s181 + $0x60] sm:$0xff] %v493
      %510 = vst [vmem:[%s181 + $0x68] sm:$0xff] %v494
      %511 = vst [vmem:[%s181 + $0x70] sm:$0xff] %v495
      %512 = vst [vmem:[%s181 + $0x78] sm:$0xff] %v496
      %s513 = smul.u32 16, %s18
      %p514 = scmp.lt.s32.totalorder %s17, 1
      %s515 = scalar_select %p514, %s17, 1
      %p516 = scmp.lt.s32.totalorder %s513, 15
      %s517 = scalar_select %p516, %s513, 15
      %s518 = smul.addr %s515, 32
      %s519 = sadd.s32 %s517, %s518
      %s520 = smul.addr %s519, 4
      %s521 = scalar_lea.vmem %s2, %s520
      // Predicated region
      $region29: #{segformer_segmentation_forward.26} parent=27 // pred_check
        %p522 = pneg %p94
      $region30: #{segformer_segmentation_forward.26} parent=27 // pred_check_branch
        %524 = sbr.rel (%p522) target = $region32
      $region31: #{segformer_segmentation_forward.26} parent=27 // pred_region
        %s525 = smul.u32 16, %s18
      $region32: #{segformer_segmentation_forward.26} parent=27 // pred_fallthru
        _
    $region28: #{segformer_segmentation_forward.26} parent=5 // pred_fallthru
      _
    %p526 = scmp.le.s32.totalorder 2, %s8
    // Predicated region
    $region33: #{segformer_segmentation_forward.26} parent=5 // pred_check
      %p527 = pneg %p526
    $region34: #{segformer_segmentation_forward.26} parent=5 // pred_check_branch
      %529 = sbr.rel (%p527) target = $region36
    $region35: #{segformer_segmentation_forward.26} parent=5 // pred_region
      %s530 = ssub.s32 %s8, 2
      // Predicated region
      $region37: #{segformer_segmentation_forward.26} parent=35 // pred_check
        %p531 = pneg %p100
      $region38: #{segformer_segmentation_forward.26} parent=35 // pred_check_branch
        %533 = sbr.rel (%p531) target = $region40
      $region39: #{segformer_segmentation_forward.26} parent=35 // pred_region
        %s534 = smul.u32 16, %s20
        %p535 = scmp.lt.s32.totalorder %s19, 1
        %s536 = scalar_select %p535, %s19, 1
        %p537 = scmp.lt.s32.totalorder %s534, 15
        %s538 = scalar_select %p537, %s534, 15
        %s539 = smul.addr %s536, 32
        %s540 = sadd.s32 %s538, %s539
        %s541 = smul.addr %s540, 4
        %s542 = scalar_lea.vmem %s2, %s541
      $region40: #{segformer_segmentation_forward.26} parent=35 // pred_fallthru
        _
    $region36: #{segformer_segmentation_forward.26} parent=5 // pred_fallthru
      _
  $region6: #{segformer_segmentation_forward.26} parent=0 // loop_footer
    %s12 = sadd.s32 1, %s8
  $region7: #{segformer_segmentation_forward.26} parent=0 // loop_footer_branch
    %7 = sbr.rel target = $region3
  $region8: #{segformer_segmentation_forward.26} parent=0 // loop_exit
    _

// kernel: segformer_segmentation_forward.27
$region0: #{segformer_segmentation_forward.27}
  #allocation0 [shape = 'u32[]', space=smem, size = 0x4, offset = 0x4, fixed_abs, tag = 'smem constant byte address 0x4 - core index']
  #allocation1 [shape = 'u32[72,128]{1,0:T(1,128)}', space=vmem, size = 0x9000, scoped, tag = 'internal scratch']
  %s0 = inlined_call_operand.vmem [shape: bf16[8,256], index: 0, kind: input, shape index: {}]
  %s1 = inlined_call_operand.vmem [shape: bf16[256,128], index: 1, kind: input, shape index: {}]
  %s2 = inlined_call_operand.vmem [shape: f32[1,128], index: 2, kind: input, shape index: {}]
  %s3 = inlined_call_operand.vmem [shape: bf16[8,128], index: 3, kind: output, shape index: {}]
  %s4 = sld [smem:[#allocation0]]
  $region22: #{segformer_segmentation_forward.27} parent=0
    _
  %s6 = ssub.s32 1, %s4
  %s7 = scalar_select 0, %s6, %s4
  // Predicated region
  $region2: #{segformer_segmentation_forward.27} parent=0 // pred_check
    _
  $region3: #{segformer_segmentation_forward.27} parent=0 // pred_check_branch
    %9 = sbr.rel (0) target = $region5
  $region4: #{segformer_segmentation_forward.27} parent=0 // pred_region
    _
  $region5: #{segformer_segmentation_forward.27} parent=0 // pred_fallthru
    _
  // Predicated region
  $region6: #{segformer_segmentation_forward.27} parent=0 // pred_check
    _
  $region7: #{segformer_segmentation_forward.27} parent=0 // pred_check_branch
    %11 = sbr.rel (0) target = $region9
  $region8: #{segformer_segmentation_forward.27} parent=0 // pred_region
    _
  $region9: #{segformer_segmentation_forward.27} parent=0 // pred_fallthru
    _
  // Predicated region
  $region10: #{segformer_segmentation_forward.27} parent=0 // pred_check
    _
  $region11: #{segformer_segmentation_forward.27} parent=0 // pred_check_branch
    %13 = sbr.rel (0) target = $region13
  $region12: #{segformer_segmentation_forward.27} parent=0 // pred_region
    _
  $region13: #{segformer_segmentation_forward.27} parent=0 // pred_fallthru
    _
  %v14 = vld [vmem:[%s0] sm:$0xff]
  %v15 = vld [vmem:[%s1] sm:$0xf]
  %v16 = vld [vmem:[%s1 + $0x4] sm:$0xf]
  %v17 = vld [vmem:[%s1 + $0x8] sm:$0xf]
  %v18 = vld [vmem:[%s1 + $0xc] sm:$0xf]
  %v19 = vld [vmem:[%s1 + $0x10] sm:$0xf]
  %v20 = vld [vmem:[%s1 + $0x14] sm:$0xf]
  %v21 = vld [vmem:[%s1 + $0x18] sm:$0xf]
  %v22 = vld [vmem:[%s1 + $0x1c] sm:$0xf]
  %v23 = vld [vmem:[%s1 + $0x20] sm:$0xf]
  %v24 = vld [vmem:[%s1 + $0x24] sm:$0xf]
  %v25 = vld [vmem:[%s1 + $0x28] sm:$0xf]
  %v26 = vld [vmem:[%s1 + $0x2c] sm:$0xf]
  %v27 = vld [vmem:[%s1 + $0x30] sm:$0xf]
  %v28 = vld [vmem:[%s1 + $0x34] sm:$0xf]
  %v29 = vld [vmem:[%s1 + $0x38] sm:$0xf]
  %v30 = vld [vmem:[%s1 + $0x3c] sm:$0xf]
  %v31 = vld [vmem:[%s1 + $0x40] sm:$0xf]
  %v32 = vld [vmem:[%s1 + $0x44] sm:$0xf]
  %v33 = vld [vmem:[%s1 + $0x48] sm:$0xf]
  %v34 = vld [vmem:[%s1 + $0x4c] sm:$0xf]
  %v35 = vld [vmem:[%s1 + $0x50] sm:$0xf]
  %v36 = vld [vmem:[%s1 + $0x54] sm:$0xf]
  %v37 = vld [vmem:[%s1 + $0x58] sm:$0xf]
  %v38 = vld [vmem:[%s1 + $0x5c] sm:$0xf]
  %v39 = vld [vmem:[%s1 + $0x60] sm:$0xf]
  %v40 = vld [vmem:[%s1 + $0x64] sm:$0xf]
  %v41 = vld [vmem:[%s1 + $0x68] sm:$0xf]
  %v42 = vld [vmem:[%s1 + $0x6c] sm:$0xf]
  %v43 = vld [vmem:[%s1 + $0x70] sm:$0xf]
  %v44 = vld [vmem:[%s1 + $0x74] sm:$0xf]
  %v45 = vld [vmem:[%s1 + $0x78] sm:$0xf]
  %v46 = vld [vmem:[%s1 + $0x7c] sm:$0xf]
  %v47 = vld [vmem:[%s2] sm:$0x1]
  %v49 = vperm.slane %v47, 0
  %v52 = vunpack.c.l.b16 %v14
  %v53 = vunpack.c.h.b16 %v14
  %v54 = vpack.c.b16 %v52, %v52
  %v55 = vpack.c.b16 %v53, %v53
  %v90 = vunpack.c.l.b16 %v15
  %v91 = vunpack.c.l.b16 %v16
  %v92 = vunpack.c.l.b16 %v17
  %v93 = vunpack.c.l.b16 %v18
  %v94 = vunpack.c.l.b16 %v19
  %v95 = vunpack.c.l.b16 %v20
  %v96 = vunpack.c.l.b16 %v21
  %v97 = vunpack.c.l.b16 %v22
  %v98 = vunpack.c.l.b16 %v23
  %v99 = vunpack.c.l.b16 %v24
  %v100 = vunpack.c.l.b16 %v25
  %v101 = vunpack.c.l.b16 %v26
  %v102 = vunpack.c.l.b16 %v27
  %v103 = vunpack.c.l.b16 %v28
  %v104 = vunpack.c.l.b16 %v29
  %v105 = vunpack.c.l.b16 %v30
  %v106 = vunpack.c.l.b16 %v31
  %v107 = vunpack.c.l.b16 %v32
  %v108 = vunpack.c.l.b16 %v33
  %v109 = vunpack.c.l.b16 %v34
  %v110 = vunpack.c.l.b16 %v35
  %v111 = vunpack.c.l.b16 %v36
  %v112 = vunpack.c.l.b16 %v37
  %v113 = vunpack.c.l.b16 %v38
  %v114 = vunpack.c.l.b16 %v39
  %v115 = vunpack.c.l.b16 %v40
  %v116 = vunpack.c.l.b16 %v41
  %v117 = vunpack.c.l.b16 %v42
  %v118 = vunpack.c.l.b16 %v43
  %v119 = vunpack.c.l.b16 %v44
  %v120 = vunpack.c.l.b16 %v45
  %v121 = vunpack.c.l.b16 %v46
  %v122 = vpack.c.b16 %v91, %v90
  %v123 = vpack.c.b16 %v93, %v92
  %v124 = vpack.c.b16 %v95, %v94
  %v125 = vpack.c.b16 %v97, %v96
  %v126 = vpack.c.b16 %v99, %v98
  %v127 = vpack.c.b16 %v101, %v100
  %v128 = vpack.c.b16 %v103, %v102
  %v129 = vpack.c.b16 %v105, %v104
  %v130 = vpack.c.b16 %v107, %v106
  %v131 = vpack.c.b16 %v109, %v108
  %v132 = vpack.c.b16 %v111, %v110
  %v133 = vpack.c.b16 %v113, %v112
  %v134 = vpack.c.b16 %v115, %v114
  %v135 = vpack.c.b16 %v117, %v116
  %v136 = vpack.c.b16 %v119, %v118
  %v137 = vpack.c.b16 %v121, %v120
  %154 = vmatpush.bf16.msra.mxu0 %v129
  %155 = vmatpush.bf16.msra.mxu0 %v128
  %156 = vmatpush.bf16.msra.mxu0 %v127
  %157 = vmatpush.bf16.msra.mxu0 %v126
  %158 = vmatpush.bf16.msra.mxu0 %v125
  %159 = vmatpush.bf16.msra.mxu0 %v124
  %160 = vmatpush.bf16.msra.mxu0 %v123
  %161 = vmatpush.bf16.msra.mxu0 %v122
  %162 = vmatmul.bf16.gmra.mxu0 %v54
  %v163 = vpop.f32.mrf.mxu0
  %v164 = vadd.f32 %v49, %v163
  %v165 = vpop.f32.mrf.mxu0
  %166 = vdwg.mxu0
  %167 = vmatpush.bf16.msra.mxu0 %v137
  %168 = vmatpush.bf16.msra.mxu0 %v136
  %169 = vmatpush.bf16.msra.mxu0 %v135
  %170 = vmatpush.bf16.msra.mxu0 %v134
  %171 = vmatpush.bf16.msra.mxu0 %v133
  %172 = vmatpush.bf16.msra.mxu0 %v132
  %173 = vmatpush.bf16.msra.mxu0 %v131
  %174 = vmatpush.bf16.msra.mxu0 %v130
  %175 = vmatmul.bf16.gmra.mxu0 %v55
  %v176 = vpop.f32.mrf.mxu0
  %v177 = vadd.f32 %v164, %v176
  %v178 = vpop.f32.mrf.mxu0
  %179 = vdwg.mxu0
  %v180 = vmax.f32 %v177, 0.0
  %v181 = vpack.c.bf16 %v180, %v180
  %182 = vst [vmem:[%s3] sm:$0xf] %v181
  // Predicated region
  $region14: #{segformer_segmentation_forward.27} parent=0 // pred_check
    _
  $region15: #{segformer_segmentation_forward.27} parent=0 // pred_check_branch
    %184 = sbr.rel (0) target = $region17
  $region16: #{segformer_segmentation_forward.27} parent=0 // pred_region
    _
  $region17: #{segformer_segmentation_forward.27} parent=0 // pred_fallthru
    _
  // Predicated region
  $region18: #{segformer_segmentation_forward.27} parent=0 // pred_check
    _
  $region19: #{segformer_segmentation_forward.27} parent=0 // pred_check_branch
    %186 = sbr.rel (0) target = $region21
  $region20: #{segformer_segmentation_forward.27} parent=0 // pred_region
    _
  $region21: #{segformer_segmentation_forward.27} parent=0 // pred_fallthru
    _

// kernel: segformer_segmentation_forward.28
$region0: #{segformer_segmentation_forward.28}
  #allocation0 [shape = 'u32[]', space=smem, size = 0x4, offset = 0x4, fixed_abs, tag = 'smem constant byte address 0x4 - core index']
  #allocation1 [shape = 'u32[72,128]{1,0:T(1,128)}', space=vmem, size = 0x9000, scoped, tag = 'internal scratch']
  %s0 = inlined_call_operand.vmem [shape: bf16[16,2], index: 0, kind: input, shape index: {}]
  %s1 = inlined_call_operand.vmem [shape: bf16[2,2,256], index: 1, kind: input, shape index: {}]
  %s2 = inlined_call_operand.vmem [shape: bf16[2,16,256], index: 2, kind: output, shape index: {}]
  %s3 = sld [smem:[#allocation0]]
  $region41: #{segformer_segmentation_forward.28} parent=0
    _
  %s5 = ssub.s32 1, %s3
  %s6 = scalar_select 0, %s5, %s3
  loop: start=0, step=1, limit=4
  $region2: #{segformer_segmentation_forward.28} parent=0 // loop_pre_header
    _
  $region3: #{segformer_segmentation_forward.28} parent=0 // loop_header
    %s8 = sphi 0, %s12
    %p9 = scmp.ge.s32.totalorder %s8, 4
    %s15 = sphi 0, %s27
    %s16 = sphi 0, %s23
    %s17 = sphi 0, %s15
    %s18 = sphi 0, %s16
    %s19 = sphi 0, %s17
    %s20 = sphi 0, %s18
    %s28 = sphi 0, %s28
    %s30 = sphi 0, %s28
    %s31 = sphi 0, %s30
    %s45 = sphi 0, %s31
    %s53 = sphi 0, %s55
    %s56 = sphi 0, %s53
    %s57 = sphi 0, %s56
    %s73 = sphi 0, %s57
    %s81 = sphi 0, %s83
    %s84 = sphi 0, %s81
    %s85 = sphi 0, %s84
    %s101 = sphi 0, %s85
  $region4: #{segformer_segmentation_forward.28} parent=0 // loop_header_branch
    %11 = sbr.rel (%p9) target = $region8
  $region5: #{segformer_segmentation_forward.28} parent=0 // loop_body
    %s13 = ssub.s32 %s8, 1
    %s14 = ssub.s32 %s8, 2
    %s21 = sadd.s32 1, %s16
    %p22 = scmp.ge.s32.totalorder %s21, 1
    %s23 = scalar_select %p22, 0, %s21
    %s24 = sadd.s32 1, %s15
    %s25 = scalar_select %p22, %s24, %s15
    %p26 = scmp.ge.s32.totalorder %s25, 2
    %s27 = scalar_select %p26, 0, %s25
    %s29 = sadd.s32 %s28, 1
    %p32 = scmp.eq.s32.totalorder %s8, 1
    %p33 = scmp.ne.s32.totalorder %s28, %s30
    %p34 = scmp.eq.s32.totalorder %s8, 0
    %p35 = por %p33, %p34
    %p36 = scmp.ne.s32.totalorder %s28, %s30
    %p37 = scmp.eq.s32.totalorder %s13, 1
    %p38 = por %p36, %p37
    %p39 = scmp.ne.s32.totalorder %s30, %s31
    %p40 = scmp.eq.s32.totalorder %s13, 0
    %p41 = por %p39, %p40
    %p42 = scmp.ne.s32.totalorder %s30, %s31
    %p43 = scmp.eq.s32.totalorder %s14, 1
    %p44 = por %p42, %p43
    %p46 = scmp.ne.s32.totalorder %s31, %s45
    %p47 = scmp.eq.s32.totalorder %s14, 0
    %p48 = por %p46, %p47
    %s49 = ssub.s32 %s15, %s27
    %s50 = ssub.s32 %s16, %s23
    %s51 = sor.u32 %s49, %s50
    %p52 = scmp.eq.s32.totalorder %s51, 0
    %s54 = sadd.s32 %s53, 1
    %s55 = scalar_select %p52, %s53, %s54
    %p58 = pneg %p52
    %p59 = scmp.eq.s32.totalorder %s8, 1
    %p60 = por %p58, %p59
    %p61 = scmp.ne.s32.totalorder %s53, %s56
    %p62 = scmp.eq.s32.totalorder %s8, 0
    %p63 = por %p61, %p62
    %p64 = scmp.ne.s32.totalorder %s53, %s56
    %p65 = scmp.eq.s32.totalorder %s13, 1
    %p66 = por %p64, %p65
    %p67 = scmp.ne.s32.totalorder %s56, %s57
    %p68 = scmp.eq.s32.totalorder %s13, 0
    %p69 = por %p67, %p68
    %p70 = scmp.ne.s32.totalorder %s56, %s57
    %p71 = scmp.eq.s32.totalorder %s14, 1
    %p72 = por %p70, %p71
    %p74 = scmp.ne.s32.totalorder %s57, %s73
    %p75 = scmp.eq.s32.totalorder %s14, 0
    %p76 = por %p74, %p75
    %s77 = ssub.s32 %s15, %s27
    %s78 = ssub.s32 %s16, %s23
    %s79 = sor.u32 %s77, %s78
    %p80 = scmp.eq.s32.totalorder %s79, 0
    %s82 = sadd.s32 %s81, 1
    %s83 = scalar_select %p80, %s81, %s82
    %p86 = pneg %p80
    %p87 = scmp.eq.s32.totalorder %s8, 1
    %p88 = por %p86, %p87
    %p89 = scmp.ne.s32.totalorder %s81, %s84
    %p90 = scmp.eq.s32.totalorder %s8, 0
    %p91 = por %p89, %p90
    %p92 = scmp.ne.s32.totalorder %s81, %s84
    %p93 = scmp.eq.s32.totalorder %s13, 1
    %p94 = por %p92, %p93
    %p95 = scmp.ne.s32.totalorder %s84, %s85
    %p96 = scmp.eq.s32.totalorder %s13, 0
    %p97 = por %p95, %p96
    %p98 = scmp.ne.s32.totalorder %s84, %s85
    %p99 = scmp.eq.s32.totalorder %s14, 1
    %p100 = por %p98, %p99
    %p102 = scmp.ne.s32.totalorder %s85, %s101
    %p103 = scmp.eq.s32.totalorder %s14, 0
    %p104 = por %p102, %p103
    %p105 = scmp.le.s32.totalorder 1, %s8
    %p106 = scmp.lt.s32.totalorder %s8, 3
    %p107 = pnand %p105, %p106
    %p108 = pneg %p107
    // Predicated region
    $region9: #{segformer_segmentation_forward.28} parent=5 // pred_check
      _
    $region10: #{segformer_segmentation_forward.28} parent=5 // pred_check_branch
      %110 = sbr.rel (%p107) target = $region12
    $region11: #{segformer_segmentation_forward.28} parent=5 // pred_region
      %s111 = ssub.s32 %s8, 1
      // Predicated region
      $region13: #{segformer_segmentation_forward.28} parent=11 // pred_check
        %p112 = pneg %p41
      $region14: #{segformer_segmentation_forward.28} parent=11 // pred_check_branch
        %114 = sbr.rel (%p112) target = $region16
      $region15: #{segformer_segmentation_forward.28} parent=11 // pred_region
        _
      $region16: #{segformer_segmentation_forward.28} parent=11 // pred_fallthru
        _
    $region12: #{segformer_segmentation_forward.28} parent=5 // pred_fallthru
      _
    %p115 = scmp.lt.s32.totalorder %s8, 2
    // Predicated region
    $region17: #{segformer_segmentation_forward.28} parent=5 // pred_check
      %p116 = pneg %p115
    $region18: #{segformer_segmentation_forward.28} parent=5 // pred_check_branch
      %118 = sbr.rel (%p116) target = $region20
    $region19: #{segformer_segmentation_forward.28} parent=5 // pred_region
      // Predicated region
      $region21: #{segformer_segmentation_forward.28} parent=19 // pred_check
        %p119 = pneg %p63
      $region22: #{segformer_segmentation_forward.28} parent=19 // pred_check_branch
        %121 = sbr.rel (%p119) target = $region24
      $region23: #{segformer_segmentation_forward.28} parent=19 // pred_region
        %s122 = smul.u32 2, %s16
        %p123 = scmp.lt.s32.totalorder %s15, 1
        %s124 = scalar_select %p123, %s15, 1
        %p125 = scmp.lt.s32.totalorder %s122, 1
        %s126 = scalar_select %p125, %s122, 1
        %s127 = smul.addr %s124, 2
        %s128 = sadd.s32 %s126, %s127
        %s129 = scalar_lea.vmem %s1, %s128
        %s130 = smul.u32 2, %s16
      $region24: #{segformer_segmentation_forward.28} parent=19 // pred_fallthru
        _
    $region20: #{segformer_segmentation_forward.28} parent=5 // pred_fallthru
      _
    %p131 = scmp.le.s32.totalorder 1, %s8
    %p132 = scmp.lt.s32.totalorder %s8, 3
    %p133 = pnand %p131, %p132
    %p134 = pneg %p133
    // Predicated region
    $region25: #{segformer_segmentation_forward.28} parent=5 // pred_check
      _
    $region26: #{segformer_segmentation_forward.28} parent=5 // pred_check_branch
      %136 = sbr.rel (%p133) target = $region28
    $region27: #{segformer_segmentation_forward.28} parent=5 // pred_region
      %s137 = ssub.s32 %s8, 1
      %p138 = pneg %p41
      %p139 = pneg %p38
      %s140 = smul.u32 2, %s18
      %p141 = scmp.lt.s32.totalorder %s17, 1
      %s142 = scalar_select %p141, %s17, 1
      %p143 = scmp.lt.s32.totalorder %s140, 1
      %s144 = scalar_select %p143, %s140, 1
      %s145 = smul.addr %s142, 2
      %s146 = sadd.s32 %s144, %s145
      %s147 = scalar_lea.vmem %s1, %s146
      %p148 = pneg %p69
      %p149 = pneg %p66
      %p150 = pneg %p97
      %p151 = pneg %p94
      %s152 = smul.u32 2, %s18
      %p153 = scmp.lt.s32.totalorder %s17, 1
      %s154 = scalar_select %p153, %s17, 1
      %p155 = scmp.lt.s32.totalorder %s152, 1
      %s156 = scalar_select %p155, %s152, 1
      %s157 = smul.addr %s154, 4
      %s158 = sadd.s32 %s156, %s157
      %s159 = smul.addr %s158, 4
      %s160 = scalar_lea.vmem %s2, %s159
      %s161 = smul.u32 2, %s18
      %p162 = scmp.lt.s32.totalorder %s17, 1
      %s163 = scalar_select %p162, %s17, 1
      %p164 = scmp.lt.s32.totalorder %s161, 1
      %s165 = scalar_select %p164, %s161, 1
      %s166 = smul.addr %s163, 2
      %s167 = sadd.s32 %s165, %s166
      %s168 = scalar_lea.vmem %s1, %s167
      %s169 = smul.u32 2, %s18
      %s170 = smul.u32 2, %s18
      %p171 = scmp.lt.s32.totalorder %s17, 1
      %s172 = scalar_select %p171, %s17, 1
      %p173 = scmp.lt.s32.totalorder %s170, 1
      %s174 = scalar_select %p173, %s170, 1
      %s175 = smul.addr %s172, 4
      %s176 = sadd.s32 %s174, %s175
      %s177 = smul.addr %s176, 4
      %s178 = scalar_lea.vmem %s2, %s177
      %s179 = smul.u32 2, %s18
      %v181 = vld [vmem:[%s0] sm:$0xf]
      %v182 = vld [vmem:[%s0 + $0x4] sm:$0xf]
      %v183 = vld [vmem:[%s168] sm:$0x3]
      %v186 = vunpack.c.l.b16 %v181
      %v187 = vunpack.c.l.b16 %v182
      %v188 = vpack.c.b16 %v187, %v186
      %190 = vst [vmem:[#allocation1] ss:$9 sm:$0xff] %v183
      %v191 = vld [vmem:[#allocation1] sm:$0xff]
      %v192 = vld [vmem:[#allocation1 + $0x9] sm:$0xff]
      %vm193 = vcmask 15360
      %v195 = vsel %vm193, %v188, 0
      %vm197 = vcmask 1040384
      %v198 = vsel %vm197, %v191, 0
      %v200 = vsel %vm197, %v192, 0
      %202 = vmatpush.bf16.msra.mxu0 0
      %203 = vmatpush.bf16.msra.mxu0 0
      %204 = vmatpush.bf16.msra.mxu0 0
      %205 = vmatpush.bf16.msra.mxu0 0
      %206 = vmatpush.bf16.msra.mxu0 0
      %207 = vmatpush.bf16.msra.mxu0 0
      %208 = vmatpush.bf16.msra.mxu0 0
      %209 = vmatpush.bf16.msra.mxu0 %v198
      %210 = vmatmul.bf16.gmra.mxu0 %v195
      %v211 = vpop.f32.mrf.mxu0
      %v212 = vadd.f32 0.0, %v211
      %v213 = vpop.f32.mrf.mxu0
      %v214 = vadd.f32 0.0, %v213
      %215 = vdwg.mxu0
      %216 = vmatpush.bf16.msra.mxu0 0
      %217 = vmatpush.bf16.msra.mxu0 0
      %218 = vmatpush.bf16.msra.mxu0 0
      %219 = vmatpush.bf16.msra.mxu0 0
      %220 = vmatpush.bf16.msra.mxu0 0
      %221 = vmatpush.bf16.msra.mxu0 0
      %222 = vmatpush.bf16.msra.mxu0 0
      %223 = vmatpush.bf16.msra.mxu0 %v200
      %224 = vmatmul.bf16.gmra.mxu0 %v195
      %v225 = vpop.f32.mrf.mxu0
      %v226 = vadd.f32 0.0, %v225
      %v227 = vpop.f32.mrf.mxu0
      %v228 = vadd.f32 0.0, %v227
      %229 = vdwg.mxu0
      %v230 = vpack.c.bf16 %v226, %v212
      %v231 = vpack.c.bf16 %v228, %v214
      %232 = vst [vmem:[%s178] sm:$0xff] %v230
      %233 = vst [vmem:[%s178 + $0x8] sm:$0xff] %v231
      %s234 = smul.u32 2, %s18
      %p235 = scmp.lt.s32.totalorder %s17, 1
      %s236 = scalar_select %p235, %s17, 1
      %p237 = scmp.lt.s32.totalorder %s234, 1
      %s238 = scalar_select %p237, %s234, 1
      %s239 = smul.addr %s236, 4
      %s240 = sadd.s32 %s238, %s239
      %s241 = smul.addr %s240, 4
      %s242 = scalar_lea.vmem %s2, %s241
      // Predicated region
      $region29: #{segformer_segmentation_forward.28} parent=27 // pred_check
        %p243 = pneg %p94
      $region30: #{segformer_segmentation_forward.28} parent=27 // pred_check_branch
        %245 = sbr.rel (%p243) target = $region32
      $region31: #{segformer_segmentation_forward.28} parent=27 // pred_region
        %s246 = smul.u32 2, %s18
      $region32: #{segformer_segmentation_forward.28} parent=27 // pred_fallthru
        _
    $region28: #{segformer_segmentation_forward.28} parent=5 // pred_fallthru
      _
    %p247 = scmp.le.s32.totalorder 2, %s8
    // Predicated region
    $region33: #{segformer_segmentation_forward.28} parent=5 // pred_check
      %p248 = pneg %p247
    $region34: #{segformer_segmentation_forward.28} parent=5 // pred_check_branch
      %250 = sbr.rel (%p248) target = $region36
    $region35: #{segformer_segmentation_forward.28} parent=5 // pred_region
      %s251 = ssub.s32 %s8, 2
      // Predicated region
      $region37: #{segformer_segmentation_forward.28} parent=35 // pred_check
        %p252 = pneg %p100
      $region38: #{segformer_segmentation_forward.28} parent=35 // pred_check_branch
        %254 = sbr.rel (%p252) target = $region40
      $region39: #{segformer_segmentation_forward.28} parent=35 // pred_region
        %s255 = smul.u32 2, %s20
        %p256 = scmp.lt.s32.totalorder %s19, 1
        %s257 = scalar_select %p256, %s19, 1
        %p258 = scmp.lt.s32.totalorder %s255, 1
        %s259 = scalar_select %p258, %s255, 1
        %s260 = smul.addr %s257, 4
        %s261 = sadd.s32 %s259, %s260
        %s262 = smul.addr %s261, 4
        %s263 = scalar_lea.vmem %s2, %s262
      $region40: #{segformer_segmentation_forward.28} parent=35 // pred_fallthru
        _
    $region36: #{segformer_segmentation_forward.28} parent=5 // pred_fallthru
      _
  $region6: #{segformer_segmentation_forward.28} parent=0 // loop_footer
    %s12 = sadd.s32 1, %s8
  $region7: #{segformer_segmentation_forward.28} parent=0 // loop_footer_branch
    %7 = sbr.rel target = $region3
  $region8: #{segformer_segmentation_forward.28} parent=0 // loop_exit
    _

// kernel: segformer_segmentation_forward.19
$region0: #{segformer_segmentation_forward.19}
  #allocation0 [shape = 'u32[]', space=smem, size = 0x4, offset = 0x4, fixed_abs, tag = 'smem constant byte address 0x4 - core index']
  #allocation1 [shape = 'u32[72,128]{1,0:T(1,128)}', space=vmem, size = 0x9000, scoped, tag = 'internal scratch']
  %s0 = inlined_call_operand.vmem [shape: bf16[8,1440], index: 0, kind: input, shape index: {}]
  %s1 = inlined_call_operand.vmem [shape: bf16[1440,256], index: 1, kind: input, shape index: {}]
  %s2 = inlined_call_operand.vmem [shape: f32[1,256], index: 2, kind: input, shape index: {}]
  %s3 = inlined_call_operand.vmem [shape: bf16[8,256], index: 3, kind: output, shape index: {}]
  %s4 = sld [smem:[#allocation0]]
  $region22: #{segformer_segmentation_forward.19} parent=0
    _
  %s6 = ssub.s32 1, %s4
  %s7 = scalar_select 0, %s6, %s4
  // Predicated region
  $region2: #{segformer_segmentation_forward.19} parent=0 // pred_check
    _
  $region3: #{segformer_segmentation_forward.19} parent=0 // pred_check_branch
    %9 = sbr.rel (0) target = $region5
  $region4: #{segformer_segmentation_forward.19} parent=0 // pred_region
    _
  $region5: #{segformer_segmentation_forward.19} parent=0 // pred_fallthru
    _
  // Predicated region
  $region6: #{segformer_segmentation_forward.19} parent=0 // pred_check
    _
  $region7: #{segformer_segmentation_forward.19} parent=0 // pred_check_branch
    %11 = sbr.rel (0) target = $region9
  $region8: #{segformer_segmentation_forward.19} parent=0 // pred_region
    _
  $region9: #{segformer_segmentation_forward.19} parent=0 // pred_fallthru
    _
  // Predicated region
  $region10: #{segformer_segmentation_forward.19} parent=0 // pred_check
    _
  $region11: #{segformer_segmentation_forward.19} parent=0 // pred_check_branch
    %13 = sbr.rel (0) target = $region13
  $region12: #{segformer_segmentation_forward.19} parent=0 // pred_region
    _
  $region13: #{segformer_segmentation_forward.19} parent=0 // pred_fallthru
    _
  %v15 = vld [vmem:[%s0] sm:$0xff]
  %v16 = vld [vmem:[%s0 + $0x8] sm:$0xff]
  %v17 = vld [vmem:[%s0 + $0x10] sm:$0xff]
  %v18 = vld [vmem:[%s0 + $0x18] sm:$0xff]
  %v19 = vld [vmem:[%s0 + $0x20] sm:$0xff]
  %v20 = vld [vmem:[%s0 + $0x28] sm:$0xff]
  %v21 = vld [vmem:[%s1] sm:$0xff]
  %v22 = vld [vmem:[%s1 + $0x8] sm:$0xff]
  %v23 = vld [vmem:[%s1 + $0x10] sm:$0xff]
  %v24 = vld [vmem:[%s1 + $0x18] sm:$0xff]
  %v25 = vld [vmem:[%s1 + $0x20] sm:$0xff]
  %v26 = vld [vmem:[%s1 + $0x28] sm:$0xff]
  %v27 = vld [vmem:[%s1 + $0x30] sm:$0xff]
  %v28 = vld [vmem:[%s1 + $0x38] sm:$0xff]
  %v29 = vld [vmem:[%s1 + $0x40] sm:$0xff]
  %v30 = vld [vmem:[%s1 + $0x48] sm:$0xff]
  %v31 = vld [vmem:[%s1 + $0x50] sm:$0xff]
  %v32 = vld [vmem:[%s1 + $0x58] sm:$0xff]
  %v33 = vld [vmem:[%s1 + $0x60] sm:$0xff]
  %v34 = vld [vmem:[%s1 + $0x68] sm:$0xff]
  %v35 = vld [vmem:[%s1 + $0x70] sm:$0xff]
  %v36 = vld [vmem:[%s1 + $0x78] sm:$0xff]
  %v37 = vld [vmem:[%s1 + $0x80] sm:$0xff]
  %v38 = vld [vmem:[%s1 + $0x88] sm:$0xff]
  %v39 = vld [vmem:[%s1 + $0x90] sm:$0xff]
  %v40 = vld [vmem:[%s1 + $0x98] sm:$0xff]
  %v41 = vld [vmem:[%s1 + $0xa0] sm:$0xff]
  %v42 = vld [vmem:[%s1 + $0xa8] sm:$0xff]
  %v43 = vld [vmem:[%s1 + $0xb0] sm:$0xff]
  %v44 = vld [vmem:[%s1 + $0xb8] sm:$0xff]
  %v45 = vld [vmem:[%s1 + $0xc0] sm:$0xff]
  %v46 = vld [vmem:[%s1 + $0xc8] sm:$0xff]
  %v47 = vld [vmem:[%s1 + $0xd0] sm:$0xff]
  %v48 = vld [vmem:[%s1 + $0xd8] sm:$0xff]
  %v49 = vld [vmem:[%s1 + $0xe0] sm:$0xff]
  %v50 = vld [vmem:[%s1 + $0xe8] sm:$0xff]
  %v51 = vld [vmem:[%s1 + $0xf0] sm:$0xff]
  %v52 = vld [vmem:[%s1 + $0xf8] sm:$0xff]
  %v53 = vld [vmem:[%s1 + $0x100] sm:$0xff]
  %v54 = vld [vmem:[%s1 + $0x108] sm:$0xff]
  %v55 = vld [vmem:[%s1 + $0x110] sm:$0xff]
  %v56 = vld [vmem:[%s1 + $0x118] sm:$0xff]
  %v57 = vld [vmem:[%s1 + $0x120] sm:$0xff]
  %v58 = vld [vmem:[%s1 + $0x128] sm:$0xff]
  %v59 = vld [vmem:[%s1 + $0x130] sm:$0xff]
  %v60 = vld [vmem:[%s1 + $0x138] sm:$0xff]
  %v61 = vld [vmem:[%s1 + $0x140] sm:$0xff]
  %v62 = vld [vmem:[%s1 + $0x148] sm:$0xff]
  %v63 = vld [vmem:[%s1 + $0x150] sm:$0xff]
  %v64 = vld [vmem:[%s1 + $0x158] sm:$0xff]
  %v65 = vld [vmem:[%s1 + $0x160] sm:$0xff]
  %v66 = vld [vmem:[%s1 + $0x168] sm:$0xff]
  %v67 = vld [vmem:[%s1 + $0x170] sm:$0xff]
  %v68 = vld [vmem:[%s1 + $0x178] sm:$0xff]
  %v69 = vld [vmem:[%s1 + $0x180] sm:$0xff]
  %v70 = vld [vmem:[%s1 + $0x188] sm:$0xff]
  %v71 = vld [vmem:[%s1 + $0x190] sm:$0xff]
  %v72 = vld [vmem:[%s1 + $0x198] sm:$0xff]
  %v73 = vld [vmem:[%s1 + $0x1a0] sm:$0xff]
  %v74 = vld [vmem:[%s1 + $0x1a8] sm:$0xff]
  %v75 = vld [vmem:[%s1 + $0x1b0] sm:$0xff]
  %v76 = vld [vmem:[%s1 + $0x1b8] sm:$0xff]
  %v77 = vld [vmem:[%s1 + $0x1c0] sm:$0xff]
  %v78 = vld [vmem:[%s1 + $0x1c8] sm:$0xff]
  %v79 = vld [vmem:[%s1 + $0x1d0] sm:$0xff]
  %v80 = vld [vmem:[%s1 + $0x1d8] sm:$0xff]
  %v81 = vld [vmem:[%s1 + $0x1e0] sm:$0xff]
  %v82 = vld [vmem:[%s1 + $0x1e8] sm:$0xff]
  %v83 = vld [vmem:[%s1 + $0x1f0] sm:$0xff]
  %v84 = vld [vmem:[%s1 + $0x1f8] sm:$0xff]
  %v85 = vld [vmem:[%s1 + $0x200] sm:$0xff]
  %v86 = vld [vmem:[%s1 + $0x208] sm:$0xff]
  %v87 = vld [vmem:[%s1 + $0x210] sm:$0xff]
  %v88 = vld [vmem:[%s1 + $0x218] sm:$0xff]
  %v89 = vld [vmem:[%s1 + $0x220] sm:$0xff]
  %v90 = vld [vmem:[%s1 + $0x228] sm:$0xff]
  %v91 = vld [vmem:[%s1 + $0x230] sm:$0xff]
  %v92 = vld [vmem:[%s1 + $0x238] sm:$0xff]
  %v93 = vld [vmem:[%s1 + $0x240] sm:$0xff]
  %v94 = vld [vmem:[%s1 + $0x248] sm:$0xff]
  %v95 = vld [vmem:[%s1 + $0x250] sm:$0xff]
  %v96 = vld [vmem:[%s1 + $0x258] sm:$0xff]
  %v97 = vld [vmem:[%s1 + $0x260] sm:$0xff]
  %v98 = vld [vmem:[%s1 + $0x268] sm:$0xff]
  %v99 = vld [vmem:[%s1 + $0x270] sm:$0xff]
  %v100 = vld [vmem:[%s1 + $0x278] sm:$0xff]
  %v101 = vld [vmem:[%s1 + $0x280] sm:$0xff]
  %v102 = vld [vmem:[%s1 + $0x288] sm:$0xff]
  %v103 = vld [vmem:[%s1 + $0x290] sm:$0xff]
  %v104 = vld [vmem:[%s1 + $0x298] sm:$0xff]
  %v105 = vld [vmem:[%s1 + $0x2a0] sm:$0xff]
  %v106 = vld [vmem:[%s1 + $0x2a8] sm:$0xff]
  %v107 = vld [vmem:[%s1 + $0x2b0] sm:$0xff]
  %v108 = vld [vmem:[%s1 + $0x2b8] sm:$0xff]
  %v109 = vld [vmem:[%s1 + $0x2c0] sm:$0xff]
  %v110 = vld [vmem:[%s1 + $0x2c8] sm:$0xff]
  %v111 = vld [vmem:[%s1 + $0x2d0] sm:$0xff]
  %v112 = vld [vmem:[%s1 + $0x2d8] sm:$0xff]
  %v113 = vld [vmem:[%s1 + $0x2e0] sm:$0xff]
  %v114 = vld [vmem:[%s1 + $0x2e8] sm:$0xff]
  %v115 = vld [vmem:[%s1 + $0x2f0] sm:$0xff]
  %v116 = vld [vmem:[%s1 + $0x2f8] sm:$0xff]
  %v117 = vld [vmem:[%s1 + $0x300] sm:$0xff]
  %v118 = vld [vmem:[%s1 + $0x308] sm:$0xff]
  %v119 = vld [vmem:[%s1 + $0x310] sm:$0xff]
  %v120 = vld [vmem:[%s1 + $0x318] sm:$0xff]
  %v121 = vld [vmem:[%s1 + $0x320] sm:$0xff]
  %v122 = vld [vmem:[%s1 + $0x328] sm:$0xff]
  %v123 = vld [vmem:[%s1 + $0x330] sm:$0xff]
  %v124 = vld [vmem:[%s1 + $0x338] sm:$0xff]
  %v125 = vld [vmem:[%s1 + $0x340] sm:$0xff]
  %v126 = vld [vmem:[%s1 + $0x348] sm:$0xff]
  %v127 = vld [vmem:[%s1 + $0x350] sm:$0xff]
  %v128 = vld [vmem:[%s1 + $0x358] sm:$0xff]
  %v129 = vld [vmem:[%s1 + $0x360] sm:$0xff]
  %v130 = vld [vmem:[%s1 + $0x368] sm:$0xff]
  %v131 = vld [vmem:[%s1 + $0x370] sm:$0xff]
  %v132 = vld [vmem:[%s1 + $0x378] sm:$0xff]
  %v133 = vld [vmem:[%s1 + $0x380] sm:$0xff]
  %v134 = vld [vmem:[%s1 + $0x388] sm:$0xff]
  %v135 = vld [vmem:[%s1 + $0x390] sm:$0xff]
  %v136 = vld [vmem:[%s1 + $0x398] sm:$0xff]
  %v137 = vld [vmem:[%s1 + $0x3a0] sm:$0xff]
  %v138 = vld [vmem:[%s1 + $0x3a8] sm:$0xff]
  %v139 = vld [vmem:[%s1 + $0x3b0] sm:$0xff]
  %v140 = vld [vmem:[%s1 + $0x3b8] sm:$0xff]
  %v141 = vld [vmem:[%s1 + $0x3c0] sm:$0xff]
  %v142 = vld [vmem:[%s1 + $0x3c8] sm:$0xff]
  %v143 = vld [vmem:[%s1 + $0x3d0] sm:$0xff]
  %v144 = vld [vmem:[%s1 + $0x3d8] sm:$0xff]
  %v145 = vld [vmem:[%s1 + $0x3e0] sm:$0xff]
  %v146 = vld [vmem:[%s1 + $0x3e8] sm:$0xff]
  %v147 = vld [vmem:[%s1 + $0x3f0] sm:$0xff]
  %v148 = vld [vmem:[%s1 + $0x3f8] sm:$0xff]
  %v149 = vld [vmem:[%s1 + $0x400] sm:$0xff]
  %v150 = vld [vmem:[%s1 + $0x408] sm:$0xff]
  %v151 = vld [vmem:[%s1 + $0x410] sm:$0xff]
  %v152 = vld [vmem:[%s1 + $0x418] sm:$0xff]
  %v153 = vld [vmem:[%s1 + $0x420] sm:$0xff]
  %v154 = vld [vmem:[%s1 + $0x428] sm:$0xff]
  %v155 = vld [vmem:[%s1 + $0x430] sm:$0xff]
  %v156 = vld [vmem:[%s1 + $0x438] sm:$0xff]
  %v157 = vld [vmem:[%s1 + $0x440] sm:$0xff]
  %v158 = vld [vmem:[%s1 + $0x448] sm:$0xff]
  %v159 = vld [vmem:[%s1 + $0x450] sm:$0xff]
  %v160 = vld [vmem:[%s1 + $0x458] sm:$0xff]
  %v161 = vld [vmem:[%s1 + $0x460] sm:$0xff]
  %v162 = vld [vmem:[%s1 + $0x468] sm:$0xff]
  %v163 = vld [vmem:[%s1 + $0x470] sm:$0xff]
  %v164 = vld [vmem:[%s1 + $0x478] sm:$0xff]
  %v165 = vld [vmem:[%s1 + $0x480] sm:$0xff]
  %v166 = vld [vmem:[%s1 + $0x488] sm:$0xff]
  %v167 = vld [vmem:[%s1 + $0x490] sm:$0xff]
  %v168 = vld [vmem:[%s1 + $0x498] sm:$0xff]
  %v169 = vld [vmem:[%s1 + $0x4a0] sm:$0xff]
  %v170 = vld [vmem:[%s1 + $0x4a8] sm:$0xff]
  %v171 = vld [vmem:[%s1 + $0x4b0] sm:$0xff]
  %v172 = vld [vmem:[%s1 + $0x4b8] sm:$0xff]
  %v173 = vld [vmem:[%s1 + $0x4c0] sm:$0xff]
  %v174 = vld [vmem:[%s1 + $0x4c8] sm:$0xff]
  %v175 = vld [vmem:[%s1 + $0x4d0] sm:$0xff]
  %v176 = vld [vmem:[%s1 + $0x4d8] sm:$0xff]
  %v177 = vld [vmem:[%s1 + $0x4e0] sm:$0xff]
  %v178 = vld [vmem:[%s1 + $0x4e8] sm:$0xff]
  %v179 = vld [vmem:[%s1 + $0x4f0] sm:$0xff]
  %v180 = vld [vmem:[%s1 + $0x4f8] sm:$0xff]
  %v181 = vld [vmem:[%s1 + $0x500] sm:$0xff]
  %v182 = vld [vmem:[%s1 + $0x508] sm:$0xff]
  %v183 = vld [vmem:[%s1 + $0x510] sm:$0xff]
  %v184 = vld [vmem:[%s1 + $0x518] sm:$0xff]
  %v185 = vld [vmem:[%s1 + $0x520] sm:$0xff]
  %v186 = vld [vmem:[%s1 + $0x528] sm:$0xff]
  %v187 = vld [vmem:[%s1 + $0x530] sm:$0xff]
  %v188 = vld [vmem:[%s1 + $0x538] sm:$0xff]
  %v189 = vld [vmem:[%s1 + $0x540] sm:$0xff]
  %v190 = vld [vmem:[%s1 + $0x548] sm:$0xff]
  %v191 = vld [vmem:[%s1 + $0x550] sm:$0xff]
  %v192 = vld [vmem:[%s1 + $0x558] sm:$0xff]
  %v193 = vld [vmem:[%s1 + $0x560] sm:$0xff]
  %v194 = vld [vmem:[%s1 + $0x568] sm:$0xff]
  %v195 = vld [vmem:[%s1 + $0x570] sm:$0xff]
  %v196 = vld [vmem:[%s1 + $0x578] sm:$0xff]
  %v197 = vld [vmem:[%s1 + $0x580] sm:$0xff]
  %v198 = vld [vmem:[%s1 + $0x588] sm:$0xff]
  %v199 = vld [vmem:[%s1 + $0x590] sm:$0xff]
  %v200 = vld [vmem:[%s1 + $0x598] sm:$0xff]
  %v201 = vld [vmem:[%s2] sm:$0x3]
  %v203 = vperm.slane %v201, 0
  %v204 = vperm.slane %v201, 1
  %v213 = vunpack.c.l.b16 %v15
  %v214 = vunpack.c.h.b16 %v15
  %v215 = vunpack.c.l.b16 %v16
  %v216 = vunpack.c.h.b16 %v16
  %v217 = vunpack.c.l.b16 %v17
  %v218 = vunpack.c.h.b16 %v17
  %v219 = vunpack.c.l.b16 %v18
  %v220 = vunpack.c.h.b16 %v18
  %v221 = vunpack.c.l.b16 %v19
  %v222 = vunpack.c.h.b16 %v19
  %v223 = vunpack.c.l.b16 %v20
  %v224 = vunpack.c.h.b16 %v20
  %v225 = vpack.c.b16 %v213, %v213
  %v226 = vpack.c.b16 %v214, %v214
  %v227 = vpack.c.b16 %v215, %v215
  %v228 = vpack.c.b16 %v216, %v216
  %v229 = vpack.c.b16 %v217, %v217
  %v230 = vpack.c.b16 %v218, %v218
  %v231 = vpack.c.b16 %v219, %v219
  %v232 = vpack.c.b16 %v220, %v220
  %v233 = vpack.c.b16 %v221, %v221
  %v234 = vpack.c.b16 %v222, %v222
  %v235 = vpack.c.b16 %v223, %v223
  %v236 = vpack.c.b16 %v224, %v224
  %v428 = vunpack.c.l.b16 %v21
  %v429 = vunpack.c.h.b16 %v21
  %v430 = vunpack.c.l.b16 %v22
  %v431 = vunpack.c.h.b16 %v22
  %v432 = vunpack.c.l.b16 %v23
  %v433 = vunpack.c.h.b16 %v23
  %v434 = vunpack.c.l.b16 %v24
  %v435 = vunpack.c.h.b16 %v24
  %v436 = vunpack.c.l.b16 %v25
  %v437 = vunpack.c.h.b16 %v25
  %v438 = vunpack.c.l.b16 %v26
  %v439 = vunpack.c.h.b16 %v26
  %v440 = vunpack.c.l.b16 %v27
  %v441 = vunpack.c.h.b16 %v27
  %v442 = vunpack.c.l.b16 %v28
  %v443 = vunpack.c.h.b16 %v28
  %v444 = vunpack.c.l.b16 %v29
  %v445 = vunpack.c.h.b16 %v29
  %v446 = vunpack.c.l.b16 %v30
  %v447 = vunpack.c.h.b16 %v30
  %v448 = vunpack.c.l.b16 %v31
  %v449 = vunpack.c.h.b16 %v31
  %v450 = vunpack.c.l.b16 %v32
  %v451 = vunpack.c.h.b16 %v32
  %v452 = vunpack.c.l.b16 %v33
  %v453 = vunpack.c.h.b16 %v33
  %v454 = vunpack.c.l.b16 %v34
  %v455 = vunpack.c.h.b16 %v34
  %v456 = vunpack.c.l.b16 %v35
  %v457 = vunpack.c.h.b16 %v35
  %v458 = vunpack.c.l.b16 %v36
  %v459 = vunpack.c.h.b16 %v36
  %v460 = vunpack.c.l.b16 %v37
  %v461 = vunpack.c.h.b16 %v37
  %v462 = vunpack.c.l.b16 %v38
  %v463 = vunpack.c.h.b16 %v38
  %v464 = vunpack.c.l.b16 %v39
  %v465 = vunpack.c.h.b16 %v39
  %v466 = vunpack.c.l.b16 %v40
  %v467 = vunpack.c.h.b16 %v40
  %v468 = vunpack.c.l.b16 %v41
  %v469 = vunpack.c.h.b16 %v41
  %v470 = vunpack.c.l.b16 %v42
  %v471 = vunpack.c.h.b16 %v42
  %v472 = vunpack.c.l.b16 %v43
  %v473 = vunpack.c.h.b16 %v43
  %v474 = vunpack.c.l.b16 %v44
  %v475 = vunpack.c.h.b16 %v44
  %v476 = vunpack.c.l.b16 %v45
  %v477 = vunpack.c.h.b16 %v45
  %v478 = vunpack.c.l.b16 %v46
  %v479 = vunpack.c.h.b16 %v46
  %v480 = vunpack.c.l.b16 %v47
  %v481 = vunpack.c.h.b16 %v47
  %v482 = vunpack.c.l.b16 %v48
  %v483 = vunpack.c.h.b16 %v48
  %v484 = vunpack.c.l.b16 %v49
  %v485 = vunpack.c.h.b16 %v49
  %v486 = vunpack.c.l.b16 %v50
  %v487 = vunpack.c.h.b16 %v50
  %v488 = vunpack.c.l.b16 %v51
  %v489 = vunpack.c.h.b16 %v51
  %v490 = vunpack.c.l.b16 %v52
  %v491 = vunpack.c.h.b16 %v52
  %v492 = vunpack.c.l.b16 %v53
  %v493 = vunpack.c.h.b16 %v53
  %v494 = vunpack.c.l.b16 %v54
  %v495 = vunpack.c.h.b16 %v54
  %v496 = vunpack.c.l.b16 %v55
  %v497 = vunpack.c.h.b16 %v55
  %v498 = vunpack.c.l.b16 %v56
  %v499 = vunpack.c.h.b16 %v56
  %v500 = vunpack.c.l.b16 %v57
  %v501 = vunpack.c.h.b16 %v57
  %v502 = vunpack.c.l.b16 %v58
  %v503 = vunpack.c.h.b16 %v58
  %v504 = vunpack.c.l.b16 %v59
  %v505 = vunpack.c.h.b16 %v59
  %v506 = vunpack.c.l.b16 %v60
  %v507 = vunpack.c.h.b16 %v60
  %v508 = vunpack.c.l.b16 %v61
  %v509 = vunpack.c.h.b16 %v61
  %v510 = vunpack.c.l.b16 %v62
  %v511 = vunpack.c.h.b16 %v62
  %v512 = vunpack.c.l.b16 %v63
  %v513 = vunpack.c.h.b16 %v63
  %v514 = vunpack.c.l.b16 %v64
  %v515 = vunpack.c.h.b16 %v64
  %v516 = vunpack.c.l.b16 %v65
  %v517 = vunpack.c.h.b16 %v65
  %v518 = vunpack.c.l.b16 %v66
  %v519 = vunpack.c.h.b16 %v66
  %v520 = vunpack.c.l.b16 %v67
  %v521 = vunpack.c.h.b16 %v67
  %v522 = vunpack.c.l.b16 %v68
  %v523 = vunpack.c.h.b16 %v68
  %v524 = vunpack.c.l.b16 %v69
  %v525 = vunpack.c.h.b16 %v69
  %v526 = vunpack.c.l.b16 %v70
  %v527 = vunpack.c.h.b16 %v70
  %v528 = vunpack.c.l.b16 %v71
  %v529 = vunpack.c.h.b16 %v71
  %v530 = vunpack.c.l.b16 %v72
  %v531 = vunpack.c.h.b16 %v72
  %v532 = vunpack.c.l.b16 %v73
  %v533 = vunpack.c.h.b16 %v73
  %v534 = vunpack.c.l.b16 %v74
  %v535 = vunpack.c.h.b16 %v74
  %v536 = vunpack.c.l.b16 %v75
  %v537 = vunpack.c.h.b16 %v75
  %v538 = vunpack.c.l.b16 %v76
  %v539 = vunpack.c.h.b16 %v76
  %v540 = vunpack.c.l.b16 %v77
  %v541 = vunpack.c.h.b16 %v77
  %v542 = vunpack.c.l.b16 %v78
  %v543 = vunpack.c.h.b16 %v78
  %v544 = vunpack.c.l.b16 %v79
  %v545 = vunpack.c.h.b16 %v79
  %v546 = vunpack.c.l.b16 %v80
  %v547 = vunpack.c.h.b16 %v80
  %v548 = vunpack.c.l.b16 %v81
  %v549 = vunpack.c.h.b16 %v81
  %v550 = vunpack.c.l.b16 %v82
  %v551 = vunpack.c.h.b16 %v82
  %v552 = vunpack.c.l.b16 %v83
  %v553 = vunpack.c.h.b16 %v83
  %v554 = vunpack.c.l.b16 %v84
  %v555 = vunpack.c.h.b16 %v84
  %v556 = vunpack.c.l.b16 %v85
  %v557 = vunpack.c.h.b16 %v85
  %v558 = vunpack.c.l.b16 %v86
  %v559 = vunpack.c.h.b16 %v86
  %v560 = vunpack.c.l.b16 %v87
  %v561 = vunpack.c.h.b16 %v87
  %v562 = vunpack.c.l.b16 %v88
  %v563 = vunpack.c.h.b16 %v88
  %v564 = vunpack.c.l.b16 %v89
  %v565 = vunpack.c.h.b16 %v89
  %v566 = vunpack.c.l.b16 %v90
  %v567 = vunpack.c.h.b16 %v90
  %v568 = vunpack.c.l.b16 %v91
  %v569 = vunpack.c.h.b16 %v91
  %v570 = vunpack.c.l.b16 %v92
  %v571 = vunpack.c.h.b16 %v92
  %v572 = vunpack.c.l.b16 %v93
  %v573 = vunpack.c.h.b16 %v93
  %v574 = vunpack.c.l.b16 %v94
  %v575 = vunpack.c.h.b16 %v94
  %v576 = vunpack.c.l.b16 %v95
  %v577 = vunpack.c.h.b16 %v95
  %v578 = vunpack.c.l.b16 %v96
  %v579 = vunpack.c.h.b16 %v96
  %v580 = vunpack.c.l.b16 %v97
  %v581 = vunpack.c.h.b16 %v97
  %v582 = vunpack.c.l.b16 %v98
  %v583 = vunpack.c.h.b16 %v98
  %v584 = vunpack.c.l.b16 %v99
  %v585 = vunpack.c.h.b16 %v99
  %v586 = vunpack.c.l.b16 %v100
  %v587 = vunpack.c.h.b16 %v100
  %v588 = vunpack.c.l.b16 %v101
  %v589 = vunpack.c.h.b16 %v101
  %v590 = vunpack.c.l.b16 %v102
  %v591 = vunpack.c.h.b16 %v102
  %v592 = vunpack.c.l.b16 %v103
  %v593 = vunpack.c.h.b16 %v103
  %v594 = vunpack.c.l.b16 %v104
  %v595 = vunpack.c.h.b16 %v104
  %v596 = vunpack.c.l.b16 %v105
  %v597 = vunpack.c.h.b16 %v105
  %v598 = vunpack.c.l.b16 %v106
  %v599 = vunpack.c.h.b16 %v106
  %v600 = vunpack.c.l.b16 %v107
  %v601 = vunpack.c.h.b16 %v107
  %v602 = vunpack.c.l.b16 %v108
  %v603 = vunpack.c.h.b16 %v108
  %v604 = vunpack.c.l.b16 %v109
  %v605 = vunpack.c.h.b16 %v109
  %v606 = vunpack.c.l.b16 %v110
  %v607 = vunpack.c.h.b16 %v110
  %v608 = vunpack.c.l.b16 %v111
  %v609 = vunpack.c.h.b16 %v111
  %v610 = vunpack.c.l.b16 %v112
  %v611 = vunpack.c.h.b16 %v112
  %v612 = vunpack.c.l.b16 %v113
  %v613 = vunpack.c.h.b16 %v113
  %v614 = vunpack.c.l.b16 %v114
  %v615 = vunpack.c.h.b16 %v114
  %v616 = vunpack.c.l.b16 %v115
  %v617 = vunpack.c.h.b16 %v115
  %v618 = vunpack.c.l.b16 %v116
  %v619 = vunpack.c.h.b16 %v116
  %v620 = vunpack.c.l.b16 %v117
  %v621 = vunpack.c.h.b16 %v117
  %v622 = vunpack.c.l.b16 %v118
  %v623 = vunpack.c.h.b16 %v118
  %v624 = vunpack.c.l.b16 %v119
  %v625 = vunpack.c.h.b16 %v119
  %v626 = vunpack.c.l.b16 %v120
  %v627 = vunpack.c.h.b16 %v120
  %v628 = vunpack.c.l.b16 %v121
  %v629 = vunpack.c.h.b16 %v121
  %v630 = vunpack.c.l.b16 %v122
  %v631 = vunpack.c.h.b16 %v122
  %v632 = vunpack.c.l.b16 %v123
  %v633 = vunpack.c.h.b16 %v123
  %v634 = vunpack.c.l.b16 %v124
  %v635 = vunpack.c.h.b16 %v124
  %v636 = vunpack.c.l.b16 %v125
  %v637 = vunpack.c.h.b16 %v125
  %v638 = vunpack.c.l.b16 %v126
  %v639 = vunpack.c.h.b16 %v126
  %v640 = vunpack.c.l.b16 %v127
  %v641 = vunpack.c.h.b16 %v127
  %v642 = vunpack.c.l.b16 %v128
  %v643 = vunpack.c.h.b16 %v128
  %v644 = vunpack.c.l.b16 %v129
  %v645 = vunpack.c.h.b16 %v129
  %v646 = vunpack.c.l.b16 %v130
  %v647 = vunpack.c.h.b16 %v130
  %v648 = vunpack.c.l.b16 %v131
  %v649 = vunpack.c.h.b16 %v131
  %v650 = vunpack.c.l.b16 %v132
  %v651 = vunpack.c.h.b16 %v132
  %v652 = vunpack.c.l.b16 %v133
  %v653 = vunpack.c.h.b16 %v133
  %v654 = vunpack.c.l.b16 %v134
  %v655 = vunpack.c.h.b16 %v134
  %v656 = vunpack.c.l.b16 %v135
  %v657 = vunpack.c.h.b16 %v135
  %v658 = vunpack.c.l.b16 %v136
  %v659 = vunpack.c.h.b16 %v136
  %v660 = vunpack.c.l.b16 %v137
  %v661 = vunpack.c.h.b16 %v137
  %v662 = vunpack.c.l.b16 %v138
  %v663 = vunpack.c.h.b16 %v138
  %v664 = vunpack.c.l.b16 %v139
  %v665 = vunpack.c.h.b16 %v139
  %v666 = vunpack.c.l.b16 %v140
  %v667 = vunpack.c.h.b16 %v140
  %v668 = vunpack.c.l.b16 %v141
  %v669 = vunpack.c.h.b16 %v141
  %v670 = vunpack.c.l.b16 %v142
  %v671 = vunpack.c.h.b16 %v142
  %v672 = vunpack.c.l.b16 %v143
  %v673 = vunpack.c.h.b16 %v143
  %v674 = vunpack.c.l.b16 %v144
  %v675 = vunpack.c.h.b16 %v144
  %v676 = vunpack.c.l.b16 %v145
  %v677 = vunpack.c.h.b16 %v145
  %v678 = vunpack.c.l.b16 %v146
  %v679 = vunpack.c.h.b16 %v146
  %v680 = vunpack.c.l.b16 %v147
  %v681 = vunpack.c.h.b16 %v147
  %v682 = vunpack.c.l.b16 %v148
  %v683 = vunpack.c.h.b16 %v148
  %v684 = vunpack.c.l.b16 %v149
  %v685 = vunpack.c.h.b16 %v149
  %v686 = vunpack.c.l.b16 %v150
  %v687 = vunpack.c.h.b16 %v150
  %v688 = vunpack.c.l.b16 %v151
  %v689 = vunpack.c.h.b16 %v151
  %v690 = vunpack.c.l.b16 %v152
  %v691 = vunpack.c.h.b16 %v152
  %v692 = vunpack.c.l.b16 %v153
  %v693 = vunpack.c.h.b16 %v153
  %v694 = vunpack.c.l.b16 %v154
  %v695 = vunpack.c.h.b16 %v154
  %v696 = vunpack.c.l.b16 %v155
  %v697 = vunpack.c.h.b16 %v155
  %v698 = vunpack.c.l.b16 %v156
  %v699 = vunpack.c.h.b16 %v156
  %v700 = vunpack.c.l.b16 %v157
  %v701 = vunpack.c.h.b16 %v157
  %v702 = vunpack.c.l.b16 %v158
  %v703 = vunpack.c.h.b16 %v158
  %v704 = vunpack.c.l.b16 %v159
  %v705 = vunpack.c.h.b16 %v159
  %v706 = vunpack.c.l.b16 %v160
  %v707 = vunpack.c.h.b16 %v160
  %v708 = vunpack.c.l.b16 %v161
  %v709 = vunpack.c.h.b16 %v161
  %v710 = vunpack.c.l.b16 %v162
  %v711 = vunpack.c.h.b16 %v162
  %v712 = vunpack.c.l.b16 %v163
  %v713 = vunpack.c.h.b16 %v163
  %v714 = vunpack.c.l.b16 %v164
  %v715 = vunpack.c.h.b16 %v164
  %v716 = vunpack.c.l.b16 %v165
  %v717 = vunpack.c.h.b16 %v165
  %v718 = vunpack.c.l.b16 %v166
  %v719 = vunpack.c.h.b16 %v166
  %v720 = vunpack.c.l.b16 %v167
  %v721 = vunpack.c.h.b16 %v167
  %v722 = vunpack.c.l.b16 %v168
  %v723 = vunpack.c.h.b16 %v168
  %v724 = vunpack.c.l.b16 %v169
  %v725 = vunpack.c.h.b16 %v169
  %v726 = vunpack.c.l.b16 %v170
  %v727 = vunpack.c.h.b16 %v170
  %v728 = vunpack.c.l.b16 %v171
  %v729 = vunpack.c.h.b16 %v171
  %v730 = vunpack.c.l.b16 %v172
  %v731 = vunpack.c.h.b16 %v172
  %v732 = vunpack.c.l.b16 %v173
  %v733 = vunpack.c.h.b16 %v173
  %v734 = vunpack.c.l.b16 %v174
  %v735 = vunpack.c.h.b16 %v174
  %v736 = vunpack.c.l.b16 %v175
  %v737 = vunpack.c.h.b16 %v175
  %v738 = vunpack.c.l.b16 %v176
  %v739 = vunpack.c.h.b16 %v176
  %v740 = vunpack.c.l.b16 %v177
  %v741 = vunpack.c.h.b16 %v177
  %v742 = vunpack.c.l.b16 %v178
  %v743 = vunpack.c.h.b16 %v178
  %v744 = vunpack.c.l.b16 %v179
  %v745 = vunpack.c.h.b16 %v179
  %v746 = vunpack.c.l.b16 %v180
  %v747 = vunpack.c.h.b16 %v180
  %v748 = vunpack.c.l.b16 %v181
  %v749 = vunpack.c.h.b16 %v181
  %v750 = vunpack.c.l.b16 %v182
  %v751 = vunpack.c.h.b16 %v182
  %v752 = vunpack.c.l.b16 %v183
  %v753 = vunpack.c.h.b16 %v183
  %v754 = vunpack.c.l.b16 %v184
  %v755 = vunpack.c.h.b16 %v184
  %v756 = vunpack.c.l.b16 %v185
  %v757 = vunpack.c.h.b16 %v185
  %v758 = vunpack.c.l.b16 %v186
  %v759 = vunpack.c.h.b16 %v186
  %v760 = vunpack.c.l.b16 %v187
  %v761 = vunpack.c.h.b16 %v187
  %v762 = vunpack.c.l.b16 %v188
  %v763 = vunpack.c.h.b16 %v188
  %v764 = vunpack.c.l.b16 %v189
  %v765 = vunpack.c.h.b16 %v189
  %v766 = vunpack.c.l.b16 %v190
  %v767 = vunpack.c.h.b16 %v190
  %v768 = vunpack.c.l.b16 %v191
  %v769 = vunpack.c.h.b16 %v191
  %v770 = vunpack.c.l.b16 %v192
  %v771 = vunpack.c.h.b16 %v192
  %v772 = vunpack.c.l.b16 %v193
  %v773 = vunpack.c.h.b16 %v193
  %v774 = vunpack.c.l.b16 %v194
  %v775 = vunpack.c.h.b16 %v194
  %v776 = vunpack.c.l.b16 %v195
  %v777 = vunpack.c.h.b16 %v195
  %v778 = vunpack.c.l.b16 %v196
  %v779 = vunpack.c.h.b16 %v196
  %v780 = vunpack.c.l.b16 %v197
  %v781 = vunpack.c.h.b16 %v197
  %v782 = vunpack.c.l.b16 %v198
  %v783 = vunpack.c.h.b16 %v198
  %v784 = vunpack.c.l.b16 %v199
  %v785 = vunpack.c.h.b16 %v199
  %v786 = vunpack.c.l.b16 %v200
  %v787 = vunpack.c.h.b16 %v200
  %v788 = vpack.c.b16 %v430, %v428
  %v789 = vpack.c.b16 %v431, %v429
  %v790 = vpack.c.b16 %v434, %v432
  %v791 = vpack.c.b16 %v435, %v433
  %v792 = vpack.c.b16 %v438, %v436
  %v793 = vpack.c.b16 %v439, %v437
  %v794 = vpack.c.b16 %v442, %v440
  %v795 = vpack.c.b16 %v443, %v441
  %v796 = vpack.c.b16 %v446, %v444
  %v797 = vpack.c.b16 %v447, %v445
  %v798 = vpack.c.b16 %v450, %v448
  %v799 = vpack.c.b16 %v451, %v449
  %v800 = vpack.c.b16 %v454, %v452
  %v801 = vpack.c.b16 %v455, %v453
  %v802 = vpack.c.b16 %v458, %v456
  %v803 = vpack.c.b16 %v459, %v457
  %v804 = vpack.c.b16 %v462, %v460
  %v805 = vpack.c.b16 %v463, %v461
  %v806 = vpack.c.b16 %v466, %v464
  %v807 = vpack.c.b16 %v467, %v465
  %v808 = vpack.c.b16 %v470, %v468
  %v809 = vpack.c.b16 %v471, %v469
  %v810 = vpack.c.b16 %v474, %v472
  %v811 = vpack.c.b16 %v475, %v473
  %v812 = vpack.c.b16 %v478, %v476
  %v813 = vpack.c.b16 %v479, %v477
  %v814 = vpack.c.b16 %v482, %v480
  %v815 = vpack.c.b16 %v483, %v481
  %v816 = vpack.c.b16 %v486, %v484
  %v817 = vpack.c.b16 %v487, %v485
  %v818 = vpack.c.b16 %v490, %v488
  %v819 = vpack.c.b16 %v491, %v489
  %v820 = vpack.c.b16 %v494, %v492
  %v821 = vpack.c.b16 %v495, %v493
  %v822 = vpack.c.b16 %v498, %v496
  %v823 = vpack.c.b16 %v499, %v497
  %v824 = vpack.c.b16 %v502, %v500
  %v825 = vpack.c.b16 %v503, %v501
  %v826 = vpack.c.b16 %v506, %v504
  %v827 = vpack.c.b16 %v507, %v505
  %v828 = vpack.c.b16 %v510, %v508
  %v829 = vpack.c.b16 %v511, %v509
  %v830 = vpack.c.b16 %v514, %v512
  %v831 = vpack.c.b16 %v515, %v513
  %v832 = vpack.c.b16 %v518, %v516
  %v833 = vpack.c.b16 %v519, %v517
  %v834 = vpack.c.b16 %v522, %v520
  %v835 = vpack.c.b16 %v523, %v521
  %v836 = vpack.c.b16 %v526, %v524
  %v837 = vpack.c.b16 %v527, %v525
  %v838 = vpack.c.b16 %v530, %v528
  %v839 = vpack.c.b16 %v531, %v529
  %v840 = vpack.c.b16 %v534, %v532
  %v841 = vpack.c.b16 %v535, %v533
  %v842 = vpack.c.b16 %v538, %v536
  %v843 = vpack.c.b16 %v539, %v537
  %v844 = vpack.c.b16 %v542, %v540
  %v845 = vpack.c.b16 %v543, %v541
  %v846 = vpack.c.b16 %v546, %v544
  %v847 = vpack.c.b16 %v547, %v545
  %v848 = vpack.c.b16 %v550, %v548
  %v849 = vpack.c.b16 %v551, %v549
  %v850 = vpack.c.b16 %v554, %v552
  %v851 = vpack.c.b16 %v555, %v553
  %v852 = vpack.c.b16 %v558, %v556
  %v853 = vpack.c.b16 %v559, %v557
  %v854 = vpack.c.b16 %v562, %v560
  %v855 = vpack.c.b16 %v563, %v561
  %v856 = vpack.c.b16 %v566, %v564
  %v857 = vpack.c.b16 %v567, %v565
  %v858 = vpack.c.b16 %v570, %v568
  %v859 = vpack.c.b16 %v571, %v569
  %v860 = vpack.c.b16 %v574, %v572
  %v861 = vpack.c.b16 %v575, %v573
  %v862 = vpack.c.b16 %v578, %v576
  %v863 = vpack.c.b16 %v579, %v577
  %v864 = vpack.c.b16 %v582, %v580
  %v865 = vpack.c.b16 %v583, %v581
  %v866 = vpack.c.b16 %v586, %v584
  %v867 = vpack.c.b16 %v587, %v585
  %v868 = vpack.c.b16 %v590, %v588
  %v869 = vpack.c.b16 %v591, %v589
  %v870 = vpack.c.b16 %v594, %v592
  %v871 = vpack.c.b16 %v595, %v593
  %v872 = vpack.c.b16 %v598, %v596
  %v873 = vpack.c.b16 %v599, %v597
  %v874 = vpack.c.b16 %v602, %v600
  %v875 = vpack.c.b16 %v603, %v601
  %v876 = vpack.c.b16 %v606, %v604
  %v877 = vpack.c.b16 %v607, %v605
  %v878 = vpack.c.b16 %v610, %v608
  %v879 = vpack.c.b16 %v611, %v609
  %v880 = vpack.c.b16 %v614, %v612
  %v881 = vpack.c.b16 %v615, %v613
  %v882 = vpack.c.b16 %v618, %v616
  %v883 = vpack.c.b16 %v619, %v617
  %v884 = vpack.c.b16 %v622, %v620
  %v885 = vpack.c.b16 %v623, %v621
  %v886 = vpack.c.b16 %v626, %v624
  %v887 = vpack.c.b16 %v627, %v625
  %v888 = vpack.c.b16 %v630, %v628
  %v889 = vpack.c.b16 %v631, %v629
  %v890 = vpack.c.b16 %v634, %v632
  %v891 = vpack.c.b16 %v635, %v633
  %v892 = vpack.c.b16 %v638, %v636
  %v893 = vpack.c.b16 %v639, %v637
  %v894 = vpack.c.b16 %v642, %v640
  %v895 = vpack.c.b16 %v643, %v641
  %v896 = vpack.c.b16 %v646, %v644
  %v897 = vpack.c.b16 %v647, %v645
  %v898 = vpack.c.b16 %v650, %v648
  %v899 = vpack.c.b16 %v651, %v649
  %v900 = vpack.c.b16 %v654, %v652
  %v901 = vpack.c.b16 %v655, %v653
  %v902 = vpack.c.b16 %v658, %v656
  %v903 = vpack.c.b16 %v659, %v657
  %v904 = vpack.c.b16 %v662, %v660
  %v905 = vpack.c.b16 %v663, %v661
  %v906 = vpack.c.b16 %v666, %v664
  %v907 = vpack.c.b16 %v667, %v665
  %v908 = vpack.c.b16 %v670, %v668
  %v909 = vpack.c.b16 %v671, %v669
  %v910 = vpack.c.b16 %v674, %v672
  %v911 = vpack.c.b16 %v675, %v673
  %v912 = vpack.c.b16 %v678, %v676
  %v913 = vpack.c.b16 %v679, %v677
  %v914 = vpack.c.b16 %v682, %v680
  %v915 = vpack.c.b16 %v683, %v681
  %v916 = vpack.c.b16 %v686, %v684
  %v917 = vpack.c.b16 %v687, %v685
  %v918 = vpack.c.b16 %v690, %v688
  %v919 = vpack.c.b16 %v691, %v689
  %v920 = vpack.c.b16 %v694, %v692
  %v921 = vpack.c.b16 %v695, %v693
  %v922 = vpack.c.b16 %v698, %v696
  %v923 = vpack.c.b16 %v699, %v697
  %v924 = vpack.c.b16 %v702, %v700
  %v925 = vpack.c.b16 %v703, %v701
  %v926 = vpack.c.b16 %v706, %v704
  %v927 = vpack.c.b16 %v707, %v705
  %v928 = vpack.c.b16 %v710, %v708
  %v929 = vpack.c.b16 %v711, %v709
  %v930 = vpack.c.b16 %v714, %v712
  %v931 = vpack.c.b16 %v715, %v713
  %v932 = vpack.c.b16 %v718, %v716
  %v933 = vpack.c.b16 %v719, %v717
  %v934 = vpack.c.b16 %v722, %v720
  %v935 = vpack.c.b16 %v723, %v721
  %v936 = vpack.c.b16 %v726, %v724
  %v937 = vpack.c.b16 %v727, %v725
  %v938 = vpack.c.b16 %v730, %v728
  %v939 = vpack.c.b16 %v731, %v729
  %v940 = vpack.c.b16 %v734, %v732
  %v941 = vpack.c.b16 %v735, %v733
  %v942 = vpack.c.b16 %v738, %v736
  %v943 = vpack.c.b16 %v739, %v737
  %v944 = vpack.c.b16 %v742, %v740
  %v945 = vpack.c.b16 %v743, %v741
  %v946 = vpack.c.b16 %v746, %v744
  %v947 = vpack.c.b16 %v747, %v745
  %v948 = vpack.c.b16 %v750, %v748
  %v949 = vpack.c.b16 %v751, %v749
  %v950 = vpack.c.b16 %v754, %v752
  %v951 = vpack.c.b16 %v755, %v753
  %v952 = vpack.c.b16 %v758, %v756
  %v953 = vpack.c.b16 %v759, %v757
  %v954 = vpack.c.b16 %v762, %v760
  %v955 = vpack.c.b16 %v763, %v761
  %v956 = vpack.c.b16 %v766, %v764
  %v957 = vpack.c.b16 %v767, %v765
  %v958 = vpack.c.b16 %v770, %v768
  %v959 = vpack.c.b16 %v771, %v769
  %v960 = vpack.c.b16 %v774, %v772
  %v961 = vpack.c.b16 %v775, %v773
  %v962 = vpack.c.b16 %v778, %v776
  %v963 = vpack.c.b16 %v779, %v777
  %v964 = vpack.c.b16 %v782, %v780
  %v965 = vpack.c.b16 %v783, %v781
  %v966 = vpack.c.b16 %v786, %v784
  %v967 = vpack.c.b16 %v787, %v785
  %vm1148 = vcmask 261120
  %v1150 = vsel %vm1148, %v236, 0
  %1152 = vmatpush.bf16.msra.mxu0 %v802
  %1153 = vmatpush.bf16.msra.mxu0 %v800
  %1154 = vmatpush.bf16.msra.mxu0 %v798
  %1155 = vmatpush.bf16.msra.mxu0 %v796
  %1156 = vmatpush.bf16.msra.mxu0 %v794
  %1157 = vmatpush.bf16.msra.mxu0 %v792
  %1158 = vmatpush.bf16.msra.mxu0 %v790
  %1159 = vmatpush.bf16.msra.mxu0 %v788
  %1160 = vmatmul.bf16.gmra.mxu0 %v225
  %v1161 = vpop.f32.mrf.mxu0
  %v1162 = vadd.f32 %v203, %v1161
  %v1163 = vpop.f32.mrf.mxu0
  %1164 = vdwg.mxu0
  %1165 = vmatpush.bf16.msra.mxu0 %v818
  %1166 = vmatpush.bf16.msra.mxu0 %v816
  %1167 = vmatpush.bf16.msra.mxu0 %v814
  %1168 = vmatpush.bf16.msra.mxu0 %v812
  %1169 = vmatpush.bf16.msra.mxu0 %v810
  %1170 = vmatpush.bf16.msra.mxu0 %v808
  %1171 = vmatpush.bf16.msra.mxu0 %v806
  %1172 = vmatpush.bf16.msra.mxu0 %v804
  %1173 = vmatmul.bf16.gmra.mxu0 %v226
  %v1174 = vpop.f32.mrf.mxu0
  %v1175 = vadd.f32 %v1162, %v1174
  %v1176 = vpop.f32.mrf.mxu0
  %1177 = vdwg.mxu0
  %1178 = vmatpush.bf16.msra.mxu0 %v834
  %1179 = vmatpush.bf16.msra.mxu0 %v832
  %1180 = vmatpush.bf16.msra.mxu0 %v830
  %1181 = vmatpush.bf16.msra.mxu0 %v828
  %1182 = vmatpush.bf16.msra.mxu0 %v826
  %1183 = vmatpush.bf16.msra.mxu0 %v824
  %1184 = vmatpush.bf16.msra.mxu0 %v822
  %1185 = vmatpush.bf16.msra.mxu0 %v820
  %1186 = vmatmul.bf16.gmra.mxu0 %v227
  %v1187 = vpop.f32.mrf.mxu0
  %v1188 = vadd.f32 %v1175, %v1187
  %v1189 = vpop.f32.mrf.mxu0
  %1190 = vdwg.mxu0
  %1191 = vmatpush.bf16.msra.mxu0 %v850
  %1192 = vmatpush.bf16.msra.mxu0 %v848
  %1193 = vmatpush.bf16.msra.mxu0 %v846
  %1194 = vmatpush.bf16.msra.mxu0 %v844
  %1195 = vmatpush.bf16.msra.mxu0 %v842
  %1196 = vmatpush.bf16.msra.mxu0 %v840
  %1197 = vmatpush.bf16.msra.mxu0 %v838
  %1198 = vmatpush.bf16.msra.mxu0 %v836
  %1199 = vmatmul.bf16.gmra.mxu0 %v228
  %v1200 = vpop.f32.mrf.mxu0
  %v1201 = vadd.f32 %v1188, %v1200
  %v1202 = vpop.f32.mrf.mxu0
  %1203 = vdwg.mxu0
  %1204 = vmatpush.bf16.msra.mxu0 %v866
  %1205 = vmatpush.bf16.msra.mxu0 %v864
  %1206 = vmatpush.bf16.msra.mxu0 %v862
  %1207 = vmatpush.bf16.msra.mxu0 %v860
  %1208 = vmatpush.bf16.msra.mxu0 %v858
  %1209 = vmatpush.bf16.msra.mxu0 %v856
  %1210 = vmatpush.bf16.msra.mxu0 %v854
  %1211 = vmatpush.bf16.msra.mxu0 %v852
  %1212 = vmatmul.bf16.gmra.mxu0 %v229
  %v1213 = vpop.f32.mrf.mxu0
  %v1214 = vadd.f32 %v1201, %v1213
  %v1215 = vpop.f32.mrf.mxu0
  %1216 = vdwg.mxu0
  %1217 = vmatpush.bf16.msra.mxu0 %v882
  %1218 = vmatpush.bf16.msra.mxu0 %v880
  %1219 = vmatpush.bf16.msra.mxu0 %v878
  %1220 = vmatpush.bf16.msra.mxu0 %v876
  %1221 = vmatpush.bf16.msra.mxu0 %v874
  %1222 = vmatpush.bf16.msra.mxu0 %v872
  %1223 = vmatpush.bf16.msra.mxu0 %v870
  %1224 = vmatpush.bf16.msra.mxu0 %v868
  %1225 = vmatmul.bf16.gmra.mxu0 %v230
  %v1226 = vpop.f32.mrf.mxu0
  %v1227 = vadd.f32 %v1214, %v1226
  %v1228 = vpop.f32.mrf.mxu0
  %1229 = vdwg.mxu0
  %1230 = vmatpush.bf16.msra.mxu0 %v898
  %1231 = vmatpush.bf16.msra.mxu0 %v896
  %1232 = vmatpush.bf16.msra.mxu0 %v894
  %1233 = vmatpush.bf16.msra.mxu0 %v892
  %1234 = vmatpush.bf16.msra.mxu0 %v890
  %1235 = vmatpush.bf16.msra.mxu0 %v888
  %1236 = vmatpush.bf16.msra.mxu0 %v886
  %1237 = vmatpush.bf16.msra.mxu0 %v884
  %1238 = vmatmul.bf16.gmra.mxu0 %v231
  %v1239 = vpop.f32.mrf.mxu0
  %v1240 = vadd.f32 %v1227, %v1239
  %v1241 = vpop.f32.mrf.mxu0
  %1242 = vdwg.mxu0
  %1243 = vmatpush.bf16.msra.mxu0 %v914
  %1244 = vmatpush.bf16.msra.mxu0 %v912
  %1245 = vmatpush.bf16.msra.mxu0 %v910
  %1246 = vmatpush.bf16.msra.mxu0 %v908
  %1247 = vmatpush.bf16.msra.mxu0 %v906
  %1248 = vmatpush.bf16.msra.mxu0 %v904
  %1249 = vmatpush.bf16.msra.mxu0 %v902
  %1250 = vmatpush.bf16.msra.mxu0 %v900
  %1251 = vmatmul.bf16.gmra.mxu0 %v232
  %v1252 = vpop.f32.mrf.mxu0
  %v1253 = vadd.f32 %v1240, %v1252
  %v1254 = vpop.f32.mrf.mxu0
  %1255 = vdwg.mxu0
  %1256 = vmatpush.bf16.msra.mxu0 %v930
  %1257 = vmatpush.bf16.msra.mxu0 %v928
  %1258 = vmatpush.bf16.msra.mxu0 %v926
  %1259 = vmatpush.bf16.msra.mxu0 %v924
  %1260 = vmatpush.bf16.msra.mxu0 %v922
  %1261 = vmatpush.bf16.msra.mxu0 %v920
  %1262 = vmatpush.bf16.msra.mxu0 %v918
  %1263 = vmatpush.bf16.msra.mxu0 %v916
  %1264 = vmatmul.bf16.gmra.mxu0 %v233
  %v1265 = vpop.f32.mrf.mxu0
  %v1266 = vadd.f32 %v1253, %v1265
  %v1267 = vpop.f32.mrf.mxu0
  %1268 = vdwg.mxu0
  %1269 = vmatpush.bf16.msra.mxu0 %v946
  %1270 = vmatpush.bf16.msra.mxu0 %v944
  %1271 = vmatpush.bf16.msra.mxu0 %v942
  %1272 = vmatpush.bf16.msra.mxu0 %v940
  %1273 = vmatpush.bf16.msra.mxu0 %v938
  %1274 = vmatpush.bf16.msra.mxu0 %v936
  %1275 = vmatpush.bf16.msra.mxu0 %v934
  %1276 = vmatpush.bf16.msra.mxu0 %v932
  %1277 = vmatmul.bf16.gmra.mxu0 %v234
  %v1278 = vpop.f32.mrf.mxu0
  %v1279 = vadd.f32 %v1266, %v1278
  %v1280 = vpop.f32.mrf.mxu0
  %1281 = vdwg.mxu0
  %1282 = vmatpush.bf16.msra.mxu0 %v962
  %1283 = vmatpush.bf16.msra.mxu0 %v960
  %1284 = vmatpush.bf16.msra.mxu0 %v958
  %1285 = vmatpush.bf16.msra.mxu0 %v956
  %1286 = vmatpush.bf16.msra.mxu0 %v954
  %1287 = vmatpush.bf16.msra.mxu0 %v952
  %1288 = vmatpush.bf16.msra.mxu0 %v950
  %1289 = vmatpush.bf16.msra.mxu0 %v948
  %1290 = vmatmul.bf16.gmra.mxu0 %v235
  %v1291 = vpop.f32.mrf.mxu0
  %v1292 = vadd.f32 %v1279, %v1291
  %v1293 = vpop.f32.mrf.mxu0
  %1294 = vdwg.mxu0
  %1295 = vmatpush.bf16.msra.mxu0 0
  %1296 = vmatpush.bf16.msra.mxu0 0
  %1297 = vmatpush.bf16.msra.mxu0 0
  %1298 = vmatpush.bf16.msra.mxu0 0
  %1299 = vmatpush.bf16.msra.mxu0 0
  %1300 = vmatpush.bf16.msra.mxu0 0
  %1301 = vmatpush.bf16.msra.mxu0 %v966
  %1302 = vmatpush.bf16.msra.mxu0 %v964
  %1303 = vmatmul.bf16.gmra.mxu0 %v1150
  %v1304 = vpop.f32.mrf.mxu0
  %v1305 = vadd.f32 %v1292, %v1304
  %v1306 = vpop.f32.mrf.mxu0
  %1307 = vdwg.mxu0
  %1308 = vmatpush.bf16.msra.mxu0 %v803
  %1309 = vmatpush.bf16.msra.mxu0 %v801
  %1310 = vmatpush.bf16.msra.mxu0 %v799
  %1311 = vmatpush.bf16.msra.mxu0 %v797
  %1312 = vmatpush.bf16.msra.mxu0 %v795
  %1313 = vmatpush.bf16.msra.mxu0 %v793
  %1314 = vmatpush.bf16.msra.mxu0 %v791
  %1315 = vmatpush.bf16.msra.mxu0 %v789
  %1316 = vmatmul.bf16.gmra.mxu0 %v225
  %v1317 = vpop.f32.mrf.mxu0
  %v1318 = vadd.f32 %v204, %v1317
  %v1319 = vpop.f32.mrf.mxu0
  %1320 = vdwg.mxu0
  %1321 = vmatpush.bf16.msra.mxu0 %v819
  %1322 = vmatpush.bf16.msra.mxu0 %v817
  %1323 = vmatpush.bf16.msra.mxu0 %v815
  %1324 = vmatpush.bf16.msra.mxu0 %v813
  %1325 = vmatpush.bf16.msra.mxu0 %v811
  %1326 = vmatpush.bf16.msra.mxu0 %v809
  %1327 = vmatpush.bf16.msra.mxu0 %v807
  %1328 = vmatpush.bf16.msra.mxu0 %v805
  %1329 = vmatmul.bf16.gmra.mxu0 %v226
  %v1330 = vpop.f32.mrf.mxu0
  %v1331 = vadd.f32 %v1318, %v1330
  %v1332 = vpop.f32.mrf.mxu0
  %1333 = vdwg.mxu0
  %1334 = vmatpush.bf16.msra.mxu0 %v835
  %1335 = vmatpush.bf16.msra.mxu0 %v833
  %1336 = vmatpush.bf16.msra.mxu0 %v831
  %1337 = vmatpush.bf16.msra.mxu0 %v829
  %1338 = vmatpush.bf16.msra.mxu0 %v827
  %1339 = vmatpush.bf16.msra.mxu0 %v825
  %1340 = vmatpush.bf16.msra.mxu0 %v823
  %1341 = vmatpush.bf16.msra.mxu0 %v821
  %1342 = vmatmul.bf16.gmra.mxu0 %v227
  %v1343 = vpop.f32.mrf.mxu0
  %v1344 = vadd.f32 %v1331, %v1343
  %v1345 = vpop.f32.mrf.mxu0
  %1346 = vdwg.mxu0
  %1347 = vmatpush.bf16.msra.mxu0 %v851
  %1348 = vmatpush.bf16.msra.mxu0 %v849
  %1349 = vmatpush.bf16.msra.mxu0 %v847
  %1350 = vmatpush.bf16.msra.mxu0 %v845
  %1351 = vmatpush.bf16.msra.mxu0 %v843
  %1352 = vmatpush.bf16.msra.mxu0 %v841
  %1353 = vmatpush.bf16.msra.mxu0 %v839
  %1354 = vmatpush.bf16.msra.mxu0 %v837
  %1355 = vmatmul.bf16.gmra.mxu0 %v228
  %v1356 = vpop.f32.mrf.mxu0
  %v1357 = vadd.f32 %v1344, %v1356
  %v1358 = vpop.f32.mrf.mxu0
  %1359 = vdwg.mxu0
  %1360 = vmatpush.bf16.msra.mxu0 %v867
  %1361 = vmatpush.bf16.msra.mxu0 %v865
  %1362 = vmatpush.bf16.msra.mxu0 %v863
  %1363 = vmatpush.bf16.msra.mxu0 %v861
  %1364 = vmatpush.bf16.msra.mxu0 %v859
  %1365 = vmatpush.bf16.msra.mxu0 %v857
  %1366 = vmatpush.bf16.msra.mxu0 %v855
  %1367 = vmatpush.bf16.msra.mxu0 %v853
  %1368 = vmatmul.bf16.gmra.mxu0 %v229
  %v1369 = vpop.f32.mrf.mxu0
  %v1370 = vadd.f32 %v1357, %v1369
  %v1371 = vpop.f32.mrf.mxu0
  %1372 = vdwg.mxu0
  %1373 = vmatpush.bf16.msra.mxu0 %v883
  %1374 = vmatpush.bf16.msra.mxu0 %v881
  %1375 = vmatpush.bf16.msra.mxu0 %v879
  %1376 = vmatpush.bf16.msra.mxu0 %v877
  %1377 = vmatpush.bf16.msra.mxu0 %v875
  %1378 = vmatpush.bf16.msra.mxu0 %v873
  %1379 = vmatpush.bf16.msra.mxu0 %v871
  %1380 = vmatpush.bf16.msra.mxu0 %v869
  %1381 = vmatmul.bf16.gmra.mxu0 %v230
  %v1382 = vpop.f32.mrf.mxu0
  %v1383 = vadd.f32 %v1370, %v1382
  %v1384 = vpop.f32.mrf.mxu0
  %1385 = vdwg.mxu0
  %1386 = vmatpush.bf16.msra.mxu0 %v899
  %1387 = vmatpush.bf16.msra.mxu0 %v897
  %1388 = vmatpush.bf16.msra.mxu0 %v895
  %1389 = vmatpush.bf16.msra.mxu0 %v893
  %1390 = vmatpush.bf16.msra.mxu0 %v891
  %1391 = vmatpush.bf16.msra.mxu0 %v889
  %1392 = vmatpush.bf16.msra.mxu0 %v887
  %1393 = vmatpush.bf16.msra.mxu0 %v885
  %1394 = vmatmul.bf16.gmra.mxu0 %v231
  %v1395 = vpop.f32.mrf.mxu0
  %v1396 = vadd.f32 %v1383, %v1395
  %v1397 = vpop.f32.mrf.mxu0
  %1398 = vdwg.mxu0
  %1399 = vmatpush.bf16.msra.mxu0 %v915
  %1400 = vmatpush.bf16.msra.mxu0 %v913
  %1401 = vmatpush.bf16.msra.mxu0 %v911
  %1402 = vmatpush.bf16.msra.mxu0 %v909
  %1403 = vmatpush.bf16.msra.mxu0 %v907
  %1404 = vmatpush.bf16.msra.mxu0 %v905
  %1405 = vmatpush.bf16.msra.mxu0 %v903
  %1406 = vmatpush.bf16.msra.mxu0 %v901
  %1407 = vmatmul.bf16.gmra.mxu0 %v232
  %v1408 = vpop.f32.mrf.mxu0
  %v1409 = vadd.f32 %v1396, %v1408
  %v1410 = vpop.f32.mrf.mxu0
  %1411 = vdwg.mxu0
  %1412 = vmatpush.bf16.msra.mxu0 %v931
  %1413 = vmatpush.bf16.msra.mxu0 %v929
  %1414 = vmatpush.bf16.msra.mxu0 %v927
  %1415 = vmatpush.bf16.msra.mxu0 %v925
  %1416 = vmatpush.bf16.msra.mxu0 %v923
  %1417 = vmatpush.bf16.msra.mxu0 %v921
  %1418 = vmatpush.bf16.msra.mxu0 %v919
  %1419 = vmatpush.bf16.msra.mxu0 %v917
  %1420 = vmatmul.bf16.gmra.mxu0 %v233
  %v1421 = vpop.f32.mrf.mxu0
  %v1422 = vadd.f32 %v1409, %v1421
  %v1423 = vpop.f32.mrf.mxu0
  %1424 = vdwg.mxu0
  %1425 = vmatpush.bf16.msra.mxu0 %v947
  %1426 = vmatpush.bf16.msra.mxu0 %v945
  %1427 = vmatpush.bf16.msra.mxu0 %v943
  %1428 = vmatpush.bf16.msra.mxu0 %v941
  %1429 = vmatpush.bf16.msra.mxu0 %v939
  %1430 = vmatpush.bf16.msra.mxu0 %v937
  %1431 = vmatpush.bf16.msra.mxu0 %v935
  %1432 = vmatpush.bf16.msra.mxu0 %v933
  %1433 = vmatmul.bf16.gmra.mxu0 %v234
  %v1434 = vpop.f32.mrf.mxu0
  %v1435 = vadd.f32 %v1422, %v1434
  %v1436 = vpop.f32.mrf.mxu0
  %1437 = vdwg.mxu0
  %1438 = vmatpush.bf16.msra.mxu0 %v963
  %1439 = vmatpush.bf16.msra.mxu0 %v961
  %1440 = vmatpush.bf16.msra.mxu0 %v959
  %1441 = vmatpush.bf16.msra.mxu0 %v957
  %1442 = vmatpush.bf16.msra.mxu0 %v955
  %1443 = vmatpush.bf16.msra.mxu0 %v953
  %1444 = vmatpush.bf16.msra.mxu0 %v951
  %1445 = vmatpush.bf16.msra.mxu0 %v949
  %1446 = vmatmul.bf16.gmra.mxu0 %v235
  %v1447 = vpop.f32.mrf.mxu0
  %v1448 = vadd.f32 %v1435, %v1447
  %v1449 = vpop.f32.mrf.mxu0
  %1450 = vdwg.mxu0
  %1451 = vmatpush.bf16.msra.mxu0 0
  %1452 = vmatpush.bf16.msra.mxu0 0
  %1453 = vmatpush.bf16.msra.mxu0 0
  %1454 = vmatpush.bf16.msra.mxu0 0
  %1455 = vmatpush.bf16.msra.mxu0 0
  %1456 = vmatpush.bf16.msra.mxu0 0
  %1457 = vmatpush.bf16.msra.mxu0 %v967
  %1458 = vmatpush.bf16.msra.mxu0 %v965
  %1459 = vmatmul.bf16.gmra.mxu0 %v1150
  %v1460 = vpop.f32.mrf.mxu0
  %v1461 = vadd.f32 %v1448, %v1460
  %v1462 = vpop.f32.mrf.mxu0
  %1463 = vdwg.mxu0
  %v1464 = vmax.f32 %v1305, 0.0
  %v1465 = vmax.f32 %v1461, 0.0
  %v1466 = vpack.c.bf16 %v1465, %v1464
  %1467 = vst [vmem:[%s3] sm:$0xff] %v1466
  // Predicated region
  $region14: #{segformer_segmentation_forward.19} parent=0 // pred_check
    _
  $region15: #{segformer_segmentation_forward.19} parent=0 // pred_check_branch
    %1469 = sbr.rel (0) target = $region17
  $region16: #{segformer_segmentation_forward.19} parent=0 // pred_region
    _
  $region17: #{segformer_segmentation_forward.19} parent=0 // pred_fallthru
    _
  // Predicated region
  $region18: #{segformer_segmentation_forward.19} parent=0 // pred_check
    _
  $region19: #{segformer_segmentation_forward.19} parent=0 // pred_check_branch
    %1471 = sbr.rel (0) target = $region21
  $region20: #{segformer_segmentation_forward.19} parent=0 // pred_region
    _
  $region21: #{segformer_segmentation_forward.19} parent=0 // pred_fallthru
    _

// kernel: segformer_segmentation_forward.29
$region0: #{segformer_segmentation_forward.29}
  #allocation0 [shape = 'u32[]', space=smem, size = 0x4, offset = 0x4, fixed_abs, tag = 'smem constant byte address 0x4 - core index']
  #allocation1 [shape = 'u32[72,128]{1,0:T(1,128)}', space=vmem, size = 0x9000, scoped, tag = 'internal scratch']
  %s0 = inlined_call_operand.vmem [shape: bf16[16,2], index: 0, kind: input, shape index: {}]
  %s1 = inlined_call_operand.vmem [shape: bf16[2,2,2048], index: 1, kind: input, shape index: {}]
  %s2 = inlined_call_operand.vmem [shape: bf16[2,16,2048], index: 2, kind: output, shape index: {}]
  %s3 = sld [smem:[#allocation0]]
  $region41: #{segformer_segmentation_forward.29} parent=0
    _
  %s5 = ssub.s32 1, %s3
  %s6 = scalar_select 0, %s5, %s3
  loop: start=0, step=1, limit=4
  $region2: #{segformer_segmentation_forward.29} parent=0 // loop_pre_header
    _
  $region3: #{segformer_segmentation_forward.29} parent=0 // loop_header
    %s8 = sphi 0, %s12
    %p9 = scmp.ge.s32.totalorder %s8, 4
    %s15 = sphi 0, %s27
    %s16 = sphi 0, %s23
    %s17 = sphi 0, %s15
    %s18 = sphi 0, %s16
    %s19 = sphi 0, %s17
    %s20 = sphi 0, %s18
    %s28 = sphi 0, %s28
    %s30 = sphi 0, %s28
    %s31 = sphi 0, %s30
    %s45 = sphi 0, %s31
    %s53 = sphi 0, %s55
    %s56 = sphi 0, %s53
    %s57 = sphi 0, %s56
    %s73 = sphi 0, %s57
    %s81 = sphi 0, %s83
    %s84 = sphi 0, %s81
    %s85 = sphi 0, %s84
    %s101 = sphi 0, %s85
  $region4: #{segformer_segmentation_forward.29} parent=0 // loop_header_branch
    %11 = sbr.rel (%p9) target = $region8
  $region5: #{segformer_segmentation_forward.29} parent=0 // loop_body
    %s13 = ssub.s32 %s8, 1
    %s14 = ssub.s32 %s8, 2
    %s21 = sadd.s32 1, %s16
    %p22 = scmp.ge.s32.totalorder %s21, 1
    %s23 = scalar_select %p22, 0, %s21
    %s24 = sadd.s32 1, %s15
    %s25 = scalar_select %p22, %s24, %s15
    %p26 = scmp.ge.s32.totalorder %s25, 2
    %s27 = scalar_select %p26, 0, %s25
    %s29 = sadd.s32 %s28, 1
    %p32 = scmp.eq.s32.totalorder %s8, 1
    %p33 = scmp.ne.s32.totalorder %s28, %s30
    %p34 = scmp.eq.s32.totalorder %s8, 0
    %p35 = por %p33, %p34
    %p36 = scmp.ne.s32.totalorder %s28, %s30
    %p37 = scmp.eq.s32.totalorder %s13, 1
    %p38 = por %p36, %p37
    %p39 = scmp.ne.s32.totalorder %s30, %s31
    %p40 = scmp.eq.s32.totalorder %s13, 0
    %p41 = por %p39, %p40
    %p42 = scmp.ne.s32.totalorder %s30, %s31
    %p43 = scmp.eq.s32.totalorder %s14, 1
    %p44 = por %p42, %p43
    %p46 = scmp.ne.s32.totalorder %s31, %s45
    %p47 = scmp.eq.s32.totalorder %s14, 0
    %p48 = por %p46, %p47
    %s49 = ssub.s32 %s15, %s27
    %s50 = ssub.s32 %s16, %s23
    %s51 = sor.u32 %s49, %s50
    %p52 = scmp.eq.s32.totalorder %s51, 0
    %s54 = sadd.s32 %s53, 1
    %s55 = scalar_select %p52, %s53, %s54
    %p58 = pneg %p52
    %p59 = scmp.eq.s32.totalorder %s8, 1
    %p60 = por %p58, %p59
    %p61 = scmp.ne.s32.totalorder %s53, %s56
    %p62 = scmp.eq.s32.totalorder %s8, 0
    %p63 = por %p61, %p62
    %p64 = scmp.ne.s32.totalorder %s53, %s56
    %p65 = scmp.eq.s32.totalorder %s13, 1
    %p66 = por %p64, %p65
    %p67 = scmp.ne.s32.totalorder %s56, %s57
    %p68 = scmp.eq.s32.totalorder %s13, 0
    %p69 = por %p67, %p68
    %p70 = scmp.ne.s32.totalorder %s56, %s57
    %p71 = scmp.eq.s32.totalorder %s14, 1
    %p72 = por %p70, %p71
    %p74 = scmp.ne.s32.totalorder %s57, %s73
    %p75 = scmp.eq.s32.totalorder %s14, 0
    %p76 = por %p74, %p75
    %s77 = ssub.s32 %s15, %s27
    %s78 = ssub.s32 %s16, %s23
    %s79 = sor.u32 %s77, %s78
    %p80 = scmp.eq.s32.totalorder %s79, 0
    %s82 = sadd.s32 %s81, 1
    %s83 = scalar_select %p80, %s81, %s82
    %p86 = pneg %p80
    %p87 = scmp.eq.s32.totalorder %s8, 1
    %p88 = por %p86, %p87
    %p89 = scmp.ne.s32.totalorder %s81, %s84
    %p90 = scmp.eq.s32.totalorder %s8, 0
    %p91 = por %p89, %p90
    %p92 = scmp.ne.s32.totalorder %s81, %s84
    %p93 = scmp.eq.s32.totalorder %s13, 1
    %p94 = por %p92, %p93
    %p95 = scmp.ne.s32.totalorder %s84, %s85
    %p96 = scmp.eq.s32.totalorder %s13, 0
    %p97 = por %p95, %p96
    %p98 = scmp.ne.s32.totalorder %s84, %s85
    %p99 = scmp.eq.s32.totalorder %s14, 1
    %p100 = por %p98, %p99
    %p102 = scmp.ne.s32.totalorder %s85, %s101
    %p103 = scmp.eq.s32.totalorder %s14, 0
    %p104 = por %p102, %p103
    %p105 = scmp.le.s32.totalorder 1, %s8
    %p106 = scmp.lt.s32.totalorder %s8, 3
    %p107 = pnand %p105, %p106
    %p108 = pneg %p107
    // Predicated region
    $region9: #{segformer_segmentation_forward.29} parent=5 // pred_check
      _
    $region10: #{segformer_segmentation_forward.29} parent=5 // pred_check_branch
      %110 = sbr.rel (%p107) target = $region12
    $region11: #{segformer_segmentation_forward.29} parent=5 // pred_region
      %s111 = ssub.s32 %s8, 1
      // Predicated region
      $region13: #{segformer_segmentation_forward.29} parent=11 // pred_check
        %p112 = pneg %p41
      $region14: #{segformer_segmentation_forward.29} parent=11 // pred_check_branch
        %114 = sbr.rel (%p112) target = $region16
      $region15: #{segformer_segmentation_forward.29} parent=11 // pred_region
        _
      $region16: #{segformer_segmentation_forward.29} parent=11 // pred_fallthru
        _
    $region12: #{segformer_segmentation_forward.29} parent=5 // pred_fallthru
      _
    %p115 = scmp.lt.s32.totalorder %s8, 2
    // Predicated region
    $region17: #{segformer_segmentation_forward.29} parent=5 // pred_check
      %p116 = pneg %p115
    $region18: #{segformer_segmentation_forward.29} parent=5 // pred_check_branch
      %118 = sbr.rel (%p116) target = $region20
    $region19: #{segformer_segmentation_forward.29} parent=5 // pred_region
      // Predicated region
      $region21: #{segformer_segmentation_forward.29} parent=19 // pred_check
        %p119 = pneg %p63
      $region22: #{segformer_segmentation_forward.29} parent=19 // pred_check_branch
        %121 = sbr.rel (%p119) target = $region24
      $region23: #{segformer_segmentation_forward.29} parent=19 // pred_region
        %s122 = smul.u32 16, %s16
        %p123 = scmp.lt.s32.totalorder %s15, 1
        %s124 = scalar_select %p123, %s15, 1
        %p125 = scmp.lt.s32.totalorder %s122, 15
        %s126 = scalar_select %p125, %s122, 15
        %s127 = smul.addr %s124, 16
        %s128 = sadd.s32 %s126, %s127
        %s129 = scalar_lea.vmem %s1, %s128
        %s130 = smul.u32 16, %s16
      $region24: #{segformer_segmentation_forward.29} parent=19 // pred_fallthru
        _
    $region20: #{segformer_segmentation_forward.29} parent=5 // pred_fallthru
      _
    %p131 = scmp.le.s32.totalorder 1, %s8
    %p132 = scmp.lt.s32.totalorder %s8, 3
    %p133 = pnand %p131, %p132
    %p134 = pneg %p133
    // Predicated region
    $region25: #{segformer_segmentation_forward.29} parent=5 // pred_check
      _
    $region26: #{segformer_segmentation_forward.29} parent=5 // pred_check_branch
      %136 = sbr.rel (%p133) target = $region28
    $region27: #{segformer_segmentation_forward.29} parent=5 // pred_region
      %s137 = ssub.s32 %s8, 1
      %p138 = pneg %p41
      %p139 = pneg %p38
      %s140 = smul.u32 16, %s18
      %p141 = scmp.lt.s32.totalorder %s17, 1
      %s142 = scalar_select %p141, %s17, 1
      %p143 = scmp.lt.s32.totalorder %s140, 15
      %s144 = scalar_select %p143, %s140, 15
      %s145 = smul.addr %s142, 16
      %s146 = sadd.s32 %s144, %s145
      %s147 = scalar_lea.vmem %s1, %s146
      %p148 = pneg %p69
      %p149 = pneg %p66
      %p150 = pneg %p97
      %p151 = pneg %p94
      %s152 = smul.u32 16, %s18
      %p153 = scmp.lt.s32.totalorder %s17, 1
      %s154 = scalar_select %p153, %s17, 1
      %p155 = scmp.lt.s32.totalorder %s152, 15
      %s156 = scalar_select %p155, %s152, 15
      %s157 = smul.addr %s154, 32
      %s158 = sadd.s32 %s156, %s157
      %s159 = smul.addr %s158, 4
      %s160 = scalar_lea.vmem %s2, %s159
      %s161 = smul.u32 16, %s18
      %p162 = scmp.lt.s32.totalorder %s17, 1
      %s163 = scalar_select %p162, %s17, 1
      %p164 = scmp.lt.s32.totalorder %s161, 15
      %s165 = scalar_select %p164, %s161, 15
      %s166 = smul.addr %s163, 16
      %s167 = sadd.s32 %s165, %s166
      %s168 = scalar_lea.vmem %s1, %s167
      %s169 = smul.u32 16, %s18
      %s170 = smul.u32 16, %s18
      %p171 = scmp.lt.s32.totalorder %s17, 1
      %s172 = scalar_select %p171, %s17, 1
      %p173 = scmp.lt.s32.totalorder %s170, 15
      %s174 = scalar_select %p173, %s170, 15
      %s175 = smul.addr %s172, 32
      %s176 = sadd.s32 %s174, %s175
      %s177 = smul.addr %s176, 4
      %s178 = scalar_lea.vmem %s2, %s177
      %s179 = smul.u32 16, %s18
      %v181 = vld [vmem:[%s0] sm:$0xf]
      %v182 = vld [vmem:[%s0 + $0x4] sm:$0xf]
      %v183 = vld [vmem:[%s168] sm:$0xff]
      %v184 = vld [vmem:[%s168 + $0x8] sm:$0xff]
      %v187 = vunpack.c.l.b16 %v181
      %v188 = vunpack.c.l.b16 %v182
      %v189 = vpack.c.b16 %v188, %v187
      %191 = vst [vmem:[#allocation1] ss:$9 sm:$0xff] %v183
      %v192 = vld [vmem:[#allocation1] sm:$0xff]
      %v193 = vld [vmem:[#allocation1 + $0x9] sm:$0xff]
      %v194 = vld [vmem:[#allocation1 + $0x12] sm:$0xff]
      %v195 = vld [vmem:[#allocation1 + $0x1b] sm:$0xff]
      %v196 = vld [vmem:[#allocation1 + $0x24] sm:$0xff]
      %v197 = vld [vmem:[#allocation1 + $0x2d] sm:$0xff]
      %v198 = vld [vmem:[#allocation1 + $0x36] sm:$0xff]
      %v199 = vld [vmem:[#allocation1 + $0x3f] sm:$0xff]
      %201 = vst [vmem:[#allocation1] ss:$9 sm:$0xff] %v184
      %v202 = vld [vmem:[#allocation1] sm:$0xff]
      %v203 = vld [vmem:[#allocation1 + $0x9] sm:$0xff]
      %v204 = vld [vmem:[#allocation1 + $0x12] sm:$0xff]
      %v205 = vld [vmem:[#allocation1 + $0x1b] sm:$0xff]
      %v206 = vld [vmem:[#allocation1 + $0x24] sm:$0xff]
      %v207 = vld [vmem:[#allocation1 + $0x2d] sm:$0xff]
      %v208 = vld [vmem:[#allocation1 + $0x36] sm:$0xff]
      %v209 = vld [vmem:[#allocation1 + $0x3f] sm:$0xff]
      %vm210 = vcmask 15360
      %v212 = vsel %vm210, %v189, 0
      %vm214 = vcmask 1040384
      %v215 = vsel %vm214, %v192, 0
      %v217 = vsel %vm214, %v193, 0
      %v219 = vsel %vm214, %v194, 0
      %v221 = vsel %vm214, %v195, 0
      %v223 = vsel %vm214, %v196, 0
      %v225 = vsel %vm214, %v197, 0
      %v227 = vsel %vm214, %v198, 0
      %v229 = vsel %vm214, %v199, 0
      %v231 = vsel %vm214, %v202, 0
      %v233 = vsel %vm214, %v203, 0
      %v235 = vsel %vm214, %v204, 0
      %v237 = vsel %vm214, %v205, 0
      %v239 = vsel %vm214, %v206, 0
      %v241 = vsel %vm214, %v207, 0
      %v243 = vsel %vm214, %v208, 0
      %v245 = vsel %vm214, %v209, 0
      %247 = vmatpush.bf16.msra.mxu0 0
      %248 = vmatpush.bf16.msra.mxu0 0
      %249 = vmatpush.bf16.msra.mxu0 0
      %250 = vmatpush.bf16.msra.mxu0 0
      %251 = vmatpush.bf16.msra.mxu0 0
      %252 = vmatpush.bf16.msra.mxu0 0
      %253 = vmatpush.bf16.msra.mxu0 0
      %254 = vmatpush.bf16.msra.mxu0 %v215
      %255 = vmatmul.bf16.gmra.mxu0 %v212
      %v256 = vpop.f32.mrf.mxu0
      %v257 = vadd.f32 0.0, %v256
      %v258 = vpop.f32.mrf.mxu0
      %v259 = vadd.f32 0.0, %v258
      %260 = vdwg.mxu0
      %261 = vmatpush.bf16.msra.mxu0 0
      %262 = vmatpush.bf16.msra.mxu0 0
      %263 = vmatpush.bf16.msra.mxu0 0
      %264 = vmatpush.bf16.msra.mxu0 0
      %265 = vmatpush.bf16.msra.mxu0 0
      %266 = vmatpush.bf16.msra.mxu0 0
      %267 = vmatpush.bf16.msra.mxu0 0
      %268 = vmatpush.bf16.msra.mxu0 %v217
      %269 = vmatmul.bf16.gmra.mxu0 %v212
      %v270 = vpop.f32.mrf.mxu0
      %v271 = vadd.f32 0.0, %v270
      %v272 = vpop.f32.mrf.mxu0
      %v273 = vadd.f32 0.0, %v272
      %274 = vdwg.mxu0
      %275 = vmatpush.bf16.msra.mxu0 0
      %276 = vmatpush.bf16.msra.mxu0 0
      %277 = vmatpush.bf16.msra.mxu0 0
      %278 = vmatpush.bf16.msra.mxu0 0
      %279 = vmatpush.bf16.msra.mxu0 0
      %280 = vmatpush.bf16.msra.mxu0 0
      %281 = vmatpush.bf16.msra.mxu0 0
      %282 = vmatpush.bf16.msra.mxu0 %v219
      %283 = vmatmul.bf16.gmra.mxu0 %v212
      %v284 = vpop.f32.mrf.mxu0
      %v285 = vadd.f32 0.0, %v284
      %v286 = vpop.f32.mrf.mxu0
      %v287 = vadd.f32 0.0, %v286
      %288 = vdwg.mxu0
      %289 = vmatpush.bf16.msra.mxu0 0
      %290 = vmatpush.bf16.msra.mxu0 0
      %291 = vmatpush.bf16.msra.mxu0 0
      %292 = vmatpush.bf16.msra.mxu0 0
      %293 = vmatpush.bf16.msra.mxu0 0
      %294 = vmatpush.bf16.msra.mxu0 0
      %295 = vmatpush.bf16.msra.mxu0 0
      %296 = vmatpush.bf16.msra.mxu0 %v221
      %297 = vmatmul.bf16.gmra.mxu0 %v212
      %v298 = vpop.f32.mrf.mxu0
      %v299 = vadd.f32 0.0, %v298
      %v300 = vpop.f32.mrf.mxu0
      %v301 = vadd.f32 0.0, %v300
      %302 = vdwg.mxu0
      %303 = vmatpush.bf16.msra.mxu0 0
      %304 = vmatpush.bf16.msra.mxu0 0
      %305 = vmatpush.bf16.msra.mxu0 0
      %306 = vmatpush.bf16.msra.mxu0 0
      %307 = vmatpush.bf16.msra.mxu0 0
      %308 = vmatpush.bf16.msra.mxu0 0
      %309 = vmatpush.bf16.msra.mxu0 0
      %310 = vmatpush.bf16.msra.mxu0 %v223
      %311 = vmatmul.bf16.gmra.mxu0 %v212
      %v312 = vpop.f32.mrf.mxu0
      %v313 = vadd.f32 0.0, %v312
      %v314 = vpop.f32.mrf.mxu0
      %v315 = vadd.f32 0.0, %v314
      %316 = vdwg.mxu0
      %317 = vmatpush.bf16.msra.mxu0 0
      %318 = vmatpush.bf16.msra.mxu0 0
      %319 = vmatpush.bf16.msra.mxu0 0
      %320 = vmatpush.bf16.msra.mxu0 0
      %321 = vmatpush.bf16.msra.mxu0 0
      %322 = vmatpush.bf16.msra.mxu0 0
      %323 = vmatpush.bf16.msra.mxu0 0
      %324 = vmatpush.bf16.msra.mxu0 %v225
      %325 = vmatmul.bf16.gmra.mxu0 %v212
      %v326 = vpop.f32.mrf.mxu0
      %v327 = vadd.f32 0.0, %v326
      %v328 = vpop.f32.mrf.mxu0
      %v329 = vadd.f32 0.0, %v328
      %330 = vdwg.mxu0
      %331 = vmatpush.bf16.msra.mxu0 0
      %332 = vmatpush.bf16.msra.mxu0 0
      %333 = vmatpush.bf16.msra.mxu0 0
      %334 = vmatpush.bf16.msra.mxu0 0
      %335 = vmatpush.bf16.msra.mxu0 0
      %336 = vmatpush.bf16.msra.mxu0 0
      %337 = vmatpush.bf16.msra.mxu0 0
      %338 = vmatpush.bf16.msra.mxu0 %v227
      %339 = vmatmul.bf16.gmra.mxu0 %v212
      %v340 = vpop.f32.mrf.mxu0
      %v341 = vadd.f32 0.0, %v340
      %v342 = vpop.f32.mrf.mxu0
      %v343 = vadd.f32 0.0, %v342
      %344 = vdwg.mxu0
      %345 = vmatpush.bf16.msra.mxu0 0
      %346 = vmatpush.bf16.msra.mxu0 0
      %347 = vmatpush.bf16.msra.mxu0 0
      %348 = vmatpush.bf16.msra.mxu0 0
      %349 = vmatpush.bf16.msra.mxu0 0
      %350 = vmatpush.bf16.msra.mxu0 0
      %351 = vmatpush.bf16.msra.mxu0 0
      %352 = vmatpush.bf16.msra.mxu0 %v229
      %353 = vmatmul.bf16.gmra.mxu0 %v212
      %v354 = vpop.f32.mrf.mxu0
      %v355 = vadd.f32 0.0, %v354
      %v356 = vpop.f32.mrf.mxu0
      %v357 = vadd.f32 0.0, %v356
      %358 = vdwg.mxu0
      %359 = vmatpush.bf16.msra.mxu0 0
      %360 = vmatpush.bf16.msra.mxu0 0
      %361 = vmatpush.bf16.msra.mxu0 0
      %362 = vmatpush.bf16.msra.mxu0 0
      %363 = vmatpush.bf16.msra.mxu0 0
      %364 = vmatpush.bf16.msra.mxu0 0
      %365 = vmatpush.bf16.msra.mxu0 0
      %366 = vmatpush.bf16.msra.mxu0 %v231
      %367 = vmatmul.bf16.gmra.mxu0 %v212
      %v368 = vpop.f32.mrf.mxu0
      %v369 = vadd.f32 0.0, %v368
      %v370 = vpop.f32.mrf.mxu0
      %v371 = vadd.f32 0.0, %v370
      %372 = vdwg.mxu0
      %373 = vmatpush.bf16.msra.mxu0 0
      %374 = vmatpush.bf16.msra.mxu0 0
      %375 = vmatpush.bf16.msra.mxu0 0
      %376 = vmatpush.bf16.msra.mxu0 0
      %377 = vmatpush.bf16.msra.mxu0 0
      %378 = vmatpush.bf16.msra.mxu0 0
      %379 = vmatpush.bf16.msra.mxu0 0
      %380 = vmatpush.bf16.msra.mxu0 %v233
      %381 = vmatmul.bf16.gmra.mxu0 %v212
      %v382 = vpop.f32.mrf.mxu0
      %v383 = vadd.f32 0.0, %v382
      %v384 = vpop.f32.mrf.mxu0
      %v385 = vadd.f32 0.0, %v384
      %386 = vdwg.mxu0
      %387 = vmatpush.bf16.msra.mxu0 0
      %388 = vmatpush.bf16.msra.mxu0 0
      %389 = vmatpush.bf16.msra.mxu0 0
      %390 = vmatpush.bf16.msra.mxu0 0
      %391 = vmatpush.bf16.msra.mxu0 0
      %392 = vmatpush.bf16.msra.mxu0 0
      %393 = vmatpush.bf16.msra.mxu0 0
      %394 = vmatpush.bf16.msra.mxu0 %v235
      %395 = vmatmul.bf16.gmra.mxu0 %v212
      %v396 = vpop.f32.mrf.mxu0
      %v397 = vadd.f32 0.0, %v396
      %v398 = vpop.f32.mrf.mxu0
      %v399 = vadd.f32 0.0, %v398
      %400 = vdwg.mxu0
      %401 = vmatpush.bf16.msra.mxu0 0
      %402 = vmatpush.bf16.msra.mxu0 0
      %403 = vmatpush.bf16.msra.mxu0 0
      %404 = vmatpush.bf16.msra.mxu0 0
      %405 = vmatpush.bf16.msra.mxu0 0
      %406 = vmatpush.bf16.msra.mxu0 0
      %407 = vmatpush.bf16.msra.mxu0 0
      %408 = vmatpush.bf16.msra.mxu0 %v237
      %409 = vmatmul.bf16.gmra.mxu0 %v212
      %v410 = vpop.f32.mrf.mxu0
      %v411 = vadd.f32 0.0, %v410
      %v412 = vpop.f32.mrf.mxu0
      %v413 = vadd.f32 0.0, %v412
      %414 = vdwg.mxu0
      %415 = vmatpush.bf16.msra.mxu0 0
      %416 = vmatpush.bf16.msra.mxu0 0
      %417 = vmatpush.bf16.msra.mxu0 0
      %418 = vmatpush.bf16.msra.mxu0 0
      %419 = vmatpush.bf16.msra.mxu0 0
      %420 = vmatpush.bf16.msra.mxu0 0
      %421 = vmatpush.bf16.msra.mxu0 0
      %422 = vmatpush.bf16.msra.mxu0 %v239
      %423 = vmatmul.bf16.gmra.mxu0 %v212
      %v424 = vpop.f32.mrf.mxu0
      %v425 = vadd.f32 0.0, %v424
      %v426 = vpop.f32.mrf.mxu0
      %v427 = vadd.f32 0.0, %v426
      %428 = vdwg.mxu0
      %429 = vmatpush.bf16.msra.mxu0 0
      %430 = vmatpush.bf16.msra.mxu0 0
      %431 = vmatpush.bf16.msra.mxu0 0
      %432 = vmatpush.bf16.msra.mxu0 0
      %433 = vmatpush.bf16.msra.mxu0 0
      %434 = vmatpush.bf16.msra.mxu0 0
      %435 = vmatpush.bf16.msra.mxu0 0
      %436 = vmatpush.bf16.msra.mxu0 %v241
      %437 = vmatmul.bf16.gmra.mxu0 %v212
      %v438 = vpop.f32.mrf.mxu0
      %v439 = vadd.f32 0.0, %v438
      %v440 = vpop.f32.mrf.mxu0
      %v441 = vadd.f32 0.0, %v440
      %442 = vdwg.mxu0
      %443 = vmatpush.bf16.msra.mxu0 0
      %444 = vmatpush.bf16.msra.mxu0 0
      %445 = vmatpush.bf16.msra.mxu0 0
      %446 = vmatpush.bf16.msra.mxu0 0
      %447 = vmatpush.bf16.msra.mxu0 0
      %448 = vmatpush.bf16.msra.mxu0 0
      %449 = vmatpush.bf16.msra.mxu0 0
      %450 = vmatpush.bf16.msra.mxu0 %v243
      %451 = vmatmul.bf16.gmra.mxu0 %v212
      %v452 = vpop.f32.mrf.mxu0
      %v453 = vadd.f32 0.0, %v452
      %v454 = vpop.f32.mrf.mxu0
      %v455 = vadd.f32 0.0, %v454
      %456 = vdwg.mxu0
      %457 = vmatpush.bf16.msra.mxu0 0
      %458 = vmatpush.bf16.msra.mxu0 0
      %459 = vmatpush.bf16.msra.mxu0 0
      %460 = vmatpush.bf16.msra.mxu0 0
      %461 = vmatpush.bf16.msra.mxu0 0
      %462 = vmatpush.bf16.msra.mxu0 0
      %463 = vmatpush.bf16.msra.mxu0 0
      %464 = vmatpush.bf16.msra.mxu0 %v245
      %465 = vmatmul.bf16.gmra.mxu0 %v212
      %v466 = vpop.f32.mrf.mxu0
      %v467 = vadd.f32 0.0, %v466
      %v468 = vpop.f32.mrf.mxu0
      %v469 = vadd.f32 0.0, %v468
      %470 = vdwg.mxu0
      %v471 = vpack.c.bf16 %v271, %v257
      %v472 = vpack.c.bf16 %v299, %v285
      %v473 = vpack.c.bf16 %v327, %v313
      %v474 = vpack.c.bf16 %v355, %v341
      %v475 = vpack.c.bf16 %v383, %v369
      %v476 = vpack.c.bf16 %v411, %v397
      %v477 = vpack.c.bf16 %v439, %v425
      %v478 = vpack.c.bf16 %v467, %v453
      %v479 = vpack.c.bf16 %v273, %v259
      %v480 = vpack.c.bf16 %v301, %v287
      %v481 = vpack.c.bf16 %v329, %v315
      %v482 = vpack.c.bf16 %v357, %v343
      %v483 = vpack.c.bf16 %v385, %v371
      %v484 = vpack.c.bf16 %v413, %v399
      %v485 = vpack.c.bf16 %v441, %v427
      %v486 = vpack.c.bf16 %v469, %v455
      %487 = vst [vmem:[%s178] sm:$0xff] %v471
      %488 = vst [vmem:[%s178 + $0x8] sm:$0xff] %v472
      %489 = vst [vmem:[%s178 + $0x10] sm:$0xff] %v473
      %490 = vst [vmem:[%s178 + $0x18] sm:$0xff] %v474
      %491 = vst [vmem:[%s178 + $0x20] sm:$0xff] %v475
      %492 = vst [vmem:[%s178 + $0x28] sm:$0xff] %v476
      %493 = vst [vmem:[%s178 + $0x30] sm:$0xff] %v477
      %494 = vst [vmem:[%s178 + $0x38] sm:$0xff] %v478
      %495 = vst [vmem:[%s178 + $0x40] sm:$0xff] %v479
      %496 = vst [vmem:[%s178 + $0x48] sm:$0xff] %v480
      %497 = vst [vmem:[%s178 + $0x50] sm:$0xff] %v481
      %498 = vst [vmem:[%s178 + $0x58] sm:$0xff] %v482
      %499 = vst [vmem:[%s178 + $0x60] sm:$0xff] %v483
      %500 = vst [vmem:[%s178 + $0x68] sm:$0xff] %v484
      %501 = vst [vmem:[%s178 + $0x70] sm:$0xff] %v485
      %502 = vst [vmem:[%s178 + $0x78] sm:$0xff] %v486
      %s503 = smul.u32 16, %s18
      %p504 = scmp.lt.s32.totalorder %s17, 1
      %s505 = scalar_select %p504, %s17, 1
      %p506 = scmp.lt.s32.totalorder %s503, 15
      %s507 = scalar_select %p506, %s503, 15
      %s508 = smul.addr %s505, 32
      %s509 = sadd.s32 %s507, %s508
      %s510 = smul.addr %s509, 4
      %s511 = scalar_lea.vmem %s2, %s510
      // Predicated region
      $region29: #{segformer_segmentation_forward.29} parent=27 // pred_check
        %p512 = pneg %p94
      $region30: #{segformer_segmentation_forward.29} parent=27 // pred_check_branch
        %514 = sbr.rel (%p512) target = $region32
      $region31: #{segformer_segmentation_forward.29} parent=27 // pred_region
        %s515 = smul.u32 16, %s18
      $region32: #{segformer_segmentation_forward.29} parent=27 // pred_fallthru
        _
    $region28: #{segformer_segmentation_forward.29} parent=5 // pred_fallthru
      _
    %p516 = scmp.le.s32.totalorder 2, %s8
    // Predicated region
    $region33: #{segformer_segmentation_forward.29} parent=5 // pred_check
      %p517 = pneg %p516
    $region34: #{segformer_segmentation_forward.29} parent=5 // pred_check_branch
      %519 = sbr.rel (%p517) target = $region36
    $region35: #{segformer_segmentation_forward.29} parent=5 // pred_region
      %s520 = ssub.s32 %s8, 2
      // Predicated region
      $region37: #{segformer_segmentation_forward.29} parent=35 // pred_check
        %p521 = pneg %p100
      $region38: #{segformer_segmentation_forward.29} parent=35 // pred_check_branch
        %523 = sbr.rel (%p521) target = $region40
      $region39: #{segformer_segmentation_forward.29} parent=35 // pred_region
        %s524 = smul.u32 16, %s20
        %p525 = scmp.lt.s32.totalorder %s19, 1
        %s526 = scalar_select %p525, %s19, 1
        %p527 = scmp.lt.s32.totalorder %s524, 15
        %s528 = scalar_select %p527, %s524, 15
        %s529 = smul.addr %s526, 32
        %s530 = sadd.s32 %s528, %s529
        %s531 = smul.addr %s530, 4
        %s532 = scalar_lea.vmem %s2, %s531
      $region40: #{segformer_segmentation_forward.29} parent=35 // pred_fallthru
        _
    $region36: #{segformer_segmentation_forward.29} parent=5 // pred_fallthru
      _
  $region6: #{segformer_segmentation_forward.29} parent=0 // loop_footer
    %s12 = sadd.s32 1, %s8
  $region7: #{segformer_segmentation_forward.29} parent=0 // loop_footer_branch
    %7 = sbr.rel target = $region3
  $region8: #{segformer_segmentation_forward.29} parent=0 // loop_exit
    _

// kernel: segformer_segmentation_forward.30
$region0: #{segformer_segmentation_forward.30}
  #allocation0 [shape = 'u32[]', space=smem, size = 0x4, offset = 0x4, fixed_abs, tag = 'smem constant byte address 0x4 - core index']
  #allocation1 [shape = 'u32[72,128]{1,0:T(1,128)}', space=vmem, size = 0x9000, scoped, tag = 'internal scratch']
  %s0 = inlined_call_operand.vmem [shape: bf16[512,128], index: 0, kind: input, shape index: {}]
  %s1 = inlined_call_operand.vmem [shape: bf16[512,128], index: 1, kind: input, shape index: {}]
  %s2 = inlined_call_operand.vmem [shape: bf16[512,128], index: 2, kind: input, shape index: {}]
  %s3 = inlined_call_operand.vmem [shape: bf16[512,128], index: 3, kind: input, shape index: {}]
  %s4 = inlined_call_operand.vmem [shape: bf16[512,128], index: 4, kind: input, shape index: {}]
  %s5 = inlined_call_operand.vmem [shape: f32[1,128], index: 5, kind: input, shape index: {}]
  %s6 = inlined_call_operand.vmem [shape: bf16[128,8], index: 6, kind: input, shape index: {}]
  %s7 = inlined_call_operand.vmem [shape: f32[1,8], index: 7, kind: input, shape index: {}]
  %s8 = inlined_call_operand.vmem [shape: bf16[512,8], index: 8, kind: output, shape index: {}]
  %s9 = sld [smem:[#allocation0]]
  $region65: #{segformer_segmentation_forward.30} parent=0
    _
  %s11 = ssub.s32 1, %s9
  %s12 = scalar_select 0, %s11, %s9
  loop: start=0, step=1, limit=4
  $region2: #{segformer_segmentation_forward.30} parent=0 // loop_pre_header
    _
  $region3: #{segformer_segmentation_forward.30} parent=0 // loop_header
    %s14 = sphi 0, %s18
    %p15 = scmp.ge.s32.totalorder %s14, 4
    %s24 = sphi 0, %s26
    %s27 = sphi 0, %s24
    %s28 = sphi 0, %s27
    %s44 = sphi 0, %s28
    %s50 = sphi 0, %s52
    %s53 = sphi 0, %s50
    %s54 = sphi 0, %s53
    %s70 = sphi 0, %s54
    %s76 = sphi 0, %s78
    %s79 = sphi 0, %s76
    %s80 = sphi 0, %s79
    %s96 = sphi 0, %s80
    %s102 = sphi 0, %s104
    %s105 = sphi 0, %s102
    %s106 = sphi 0, %s105
    %s122 = sphi 0, %s106
    %s126 = sphi 0, %s126
    %s128 = sphi 0, %s126
    %s129 = sphi 0, %s128
    %s143 = sphi 0, %s129
    %s147 = sphi 0, %s147
    %s149 = sphi 0, %s147
    %s150 = sphi 0, %s149
    %s164 = sphi 0, %s150
    %s168 = sphi 0, %s168
    %s170 = sphi 0, %s168
    %s171 = sphi 0, %s170
    %s185 = sphi 0, %s171
    %s189 = sphi 0, %s189
    %s191 = sphi 0, %s189
    %s192 = sphi 0, %s191
    %s206 = sphi 0, %s192
    %s212 = sphi 0, %s214
    %s215 = sphi 0, %s212
    %s216 = sphi 0, %s215
    %s232 = sphi 0, %s216
  $region4: #{segformer_segmentation_forward.30} parent=0 // loop_header_branch
    %17 = sbr.rel (%p15) target = $region8
  $region5: #{segformer_segmentation_forward.30} parent=0 // loop_body
    %s19 = ssub.s32 %s14, 1
    %s20 = ssub.s32 %s14, 2
    %s21 = sadd.s32 %s14, 1
    %s22 = ssub.s32 %s14, %s21
    %p23 = scmp.eq.s32.totalorder %s22, 0
    %s25 = sadd.s32 %s24, 1
    %s26 = scalar_select %p23, %s24, %s25
    %p29 = pneg %p23
    %p30 = scmp.eq.s32.totalorder %s14, 1
    %p31 = por %p29, %p30
    %p32 = scmp.ne.s32.totalorder %s24, %s27
    %p33 = scmp.eq.s32.totalorder %s14, 0
    %p34 = por %p32, %p33
    %p35 = scmp.ne.s32.totalorder %s24, %s27
    %p36 = scmp.eq.s32.totalorder %s19, 1
    %p37 = por %p35, %p36
    %p38 = scmp.ne.s32.totalorder %s27, %s28
    %p39 = scmp.eq.s32.totalorder %s19, 0
    %p40 = por %p38, %p39
    %p41 = scmp.ne.s32.totalorder %s27, %s28
    %p42 = scmp.eq.s32.totalorder %s20, 1
    %p43 = por %p41, %p42
    %p45 = scmp.ne.s32.totalorder %s28, %s44
    %p46 = scmp.eq.s32.totalorder %s20, 0
    %p47 = por %p45, %p46
    %s48 = ssub.s32 %s14, %s21
    %p49 = scmp.eq.s32.totalorder %s48, 0
    %s51 = sadd.s32 %s50, 1
    %s52 = scalar_select %p49, %s50, %s51
    %p55 = pneg %p49
    %p56 = scmp.eq.s32.totalorder %s14, 1
    %p57 = por %p55, %p56
    %p58 = scmp.ne.s32.totalorder %s50, %s53
    %p59 = scmp.eq.s32.totalorder %s14, 0
    %p60 = por %p58, %p59
    %p61 = scmp.ne.s32.totalorder %s50, %s53
    %p62 = scmp.eq.s32.totalorder %s19, 1
    %p63 = por %p61, %p62
    %p64 = scmp.ne.s32.totalorder %s53, %s54
    %p65 = scmp.eq.s32.totalorder %s19, 0
    %p66 = por %p64, %p65
    %p67 = scmp.ne.s32.totalorder %s53, %s54
    %p68 = scmp.eq.s32.totalorder %s20, 1
    %p69 = por %p67, %p68
    %p71 = scmp.ne.s32.totalorder %s54, %s70
    %p72 = scmp.eq.s32.totalorder %s20, 0
    %p73 = por %p71, %p72
    %s74 = ssub.s32 %s14, %s21
    %p75 = scmp.eq.s32.totalorder %s74, 0
    %s77 = sadd.s32 %s76, 1
    %s78 = scalar_select %p75, %s76, %s77
    %p81 = pneg %p75
    %p82 = scmp.eq.s32.totalorder %s14, 1
    %p83 = por %p81, %p82
    %p84 = scmp.ne.s32.totalorder %s76, %s79
    %p85 = scmp.eq.s32.totalorder %s14, 0
    %p86 = por %p84, %p85
    %p87 = scmp.ne.s32.totalorder %s76, %s79
    %p88 = scmp.eq.s32.totalorder %s19, 1
    %p89 = por %p87, %p88
    %p90 = scmp.ne.s32.totalorder %s79, %s80
    %p91 = scmp.eq.s32.totalorder %s19, 0
    %p92 = por %p90, %p91
    %p93 = scmp.ne.s32.totalorder %s79, %s80
    %p94 = scmp.eq.s32.totalorder %s20, 1
    %p95 = por %p93, %p94
    %p97 = scmp.ne.s32.totalorder %s80, %s96
    %p98 = scmp.eq.s32.totalorder %s20, 0
    %p99 = por %p97, %p98
    %s100 = ssub.s32 %s14, %s21
    %p101 = scmp.eq.s32.totalorder %s100, 0
    %s103 = sadd.s32 %s102, 1
    %s104 = scalar_select %p101, %s102, %s103
    %p107 = pneg %p101
    %p108 = scmp.eq.s32.totalorder %s14, 1
    %p109 = por %p107, %p108
    %p110 = scmp.ne.s32.totalorder %s102, %s105
    %p111 = scmp.eq.s32.totalorder %s14, 0
    %p112 = por %p110, %p111
    %p113 = scmp.ne.s32.totalorder %s102, %s105
    %p114 = scmp.eq.s32.totalorder %s19, 1
    %p115 = por %p113, %p114
    %p116 = scmp.ne.s32.totalorder %s105, %s106
    %p117 = scmp.eq.s32.totalorder %s19, 0
    %p118 = por %p116, %p117
    %p119 = scmp.ne.s32.totalorder %s105, %s106
    %p120 = scmp.eq.s32.totalorder %s20, 1
    %p121 = por %p119, %p120
    %p123 = scmp.ne.s32.totalorder %s106, %s122
    %p124 = scmp.eq.s32.totalorder %s20, 0
    %p125 = por %p123, %p124
    %s127 = sadd.s32 %s126, 1
    %p130 = scmp.eq.s32.totalorder %s14, 1
    %p131 = scmp.ne.s32.totalorder %s126, %s128
    %p132 = scmp.eq.s32.totalorder %s14, 0
    %p133 = por %p131, %p132
    %p134 = scmp.ne.s32.totalorder %s126, %s128
    %p135 = scmp.eq.s32.totalorder %s19, 1
    %p136 = por %p134, %p135
    %p137 = scmp.ne.s32.totalorder %s128, %s129
    %p138 = scmp.eq.s32.totalorder %s19, 0
    %p139 = por %p137, %p138
    %p140 = scmp.ne.s32.totalorder %s128, %s129
    %p141 = scmp.eq.s32.totalorder %s20, 1
    %p142 = por %p140, %p141
    %p144 = scmp.ne.s32.totalorder %s129, %s143
    %p145 = scmp.eq.s32.totalorder %s20, 0
    %p146 = por %p144, %p145
    %s148 = sadd.s32 %s147, 1
    %p151 = scmp.eq.s32.totalorder %s14, 1
    %p152 = scmp.ne.s32.totalorder %s147, %s149
    %p153 = scmp.eq.s32.totalorder %s14, 0
    %p154 = por %p152, %p153
    %p155 = scmp.ne.s32.totalorder %s147, %s149
    %p156 = scmp.eq.s32.totalorder %s19, 1
    %p157 = por %p155, %p156
    %p158 = scmp.ne.s32.totalorder %s149, %s150
    %p159 = scmp.eq.s32.totalorder %s19, 0
    %p160 = por %p158, %p159
    %p161 = scmp.ne.s32.totalorder %s149, %s150
    %p162 = scmp.eq.s32.totalorder %s20, 1
    %p163 = por %p161, %p162
    %p165 = scmp.ne.s32.totalorder %s150, %s164
    %p166 = scmp.eq.s32.totalorder %s20, 0
    %p167 = por %p165, %p166
    %s169 = sadd.s32 %s168, 1
    %p172 = scmp.eq.s32.totalorder %s14, 1
    %p173 = scmp.ne.s32.totalorder %s168, %s170
    %p174 = scmp.eq.s32.totalorder %s14, 0
    %p175 = por %p173, %p174
    %p176 = scmp.ne.s32.totalorder %s168, %s170
    %p177 = scmp.eq.s32.totalorder %s19, 1
    %p178 = por %p176, %p177
    %p179 = scmp.ne.s32.totalorder %s170, %s171
    %p180 = scmp.eq.s32.totalorder %s19, 0
    %p181 = por %p179, %p180
    %p182 = scmp.ne.s32.totalorder %s170, %s171
    %p183 = scmp.eq.s32.totalorder %s20, 1
    %p184 = por %p182, %p183
    %p186 = scmp.ne.s32.totalorder %s171, %s185
    %p187 = scmp.eq.s32.totalorder %s20, 0
    %p188 = por %p186, %p187
    %s190 = sadd.s32 %s189, 1
    %p193 = scmp.eq.s32.totalorder %s14, 1
    %p194 = scmp.ne.s32.totalorder %s189, %s191
    %p195 = scmp.eq.s32.totalorder %s14, 0
    %p196 = por %p194, %p195
    %p197 = scmp.ne.s32.totalorder %s189, %s191
    %p198 = scmp.eq.s32.totalorder %s19, 1
    %p199 = por %p197, %p198
    %p200 = scmp.ne.s32.totalorder %s191, %s192
    %p201 = scmp.eq.s32.totalorder %s19, 0
    %p202 = por %p200, %p201
    %p203 = scmp.ne.s32.totalorder %s191, %s192
    %p204 = scmp.eq.s32.totalorder %s20, 1
    %p205 = por %p203, %p204
    %p207 = scmp.ne.s32.totalorder %s192, %s206
    %p208 = scmp.eq.s32.totalorder %s20, 0
    %p209 = por %p207, %p208
    %s210 = ssub.s32 %s14, %s21
    %p211 = scmp.eq.s32.totalorder %s210, 0
    %s213 = sadd.s32 %s212, 1
    %s214 = scalar_select %p211, %s212, %s213
    %p217 = pneg %p211
    %p218 = scmp.eq.s32.totalorder %s14, 1
    %p219 = por %p217, %p218
    %p220 = scmp.ne.s32.totalorder %s212, %s215
    %p221 = scmp.eq.s32.totalorder %s14, 0
    %p222 = por %p220, %p221
    %p223 = scmp.ne.s32.totalorder %s212, %s215
    %p224 = scmp.eq.s32.totalorder %s19, 1
    %p225 = por %p223, %p224
    %p226 = scmp.ne.s32.totalorder %s215, %s216
    %p227 = scmp.eq.s32.totalorder %s19, 0
    %p228 = por %p226, %p227
    %p229 = scmp.ne.s32.totalorder %s215, %s216
    %p230 = scmp.eq.s32.totalorder %s20, 1
    %p231 = por %p229, %p230
    %p233 = scmp.ne.s32.totalorder %s216, %s232
    %p234 = scmp.eq.s32.totalorder %s20, 0
    %p235 = por %p233, %p234
    %p236 = scmp.le.s32.totalorder 1, %s14
    %p237 = scmp.lt.s32.totalorder %s14, 3
    %p238 = pnand %p236, %p237
    %p239 = pneg %p238
    // Predicated region
    $region9: #{segformer_segmentation_forward.30} parent=5 // pred_check
      _
    $region10: #{segformer_segmentation_forward.30} parent=5 // pred_check_branch
      %241 = sbr.rel (%p238) target = $region12
    $region11: #{segformer_segmentation_forward.30} parent=5 // pred_region
      %s242 = ssub.s32 %s14, 1
      // Predicated region
      $region13: #{segformer_segmentation_forward.30} parent=11 // pred_check
        %p243 = pneg %p139
      $region14: #{segformer_segmentation_forward.30} parent=11 // pred_check_branch
        %245 = sbr.rel (%p243) target = $region16
      $region15: #{segformer_segmentation_forward.30} parent=11 // pred_region
        _
      $region16: #{segformer_segmentation_forward.30} parent=11 // pred_fallthru
        _
      // Predicated region
      $region17: #{segformer_segmentation_forward.30} parent=11 // pred_check
        %p246 = pneg %p160
      $region18: #{segformer_segmentation_forward.30} parent=11 // pred_check_branch
        %248 = sbr.rel (%p246) target = $region20
      $region19: #{segformer_segmentation_forward.30} parent=11 // pred_region
        _
      $region20: #{segformer_segmentation_forward.30} parent=11 // pred_fallthru
        _
      // Predicated region
      $region21: #{segformer_segmentation_forward.30} parent=11 // pred_check
        %p249 = pneg %p181
      $region22: #{segformer_segmentation_forward.30} parent=11 // pred_check_branch
        %251 = sbr.rel (%p249) target = $region24
      $region23: #{segformer_segmentation_forward.30} parent=11 // pred_region
        _
      $region24: #{segformer_segmentation_forward.30} parent=11 // pred_fallthru
        _
      // Predicated region
      $region25: #{segformer_segmentation_forward.30} parent=11 // pred_check
        %p252 = pneg %p202
      $region26: #{segformer_segmentation_forward.30} parent=11 // pred_check_branch
        %254 = sbr.rel (%p252) target = $region28
      $region27: #{segformer_segmentation_forward.30} parent=11 // pred_region
        _
      $region28: #{segformer_segmentation_forward.30} parent=11 // pred_fallthru
        _
    $region12: #{segformer_segmentation_forward.30} parent=5 // pred_fallthru
      _
    %p255 = scmp.lt.s32.totalorder %s14, 2
    // Predicated region
    $region29: #{segformer_segmentation_forward.30} parent=5 // pred_check
      %p256 = pneg %p255
    $region30: #{segformer_segmentation_forward.30} parent=5 // pred_check_branch
      %258 = sbr.rel (%p256) target = $region32
    $region31: #{segformer_segmentation_forward.30} parent=5 // pred_region
      // Predicated region
      $region33: #{segformer_segmentation_forward.30} parent=31 // pred_check
        %p259 = pneg %p34
      $region34: #{segformer_segmentation_forward.30} parent=31 // pred_check_branch
        %261 = sbr.rel (%p259) target = $region36
      $region35: #{segformer_segmentation_forward.30} parent=31 // pred_region
        %s262 = smul.u32 32, %s14
        %p263 = scmp.lt.s32.totalorder %s262, 63
        %s264 = scalar_select %p263, %s262, 63
        %s265 = smul.addr %s264, 4
        %s266 = scalar_lea.vmem %s0, %s265
        %s267 = smul.u32 32, %s14
      $region36: #{segformer_segmentation_forward.30} parent=31 // pred_fallthru
        _
      // Predicated region
      $region37: #{segformer_segmentation_forward.30} parent=31 // pred_check
        %p268 = pneg %p60
      $region38: #{segformer_segmentation_forward.30} parent=31 // pred_check_branch
        %270 = sbr.rel (%p268) target = $region40
      $region39: #{segformer_segmentation_forward.30} parent=31 // pred_region
        %s271 = smul.u32 32, %s14
        %p272 = scmp.lt.s32.totalorder %s271, 63
        %s273 = scalar_select %p272, %s271, 63
        %s274 = smul.addr %s273, 4
        %s275 = scalar_lea.vmem %s1, %s274
        %s276 = smul.u32 32, %s14
      $region40: #{segformer_segmentation_forward.30} parent=31 // pred_fallthru
        _
      // Predicated region
      $region41: #{segformer_segmentation_forward.30} parent=31 // pred_check
        %p277 = pneg %p86
      $region42: #{segformer_segmentation_forward.30} parent=31 // pred_check_branch
        %279 = sbr.rel (%p277) target = $region44
      $region43: #{segformer_segmentation_forward.30} parent=31 // pred_region
        %s280 = smul.u32 32, %s14
        %p281 = scmp.lt.s32.totalorder %s280, 63
        %s282 = scalar_select %p281, %s280, 63
        %s283 = smul.addr %s282, 4
        %s284 = scalar_lea.vmem %s2, %s283
        %s285 = smul.u32 32, %s14
      $region44: #{segformer_segmentation_forward.30} parent=31 // pred_fallthru
        _
      // Predicated region
      $region45: #{segformer_segmentation_forward.30} parent=31 // pred_check
        %p286 = pneg %p112
      $region46: #{segformer_segmentation_forward.30} parent=31 // pred_check_branch
        %288 = sbr.rel (%p286) target = $region48
      $region47: #{segformer_segmentation_forward.30} parent=31 // pred_region
        %s289 = smul.u32 32, %s14
        %p290 = scmp.lt.s32.totalorder %s289, 63
        %s291 = scalar_select %p290, %s289, 63
        %s292 = smul.addr %s291, 4
        %s293 = scalar_lea.vmem %s3, %s292
        %s294 = smul.u32 32, %s14
      $region48: #{segformer_segmentation_forward.30} parent=31 // pred_fallthru
        _
    $region32: #{segformer_segmentation_forward.30} parent=5 // pred_fallthru
      _
    %p295 = scmp.le.s32.totalorder 1, %s14
    %p296 = scmp.lt.s32.totalorder %s14, 3
    %p297 = pnand %p295, %p296
    %p298 = pneg %p297
    // Predicated region
    $region49: #{segformer_segmentation_forward.30} parent=5 // pred_check
      _
    $region50: #{segformer_segmentation_forward.30} parent=5 // pred_check_branch
      %300 = sbr.rel (%p297) target = $region52
    $region51: #{segformer_segmentation_forward.30} parent=5 // pred_region
      %s301 = ssub.s32 %s14, 1
      %s302 = smul.u32 32, %s19
      %p303 = scmp.lt.s32.totalorder %s302, 63
      %s304 = scalar_select %p303, %s302, 63
      %s305 = smul.addr %s304, 4
      %s306 = scalar_lea.vmem %s0, %s305
      %p307 = pneg %p40
      %p308 = pneg %p37
      %s309 = smul.u32 32, %s19
      %p310 = scmp.lt.s32.totalorder %s309, 63
      %s311 = scalar_select %p310, %s309, 63
      %s312 = smul.addr %s311, 4
      %s313 = scalar_lea.vmem %s1, %s312
      %p314 = pneg %p66
      %p315 = pneg %p63
      %s316 = smul.u32 32, %s19
      %p317 = scmp.lt.s32.totalorder %s316, 63
      %s318 = scalar_select %p317, %s316, 63
      %s319 = smul.addr %s318, 4
      %s320 = scalar_lea.vmem %s2, %s319
      %p321 = pneg %p92
      %p322 = pneg %p89
      %s323 = smul.u32 32, %s19
      %p324 = scmp.lt.s32.totalorder %s323, 63
      %s325 = scalar_select %p324, %s323, 63
      %s326 = smul.addr %s325, 4
      %s327 = scalar_lea.vmem %s3, %s326
      %p328 = pneg %p118
      %p329 = pneg %p115
      %p330 = pneg %p139
      %p331 = pneg %p136
      %p332 = pneg %p160
      %p333 = pneg %p157
      %p334 = pneg %p181
      %p335 = pneg %p178
      %p336 = pneg %p202
      %p337 = pneg %p199
      %p338 = pneg %p228
      %p339 = pneg %p225
      %s340 = smul.u32 32, %s19
      %p341 = scmp.lt.s32.totalorder %s340, 63
      %s342 = scalar_select %p341, %s340, 63
      %s343 = smul.addr %s342, 4
      %s344 = scalar_lea.vmem %s8, %s343
      %s345 = smul.u32 32, %s19
      %p346 = scmp.lt.s32.totalorder %s345, 63
      %s347 = scalar_select %p346, %s345, 63
      %s348 = smul.addr %s347, 4
      %s349 = scalar_lea.vmem %s0, %s348
      %s350 = smul.u32 32, %s19
      %s351 = smul.u32 32, %s19
      %p352 = scmp.lt.s32.totalorder %s351, 63
      %s353 = scalar_select %p352, %s351, 63
      %s354 = smul.addr %s353, 4
      %s355 = scalar_lea.vmem %s1, %s354
      %s356 = smul.u32 32, %s19
      %s357 = smul.u32 32, %s19
      %p358 = scmp.lt.s32.totalorder %s357, 63
      %s359 = scalar_select %p358, %s357, 63
      %s360 = smul.addr %s359, 4
      %s361 = scalar_lea.vmem %s2, %s360
      %s362 = smul.u32 32, %s19
      %s363 = smul.u32 32, %s19
      %p364 = scmp.lt.s32.totalorder %s363, 63
      %s365 = scalar_select %p364, %s363, 63
      %s366 = smul.addr %s365, 4
      %s367 = scalar_lea.vmem %s3, %s366
      %s368 = smul.u32 32, %s19
      %s369 = smul.u32 32, %s19
      %p370 = scmp.lt.s32.totalorder %s369, 63
      %s371 = scalar_select %p370, %s369, 63
      %s372 = smul.addr %s371, 4
      %s373 = scalar_lea.vmem %s8, %s372
      %s374 = smul.u32 32, %s19
      %v375 = vld [vmem:[%s349] sm:$0xf]
      %v376 = vld [vmem:[%s349 + $0x4] sm:$0xf]
      %v377 = vld [vmem:[%s349 + $0x8] sm:$0xf]
      %v378 = vld [vmem:[%s349 + $0xc] sm:$0xf]
      %v379 = vld [vmem:[%s349 + $0x10] sm:$0xf]
      %v380 = vld [vmem:[%s349 + $0x14] sm:$0xf]
      %v381 = vld [vmem:[%s349 + $0x18] sm:$0xf]
      %v382 = vld [vmem:[%s349 + $0x1c] sm:$0xf]
      %v383 = vld [vmem:[%s349 + $0x20] sm:$0xf]
      %v384 = vld [vmem:[%s349 + $0x24] sm:$0xf]
      %v385 = vld [vmem:[%s349 + $0x28] sm:$0xf]
      %v386 = vld [vmem:[%s349 + $0x2c] sm:$0xf]
      %v387 = vld [vmem:[%s349 + $0x30] sm:$0xf]
      %v388 = vld [vmem:[%s349 + $0x34] sm:$0xf]
      %v389 = vld [vmem:[%s349 + $0x38] sm:$0xf]
      %v390 = vld [vmem:[%s349 + $0x3c] sm:$0xf]
      %v391 = vld [vmem:[%s349 + $0x40] sm:$0xf]
      %v392 = vld [vmem:[%s349 + $0x44] sm:$0xf]
      %v393 = vld [vmem:[%s349 + $0x48] sm:$0xf]
      %v394 = vld [vmem:[%s349 + $0x4c] sm:$0xf]
      %v395 = vld [vmem:[%s349 + $0x50] sm:$0xf]
      %v396 = vld [vmem:[%s349 + $0x54] sm:$0xf]
      %v397 = vld [vmem:[%s349 + $0x58] sm:$0xf]
      %v398 = vld [vmem:[%s349 + $0x5c] sm:$0xf]
      %v399 = vld [vmem:[%s349 + $0x60] sm:$0xf]
      %v400 = vld [vmem:[%s349 + $0x64] sm:$0xf]
      %v401 = vld [vmem:[%s349 + $0x68] sm:$0xf]
      %v402 = vld [vmem:[%s349 + $0x6c] sm:$0xf]
      %v403 = vld [vmem:[%s349 + $0x70] sm:$0xf]
      %v404 = vld [vmem:[%s349 + $0x74] sm:$0xf]
      %v405 = vld [vmem:[%s349 + $0x78] sm:$0xf]
      %v406 = vld [vmem:[%s349 + $0x7c] sm:$0xf]
      %v407 = vld [vmem:[%s355] sm:$0xf]
      %v408 = vld [vmem:[%s355 + $0x4] sm:$0xf]
      %v409 = vld [vmem:[%s355 + $0x8] sm:$0xf]
      %v410 = vld [vmem:[%s355 + $0xc] sm:$0xf]
      %v411 = vld [vmem:[%s355 + $0x10] sm:$0xf]
      %v412 = vld [vmem:[%s355 + $0x14] sm:$0xf]
      %v413 = vld [vmem:[%s355 + $0x18] sm:$0xf]
      %v414 = vld [vmem:[%s355 + $0x1c] sm:$0xf]
      %v415 = vld [vmem:[%s355 + $0x20] sm:$0xf]
      %v416 = vld [vmem:[%s355 + $0x24] sm:$0xf]
      %v417 = vld [vmem:[%s355 + $0x28] sm:$0xf]
      %v418 = vld [vmem:[%s355 + $0x2c] sm:$0xf]
      %v419 = vld [vmem:[%s355 + $0x30] sm:$0xf]
      %v420 = vld [vmem:[%s355 + $0x34] sm:$0xf]
      %v421 = vld [vmem:[%s355 + $0x38] sm:$0xf]
      %v422 = vld [vmem:[%s355 + $0x3c] sm:$0xf]
      %v423 = vld [vmem:[%s355 + $0x40] sm:$0xf]
      %v424 = vld [vmem:[%s355 + $0x44] sm:$0xf]
      %v425 = vld [vmem:[%s355 + $0x48] sm:$0xf]
      %v426 = vld [vmem:[%s355 + $0x4c] sm:$0xf]
      %v427 = vld [vmem:[%s355 + $0x50] sm:$0xf]
      %v428 = vld [vmem:[%s355 + $0x54] sm:$0xf]
      %v429 = vld [vmem:[%s355 + $0x58] sm:$0xf]
      %v430 = vld [vmem:[%s355 + $0x5c] sm:$0xf]
      %v431 = vld [vmem:[%s355 + $0x60] sm:$0xf]
      %v432 = vld [vmem:[%s355 + $0x64] sm:$0xf]
      %v433 = vld [vmem:[%s355 + $0x68] sm:$0xf]
      %v434 = vld [vmem:[%s355 + $0x6c] sm:$0xf]
      %v435 = vld [vmem:[%s355 + $0x70] sm:$0xf]
      %v436 = vld [vmem:[%s355 + $0x74] sm:$0xf]
      %v437 = vld [vmem:[%s355 + $0x78] sm:$0xf]
      %v438 = vld [vmem:[%s355 + $0x7c] sm:$0xf]
      %v439 = vld [vmem:[%s361] sm:$0xf]
      %v440 = vld [vmem:[%s361 + $0x4] sm:$0xf]
      %v441 = vld [vmem:[%s361 + $0x8] sm:$0xf]
      %v442 = vld [vmem:[%s361 + $0xc] sm:$0xf]
      %v443 = vld [vmem:[%s361 + $0x10] sm:$0xf]
      %v444 = vld [vmem:[%s361 + $0x14] sm:$0xf]
      %v445 = vld [vmem:[%s361 + $0x18] sm:$0xf]
      %v446 = vld [vmem:[%s361 + $0x1c] sm:$0xf]
      %v447 = vld [vmem:[%s361 + $0x20] sm:$0xf]
      %v448 = vld [vmem:[%s361 + $0x24] sm:$0xf]
      %v449 = vld [vmem:[%s361 + $0x28] sm:$0xf]
      %v450 = vld [vmem:[%s361 + $0x2c] sm:$0xf]
      %v451 = vld [vmem:[%s361 + $0x30] sm:$0xf]
      %v452 = vld [vmem:[%s361 + $0x34] sm:$0xf]
      %v453 = vld [vmem:[%s361 + $0x38] sm:$0xf]
      %v454 = vld [vmem:[%s361 + $0x3c] sm:$0xf]
      %v455 = vld [vmem:[%s361 + $0x40] sm:$0xf]
      %v456 = vld [vmem:[%s361 + $0x44] sm:$0xf]
      %v457 = vld [vmem:[%s361 + $0x48] sm:$0xf]
      %v458 = vld [vmem:[%s361 + $0x4c] sm:$0xf]
      %v459 = vld [vmem:[%s361 + $0x50] sm:$0xf]
      %v460 = vld [vmem:[%s361 + $0x54] sm:$0xf]
      %v461 = vld [vmem:[%s361 + $0x58] sm:$0xf]
      %v462 = vld [vmem:[%s361 + $0x5c] sm:$0xf]
      %v463 = vld [vmem:[%s361 + $0x60] sm:$0xf]
      %v464 = vld [vmem:[%s361 + $0x64] sm:$0xf]
      %v465 = vld [vmem:[%s361 + $0x68] sm:$0xf]
      %v466 = vld [vmem:[%s361 + $0x6c] sm:$0xf]
      %v467 = vld [vmem:[%s361 + $0x70] sm:$0xf]
      %v468 = vld [vmem:[%s361 + $0x74] sm:$0xf]
      %v469 = vld [vmem:[%s361 + $0x78] sm:$0xf]
      %v470 = vld [vmem:[%s361 + $0x7c] sm:$0xf]
      %v471 = vld [vmem:[%s367] sm:$0xf]
      %v472 = vld [vmem:[%s367 + $0x4] sm:$0xf]
      %v473 = vld [vmem:[%s367 + $0x8] sm:$0xf]
      %v474 = vld [vmem:[%s367 + $0xc] sm:$0xf]
      %v475 = vld [vmem:[%s367 + $0x10] sm:$0xf]
      %v476 = vld [vmem:[%s367 + $0x14] sm:$0xf]
      %v477 = vld [vmem:[%s367 + $0x18] sm:$0xf]
      %v478 = vld [vmem:[%s367 + $0x1c] sm:$0xf]
      %v479 = vld [vmem:[%s367 + $0x20] sm:$0xf]
      %v480 = vld [vmem:[%s367 + $0x24] sm:$0xf]
      %v481 = vld [vmem:[%s367 + $0x28] sm:$0xf]
      %v482 = vld [vmem:[%s367 + $0x2c] sm:$0xf]
      %v483 = vld [vmem:[%s367 + $0x30] sm:$0xf]
      %v484 = vld [vmem:[%s367 + $0x34] sm:$0xf]
      %v485 = vld [vmem:[%s367 + $0x38] sm:$0xf]
      %v486 = vld [vmem:[%s367 + $0x3c] sm:$0xf]
      %v487 = vld [vmem:[%s367 + $0x40] sm:$0xf]
      %v488 = vld [vmem:[%s367 + $0x44] sm:$0xf]
      %v489 = vld [vmem:[%s367 + $0x48] sm:$0xf]
      %v490 = vld [vmem:[%s367 + $0x4c] sm:$0xf]
      %v491 = vld [vmem:[%s367 + $0x50] sm:$0xf]
      %v492 = vld [vmem:[%s367 + $0x54] sm:$0xf]
      %v493 = vld [vmem:[%s367 + $0x58] sm:$0xf]
      %v494 = vld [vmem:[%s367 + $0x5c] sm:$0xf]
      %v495 = vld [vmem:[%s367 + $0x60] sm:$0xf]
      %v496 = vld [vmem:[%s367 + $0x64] sm:$0xf]
      %v497 = vld [vmem:[%s367 + $0x68] sm:$0xf]
      %v498 = vld [vmem:[%s367 + $0x6c] sm:$0xf]
      %v499 = vld [vmem:[%s367 + $0x70] sm:$0xf]
      %v500 = vld [vmem:[%s367 + $0x74] sm:$0xf]
      %v501 = vld [vmem:[%s367 + $0x78] sm:$0xf]
      %v502 = vld [vmem:[%s367 + $0x7c] sm:$0xf]
      %v535 = vunpack.c.l.b16 %v375
      %v536 = vunpack.c.l.b16 %v376
      %v537 = vunpack.c.l.b16 %v377
      %v538 = vunpack.c.l.b16 %v378
      %v539 = vunpack.c.l.b16 %v379
      %v540 = vunpack.c.l.b16 %v380
      %v541 = vunpack.c.l.b16 %v381
      %v542 = vunpack.c.l.b16 %v382
      %v543 = vunpack.c.l.b16 %v383
      %v544 = vunpack.c.l.b16 %v384
      %v545 = vunpack.c.l.b16 %v385
      %v546 = vunpack.c.l.b16 %v386
      %v547 = vunpack.c.l.b16 %v387
      %v548 = vunpack.c.l.b16 %v388
      %v549 = vunpack.c.l.b16 %v389
      %v550 = vunpack.c.l.b16 %v390
      %v551 = vunpack.c.l.b16 %v391
      %v552 = vunpack.c.l.b16 %v392
      %v553 = vunpack.c.l.b16 %v393
      %v554 = vunpack.c.l.b16 %v394
      %v555 = vunpack.c.l.b16 %v395
      %v556 = vunpack.c.l.b16 %v396
      %v557 = vunpack.c.l.b16 %v397
      %v558 = vunpack.c.l.b16 %v398
      %v559 = vunpack.c.l.b16 %v399
      %v560 = vunpack.c.l.b16 %v400
      %v561 = vunpack.c.l.b16 %v401
      %v562 = vunpack.c.l.b16 %v402
      %v563 = vunpack.c.l.b16 %v403
      %v564 = vunpack.c.l.b16 %v404
      %v565 = vunpack.c.l.b16 %v405
      %v566 = vunpack.c.l.b16 %v406
      %v567 = vpack.c.b16 %v536, %v535
      %v568 = vpack.c.b16 %v538, %v537
      %v569 = vpack.c.b16 %v540, %v539
      %v570 = vpack.c.b16 %v542, %v541
      %v571 = vpack.c.b16 %v544, %v543
      %v572 = vpack.c.b16 %v546, %v545
      %v573 = vpack.c.b16 %v548, %v547
      %v574 = vpack.c.b16 %v550, %v549
      %v575 = vpack.c.b16 %v552, %v551
      %v576 = vpack.c.b16 %v554, %v553
      %v577 = vpack.c.b16 %v556, %v555
      %v578 = vpack.c.b16 %v558, %v557
      %v579 = vpack.c.b16 %v560, %v559
      %v580 = vpack.c.b16 %v562, %v561
      %v581 = vpack.c.b16 %v564, %v563
      %v582 = vpack.c.b16 %v566, %v565
      %v631 = vunpack.c.l.b16 %v407
      %v632 = vunpack.c.l.b16 %v408
      %v633 = vunpack.c.l.b16 %v409
      %v634 = vunpack.c.l.b16 %v410
      %v635 = vunpack.c.l.b16 %v411
      %v636 = vunpack.c.l.b16 %v412
      %v637 = vunpack.c.l.b16 %v413
      %v638 = vunpack.c.l.b16 %v414
      %v639 = vunpack.c.l.b16 %v415
      %v640 = vunpack.c.l.b16 %v416
      %v641 = vunpack.c.l.b16 %v417
      %v642 = vunpack.c.l.b16 %v418
      %v643 = vunpack.c.l.b16 %v419
      %v644 = vunpack.c.l.b16 %v420
      %v645 = vunpack.c.l.b16 %v421
      %v646 = vunpack.c.l.b16 %v422
      %v647 = vunpack.c.l.b16 %v423
      %v648 = vunpack.c.l.b16 %v424
      %v649 = vunpack.c.l.b16 %v425
      %v650 = vunpack.c.l.b16 %v426
      %v651 = vunpack.c.l.b16 %v427
      %v652 = vunpack.c.l.b16 %v428
      %v653 = vunpack.c.l.b16 %v429
      %v654 = vunpack.c.l.b16 %v430
      %v655 = vunpack.c.l.b16 %v431
      %v656 = vunpack.c.l.b16 %v432
      %v657 = vunpack.c.l.b16 %v433
      %v658 = vunpack.c.l.b16 %v434
      %v659 = vunpack.c.l.b16 %v435
      %v660 = vunpack.c.l.b16 %v436
      %v661 = vunpack.c.l.b16 %v437
      %v662 = vunpack.c.l.b16 %v438
      %v663 = vpack.c.b16 %v632, %v631
      %v664 = vpack.c.b16 %v634, %v633
      %v665 = vpack.c.b16 %v636, %v635
      %v666 = vpack.c.b16 %v638, %v637
      %v667 = vpack.c.b16 %v640, %v639
      %v668 = vpack.c.b16 %v642, %v641
      %v669 = vpack.c.b16 %v644, %v643
      %v670 = vpack.c.b16 %v646, %v645
      %v671 = vpack.c.b16 %v648, %v647
      %v672 = vpack.c.b16 %v650, %v649
      %v673 = vpack.c.b16 %v652, %v651
      %v674 = vpack.c.b16 %v654, %v653
      %v675 = vpack.c.b16 %v656, %v655
      %v676 = vpack.c.b16 %v658, %v657
      %v677 = vpack.c.b16 %v660, %v659
      %v678 = vpack.c.b16 %v662, %v661
      %v727 = vunpack.c.l.b16 %v439
      %v728 = vunpack.c.l.b16 %v440
      %v729 = vunpack.c.l.b16 %v441
      %v730 = vunpack.c.l.b16 %v442
      %v731 = vunpack.c.l.b16 %v443
      %v732 = vunpack.c.l.b16 %v444
      %v733 = vunpack.c.l.b16 %v445
      %v734 = vunpack.c.l.b16 %v446
      %v735 = vunpack.c.l.b16 %v447
      %v736 = vunpack.c.l.b16 %v448
      %v737 = vunpack.c.l.b16 %v449
      %v738 = vunpack.c.l.b16 %v450
      %v739 = vunpack.c.l.b16 %v451
      %v740 = vunpack.c.l.b16 %v452
      %v741 = vunpack.c.l.b16 %v453
      %v742 = vunpack.c.l.b16 %v454
      %v743 = vunpack.c.l.b16 %v455
      %v744 = vunpack.c.l.b16 %v456
      %v745 = vunpack.c.l.b16 %v457
      %v746 = vunpack.c.l.b16 %v458
      %v747 = vunpack.c.l.b16 %v459
      %v748 = vunpack.c.l.b16 %v460
      %v749 = vunpack.c.l.b16 %v461
      %v750 = vunpack.c.l.b16 %v462
      %v751 = vunpack.c.l.b16 %v463
      %v752 = vunpack.c.l.b16 %v464
      %v753 = vunpack.c.l.b16 %v465
      %v754 = vunpack.c.l.b16 %v466
      %v755 = vunpack.c.l.b16 %v467
      %v756 = vunpack.c.l.b16 %v468
      %v757 = vunpack.c.l.b16 %v469
      %v758 = vunpack.c.l.b16 %v470
      %v759 = vpack.c.b16 %v728, %v727
      %v760 = vpack.c.b16 %v730, %v729
      %v761 = vpack.c.b16 %v732, %v731
      %v762 = vpack.c.b16 %v734, %v733
      %v763 = vpack.c.b16 %v736, %v735
      %v764 = vpack.c.b16 %v738, %v737
      %v765 = vpack.c.b16 %v740, %v739
      %v766 = vpack.c.b16 %v742, %v741
      %v767 = vpack.c.b16 %v744, %v743
      %v768 = vpack.c.b16 %v746, %v745
      %v769 = vpack.c.b16 %v748, %v747
      %v770 = vpack.c.b16 %v750, %v749
      %v771 = vpack.c.b16 %v752, %v751
      %v772 = vpack.c.b16 %v754, %v753
      %v773 = vpack.c.b16 %v756, %v755
      %v774 = vpack.c.b16 %v758, %v757
      %v823 = vunpack.c.l.b16 %v471
      %v824 = vunpack.c.l.b16 %v472
      %v825 = vunpack.c.l.b16 %v473
      %v826 = vunpack.c.l.b16 %v474
      %v827 = vunpack.c.l.b16 %v475
      %v828 = vunpack.c.l.b16 %v476
      %v829 = vunpack.c.l.b16 %v477
      %v830 = vunpack.c.l.b16 %v478
      %v831 = vunpack.c.l.b16 %v479
      %v832 = vunpack.c.l.b16 %v480
      %v833 = vunpack.c.l.b16 %v481
      %v834 = vunpack.c.l.b16 %v482
      %v835 = vunpack.c.l.b16 %v483
      %v836 = vunpack.c.l.b16 %v484
      %v837 = vunpack.c.l.b16 %v485
      %v838 = vunpack.c.l.b16 %v486
      %v839 = vunpack.c.l.b16 %v487
      %v840 = vunpack.c.l.b16 %v488
      %v841 = vunpack.c.l.b16 %v489
      %v842 = vunpack.c.l.b16 %v490
      %v843 = vunpack.c.l.b16 %v491
      %v844 = vunpack.c.l.b16 %v492
      %v845 = vunpack.c.l.b16 %v493
      %v846 = vunpack.c.l.b16 %v494
      %v847 = vunpack.c.l.b16 %v495
      %v848 = vunpack.c.l.b16 %v496
      %v849 = vunpack.c.l.b16 %v497
      %v850 = vunpack.c.l.b16 %v498
      %v851 = vunpack.c.l.b16 %v499
      %v852 = vunpack.c.l.b16 %v500
      %v853 = vunpack.c.l.b16 %v501
      %v854 = vunpack.c.l.b16 %v502
      %v855 = vpack.c.b16 %v824, %v823
      %v856 = vpack.c.b16 %v826, %v825
      %v857 = vpack.c.b16 %v828, %v827
      %v858 = vpack.c.b16 %v830, %v829
      %v859 = vpack.c.b16 %v832, %v831
      %v860 = vpack.c.b16 %v834, %v833
      %v861 = vpack.c.b16 %v836, %v835
      %v862 = vpack.c.b16 %v838, %v837
      %v863 = vpack.c.b16 %v840, %v839
      %v864 = vpack.c.b16 %v842, %v841
      %v865 = vpack.c.b16 %v844, %v843
      %v866 = vpack.c.b16 %v846, %v845
      %v867 = vpack.c.b16 %v848, %v847
      %v868 = vpack.c.b16 %v850, %v849
      %v869 = vpack.c.b16 %v852, %v851
      %v870 = vpack.c.b16 %v854, %v853
      %v887 = vld [vmem:[%s4] sm:$0xf]
      %v888 = vld [vmem:[%s4 + $0x4] sm:$0xf]
      %v889 = vld [vmem:[%s4 + $0x8] sm:$0xf]
      %v890 = vld [vmem:[%s4 + $0xc] sm:$0xf]
      %v891 = vld [vmem:[%s4 + $0x10] sm:$0xf]
      %v892 = vld [vmem:[%s4 + $0x14] sm:$0xf]
      %v893 = vld [vmem:[%s4 + $0x18] sm:$0xf]
      %v894 = vld [vmem:[%s4 + $0x1c] sm:$0xf]
      %v895 = vld [vmem:[%s4 + $0x20] sm:$0xf]
      %v896 = vld [vmem:[%s4 + $0x24] sm:$0xf]
      %v897 = vld [vmem:[%s4 + $0x28] sm:$0xf]
      %v898 = vld [vmem:[%s4 + $0x2c] sm:$0xf]
      %v899 = vld [vmem:[%s4 + $0x30] sm:$0xf]
      %v900 = vld [vmem:[%s4 + $0x34] sm:$0xf]
      %v901 = vld [vmem:[%s4 + $0x38] sm:$0xf]
      %v902 = vld [vmem:[%s4 + $0x3c] sm:$0xf]
      %v903 = vld [vmem:[%s4 + $0x40] sm:$0xf]
      %v904 = vld [vmem:[%s4 + $0x44] sm:$0xf]
      %v905 = vld [vmem:[%s4 + $0x48] sm:$0xf]
      %v906 = vld [vmem:[%s4 + $0x4c] sm:$0xf]
      %v907 = vld [vmem:[%s4 + $0x50] sm:$0xf]
      %v908 = vld [vmem:[%s4 + $0x54] sm:$0xf]
      %v909 = vld [vmem:[%s4 + $0x58] sm:$0xf]
      %v910 = vld [vmem:[%s4 + $0x5c] sm:$0xf]
      %v911 = vld [vmem:[%s4 + $0x60] sm:$0xf]
      %v912 = vld [vmem:[%s4 + $0x64] sm:$0xf]
      %v913 = vld [vmem:[%s4 + $0x68] sm:$0xf]
      %v914 = vld [vmem:[%s4 + $0x6c] sm:$0xf]
      %v915 = vld [vmem:[%s4 + $0x70] sm:$0xf]
      %v916 = vld [vmem:[%s4 + $0x74] sm:$0xf]
      %v917 = vld [vmem:[%s4 + $0x78] sm:$0xf]
      %v918 = vld [vmem:[%s4 + $0x7c] sm:$0xf]
      %v919 = vld [vmem:[%s4 + $0x80] sm:$0xf]
      %v920 = vld [vmem:[%s4 + $0x84] sm:$0xf]
      %v921 = vld [vmem:[%s4 + $0x88] sm:$0xf]
      %v922 = vld [vmem:[%s4 + $0x8c] sm:$0xf]
      %v923 = vld [vmem:[%s4 + $0x90] sm:$0xf]
      %v924 = vld [vmem:[%s4 + $0x94] sm:$0xf]
      %v925 = vld [vmem:[%s4 + $0x98] sm:$0xf]
      %v926 = vld [vmem:[%s4 + $0x9c] sm:$0xf]
      %v927 = vld [vmem:[%s4 + $0xa0] sm:$0xf]
      %v928 = vld [vmem:[%s4 + $0xa4] sm:$0xf]
      %v929 = vld [vmem:[%s4 + $0xa8] sm:$0xf]
      %v930 = vld [vmem:[%s4 + $0xac] sm:$0xf]
      %v931 = vld [vmem:[%s4 + $0xb0] sm:$0xf]
      %v932 = vld [vmem:[%s4 + $0xb4] sm:$0xf]
      %v933 = vld [vmem:[%s4 + $0xb8] sm:$0xf]
      %v934 = vld [vmem:[%s4 + $0xbc] sm:$0xf]
      %v935 = vld [vmem:[%s4 + $0xc0] sm:$0xf]
      %v936 = vld [vmem:[%s4 + $0xc4] sm:$0xf]
      %v937 = vld [vmem:[%s4 + $0xc8] sm:$0xf]
      %v938 = vld [vmem:[%s4 + $0xcc] sm:$0xf]
      %v939 = vld [vmem:[%s4 + $0xd0] sm:$0xf]
      %v940 = vld [vmem:[%s4 + $0xd4] sm:$0xf]
      %v941 = vld [vmem:[%s4 + $0xd8] sm:$0xf]
      %v942 = vld [vmem:[%s4 + $0xdc] sm:$0xf]
      %v943 = vld [vmem:[%s4 + $0xe0] sm:$0xf]
      %v944 = vld [vmem:[%s4 + $0xe4] sm:$0xf]
      %v945 = vld [vmem:[%s4 + $0xe8] sm:$0xf]
      %v946 = vld [vmem:[%s4 + $0xec] sm:$0xf]
      %v947 = vld [vmem:[%s4 + $0xf0] sm:$0xf]
      %v948 = vld [vmem:[%s4 + $0xf4] sm:$0xf]
      %v949 = vld [vmem:[%s4 + $0xf8] sm:$0xf]
      %v950 = vld [vmem:[%s4 + $0xfc] sm:$0xf]
      %v951 = vld [vmem:[%s5] sm:$0x1]
      %v953 = vperm.slane %v951, 0
      %v1019 = vunpack.c.l.b16 %v887
      %v1020 = vunpack.c.l.b16 %v888
      %v1021 = vunpack.c.l.b16 %v889
      %v1022 = vunpack.c.l.b16 %v890
      %v1023 = vunpack.c.l.b16 %v891
      %v1024 = vunpack.c.l.b16 %v892
      %v1025 = vunpack.c.l.b16 %v893
      %v1026 = vunpack.c.l.b16 %v894
      %v1027 = vunpack.c.l.b16 %v895
      %v1028 = vunpack.c.l.b16 %v896
      %v1029 = vunpack.c.l.b16 %v897
      %v1030 = vunpack.c.l.b16 %v898
      %v1031 = vunpack.c.l.b16 %v899
      %v1032 = vunpack.c.l.b16 %v900
      %v1033 = vunpack.c.l.b16 %v901
      %v1034 = vunpack.c.l.b16 %v902
      %v1035 = vunpack.c.l.b16 %v903
      %v1036 = vunpack.c.l.b16 %v904
      %v1037 = vunpack.c.l.b16 %v905
      %v1038 = vunpack.c.l.b16 %v906
      %v1039 = vunpack.c.l.b16 %v907
      %v1040 = vunpack.c.l.b16 %v908
      %v1041 = vunpack.c.l.b16 %v909
      %v1042 = vunpack.c.l.b16 %v910
      %v1043 = vunpack.c.l.b16 %v911
      %v1044 = vunpack.c.l.b16 %v912
      %v1045 = vunpack.c.l.b16 %v913
      %v1046 = vunpack.c.l.b16 %v914
      %v1047 = vunpack.c.l.b16 %v915
      %v1048 = vunpack.c.l.b16 %v916
      %v1049 = vunpack.c.l.b16 %v917
      %v1050 = vunpack.c.l.b16 %v918
      %v1051 = vunpack.c.l.b16 %v919
      %v1052 = vunpack.c.l.b16 %v920
      %v1053 = vunpack.c.l.b16 %v921
      %v1054 = vunpack.c.l.b16 %v922
      %v1055 = vunpack.c.l.b16 %v923
      %v1056 = vunpack.c.l.b16 %v924
      %v1057 = vunpack.c.l.b16 %v925
      %v1058 = vunpack.c.l.b16 %v926
      %v1059 = vunpack.c.l.b16 %v927
      %v1060 = vunpack.c.l.b16 %v928
      %v1061 = vunpack.c.l.b16 %v929
      %v1062 = vunpack.c.l.b16 %v930
      %v1063 = vunpack.c.l.b16 %v931
      %v1064 = vunpack.c.l.b16 %v932
      %v1065 = vunpack.c.l.b16 %v933
      %v1066 = vunpack.c.l.b16 %v934
      %v1067 = vunpack.c.l.b16 %v935
      %v1068 = vunpack.c.l.b16 %v936
      %v1069 = vunpack.c.l.b16 %v937
      %v1070 = vunpack.c.l.b16 %v938
      %v1071 = vunpack.c.l.b16 %v939
      %v1072 = vunpack.c.l.b16 %v940
      %v1073 = vunpack.c.l.b16 %v941
      %v1074 = vunpack.c.l.b16 %v942
      %v1075 = vunpack.c.l.b16 %v943
      %v1076 = vunpack.c.l.b16 %v944
      %v1077 = vunpack.c.l.b16 %v945
      %v1078 = vunpack.c.l.b16 %v946
      %v1079 = vunpack.c.l.b16 %v947
      %v1080 = vunpack.c.l.b16 %v948
      %v1081 = vunpack.c.l.b16 %v949
      %v1082 = vunpack.c.l.b16 %v950
      %v1083 = vpack.c.b16 %v1020, %v1019
      %v1084 = vpack.c.b16 %v1022, %v1021
      %v1085 = vpack.c.b16 %v1024, %v1023
      %v1086 = vpack.c.b16 %v1026, %v1025
      %v1087 = vpack.c.b16 %v1028, %v1027
      %v1088 = vpack.c.b16 %v1030, %v1029
      %v1089 = vpack.c.b16 %v1032, %v1031
      %v1090 = vpack.c.b16 %v1034, %v1033
      %v1091 = vpack.c.b16 %v1036, %v1035
      %v1092 = vpack.c.b16 %v1038, %v1037
      %v1093 = vpack.c.b16 %v1040, %v1039
      %v1094 = vpack.c.b16 %v1042, %v1041
      %v1095 = vpack.c.b16 %v1044, %v1043
      %v1096 = vpack.c.b16 %v1046, %v1045
      %v1097 = vpack.c.b16 %v1048, %v1047
      %v1098 = vpack.c.b16 %v1050, %v1049
      %v1099 = vpack.c.b16 %v1052, %v1051
      %v1100 = vpack.c.b16 %v1054, %v1053
      %v1101 = vpack.c.b16 %v1056, %v1055
      %v1102 = vpack.c.b16 %v1058, %v1057
      %v1103 = vpack.c.b16 %v1060, %v1059
      %v1104 = vpack.c.b16 %v1062, %v1061
      %v1105 = vpack.c.b16 %v1064, %v1063
      %v1106 = vpack.c.b16 %v1066, %v1065
      %v1107 = vpack.c.b16 %v1068, %v1067
      %v1108 = vpack.c.b16 %v1070, %v1069
      %v1109 = vpack.c.b16 %v1072, %v1071
      %v1110 = vpack.c.b16 %v1074, %v1073
      %v1111 = vpack.c.b16 %v1076, %v1075
      %v1112 = vpack.c.b16 %v1078, %v1077
      %v1113 = vpack.c.b16 %v1080, %v1079
      %v1114 = vpack.c.b16 %v1082, %v1081
      %1147 = vmatpush.bf16.msra.mxu0 %v1090
      %1148 = vmatpush.bf16.msra.mxu0 %v1089
      %1149 = vmatpush.bf16.msra.mxu0 %v1088
      %1150 = vmatpush.bf16.msra.mxu0 %v1087
      %1151 = vmatpush.bf16.msra.mxu0 %v1086
      %1152 = vmatpush.bf16.msra.mxu0 %v1085
      %1153 = vmatpush.bf16.msra.mxu0 %v1084
      %1154 = vmatpush.bf16.msra.mxu0 %v1083
      %1155 = vmatmul.bf16.gmra.mxu0 %v567
      %v1156 = vpop.f32.mrf.mxu0
      %v1157 = vadd.f32 %v953, %v1156
      %v1158 = vpop.f32.mrf.mxu0
      %v1159 = vadd.f32 %v953, %v1158
      %1160 = vmatmul.bf16.gmra.mxu0 %v568
      %v1161 = vpop.f32.mrf.mxu0
      %v1162 = vadd.f32 %v953, %v1161
      %v1163 = vpop.f32.mrf.mxu0
      %v1164 = vadd.f32 %v953, %v1163
      %1165 = vmatmul.bf16.gmra.mxu0 %v569
      %v1166 = vpop.f32.mrf.mxu0
      %v1167 = vadd.f32 %v953, %v1166
      %v1168 = vpop.f32.mrf.mxu0
      %v1169 = vadd.f32 %v953, %v1168
      %1170 = vmatmul.bf16.gmra.mxu0 %v570
      %v1171 = vpop.f32.mrf.mxu0
      %v1172 = vadd.f32 %v953, %v1171
      %v1173 = vpop.f32.mrf.mxu0
      %v1174 = vadd.f32 %v953, %v1173
      %1175 = vmatmul.bf16.gmra.mxu0 %v571
      %v1176 = vpop.f32.mrf.mxu0
      %v1177 = vadd.f32 %v953, %v1176
      %v1178 = vpop.f32.mrf.mxu0
      %v1179 = vadd.f32 %v953, %v1178
      %1180 = vmatmul.bf16.gmra.mxu0 %v572
      %v1181 = vpop.f32.mrf.mxu0
      %v1182 = vadd.f32 %v953, %v1181
      %v1183 = vpop.f32.mrf.mxu0
      %v1184 = vadd.f32 %v953, %v1183
      %1185 = vmatmul.bf16.gmra.mxu0 %v573
      %v1186 = vpop.f32.mrf.mxu0
      %v1187 = vadd.f32 %v953, %v1186
      %v1188 = vpop.f32.mrf.mxu0
      %v1189 = vadd.f32 %v953, %v1188
      %1190 = vmatmul.bf16.gmra.mxu0 %v574
      %v1191 = vpop.f32.mrf.mxu0
      %v1192 = vadd.f32 %v953, %v1191
      %v1193 = vpop.f32.mrf.mxu0
      %v1194 = vadd.f32 %v953, %v1193
      %1195 = vmatmul.bf16.gmra.mxu0 %v575
      %v1196 = vpop.f32.mrf.mxu0
      %v1197 = vadd.f32 %v953, %v1196
      %v1198 = vpop.f32.mrf.mxu0
      %v1199 = vadd.f32 %v953, %v1198
      %1200 = vmatmul.bf16.gmra.mxu0 %v576
      %v1201 = vpop.f32.mrf.mxu0
      %v1202 = vadd.f32 %v953, %v1201
      %v1203 = vpop.f32.mrf.mxu0
      %v1204 = vadd.f32 %v953, %v1203
      %1205 = vmatmul.bf16.gmra.mxu0 %v577
      %v1206 = vpop.f32.mrf.mxu0
      %v1207 = vadd.f32 %v953, %v1206
      %v1208 = vpop.f32.mrf.mxu0
      %v1209 = vadd.f32 %v953, %v1208
      %1210 = vmatmul.bf16.gmra.mxu0 %v578
      %v1211 = vpop.f32.mrf.mxu0
      %v1212 = vadd.f32 %v953, %v1211
      %v1213 = vpop.f32.mrf.mxu0
      %v1214 = vadd.f32 %v953, %v1213
      %1215 = vmatmul.bf16.gmra.mxu0 %v579
      %v1216 = vpop.f32.mrf.mxu0
      %v1217 = vadd.f32 %v953, %v1216
      %v1218 = vpop.f32.mrf.mxu0
      %v1219 = vadd.f32 %v953, %v1218
      %1220 = vmatmul.bf16.gmra.mxu0 %v580
      %v1221 = vpop.f32.mrf.mxu0
      %v1222 = vadd.f32 %v953, %v1221
      %v1223 = vpop.f32.mrf.mxu0
      %v1224 = vadd.f32 %v953, %v1223
      %1225 = vmatmul.bf16.gmra.mxu0 %v581
      %v1226 = vpop.f32.mrf.mxu0
      %v1227 = vadd.f32 %v953, %v1226
      %v1228 = vpop.f32.mrf.mxu0
      %v1229 = vadd.f32 %v953, %v1228
      %1230 = vmatmul.bf16.gmra.mxu0 %v582
      %v1231 = vpop.f32.mrf.mxu0
      %v1232 = vadd.f32 %v953, %v1231
      %v1233 = vpop.f32.mrf.mxu0
      %v1234 = vadd.f32 %v953, %v1233
      %1235 = vdwg.mxu0
      %1236 = vmatpush.bf16.msra.mxu0 %v1098
      %1237 = vmatpush.bf16.msra.mxu0 %v1097
      %1238 = vmatpush.bf16.msra.mxu0 %v1096
      %1239 = vmatpush.bf16.msra.mxu0 %v1095
      %1240 = vmatpush.bf16.msra.mxu0 %v1094
      %1241 = vmatpush.bf16.msra.mxu0 %v1093
      %1242 = vmatpush.bf16.msra.mxu0 %v1092
      %1243 = vmatpush.bf16.msra.mxu0 %v1091
      %1244 = vmatmul.bf16.gmra.mxu0 %v663
      %v1245 = vpop.f32.mrf.mxu0
      %v1246 = vadd.f32 %v1157, %v1245
      %v1247 = vpop.f32.mrf.mxu0
      %v1248 = vadd.f32 %v1159, %v1247
      %1249 = vmatmul.bf16.gmra.mxu0 %v664
      %v1250 = vpop.f32.mrf.mxu0
      %v1251 = vadd.f32 %v1162, %v1250
      %v1252 = vpop.f32.mrf.mxu0
      %v1253 = vadd.f32 %v1164, %v1252
      %1254 = vmatmul.bf16.gmra.mxu0 %v665
      %v1255 = vpop.f32.mrf.mxu0
      %v1256 = vadd.f32 %v1167, %v1255
      %v1257 = vpop.f32.mrf.mxu0
      %v1258 = vadd.f32 %v1169, %v1257
      %1259 = vmatmul.bf16.gmra.mxu0 %v666
      %v1260 = vpop.f32.mrf.mxu0
      %v1261 = vadd.f32 %v1172, %v1260
      %v1262 = vpop.f32.mrf.mxu0
      %v1263 = vadd.f32 %v1174, %v1262
      %1264 = vmatmul.bf16.gmra.mxu0 %v667
      %v1265 = vpop.f32.mrf.mxu0
      %v1266 = vadd.f32 %v1177, %v1265
      %v1267 = vpop.f32.mrf.mxu0
      %v1268 = vadd.f32 %v1179, %v1267
      %1269 = vmatmul.bf16.gmra.mxu0 %v668
      %v1270 = vpop.f32.mrf.mxu0
      %v1271 = vadd.f32 %v1182, %v1270
      %v1272 = vpop.f32.mrf.mxu0
      %v1273 = vadd.f32 %v1184, %v1272
      %1274 = vmatmul.bf16.gmra.mxu0 %v669
      %v1275 = vpop.f32.mrf.mxu0
      %v1276 = vadd.f32 %v1187, %v1275
      %v1277 = vpop.f32.mrf.mxu0
      %v1278 = vadd.f32 %v1189, %v1277
      %1279 = vmatmul.bf16.gmra.mxu0 %v670
      %v1280 = vpop.f32.mrf.mxu0
      %v1281 = vadd.f32 %v1192, %v1280
      %v1282 = vpop.f32.mrf.mxu0
      %v1283 = vadd.f32 %v1194, %v1282
      %1284 = vmatmul.bf16.gmra.mxu0 %v671
      %v1285 = vpop.f32.mrf.mxu0
      %v1286 = vadd.f32 %v1197, %v1285
      %v1287 = vpop.f32.mrf.mxu0
      %v1288 = vadd.f32 %v1199, %v1287
      %1289 = vmatmul.bf16.gmra.mxu0 %v672
      %v1290 = vpop.f32.mrf.mxu0
      %v1291 = vadd.f32 %v1202, %v1290
      %v1292 = vpop.f32.mrf.mxu0
      %v1293 = vadd.f32 %v1204, %v1292
      %1294 = vmatmul.bf16.gmra.mxu0 %v673
      %v1295 = vpop.f32.mrf.mxu0
      %v1296 = vadd.f32 %v1207, %v1295
      %v1297 = vpop.f32.mrf.mxu0
      %v1298 = vadd.f32 %v1209, %v1297
      %1299 = vmatmul.bf16.gmra.mxu0 %v674
      %v1300 = vpop.f32.mrf.mxu0
      %v1301 = vadd.f32 %v1212, %v1300
      %v1302 = vpop.f32.mrf.mxu0
      %v1303 = vadd.f32 %v1214, %v1302
      %1304 = vmatmul.bf16.gmra.mxu0 %v675
      %v1305 = vpop.f32.mrf.mxu0
      %v1306 = vadd.f32 %v1217, %v1305
      %v1307 = vpop.f32.mrf.mxu0
      %v1308 = vadd.f32 %v1219, %v1307
      %1309 = vmatmul.bf16.gmra.mxu0 %v676
      %v1310 = vpop.f32.mrf.mxu0
      %v1311 = vadd.f32 %v1222, %v1310
      %v1312 = vpop.f32.mrf.mxu0
      %v1313 = vadd.f32 %v1224, %v1312
      %1314 = vmatmul.bf16.gmra.mxu0 %v677
      %v1315 = vpop.f32.mrf.mxu0
      %v1316 = vadd.f32 %v1227, %v1315
      %v1317 = vpop.f32.mrf.mxu0
      %v1318 = vadd.f32 %v1229, %v1317
      %1319 = vmatmul.bf16.gmra.mxu0 %v678
      %v1320 = vpop.f32.mrf.mxu0
      %v1321 = vadd.f32 %v1232, %v1320
      %v1322 = vpop.f32.mrf.mxu0
      %v1323 = vadd.f32 %v1234, %v1322
      %1324 = vdwg.mxu0
      %1325 = vmatpush.bf16.msra.mxu0 %v1106
      %1326 = vmatpush.bf16.msra.mxu0 %v1105
      %1327 = vmatpush.bf16.msra.mxu0 %v1104
      %1328 = vmatpush.bf16.msra.mxu0 %v1103
      %1329 = vmatpush.bf16.msra.mxu0 %v1102
      %1330 = vmatpush.bf16.msra.mxu0 %v1101
      %1331 = vmatpush.bf16.msra.mxu0 %v1100
      %1332 = vmatpush.bf16.msra.mxu0 %v1099
      %1333 = vmatmul.bf16.gmra.mxu0 %v759
      %v1334 = vpop.f32.mrf.mxu0
      %v1335 = vadd.f32 %v1246, %v1334
      %v1336 = vpop.f32.mrf.mxu0
      %v1337 = vadd.f32 %v1248, %v1336
      %1338 = vmatmul.bf16.gmra.mxu0 %v760
      %v1339 = vpop.f32.mrf.mxu0
      %v1340 = vadd.f32 %v1251, %v1339
      %v1341 = vpop.f32.mrf.mxu0
      %v1342 = vadd.f32 %v1253, %v1341
      %1343 = vmatmul.bf16.gmra.mxu0 %v761
      %v1344 = vpop.f32.mrf.mxu0
      %v1345 = vadd.f32 %v1256, %v1344
      %v1346 = vpop.f32.mrf.mxu0
      %v1347 = vadd.f32 %v1258, %v1346
      %1348 = vmatmul.bf16.gmra.mxu0 %v762
      %v1349 = vpop.f32.mrf.mxu0
      %v1350 = vadd.f32 %v1261, %v1349
      %v1351 = vpop.f32.mrf.mxu0
      %v1352 = vadd.f32 %v1263, %v1351
      %1353 = vmatmul.bf16.gmra.mxu0 %v763
      %v1354 = vpop.f32.mrf.mxu0
      %v1355 = vadd.f32 %v1266, %v1354
      %v1356 = vpop.f32.mrf.mxu0
      %v1357 = vadd.f32 %v1268, %v1356
      %1358 = vmatmul.bf16.gmra.mxu0 %v764
      %v1359 = vpop.f32.mrf.mxu0
      %v1360 = vadd.f32 %v1271, %v1359
      %v1361 = vpop.f32.mrf.mxu0
      %v1362 = vadd.f32 %v1273, %v1361
      %1363 = vmatmul.bf16.gmra.mxu0 %v765
      %v1364 = vpop.f32.mrf.mxu0
      %v1365 = vadd.f32 %v1276, %v1364
      %v1366 = vpop.f32.mrf.mxu0
      %v1367 = vadd.f32 %v1278, %v1366
      %1368 = vmatmul.bf16.gmra.mxu0 %v766
      %v1369 = vpop.f32.mrf.mxu0
      %v1370 = vadd.f32 %v1281, %v1369
      %v1371 = vpop.f32.mrf.mxu0
      %v1372 = vadd.f32 %v1283, %v1371
      %1373 = vmatmul.bf16.gmra.mxu0 %v767
      %v1374 = vpop.f32.mrf.mxu0
      %v1375 = vadd.f32 %v1286, %v1374
      %v1376 = vpop.f32.mrf.mxu0
      %v1377 = vadd.f32 %v1288, %v1376
      %1378 = vmatmul.bf16.gmra.mxu0 %v768
      %v1379 = vpop.f32.mrf.mxu0
      %v1380 = vadd.f32 %v1291, %v1379
      %v1381 = vpop.f32.mrf.mxu0
      %v1382 = vadd.f32 %v1293, %v1381
      %1383 = vmatmul.bf16.gmra.mxu0 %v769
      %v1384 = vpop.f32.mrf.mxu0
      %v1385 = vadd.f32 %v1296, %v1384
      %v1386 = vpop.f32.mrf.mxu0
      %v1387 = vadd.f32 %v1298, %v1386
      %1388 = vmatmul.bf16.gmra.mxu0 %v770
      %v1389 = vpop.f32.mrf.mxu0
      %v1390 = vadd.f32 %v1301, %v1389
      %v1391 = vpop.f32.mrf.mxu0
      %v1392 = vadd.f32 %v1303, %v1391
      %1393 = vmatmul.bf16.gmra.mxu0 %v771
      %v1394 = vpop.f32.mrf.mxu0
      %v1395 = vadd.f32 %v1306, %v1394
      %v1396 = vpop.f32.mrf.mxu0
      %v1397 = vadd.f32 %v1308, %v1396
      %1398 = vmatmul.bf16.gmra.mxu0 %v772
      %v1399 = vpop.f32.mrf.mxu0
      %v1400 = vadd.f32 %v1311, %v1399
      %v1401 = vpop.f32.mrf.mxu0
      %v1402 = vadd.f32 %v1313, %v1401
      %1403 = vmatmul.bf16.gmra.mxu0 %v773
      %v1404 = vpop.f32.mrf.mxu0
      %v1405 = vadd.f32 %v1316, %v1404
      %v1406 = vpop.f32.mrf.mxu0
      %v1407 = vadd.f32 %v1318, %v1406
      %1408 = vmatmul.bf16.gmra.mxu0 %v774
      %v1409 = vpop.f32.mrf.mxu0
      %v1410 = vadd.f32 %v1321, %v1409
      %v1411 = vpop.f32.mrf.mxu0
      %v1412 = vadd.f32 %v1323, %v1411
      %1413 = vdwg.mxu0
      %1414 = vmatpush.bf16.msra.mxu0 %v1114
      %1415 = vmatpush.bf16.msra.mxu0 %v1113
      %1416 = vmatpush.bf16.msra.mxu0 %v1112
      %1417 = vmatpush.bf16.msra.mxu0 %v1111
      %1418 = vmatpush.bf16.msra.mxu0 %v1110
      %1419 = vmatpush.bf16.msra.mxu0 %v1109
      %1420 = vmatpush.bf16.msra.mxu0 %v1108
      %1421 = vmatpush.bf16.msra.mxu0 %v1107
      %1422 = vmatmul.bf16.gmra.mxu0 %v855
      %v1423 = vpop.f32.mrf.mxu0
      %v1424 = vadd.f32 %v1335, %v1423
      %v1425 = vpop.f32.mrf.mxu0
      %v1426 = vadd.f32 %v1337, %v1425
      %1427 = vmatmul.bf16.gmra.mxu0 %v856
      %v1428 = vpop.f32.mrf.mxu0
      %v1429 = vadd.f32 %v1340, %v1428
      %v1430 = vpop.f32.mrf.mxu0
      %v1431 = vadd.f32 %v1342, %v1430
      %1432 = vmatmul.bf16.gmra.mxu0 %v857
      %v1433 = vpop.f32.mrf.mxu0
      %v1434 = vadd.f32 %v1345, %v1433
      %v1435 = vpop.f32.mrf.mxu0
      %v1436 = vadd.f32 %v1347, %v1435
      %1437 = vmatmul.bf16.gmra.mxu0 %v858
      %v1438 = vpop.f32.mrf.mxu0
      %v1439 = vadd.f32 %v1350, %v1438
      %v1440 = vpop.f32.mrf.mxu0
      %v1441 = vadd.f32 %v1352, %v1440
      %1442 = vmatmul.bf16.gmra.mxu0 %v859
      %v1443 = vpop.f32.mrf.mxu0
      %v1444 = vadd.f32 %v1355, %v1443
      %v1445 = vpop.f32.mrf.mxu0
      %v1446 = vadd.f32 %v1357, %v1445
      %1447 = vmatmul.bf16.gmra.mxu0 %v860
      %v1448 = vpop.f32.mrf.mxu0
      %v1449 = vadd.f32 %v1360, %v1448
      %v1450 = vpop.f32.mrf.mxu0
      %v1451 = vadd.f32 %v1362, %v1450
      %1452 = vmatmul.bf16.gmra.mxu0 %v861
      %v1453 = vpop.f32.mrf.mxu0
      %v1454 = vadd.f32 %v1365, %v1453
      %v1455 = vpop.f32.mrf.mxu0
      %v1456 = vadd.f32 %v1367, %v1455
      %1457 = vmatmul.bf16.gmra.mxu0 %v862
      %v1458 = vpop.f32.mrf.mxu0
      %v1459 = vadd.f32 %v1370, %v1458
      %v1460 = vpop.f32.mrf.mxu0
      %v1461 = vadd.f32 %v1372, %v1460
      %1462 = vmatmul.bf16.gmra.mxu0 %v863
      %v1463 = vpop.f32.mrf.mxu0
      %v1464 = vadd.f32 %v1375, %v1463
      %v1465 = vpop.f32.mrf.mxu0
      %v1466 = vadd.f32 %v1377, %v1465
      %1467 = vmatmul.bf16.gmra.mxu0 %v864
      %v1468 = vpop.f32.mrf.mxu0
      %v1469 = vadd.f32 %v1380, %v1468
      %v1470 = vpop.f32.mrf.mxu0
      %v1471 = vadd.f32 %v1382, %v1470
      %1472 = vmatmul.bf16.gmra.mxu0 %v865
      %v1473 = vpop.f32.mrf.mxu0
      %v1474 = vadd.f32 %v1385, %v1473
      %v1475 = vpop.f32.mrf.mxu0
      %v1476 = vadd.f32 %v1387, %v1475
      %1477 = vmatmul.bf16.gmra.mxu0 %v866
      %v1478 = vpop.f32.mrf.mxu0
      %v1479 = vadd.f32 %v1390, %v1478
      %v1480 = vpop.f32.mrf.mxu0
      %v1481 = vadd.f32 %v1392, %v1480
      %1482 = vmatmul.bf16.gmra.mxu0 %v867
      %v1483 = vpop.f32.mrf.mxu0
      %v1484 = vadd.f32 %v1395, %v1483
      %v1485 = vpop.f32.mrf.mxu0
      %v1486 = vadd.f32 %v1397, %v1485
      %1487 = vmatmul.bf16.gmra.mxu0 %v868
      %v1488 = vpop.f32.mrf.mxu0
      %v1489 = vadd.f32 %v1400, %v1488
      %v1490 = vpop.f32.mrf.mxu0
      %v1491 = vadd.f32 %v1402, %v1490
      %1492 = vmatmul.bf16.gmra.mxu0 %v869
      %v1493 = vpop.f32.mrf.mxu0
      %v1494 = vadd.f32 %v1405, %v1493
      %v1495 = vpop.f32.mrf.mxu0
      %v1496 = vadd.f32 %v1407, %v1495
      %1497 = vmatmul.bf16.gmra.mxu0 %v870
      %v1498 = vpop.f32.mrf.mxu0
      %v1499 = vadd.f32 %v1410, %v1498
      %v1500 = vpop.f32.mrf.mxu0
      %v1501 = vadd.f32 %v1412, %v1500
      %1502 = vdwg.mxu0
      %v1503 = vmax.f32 %v1424, 0.0
      %v1504 = vmax.f32 %v1426, 0.0
      %v1505 = vmax.f32 %v1429, 0.0
      %v1506 = vmax.f32 %v1431, 0.0
      %v1507 = vmax.f32 %v1434, 0.0
      %v1508 = vmax.f32 %v1436, 0.0
      %v1509 = vmax.f32 %v1439, 0.0
      %v1510 = vmax.f32 %v1441, 0.0
      %v1511 = vmax.f32 %v1444, 0.0
      %v1512 = vmax.f32 %v1446, 0.0
      %v1513 = vmax.f32 %v1449, 0.0
      %v1514 = vmax.f32 %v1451, 0.0
      %v1515 = vmax.f32 %v1454, 0.0
      %v1516 = vmax.f32 %v1456, 0.0
      %v1517 = vmax.f32 %v1459, 0.0
      %v1518 = vmax.f32 %v1461, 0.0
      %v1519 = vmax.f32 %v1464, 0.0
      %v1520 = vmax.f32 %v1466, 0.0
      %v1521 = vmax.f32 %v1469, 0.0
      %v1522 = vmax.f32 %v1471, 0.0
      %v1523 = vmax.f32 %v1474, 0.0
      %v1524 = vmax.f32 %v1476, 0.0
      %v1525 = vmax.f32 %v1479, 0.0
      %v1526 = vmax.f32 %v1481, 0.0
      %v1527 = vmax.f32 %v1484, 0.0
      %v1528 = vmax.f32 %v1486, 0.0
      %v1529 = vmax.f32 %v1489, 0.0
      %v1530 = vmax.f32 %v1491, 0.0
      %v1531 = vmax.f32 %v1494, 0.0
      %v1532 = vmax.f32 %v1496, 0.0
      %v1533 = vmax.f32 %v1499, 0.0
      %v1534 = vmax.f32 %v1501, 0.0
      %v1535 = vpack.c.bf16 %v1504, %v1503
      %v1536 = vpack.c.bf16 %v1506, %v1505
      %v1537 = vpack.c.bf16 %v1508, %v1507
      %v1538 = vpack.c.bf16 %v1510, %v1509
      %v1539 = vpack.c.bf16 %v1512, %v1511
      %v1540 = vpack.c.bf16 %v1514, %v1513
      %v1541 = vpack.c.bf16 %v1516, %v1515
      %v1542 = vpack.c.bf16 %v1518, %v1517
      %v1543 = vpack.c.bf16 %v1520, %v1519
      %v1544 = vpack.c.bf16 %v1522, %v1521
      %v1545 = vpack.c.bf16 %v1524, %v1523
      %v1546 = vpack.c.bf16 %v1526, %v1525
      %v1547 = vpack.c.bf16 %v1528, %v1527
      %v1548 = vpack.c.bf16 %v1530, %v1529
      %v1549 = vpack.c.bf16 %v1532, %v1531
      %v1550 = vpack.c.bf16 %v1534, %v1533
      %v1551 = vld [vmem:[%s6] sm:$0xf]
      %v1552 = vld [vmem:[%s6 + $0x4] sm:$0xf]
      %v1553 = vld [vmem:[%s6 + $0x8] sm:$0xf]
      %v1554 = vld [vmem:[%s6 + $0xc] sm:$0xf]
      %v1555 = vld [vmem:[%s6 + $0x10] sm:$0xf]
      %v1556 = vld [vmem:[%s6 + $0x14] sm:$0xf]
      %v1557 = vld [vmem:[%s6 + $0x18] sm:$0xf]
      %v1558 = vld [vmem:[%s6 + $0x1c] sm:$0xf]
      %v1559 = vld [vmem:[%s6 + $0x20] sm:$0xf]
      %v1560 = vld [vmem:[%s6 + $0x24] sm:$0xf]
      %v1561 = vld [vmem:[%s6 + $0x28] sm:$0xf]
      %v1562 = vld [vmem:[%s6 + $0x2c] sm:$0xf]
      %v1563 = vld [vmem:[%s6 + $0x30] sm:$0xf]
      %v1564 = vld [vmem:[%s6 + $0x34] sm:$0xf]
      %v1565 = vld [vmem:[%s6 + $0x38] sm:$0xf]
      %v1566 = vld [vmem:[%s6 + $0x3c] sm:$0xf]
      %v1567 = vld [vmem:[%s7] sm:$0x1]
      %v1569 = vperm.slane %v1567, 0
      %v1587 = vunpack.c.l.b16 %v1551
      %v1588 = vunpack.c.l.b16 %v1552
      %v1589 = vunpack.c.l.b16 %v1553
      %v1590 = vunpack.c.l.b16 %v1554
      %v1591 = vunpack.c.l.b16 %v1555
      %v1592 = vunpack.c.l.b16 %v1556
      %v1593 = vunpack.c.l.b16 %v1557
      %v1594 = vunpack.c.l.b16 %v1558
      %v1595 = vunpack.c.l.b16 %v1559
      %v1596 = vunpack.c.l.b16 %v1560
      %v1597 = vunpack.c.l.b16 %v1561
      %v1598 = vunpack.c.l.b16 %v1562
      %v1599 = vunpack.c.l.b16 %v1563
      %v1600 = vunpack.c.l.b16 %v1564
      %v1601 = vunpack.c.l.b16 %v1565
      %v1602 = vunpack.c.l.b16 %v1566
      %v1603 = vpack.c.b16 %v1588, %v1587
      %v1604 = vpack.c.b16 %v1590, %v1589
      %v1605 = vpack.c.b16 %v1592, %v1591
      %v1606 = vpack.c.b16 %v1594, %v1593
      %v1607 = vpack.c.b16 %v1596, %v1595
      %v1608 = vpack.c.b16 %v1598, %v1597
      %v1609 = vpack.c.b16 %v1600, %v1599
      %v1610 = vpack.c.b16 %v1602, %v1601
      %1619 = vmatpush.bf16.msra.mxu0 %v1610
      %1620 = vmatpush.bf16.msra.mxu0 %v1609
      %1621 = vmatpush.bf16.msra.mxu0 %v1608
      %1622 = vmatpush.bf16.msra.mxu0 %v1607
      %1623 = vmatpush.bf16.msra.mxu0 %v1606
      %1624 = vmatpush.bf16.msra.mxu0 %v1605
      %1625 = vmatpush.bf16.msra.mxu0 %v1604
      %1626 = vmatpush.bf16.msra.mxu0 %v1603
      %1627 = vmatmul.bf16.gmra.mxu0 %v1535
      %v1628 = vpop.f32.mrf.mxu0
      %v1629 = vadd.f32 %v1569, %v1628
      %v1630 = vpop.f32.mrf.mxu0
      %v1631 = vadd.f32 %v1569, %v1630
      %1632 = vmatmul.bf16.gmra.mxu0 %v1536
      %v1633 = vpop.f32.mrf.mxu0
      %v1634 = vadd.f32 %v1569, %v1633
      %v1635 = vpop.f32.mrf.mxu0
      %v1636 = vadd.f32 %v1569, %v1635
      %1637 = vmatmul.bf16.gmra.mxu0 %v1537
      %v1638 = vpop.f32.mrf.mxu0
      %v1639 = vadd.f32 %v1569, %v1638
      %v1640 = vpop.f32.mrf.mxu0
      %v1641 = vadd.f32 %v1569, %v1640
      %1642 = vmatmul.bf16.gmra.mxu0 %v1538
      %v1643 = vpop.f32.mrf.mxu0
      %v1644 = vadd.f32 %v1569, %v1643
      %v1645 = vpop.f32.mrf.mxu0
      %v1646 = vadd.f32 %v1569, %v1645
      %1647 = vmatmul.bf16.gmra.mxu0 %v1539
      %v1648 = vpop.f32.mrf.mxu0
      %v1649 = vadd.f32 %v1569, %v1648
      %v1650 = vpop.f32.mrf.mxu0
      %v1651 = vadd.f32 %v1569, %v1650
      %1652 = vmatmul.bf16.gmra.mxu0 %v1540
      %v1653 = vpop.f32.mrf.mxu0
      %v1654 = vadd.f32 %v1569, %v1653
      %v1655 = vpop.f32.mrf.mxu0
      %v1656 = vadd.f32 %v1569, %v1655
      %1657 = vmatmul.bf16.gmra.mxu0 %v1541
      %v1658 = vpop.f32.mrf.mxu0
      %v1659 = vadd.f32 %v1569, %v1658
      %v1660 = vpop.f32.mrf.mxu0
      %v1661 = vadd.f32 %v1569, %v1660
      %1662 = vmatmul.bf16.gmra.mxu0 %v1542
      %v1663 = vpop.f32.mrf.mxu0
      %v1664 = vadd.f32 %v1569, %v1663
      %v1665 = vpop.f32.mrf.mxu0
      %v1666 = vadd.f32 %v1569, %v1665
      %1667 = vmatmul.bf16.gmra.mxu0 %v1543
      %v1668 = vpop.f32.mrf.mxu0
      %v1669 = vadd.f32 %v1569, %v1668
      %v1670 = vpop.f32.mrf.mxu0
      %v1671 = vadd.f32 %v1569, %v1670
      %1672 = vmatmul.bf16.gmra.mxu0 %v1544
      %v1673 = vpop.f32.mrf.mxu0
      %v1674 = vadd.f32 %v1569, %v1673
      %v1675 = vpop.f32.mrf.mxu0
      %v1676 = vadd.f32 %v1569, %v1675
      %1677 = vmatmul.bf16.gmra.mxu0 %v1545
      %v1678 = vpop.f32.mrf.mxu0
      %v1679 = vadd.f32 %v1569, %v1678
      %v1680 = vpop.f32.mrf.mxu0
      %v1681 = vadd.f32 %v1569, %v1680
      %1682 = vmatmul.bf16.gmra.mxu0 %v1546
      %v1683 = vpop.f32.mrf.mxu0
      %v1684 = vadd.f32 %v1569, %v1683
      %v1685 = vpop.f32.mrf.mxu0
      %v1686 = vadd.f32 %v1569, %v1685
      %1687 = vmatmul.bf16.gmra.mxu0 %v1547
      %v1688 = vpop.f32.mrf.mxu0
      %v1689 = vadd.f32 %v1569, %v1688
      %v1690 = vpop.f32.mrf.mxu0
      %v1691 = vadd.f32 %v1569, %v1690
      %1692 = vmatmul.bf16.gmra.mxu0 %v1548
      %v1693 = vpop.f32.mrf.mxu0
      %v1694 = vadd.f32 %v1569, %v1693
      %v1695 = vpop.f32.mrf.mxu0
      %v1696 = vadd.f32 %v1569, %v1695
      %1697 = vmatmul.bf16.gmra.mxu0 %v1549
      %v1698 = vpop.f32.mrf.mxu0
      %v1699 = vadd.f32 %v1569, %v1698
      %v1700 = vpop.f32.mrf.mxu0
      %v1701 = vadd.f32 %v1569, %v1700
      %1702 = vmatmul.bf16.gmra.mxu0 %v1550
      %v1703 = vpop.f32.mrf.mxu0
      %v1704 = vadd.f32 %v1569, %v1703
      %v1705 = vpop.f32.mrf.mxu0
      %v1706 = vadd.f32 %v1569, %v1705
      %1707 = vdwg.mxu0
      %v1708 = vpack.c.bf16 %v1629, %v1629
      %v1709 = vpack.c.bf16 %v1631, %v1631
      %v1710 = vpack.c.bf16 %v1634, %v1634
      %v1711 = vpack.c.bf16 %v1636, %v1636
      %v1712 = vpack.c.bf16 %v1639, %v1639
      %v1713 = vpack.c.bf16 %v1641, %v1641
      %v1714 = vpack.c.bf16 %v1644, %v1644
      %v1715 = vpack.c.bf16 %v1646, %v1646
      %v1716 = vpack.c.bf16 %v1649, %v1649
      %v1717 = vpack.c.bf16 %v1651, %v1651
      %v1718 = vpack.c.bf16 %v1654, %v1654
      %v1719 = vpack.c.bf16 %v1656, %v1656
      %v1720 = vpack.c.bf16 %v1659, %v1659
      %v1721 = vpack.c.bf16 %v1661, %v1661
      %v1722 = vpack.c.bf16 %v1664, %v1664
      %v1723 = vpack.c.bf16 %v1666, %v1666
      %v1724 = vpack.c.bf16 %v1669, %v1669
      %v1725 = vpack.c.bf16 %v1671, %v1671
      %v1726 = vpack.c.bf16 %v1674, %v1674
      %v1727 = vpack.c.bf16 %v1676, %v1676
      %v1728 = vpack.c.bf16 %v1679, %v1679
      %v1729 = vpack.c.bf16 %v1681, %v1681
      %v1730 = vpack.c.bf16 %v1684, %v1684
      %v1731 = vpack.c.bf16 %v1686, %v1686
      %v1732 = vpack.c.bf16 %v1689, %v1689
      %v1733 = vpack.c.bf16 %v1691, %v1691
      %v1734 = vpack.c.bf16 %v1694, %v1694
      %v1735 = vpack.c.bf16 %v1696, %v1696
      %v1736 = vpack.c.bf16 %v1699, %v1699
      %v1737 = vpack.c.bf16 %v1701, %v1701
      %v1738 = vpack.c.bf16 %v1704, %v1704
      %v1739 = vpack.c.bf16 %v1706, %v1706
      %vm1740 = vcmask 60416
      %1741 = vst.msk [vmem:[%s373] sm:$0xf] %vm1740, %v1708
      %1742 = vst.msk [vmem:[%s373 + $0x4] sm:$0xf] %vm1740, %v1709
      %1743 = vst.msk [vmem:[%s373 + $0x8] sm:$0xf] %vm1740, %v1710
      %1744 = vst.msk [vmem:[%s373 + $0xc] sm:$0xf] %vm1740, %v1711
      %1745 = vst.msk [vmem:[%s373 + $0x10] sm:$0xf] %vm1740, %v1712
      %1746 = vst.msk [vmem:[%s373 + $0x14] sm:$0xf] %vm1740, %v1713
      %1747 = vst.msk [vmem:[%s373 + $0x18] sm:$0xf] %vm1740, %v1714
      %1748 = vst.msk [vmem:[%s373 + $0x1c] sm:$0xf] %vm1740, %v1715
      %1749 = vst.msk [vmem:[%s373 + $0x20] sm:$0xf] %vm1740, %v1716
      %1750 = vst.msk [vmem:[%s373 + $0x24] sm:$0xf] %vm1740, %v1717
      %1751 = vst.msk [vmem:[%s373 + $0x28] sm:$0xf] %vm1740, %v1718
      %1752 = vst.msk [vmem:[%s373 + $0x2c] sm:$0xf] %vm1740, %v1719
      %1753 = vst.msk [vmem:[%s373 + $0x30] sm:$0xf] %vm1740, %v1720
      %1754 = vst.msk [vmem:[%s373 + $0x34] sm:$0xf] %vm1740, %v1721
      %1755 = vst.msk [vmem:[%s373 + $0x38] sm:$0xf] %vm1740, %v1722
      %1756 = vst.msk [vmem:[%s373 + $0x3c] sm:$0xf] %vm1740, %v1723
      %1757 = vst.msk [vmem:[%s373 + $0x40] sm:$0xf] %vm1740, %v1724
      %1758 = vst.msk [vmem:[%s373 + $0x44] sm:$0xf] %vm1740, %v1725
      %1759 = vst.msk [vmem:[%s373 + $0x48] sm:$0xf] %vm1740, %v1726
      %1760 = vst.msk [vmem:[%s373 + $0x4c] sm:$0xf] %vm1740, %v1727
      %1761 = vst.msk [vmem:[%s373 + $0x50] sm:$0xf] %vm1740, %v1728
      %1762 = vst.msk [vmem:[%s373 + $0x54] sm:$0xf] %vm1740, %v1729
      %1763 = vst.msk [vmem:[%s373 + $0x58] sm:$0xf] %vm1740, %v1730
      %1764 = vst.msk [vmem:[%s373 + $0x5c] sm:$0xf] %vm1740, %v1731
      %1765 = vst.msk [vmem:[%s373 + $0x60] sm:$0xf] %vm1740, %v1732
      %1766 = vst.msk [vmem:[%s373 + $0x64] sm:$0xf] %vm1740, %v1733
      %1767 = vst.msk [vmem:[%s373 + $0x68] sm:$0xf] %vm1740, %v1734
      %1768 = vst.msk [vmem:[%s373 + $0x6c] sm:$0xf] %vm1740, %v1735
      %1769 = vst.msk [vmem:[%s373 + $0x70] sm:$0xf] %vm1740, %v1736
      %1770 = vst.msk [vmem:[%s373 + $0x74] sm:$0xf] %vm1740, %v1737
      %1771 = vst.msk [vmem:[%s373 + $0x78] sm:$0xf] %vm1740, %v1738
      %1772 = vst.msk [vmem:[%s373 + $0x7c] sm:$0xf] %vm1740, %v1739
      %s1773 = smul.u32 32, %s19
      %p1774 = scmp.lt.s32.totalorder %s1773, 63
      %s1775 = scalar_select %p1774, %s1773, 63
      %s1776 = smul.addr %s1775, 4
      %s1777 = scalar_lea.vmem %s8, %s1776
      // Predicated region
      $region53: #{segformer_segmentation_forward.30} parent=51 // pred_check
        %p1778 = pneg %p225
      $region54: #{segformer_segmentation_forward.30} parent=51 // pred_check_branch
        %1780 = sbr.rel (%p1778) target = $region56
      $region55: #{segformer_segmentation_forward.30} parent=51 // pred_region
        %s1781 = smul.u32 32, %s19
      $region56: #{segformer_segmentation_forward.30} parent=51 // pred_fallthru
        _
    $region52: #{segformer_segmentation_forward.30} parent=5 // pred_fallthru
      _
    %p1782 = scmp.le.s32.totalorder 2, %s14
    // Predicated region
    $region57: #{segformer_segmentation_forward.30} parent=5 // pred_check
      %p1783 = pneg %p1782
    $region58: #{segformer_segmentation_forward.30} parent=5 // pred_check_branch
      %1785 = sbr.rel (%p1783) target = $region60
    $region59: #{segformer_segmentation_forward.30} parent=5 // pred_region
      %s1786 = ssub.s32 %s14, 2
      // Predicated region
      $region61: #{segformer_segmentation_forward.30} parent=59 // pred_check
        %p1787 = pneg %p231
      $region62: #{segformer_segmentation_forward.30} parent=59 // pred_check_branch
        %1789 = sbr.rel (%p1787) target = $region64
      $region63: #{segformer_segmentation_forward.30} parent=59 // pred_region
        %s1790 = smul.u32 32, %s20
        %p1791 = scmp.lt.s32.totalorder %s1790, 63
        %s1792 = scalar_select %p1791, %s1790, 63
        %s1793 = smul.addr %s1792, 4
        %s1794 = scalar_lea.vmem %s8, %s1793
      $region64: #{segformer_segmentation_forward.30} parent=59 // pred_fallthru
        _
    $region60: #{segformer_segmentation_forward.30} parent=5 // pred_fallthru
      _
  $region6: #{segformer_segmentation_forward.30} parent=0 // loop_footer
    %s18 = sadd.s32 1, %s14
  $region7: #{segformer_segmentation_forward.30} parent=0 // loop_footer_branch
    %13 = sbr.rel target = $region3
  $region8: #{segformer_segmentation_forward.30} parent=0 // loop_exit
    _

// kernel: segformer_segmentation_forward.31
$region0: #{segformer_segmentation_forward.31}
  #allocation0 [shape = 'u32[]', space=smem, size = 0x4, offset = 0x4, fixed_abs, tag = 'smem constant byte address 0x4 - core index']
  #allocation1 [shape = 'u32[72,128]{1,0:T(1,128)}', space=vmem, size = 0x9000, scoped, tag = 'internal scratch']
  %s0 = inlined_call_operand.vmem [shape: bf16[64,16], index: 0, kind: input, shape index: {}]
  %s1 = inlined_call_operand.vmem [shape: bf16[16,64], index: 1, kind: input, shape index: {}]
  %s2 = inlined_call_operand.vmem [shape: bf16[2,8,16,16], index: 2, kind: input, shape index: {}]
  %s3 = inlined_call_operand.hbm [shape: f32[2,8,64,64], index: 3, kind: output, shape index: {}]
  %s4 = sld [smem:[#allocation0]]
  $region45: #{segformer_segmentation_forward.31} parent=0
    _
  %s6 = ssub.s32 1, %s4
  %s7 = scalar_select 0, %s6, %s4
  $region1: #{segformer_segmentation_forward.31} parent=0
    #allocation2 [shape = 'u8[65536]{0}', space=vmem, size = 0x10000, scoped, tag = 'output window, operand 0']
    #allocation3 [shape = 's32[2]{0}', space=sflag, size = 0x8, scoped, tag = 'scoped memory for segformer_segmentation_forward.31']
    %8 = vsyncpa [#allocation3], 0
    %s9 = scalar_lea.sflag [#allocation3], 1
    %10 = vsyncpa %s9, 0
    loop: start=0, step=1, limit=18
    $region2: #{segformer_segmentation_forward.31} parent=1 // loop_pre_header
      _
    $region3: #{segformer_segmentation_forward.31} parent=1 // loop_header
      %s12 = sphi 0, %s16
      %p13 = scmp.ge.s32.totalorder %s12, 18
      %s19 = sphi 0, %s38
      %s20 = sphi 0, %s34
      %s21 = sphi 0, %s30
      %s22 = sphi 0, %s19
      %s23 = sphi 0, %s20
      %s24 = sphi 0, %s21
      %s25 = sphi 0, %s22
      %s26 = sphi 0, %s23
      %s27 = sphi 0, %s24
      %s41 = sphi 0, %s43
      %s44 = sphi 0, %s41
      %s45 = sphi 0, %s44
      %s61 = sphi 0, %s45
      %s65 = sphi 0, %s65
      %s67 = sphi 0, %s65
      %s68 = sphi 0, %s67
      %s82 = sphi 0, %s68
      %s90 = sphi 0, %s92
      %s93 = sphi 0, %s90
      %s94 = sphi 0, %s93
      %s110 = sphi 0, %s94
      %s120 = sphi 0, %s122
      %s123 = sphi 0, %s120
      %s124 = sphi 0, %s123
      %s140 = sphi 0, %s124
    $region4: #{segformer_segmentation_forward.31} parent=1 // loop_header_branch
      %15 = sbr.rel (%p13) target = $region8
    $region5: #{segformer_segmentation_forward.31} parent=1 // loop_body
      %s17 = ssub.s32 %s12, 1
      %s18 = ssub.s32 %s12, 2
      %s28 = sadd.s32 1, %s21
      %p29 = scmp.ge.s32.totalorder %s28, 1
      %s30 = scalar_select %p29, 0, %s28
      %s31 = sadd.s32 1, %s20
      %s32 = scalar_select %p29, %s31, %s20
      %p33 = scmp.ge.s32.totalorder %s32, 8
      %s34 = scalar_select %p33, 0, %s32
      %s35 = sadd.s32 1, %s19
      %s36 = scalar_select %p33, %s35, %s19
      %p37 = scmp.ge.s32.totalorder %s36, 2
      %s38 = scalar_select %p37, 0, %s36
      %s39 = ssub.s32 %s21, %s30
      %p40 = scmp.eq.s32.totalorder %s39, 0
      %s42 = sadd.s32 %s41, 1
      %s43 = scalar_select %p40, %s41, %s42
      %p46 = pneg %p40
      %p47 = scmp.eq.s32.totalorder %s12, 15
      %p48 = por %p46, %p47
      %p49 = scmp.ne.s32.totalorder %s41, %s44
      %p50 = scmp.eq.s32.totalorder %s12, 0
      %p51 = por %p49, %p50
      %p52 = scmp.ne.s32.totalorder %s41, %s44
      %p53 = scmp.eq.s32.totalorder %s17, 15
      %p54 = por %p52, %p53
      %p55 = scmp.ne.s32.totalorder %s44, %s45
      %p56 = scmp.eq.s32.totalorder %s17, 0
      %p57 = por %p55, %p56
      %p58 = scmp.ne.s32.totalorder %s44, %s45
      %p59 = scmp.eq.s32.totalorder %s18, 15
      %p60 = por %p58, %p59
      %p62 = scmp.ne.s32.totalorder %s45, %s61
      %p63 = scmp.eq.s32.totalorder %s18, 0
      %p64 = por %p62, %p63
      %s66 = sadd.s32 %s65, 1
      %p69 = scmp.eq.s32.totalorder %s12, 15
      %p70 = scmp.ne.s32.totalorder %s65, %s67
      %p71 = scmp.eq.s32.totalorder %s12, 0
      %p72 = por %p70, %p71
      %p73 = scmp.ne.s32.totalorder %s65, %s67
      %p74 = scmp.eq.s32.totalorder %s17, 15
      %p75 = por %p73, %p74
      %p76 = scmp.ne.s32.totalorder %s67, %s68
      %p77 = scmp.eq.s32.totalorder %s17, 0
      %p78 = por %p76, %p77
      %p79 = scmp.ne.s32.totalorder %s67, %s68
      %p80 = scmp.eq.s32.totalorder %s18, 15
      %p81 = por %p79, %p80
      %p83 = scmp.ne.s32.totalorder %s68, %s82
      %p84 = scmp.eq.s32.totalorder %s18, 0
      %p85 = por %p83, %p84
      %s86 = ssub.s32 %s19, %s38
      %s87 = ssub.s32 %s20, %s34
      %s88 = sor.u32 %s86, %s87
      %p89 = scmp.eq.s32.totalorder %s88, 0
      %s91 = sadd.s32 %s90, 1
      %s92 = scalar_select %p89, %s90, %s91
      %p95 = pneg %p89
      %p96 = scmp.eq.s32.totalorder %s12, 15
      %p97 = por %p95, %p96
      %p98 = scmp.ne.s32.totalorder %s90, %s93
      %p99 = scmp.eq.s32.totalorder %s12, 0
      %p100 = por %p98, %p99
      %p101 = scmp.ne.s32.totalorder %s90, %s93
      %p102 = scmp.eq.s32.totalorder %s17, 15
      %p103 = por %p101, %p102
      %p104 = scmp.ne.s32.totalorder %s93, %s94
      %p105 = scmp.eq.s32.totalorder %s17, 0
      %p106 = por %p104, %p105
      %p107 = scmp.ne.s32.totalorder %s93, %s94
      %p108 = scmp.eq.s32.totalorder %s18, 15
      %p109 = por %p107, %p108
      %p111 = scmp.ne.s32.totalorder %s94, %s110
      %p112 = scmp.eq.s32.totalorder %s18, 0
      %p113 = por %p111, %p112
      %s114 = ssub.s32 %s19, %s38
      %s115 = ssub.s32 %s20, %s34
      %s116 = sor.u32 %s114, %s115
      %s117 = ssub.s32 %s21, %s30
      %s118 = sor.u32 %s116, %s117
      %p119 = scmp.eq.s32.totalorder %s118, 0
      %s121 = sadd.s32 %s120, 1
      %s122 = scalar_select %p119, %s120, %s121
      %p125 = pneg %p119
      %p126 = scmp.eq.s32.totalorder %s12, 15
      %p127 = por %p125, %p126
      %p128 = scmp.ne.s32.totalorder %s120, %s123
      %p129 = scmp.eq.s32.totalorder %s12, 0
      %p130 = por %p128, %p129
      %p131 = scmp.ne.s32.totalorder %s120, %s123
      %p132 = scmp.eq.s32.totalorder %s17, 15
      %p133 = por %p131, %p132
      %p134 = scmp.ne.s32.totalorder %s123, %s124
      %p135 = scmp.eq.s32.totalorder %s17, 0
      %p136 = por %p134, %p135
      %p137 = scmp.ne.s32.totalorder %s123, %s124
      %p138 = scmp.eq.s32.totalorder %s18, 15
      %p139 = por %p137, %p138
      %p141 = scmp.ne.s32.totalorder %s124, %s140
      %p142 = scmp.eq.s32.totalorder %s18, 0
      %p143 = por %p141, %p142
      %p144 = scmp.le.s32.totalorder 1, %s12
      %p145 = scmp.lt.s32.totalorder %s12, 17
      %p146 = pnand %p144, %p145
      %p147 = pneg %p146
      // Predicated region
      $region9: #{segformer_segmentation_forward.31} parent=5 // pred_check
        _
      $region10: #{segformer_segmentation_forward.31} parent=5 // pred_check_branch
        %149 = sbr.rel (%p146) target = $region12
      $region11: #{segformer_segmentation_forward.31} parent=5 // pred_region
        %s150 = ssub.s32 %s12, 1
        // Predicated region
        $region13: #{segformer_segmentation_forward.31} parent=11 // pred_check
          %p151 = pneg %p57
        $region14: #{segformer_segmentation_forward.31} parent=11 // pred_check_branch
          %153 = sbr.rel (%p151) target = $region16
        $region15: #{segformer_segmentation_forward.31} parent=11 // pred_region
          %s154 = smul.u32 8, %s24
          %p155 = scmp.lt.s32.totalorder %s154, 7
          %s156 = scalar_select %p155, %s154, 7
          %s157 = smul.addr %s156, 4
          %s158 = scalar_lea.vmem %s0, %s157
          %s159 = smul.u32 8, %s24
        $region16: #{segformer_segmentation_forward.31} parent=11 // pred_fallthru
          _
        // Predicated region
        $region17: #{segformer_segmentation_forward.31} parent=11 // pred_check
          %p160 = pneg %p78
        $region18: #{segformer_segmentation_forward.31} parent=11 // pred_check_branch
          %162 = sbr.rel (%p160) target = $region20
        $region19: #{segformer_segmentation_forward.31} parent=11 // pred_region
          _
        $region20: #{segformer_segmentation_forward.31} parent=11 // pred_fallthru
          _
      $region12: #{segformer_segmentation_forward.31} parent=5 // pred_fallthru
        _
      %p163 = scmp.lt.s32.totalorder %s12, 16
      // Predicated region
      $region21: #{segformer_segmentation_forward.31} parent=5 // pred_check
        %p164 = pneg %p163
      $region22: #{segformer_segmentation_forward.31} parent=5 // pred_check_branch
        %166 = sbr.rel (%p164) target = $region24
      $region23: #{segformer_segmentation_forward.31} parent=5 // pred_region
        // Predicated region
        $region25: #{segformer_segmentation_forward.31} parent=23 // pred_check
          %p167 = pneg %p100
        $region26: #{segformer_segmentation_forward.31} parent=23 // pred_check_branch
          %169 = sbr.rel (%p167) target = $region28
        $region27: #{segformer_segmentation_forward.31} parent=23 // pred_region
          %p170 = scmp.lt.s32.totalorder %s19, 1
          %s171 = scalar_select %p170, %s19, 1
          %p172 = scmp.lt.s32.totalorder %s20, 7
          %s173 = scalar_select %p172, %s20, 7
          %s174 = smul.addr %s173, 2
          %s175 = smul.addr %s171, 16
          %s176 = sadd.s32 %s174, %s175
          %s177 = smul.addr %s176, 4
          %s178 = scalar_lea.vmem %s2, %s177
        $region28: #{segformer_segmentation_forward.31} parent=23 // pred_fallthru
          _
      $region24: #{segformer_segmentation_forward.31} parent=5 // pred_fallthru
        _
      %p179 = scmp.le.s32.totalorder 1, %s12
      %p180 = scmp.lt.s32.totalorder %s12, 17
      %p181 = pnand %p179, %p180
      %p182 = pneg %p181
      // Predicated region
      $region29: #{segformer_segmentation_forward.31} parent=5 // pred_check
        _
      $region30: #{segformer_segmentation_forward.31} parent=5 // pred_check_branch
        %184 = sbr.rel (%p181) target = $region32
      $region31: #{segformer_segmentation_forward.31} parent=5 // pred_region
        %s185 = ssub.s32 %s12, 1
        %s186 = smul.u32 8, %s24
        %p187 = scmp.lt.s32.totalorder %s186, 7
        %s188 = scalar_select %p187, %s186, 7
        %s189 = smul.addr %s188, 4
        %s190 = scalar_lea.vmem %s0, %s189
        %p191 = pneg %p57
        %p192 = pneg %p54
        %p193 = pneg %p78
        %p194 = pneg %p75
        %p195 = scmp.lt.s32.totalorder %s22, 1
        %s196 = scalar_select %p195, %s22, 1
        %p197 = scmp.lt.s32.totalorder %s23, 7
        %s198 = scalar_select %p197, %s23, 7
        %s199 = smul.addr %s198, 2
        %s200 = smul.addr %s196, 16
        %s201 = sadd.s32 %s199, %s200
        %s202 = smul.addr %s201, 4
        %s203 = scalar_lea.vmem %s2, %s202
        %p204 = pneg %p106
        %p205 = pneg %p103
        %p206 = pneg %p136
        %p207 = pneg %p133
        %s208 = sand.u32 %s123, 1
        %s209 = scalar_lea.sflag [#allocation3], %s208
        %s210 = sand.u32 %s123, 1
        %s211 = smul.addr %s210, 64
        %s212 = scalar_lea.vmem [#allocation2], %s211
        %s213 = smul.u32 8, %s24
        %p214 = scmp.lt.s32.totalorder %s213, 7
        %s215 = scalar_select %p214, %s213, 7
        %s216 = smul.addr %s215, 4
        %s217 = scalar_lea.vmem %s0, %s216
        %s218 = smul.u32 8, %s24
        %p219 = scmp.lt.s32.totalorder %s22, 1
        %s220 = scalar_select %p219, %s22, 1
        %p221 = scmp.lt.s32.totalorder %s23, 7
        %s222 = scalar_select %p221, %s23, 7
        %s223 = smul.addr %s222, 2
        %s224 = smul.addr %s220, 16
        %s225 = sadd.s32 %s223, %s224
        %s226 = smul.addr %s225, 4
        %s227 = scalar_lea.vmem %s2, %s226
        %s228 = smul.u32 8, %s24
        %v230 = vld [vmem:[%s217] sm:$0xf]
        %v231 = vld [vmem:[%s217 + $0x4] sm:$0xf]
        %v232 = vld [vmem:[%s217 + $0x8] sm:$0xf]
        %v233 = vld [vmem:[%s217 + $0xc] sm:$0xf]
        %v234 = vld [vmem:[%s217 + $0x10] sm:$0xf]
        %v235 = vld [vmem:[%s217 + $0x14] sm:$0xf]
        %v236 = vld [vmem:[%s217 + $0x18] sm:$0xf]
        %v237 = vld [vmem:[%s217 + $0x1c] sm:$0xf]
        %v238 = vld [vmem:[%s227] sm:$0xf]
        %v239 = vld [vmem:[%s227 + $0x4] sm:$0xf]
        %v248 = vunpack.c.l.b16 %v230
        %v249 = vunpack.c.l.b16 %v231
        %v250 = vunpack.c.l.b16 %v232
        %v251 = vunpack.c.l.b16 %v233
        %v252 = vunpack.c.l.b16 %v234
        %v253 = vunpack.c.l.b16 %v235
        %v254 = vunpack.c.l.b16 %v236
        %v255 = vunpack.c.l.b16 %v237
        %v256 = vpack.c.b16 %v249, %v248
        %v257 = vpack.c.b16 %v251, %v250
        %v258 = vpack.c.b16 %v253, %v252
        %v259 = vpack.c.b16 %v255, %v254
        %v262 = vunpack.c.l.b16 %v238
        %v263 = vunpack.c.l.b16 %v239
        %v264 = vpack.c.b16 %v263, %v262
        %vm266 = vcmask 130048
        %v268 = vsel %vm266, %v256, 0
        %v271 = vsel %vm266, %v257, 0
        %v274 = vsel %vm266, %v258, 0
        %v277 = vsel %vm266, %v259, 0
        %279 = vmatpush.bf16.msra.mxu0 0
        %280 = vmatpush.bf16.msra.mxu0 0
        %281 = vmatpush.bf16.msra.mxu0 0
        %282 = vmatpush.bf16.msra.mxu0 0
        %283 = vmatpush.bf16.msra.mxu0 0
        %284 = vmatpush.bf16.msra.mxu0 0
        %285 = vmatpush.bf16.msra.mxu0 0
        %286 = vmatpush.bf16.msra.mxu0 %v264
        %287 = vmatmul.bf16.gmra.mxu0 %v268
        %v288 = vpop.f32.mrf.mxu0
        %v289 = vadd.f32 0.0, %v288
        %v290 = vpop.f32.mrf.mxu0
        %v291 = vadd.f32 0.0, %v290
        %292 = vmatmul.bf16.gmra.mxu0 %v271
        %v293 = vpop.f32.mrf.mxu0
        %v294 = vadd.f32 0.0, %v293
        %v295 = vpop.f32.mrf.mxu0
        %v296 = vadd.f32 0.0, %v295
        %297 = vmatmul.bf16.gmra.mxu0 %v274
        %v298 = vpop.f32.mrf.mxu0
        %v299 = vadd.f32 0.0, %v298
        %v300 = vpop.f32.mrf.mxu0
        %v301 = vadd.f32 0.0, %v300
        %302 = vmatmul.bf16.gmra.mxu0 %v277
        %v303 = vpop.f32.mrf.mxu0
        %v304 = vadd.f32 0.0, %v303
        %v305 = vpop.f32.mrf.mxu0
        %v306 = vadd.f32 0.0, %v305
        %307 = vdwg.mxu0
        %v308 = vpack.c.bf16 %v291, %v289
        %v309 = vpack.c.bf16 %v296, %v294
        %v310 = vpack.c.bf16 %v301, %v299
        %v311 = vpack.c.bf16 %v306, %v304
        %v312 = vld [vmem:[%s1] sm:$0xf]
        %v313 = vld [vmem:[%s1 + $0x4] sm:$0xf]
        %v316 = vunpack.c.l.b16 %v312
        %v317 = vunpack.c.l.b16 %v313
        %v318 = vpack.c.b16 %v317, %v316
        %v321 = vsel %vm266, %v308, 0
        %v324 = vsel %vm266, %v309, 0
        %v327 = vsel %vm266, %v310, 0
        %v330 = vsel %vm266, %v311, 0
        %332 = vmatpush.bf16.msra.mxu0 0
        %333 = vmatpush.bf16.msra.mxu0 0
        %334 = vmatpush.bf16.msra.mxu0 0
        %335 = vmatpush.bf16.msra.mxu0 0
        %336 = vmatpush.bf16.msra.mxu0 0
        %337 = vmatpush.bf16.msra.mxu0 0
        %338 = vmatpush.bf16.msra.mxu0 0
        %339 = vmatpush.bf16.msra.mxu0 %v318
        %340 = vmatmul.bf16.gmra.mxu0 %v321
        %v341 = vpop.f32.mrf.mxu0
        %v342 = vadd.f32 0.0, %v341
        %v343 = vpop.f32.mrf.mxu0
        %v344 = vadd.f32 0.0, %v343
        %345 = vmatmul.bf16.gmra.mxu0 %v324
        %v346 = vpop.f32.mrf.mxu0
        %v347 = vadd.f32 0.0, %v346
        %v348 = vpop.f32.mrf.mxu0
        %v349 = vadd.f32 0.0, %v348
        %350 = vmatmul.bf16.gmra.mxu0 %v327
        %v351 = vpop.f32.mrf.mxu0
        %v352 = vadd.f32 0.0, %v351
        %v353 = vpop.f32.mrf.mxu0
        %v354 = vadd.f32 0.0, %v353
        %355 = vmatmul.bf16.gmra.mxu0 %v330
        %v356 = vpop.f32.mrf.mxu0
        %v357 = vadd.f32 0.0, %v356
        %v358 = vpop.f32.mrf.mxu0
        %v359 = vadd.f32 0.0, %v358
        %360 = vdwg.mxu0
        %vm361 = vcmask 523264
        %362 = vst.msk [vmem:[%s212] sm:$0xff] %vm361, %v342
        %363 = vst.msk [vmem:[%s212 + $0x8] sm:$0xff] %vm361, %v344
        %364 = vst.msk [vmem:[%s212 + $0x10] sm:$0xff] %vm361, %v347
        %365 = vst.msk [vmem:[%s212 + $0x18] sm:$0xff] %vm361, %v349
        %366 = vst.msk [vmem:[%s212 + $0x20] sm:$0xff] %vm361, %v352
        %367 = vst.msk [vmem:[%s212 + $0x28] sm:$0xff] %vm361, %v354
        %368 = vst.msk [vmem:[%s212 + $0x30] sm:$0xff] %vm361, %v357
        %369 = vst.msk [vmem:[%s212 + $0x38] sm:$0xff] %vm361, %v359
        %s370 = sand.u32 %s123, 1
        %s371 = scalar_lea.sflag [#allocation3], %s370
        %s372 = sand.u32 %s123, 1
        %s373 = smul.addr %s372, 64
        %s374 = scalar_lea.vmem [#allocation2], %s373
        // Predicated region
        $region33: #{segformer_segmentation_forward.31} parent=31 // pred_check
          %p375 = pneg %p133
        $region34: #{segformer_segmentation_forward.31} parent=31 // pred_check_branch
          %377 = sbr.rel (%p375) target = $region36
        $region35: #{segformer_segmentation_forward.31} parent=31 // pred_region
          %s378 = smul.u32 8, %s24
          %380 = vsyncadd %s371, 0
          %s381 = smul.addr %s23, 8
          %s382 = sadd.s32 %s378, %s381
          %s383 = smul.addr %s22, 64
          %s384 = sadd.s32 %s382, %s383
          %s385 = smul.addr %s384, 8
          %s386 = scalar_lea.hbm %s3, %s385
          %s387 = sshll.u32 %s374, 4
          %s388 = int_to_ptr.vmem [resolvable:$true] %s387
          %s389 = sshll.u32 %s386, 4
          %s390 = int_to_ptr.hbm [resolvable:$true] %s389
          %395 = dma.vmem_to_hbm [thread:$0]  %s388, 1024, %s390, %s371, 128, 128, 8
        $region36: #{segformer_segmentation_forward.31} parent=31 // pred_fallthru
          _
      $region32: #{segformer_segmentation_forward.31} parent=5 // pred_fallthru
        _
      %p396 = scmp.le.s32.totalorder 2, %s12
      // Predicated region
      $region37: #{segformer_segmentation_forward.31} parent=5 // pred_check
        %p397 = pneg %p396
      $region38: #{segformer_segmentation_forward.31} parent=5 // pred_check_branch
        %399 = sbr.rel (%p397) target = $region40
      $region39: #{segformer_segmentation_forward.31} parent=5 // pred_region
        %s400 = ssub.s32 %s12, 2
        // Predicated region
        $region41: #{segformer_segmentation_forward.31} parent=39 // pred_check
          %p401 = pneg %p139
        $region42: #{segformer_segmentation_forward.31} parent=39 // pred_check_branch
          %403 = sbr.rel (%p401) target = $region44
        $region43: #{segformer_segmentation_forward.31} parent=39 // pred_region
          %s404 = sand.u32 %s124, 1
          %s405 = scalar_lea.sflag [#allocation3], %s404
          %s406 = sand.u32 %s124, 1
          %s407 = smul.addr %s406, 64
          %s408 = scalar_lea.vmem [#allocation2], %s407
          %410 = dma.done %s405, 1024
        $region44: #{segformer_segmentation_forward.31} parent=39 // pred_fallthru
          _
      $region40: #{segformer_segmentation_forward.31} parent=5 // pred_fallthru
        _
    $region6: #{segformer_segmentation_forward.31} parent=1 // loop_footer
      %s16 = sadd.s32 1, %s12
    $region7: #{segformer_segmentation_forward.31} parent=1 // loop_footer_branch
      %11 = sbr.rel target = $region3
    $region8: #{segformer_segmentation_forward.31} parent=1 // loop_exit
      _
    %411 = vsyncpa [#allocation3], 1
    %s412 = scalar_lea.sflag [#allocation3], 1
    %413 = vsyncpa %s412, 1

</llo_original>
